<compile_context>
chip_gen: v7x
topology: tpu7x:2x2x1
jax: 0.10.0
libtpu: 0.0.40
codegen_flags: <defaults>
</compile_context>

<pallas_src>
import functools

import jax
import jax.numpy as jnp
from jax.experimental import pallas as pl
from jax.experimental.pallas import tpu as pltpu

IMG_SIZE = 64
D_IN = IMG_SIZE * IMG_SIZE            # 4096
H1, H2, H3, H4, D_OUT = 2048, 1024, 512, 256, 1
TK = 1024                             # K-tile of the first (largest) Linear
N_K = D_IN // TK                      # 4 grid steps
VMEM_LIMIT_BYTES = 32 * 1024 * 1024   # actual footprint ~13.5 MiB (bf16 weights)


def _leaky_relu(x, slope=0.2):
    return jnp.where(x > 0, x, slope * x)


def disc_kernel(x_ref, w1_ref, b1_ref, w2_hbm, b2_ref, w3_hbm, b3_ref,
                w4_hbm, b4_ref, w5_ref, b5_ref, out_ref,
                acc_ref, w2_vmem, w3_vmem, w4_vmem, copy_sem):
    """Grid axis 0 tiles the 4096-wide reduction of the first Linear.

    acc_ref : (B, 2048) f32 accumulator for layer-1 partial products.
    w2/3/4_vmem : bf16 resident weights, single-copied from HBM (started at the
    first grid step, waited in the last-step epilogue where layers 2-5 run).
    """
    k = pl.program_id(0)
    n_k = pl.num_programs(0)

    @pl.when(k == 0)
    def _():
        acc_ref[...] = jnp.zeros_like(acc_ref)
        out_ref[...] = jnp.zeros_like(out_ref)
        # Single-copy DMAs of the resident layer-2..4 weights (one buffer each,
        # deterministic on every build; W1 stream keeps pipeline priority).
        pltpu.make_async_copy(w2_hbm, w2_vmem, copy_sem.at[0]).start()
        pltpu.make_async_copy(w3_hbm, w3_vmem, copy_sem.at[1]).start()
        pltpu.make_async_copy(w4_hbm, w4_vmem, copy_sem.at[2]).start()

    # Layer 1 partial:  x[:, k*TK:(k+1)*TK] @ W1[k*TK:(k+1)*TK, :]
    # bf16 x bf16 MXU matmul with f32 accumulation.
    acc_ref[...] += jnp.dot(x_ref[...].astype(jnp.bfloat16), w1_ref[...],
                            preferred_element_type=jnp.float32)

    @pl.when(k == n_k - 1)
    def _():
        pltpu.make_async_copy(w2_hbm, w2_vmem, copy_sem.at[0]).wait()
        pltpu.make_async_copy(w3_hbm, w3_vmem, copy_sem.at[1]).wait()
        pltpu.make_async_copy(w4_hbm, w4_vmem, copy_sem.at[2]).wait()

        h1 = _leaky_relu(acc_ref[...] + b1_ref[...])          # Dropout -> identity
        h2 = _leaky_relu(jnp.dot(h1.astype(jnp.bfloat16), w2_vmem[...],
                                 preferred_element_type=jnp.float32) + b2_ref[...])
        h3 = _leaky_relu(jnp.dot(h2.astype(jnp.bfloat16), w3_vmem[...],
                                 preferred_element_type=jnp.float32) + b3_ref[...])
        h4 = _leaky_relu(jnp.dot(h3.astype(jnp.bfloat16), w4_vmem[...],
                                 preferred_element_type=jnp.float32) + b4_ref[...])
        # Linear(256, 1): N=1 matmul wastes an MXU pass; do it on the VPU/XLU
        # with W5 kept in PyTorch layout (1, 256) f32.
        logits = jnp.sum(h4 * w5_ref[...], axis=-1, keepdims=True) + b5_ref[...]
        out_ref[...] = jax.nn.sigmoid(logits).astype(out_ref.dtype)


def _build_pallas_call(B):
    flops = 2 * B * (D_IN * H1 + H1 * H2 + H2 * H3 + H3 * H4 + H4 * D_OUT)
    bytes_accessed = (
        2 * (D_IN * H1 + H1 * H2 + H2 * H3 + H3 * H4)              # bf16 weights
        + 4 * (H1 + H2 + H3 + H4 + D_OUT + D_OUT * H4)             # f32 biases + W5
        + 4 * B * D_IN + 4 * B * D_OUT)                            # x in, out

    grid_spec = pltpu.PrefetchScalarGridSpec(
        num_scalar_prefetch=0,
        grid=(N_K,),
        in_specs=[
            pl.BlockSpec((B, TK), lambda k: (0, k)),      # x K-tile (32 KB/step)
            pl.BlockSpec((TK, H1), lambda k: (k, 0)),     # W1 K-tile (bf16, streamed)
            pl.BlockSpec((1, H1), lambda k: (0, 0)),      # b1 (f32)
            pl.BlockSpec(memory_space=pl.ANY),            # W2 (bf16, HBM -> manual DMA)
            pl.BlockSpec((1, H2), lambda k: (0, 0)),      # b2
            pl.BlockSpec(memory_space=pl.ANY),            # W3 (bf16, HBM -> manual DMA)
            pl.BlockSpec((1, H3), lambda k: (0, 0)),      # b3
            pl.BlockSpec(memory_space=pl.ANY),            # W4 (bf16, HBM -> manual DMA)
            pl.BlockSpec((1, H4), lambda k: (0, 0)),      # b4
            pl.BlockSpec((D_OUT, H4), lambda k: (0, 0)),  # W5 (PyTorch layout (1,256), f32)
            pl.BlockSpec((1, D_OUT), lambda k: (0, 0)),   # b5
        ],
        out_specs=pl.BlockSpec((B, D_OUT), lambda k: (0, 0)),
        scratch_shapes=[
            pltpu.VMEM((B, H1), jnp.float32),             # layer-1 accumulator
            pltpu.VMEM((H1, H2), jnp.bfloat16),           # resident W2 (4 MiB)
            pltpu.VMEM((H2, H3), jnp.bfloat16),           # resident W3 (1 MiB)
            pltpu.VMEM((H3, H4), jnp.bfloat16),           # resident W4 (256 KiB)
            pltpu.SemaphoreType.DMA((3,)),
        ],
    )

    return pl.pallas_call(
        disc_kernel,
        out_shape=jax.ShapeDtypeStruct((B, D_OUT), jnp.float32),
        grid_spec=grid_spec,
        compiler_params=pltpu.CompilerParams(
            dimension_semantics=("arbitrary",),           # K reduction axis
            vmem_limit_bytes=VMEM_LIMIT_BYTES,
        ),
        cost_estimate=pl.CostEstimate(
            flops=flops, transcendentals=B, bytes_accessed=bytes_accessed),
    )


@jax.jit
def discriminator_forward(x_nchw, params):
    """x_nchw: (B, 1, 64, 64) float32 -> (B, 1) float32 (eval-mode semantics)."""
    B = x_nchw.shape[0]
    x2d = x_nchw.reshape(B, D_IN)     # nn.Flatten (row-major, matches PyTorch)
    return _build_pallas_call(B)(x2d, *params)


def init_params(key):
    """Deterministic synthetic f32 params matching the nn.Linear layers.

    W1..W4 stored as (in, out); W5 kept in PyTorch layout (1, 256); biases (1, out).
    """
    params = []
    for din, dout in [(D_IN, H1), (H1, H2), (H2, H3), (H3, H4)]:
        kw, kb, key = jax.random.split(key, 3)
        bound = 1.0 / jnp.sqrt(din)   # same scale as PyTorch default init
        params.append(jax.random.uniform(kw, (din, dout), jnp.float32, -bound, bound))
        params.append(jax.random.uniform(kb, (1, dout), jnp.float32, -bound, bound))
    kw, kb, key = jax.random.split(key, 3)
    bound = 1.0 / jnp.sqrt(H4)
    params.append(jax.random.uniform(kw, (D_OUT, H4), jnp.float32, -bound, bound))
    params.append(jax.random.uniform(kb, (1, D_OUT), jnp.float32, -bound, bound))
    return tuple(params)


def to_kernel_params(params_f32):
    """Cast the bulk weights W1..W4 to bf16 (HBM-byte halving); b*, W5 stay f32."""
    w1, b1, w2, b2, w3, b3, w4, b4, w5, b5 = params_f32
    c = lambda w: w.astype(jnp.bfloat16)
    return (c(w1), b1, c(w2), b2, c(w3), b3, c(w4), b4, w5, b5)


def reference_forward(x_nchw, kernel_params):
    """Pure-JAX reference mirroring the kernel's mixed precision (bf16 weights,
    bf16 matmul inputs, f32 accumulation, eval-mode dropout)."""
    w1, b1, w2, b2, w3, b3, w4, b4, w5, b5 = kernel_params
    h = x_nchw.reshape(x_nchw.shape[0], D_IN)
    for w, b in [(w1, b1), (w2, b2), (w3, b3), (w4, b4)]:
        h = jnp.dot(h.astype(jnp.bfloat16), w,
                    preferred_element_type=jnp.float32) + b
        h = jnp.where(h > 0, h, 0.2 * h)
    return jax.nn.sigmoid(h @ w5.T + b5)


if __name__ == "__main__":
    key = jax.random.PRNGKey(0)
    kx, kp = jax.random.split(key)

    # Linear(4096, 2048) pins the spatial size to 1x64x64.  Batch kept small for
    # the demo; larger B (64-256) amortizes the weight stream almost for free.
    B = 8
    x = jax.random.normal(kx, (B, 1, IMG_SIZE, IMG_SIZE), jnp.float32)  # NCHW
    params = to_kernel_params(init_params(kp))

    out = jax.block_until_ready(discriminator_forward(x, params))
    ref = reference_forward(x, params)

    assert out.shape == (B, D_OUT), out.shape
    assert bool(jnp.all(jnp.isfinite(out)))
    max_err = float(jnp.max(jnp.abs(out - ref)))
    # Tolerance relaxed vs. the old 1e-5 f32 check because weights now stream in
    # bf16; the reference uses the same bf16 weights + f32 accumulation, so the
    # remaining delta is only reassociation / activation-cast noise.
    assert max_err < 1e-3, max_err

    print("KERNEL_OK")
</pallas_src>

<mosaic_0001>
module attributes {stable_mosaic.version = 11 : i64} {
  func.func @disc_kernel(%arg0: i32, %arg1: memref<8x1024xf32, #tpu.memory_space<vmem>>, %arg2: memref<1024x2048xbf16, #tpu.memory_space<vmem>>, %arg3: memref<1x2048xf32, #tpu.memory_space<vmem>>, %arg4: memref<2048x1024xbf16, #tpu.memory_space<any>>, %arg5: memref<1x1024xf32, #tpu.memory_space<vmem>>, %arg6: memref<1024x512xbf16, #tpu.memory_space<any>>, %arg7: memref<1x512xf32, #tpu.memory_space<vmem>>, %arg8: memref<512x256xbf16, #tpu.memory_space<any>>, %arg9: memref<1x256xf32, #tpu.memory_space<vmem>>, %arg10: memref<1x256xf32, #tpu.memory_space<vmem>>, %arg11: memref<1x1xf32, #tpu.memory_space<vmem>>, %arg12: memref<8x1xf32, #tpu.memory_space<vmem>>, %arg13: memref<8x2048xf32, #tpu.memory_space<vmem>>, %arg14: memref<2048x1024xbf16, #tpu.memory_space<vmem>>, %arg15: memref<1024x512xbf16, #tpu.memory_space<vmem>>, %arg16: memref<512x256xbf16, #tpu.memory_space<vmem>>, %arg17: memref<3x!tpu.dma_semaphore, #tpu.memory_space<semaphore_mem>>) attributes {dimension_semantics = [#tpu.dimension_semantics<arbitrary>], iteration_bounds = array<i64: 4>, scalar_prefetch = 0 : i64, scratch_operands = 5 : i64, tpu.core_type = #tpu.core_type<tc>, window_params = [{transform_indices = @transform_0, window_bounds = array<i64: 8, 1024>}, {transform_indices = @transform_1, window_bounds = array<i64: 1024, 2048>}, {pipeline_mode = #tpu.pipeline_mode<synchronous>, transform_indices = @transform_2, window_bounds = array<i64: 1, 2048>}, {}, {pipeline_mode = #tpu.pipeline_mode<synchronous>, transform_indices = @transform_4, window_bounds = array<i64: 1, 1024>}, {}, {pipeline_mode = #tpu.pipeline_mode<synchronous>, transform_indices = @transform_6, window_bounds = array<i64: 1, 512>}, {}, {pipeline_mode = #tpu.pipeline_mode<synchronous>, transform_indices = @transform_8, window_bounds = array<i64: 1, 256>}, {pipeline_mode = #tpu.pipeline_mode<synchronous>, transform_indices = @transform_9, window_bounds = array<i64: 1, 256>}, {pipeline_mode = #tpu.pipeline_mode<synchronous>, transform_indices = @transform_10, window_bounds = array<i64: 1, 1>}, {pipeline_mode = #tpu.pipeline_mode<synchronous>, transform_indices = @transform_11, window_bounds = array<i64: 8, 1>}]} {
    %c0_i32 = arith.constant 0 : i32
    %0 = arith.cmpi eq, %arg0, %c0_i32 : i32
    %1 = arith.extui %0 : i1 to i32
    %c0_i32_0 = arith.constant 0 : i32
    %2 = arith.cmpi ne, %1, %c0_i32_0 : i32
    scf.if %2 {
      %cst_9 = arith.constant 0.000000e+00 : f32
      %13 = vector.broadcast %cst_9 : f32 to vector<8x2048xf32>
      %c0_10 = arith.constant 0 : index
      %c0_11 = arith.constant 0 : index
      %14 = vector.load %arg13[%c0_10, %c0_11] : memref<8x2048xf32, #tpu.memory_space<vmem>>, vector<8x2048xf32>
      tpu.vector_store %arg13[%c0_10, %c0_11], %13 {strides = array<i32>} : memref<8x2048xf32, #tpu.memory_space<vmem>>, vector<8x2048xf32>,
      %cst_12 = arith.constant 0.000000e+00 : f32
      %15 = vector.broadcast %cst_12 : f32 to vector<8x1xf32>
      %c0_13 = arith.constant 0 : index
      %c0_14 = arith.constant 0 : index
      %16 = vector.load %arg12[%c0_13, %c0_14] : memref<8x1xf32, #tpu.memory_space<vmem>>, vector<8x1xf32>
      tpu.vector_store %arg12[%c0_13, %c0_14], %15 {strides = array<i32>} : memref<8x1xf32, #tpu.memory_space<vmem>>, vector<8x1xf32>,
      %c0_i32_15 = arith.constant 0 : i32
      %17 = tpu.memref_slice %arg17[%c0_i32_15] : memref<3x!tpu.dma_semaphore, #tpu.memory_space<semaphore_mem>> -> memref<1x!tpu.dma_semaphore, #tpu.memory_space<semaphore_mem>>
      %18 = tpu.memref_squeeze %17 : memref<1x!tpu.dma_semaphore, #tpu.memory_space<semaphore_mem>> -> memref<!tpu.dma_semaphore, #tpu.memory_space<semaphore_mem>>
      tpu.enqueue_dma source(%arg4 : memref<2048x1024xbf16, #tpu.memory_space<any>>) target(%arg14 : memref<2048x1024xbf16, #tpu.memory_space<vmem>>) target_semaphore(%18 : memref<!tpu.dma_semaphore, #tpu.memory_space<semaphore_mem>>)
      %c1_i32 = arith.constant 1 : i32
      %19 = tpu.memref_slice %arg17[%c1_i32] : memref<3x!tpu.dma_semaphore, #tpu.memory_space<semaphore_mem>> -> memref<1x!tpu.dma_semaphore, #tpu.memory_space<semaphore_mem>>
      %20 = tpu.memref_squeeze %19 : memref<1x!tpu.dma_semaphore, #tpu.memory_space<semaphore_mem>> -> memref<!tpu.dma_semaphore, #tpu.memory_space<semaphore_mem>>
      tpu.enqueue_dma source(%arg6 : memref<1024x512xbf16, #tpu.memory_space<any>>) target(%arg15 : memref<1024x512xbf16, #tpu.memory_space<vmem>>) target_semaphore(%20 : memref<!tpu.dma_semaphore, #tpu.memory_space<semaphore_mem>>)
      %c2_i32 = arith.constant 2 : i32
      %21 = tpu.memref_slice %arg17[%c2_i32] : memref<3x!tpu.dma_semaphore, #tpu.memory_space<semaphore_mem>> -> memref<1x!tpu.dma_semaphore, #tpu.memory_space<semaphore_mem>>
      %22 = tpu.memref_squeeze %21 : memref<1x!tpu.dma_semaphore, #tpu.memory_space<semaphore_mem>> -> memref<!tpu.dma_semaphore, #tpu.memory_space<semaphore_mem>>
      tpu.enqueue_dma source(%arg8 : memref<512x256xbf16, #tpu.memory_space<any>>) target(%arg16 : memref<512x256xbf16, #tpu.memory_space<vmem>>) target_semaphore(%22 : memref<!tpu.dma_semaphore, #tpu.memory_space<semaphore_mem>>)
    } else {
    }
    %c0 = arith.constant 0 : index
    %c0_1 = arith.constant 0 : index
    %3 = vector.load %arg13[%c0, %c0_1] : memref<8x2048xf32, #tpu.memory_space<vmem>>, vector<8x2048xf32>
    %c0_2 = arith.constant 0 : index
    %c0_3 = arith.constant 0 : index
    %4 = vector.load %arg1[%c0_2, %c0_3] : memref<8x1024xf32, #tpu.memory_space<vmem>>, vector<8x1024xf32>
    %5 = arith.truncf %4 : vector<8x1024xf32> to vector<8x1024xbf16>
    %c0_4 = arith.constant 0 : index
    %c0_5 = arith.constant 0 : index
    %6 = vector.load %arg2[%c0_4, %c0_5] : memref<1024x2048xbf16, #tpu.memory_space<vmem>>, vector<1024x2048xbf16>
    %cst = arith.constant dense<0.000000e+00> : vector<8x2048xf32>
    %7 = tpu.matmul %5, %6, %cst {dimension_numbers = #tpu.dot_dimension_numbers<[1], [0], [0], [1], [0, 0, 1, 1], [], []>} : vector<8x1024xbf16>, vector<1024x2048xbf16>, vector<8x2048xf32> -> vector<8x2048xf32>
    %8 = arith.addf %3, %7 : vector<8x2048xf32>
    %c0_6 = arith.constant 0 : index
    %c0_7 = arith.constant 0 : index
    %9 = vector.load %arg13[%c0_6, %c0_7] : memref<8x2048xf32, #tpu.memory_space<vmem>>, vector<8x2048xf32>
    tpu.vector_store %arg13[%c0_6, %c0_7], %8 {strides = array<i32>} : memref<8x2048xf32, #tpu.memory_space<vmem>>, vector<8x2048xf32>,
    %c3_i32 = arith.constant 3 : i32
    %10 = arith.cmpi eq, %arg0, %c3_i32 : i32
    %11 = arith.extui %10 : i1 to i32
    %c0_i32_8 = arith.constant 0 : i32
    %12 = arith.cmpi ne, %11, %c0_i32_8 : i32
    scf.if %12 {
      %c0_i32_9 = arith.constant 0 : i32
      %13 = tpu.memref_slice %arg17[%c0_i32_9] : memref<3x!tpu.dma_semaphore, #tpu.memory_space<semaphore_mem>> -> memref<1x!tpu.dma_semaphore, #tpu.memory_space<semaphore_mem>>
      %14 = tpu.memref_squeeze %13 : memref<1x!tpu.dma_semaphore, #tpu.memory_space<semaphore_mem>> -> memref<!tpu.dma_semaphore, #tpu.memory_space<semaphore_mem>>
      tpu.wait_dma2 semaphore(%14 : memref<!tpu.dma_semaphore, #tpu.memory_space<semaphore_mem>>) src(%arg4 : memref<2048x1024xbf16, #tpu.memory_space<any>>) dst(%arg14 : memref<2048x1024xbf16, #tpu.memory_space<vmem>>)
      %c1_i32 = arith.constant 1 : i32
      %15 = tpu.memref_slice %arg17[%c1_i32] : memref<3x!tpu.dma_semaphore, #tpu.memory_space<semaphore_mem>> -> memref<1x!tpu.dma_semaphore, #tpu.memory_space<semaphore_mem>>
      %16 = tpu.memref_squeeze %15 : memref<1x!tpu.dma_semaphore, #tpu.memory_space<semaphore_mem>> -> memref<!tpu.dma_semaphore, #tpu.memory_space<semaphore_mem>>
      tpu.wait_dma2 semaphore(%16 : memref<!tpu.dma_semaphore, #tpu.memory_space<semaphore_mem>>) src(%arg6 : memref<1024x512xbf16, #tpu.memory_space<any>>) dst(%arg15 : memref<1024x512xbf16, #tpu.memory_space<vmem>>)
      %c2_i32 = arith.constant 2 : i32
      %17 = tpu.memref_slice %arg17[%c2_i32] : memref<3x!tpu.dma_semaphore, #tpu.memory_space<semaphore_mem>> -> memref<1x!tpu.dma_semaphore, #tpu.memory_space<semaphore_mem>>
      %18 = tpu.memref_squeeze %17 : memref<1x!tpu.dma_semaphore, #tpu.memory_space<semaphore_mem>> -> memref<!tpu.dma_semaphore, #tpu.memory_space<semaphore_mem>>
      tpu.wait_dma2 semaphore(%18 : memref<!tpu.dma_semaphore, #tpu.memory_space<semaphore_mem>>) src(%arg8 : memref<512x256xbf16, #tpu.memory_space<any>>) dst(%arg16 : memref<512x256xbf16, #tpu.memory_space<vmem>>)
      %c0_10 = arith.constant 0 : index
      %c0_11 = arith.constant 0 : index
      %19 = vector.load %arg13[%c0_10, %c0_11] : memref<8x2048xf32, #tpu.memory_space<vmem>>, vector<8x2048xf32>
      %c0_12 = arith.constant 0 : index
      %c0_13 = arith.constant 0 : index
      %20 = vector.load %arg3[%c0_12, %c0_13] : memref<1x2048xf32, #tpu.memory_space<vmem>>, vector<1x2048xf32>
      %21 = vector.broadcast %20 : vector<1x2048xf32> to vector<8x2048xf32>
      %22 = arith.addf %19, %21 : vector<8x2048xf32>
      %cst_14 = arith.constant 0.000000e+00 : f32
      %23 = vector.broadcast %cst_14 : f32 to vector<8x2048xf32>
      %24 = arith.cmpf ogt, %22, %23 : vector<8x2048xf32>
      %cst_15 = arith.constant 2.000000e-01 : f32
      %25 = vector.broadcast %cst_15 : f32 to vector<8x2048xf32>
      %26 = arith.mulf %25, %22 : vector<8x2048xf32>
      %27 = arith.select %24, %22, %26 : vector<8x2048xi1>, vector<8x2048xf32>
      %28 = arith.truncf %27 : vector<8x2048xf32> to vector<8x2048xbf16>
      %c0_16 = arith.constant 0 : index
      %c0_17 = arith.constant 0 : index
      %29 = vector.load %arg14[%c0_16, %c0_17] : memref<2048x1024xbf16, #tpu.memory_space<vmem>>, vector<2048x1024xbf16>
      %cst_18 = arith.constant dense<0.000000e+00> : vector<8x1024xf32>
      %30 = tpu.matmul %28, %29, %cst_18 {dimension_numbers = #tpu.dot_dimension_numbers<[1], [0], [0], [1], [0, 0, 1, 1], [], []>} : vector<8x2048xbf16>, vector<2048x1024xbf16>, vector<8x1024xf32> -> vector<8x1024xf32>
      %c0_19 = arith.constant 0 : index
      %c0_20 = arith.constant 0 : index
      %31 = vector.load %arg5[%c0_19, %c0_20] : memref<1x1024xf32, #tpu.memory_space<vmem>>, vector<1x1024xf32>
      %32 = vector.broadcast %31 : vector<1x1024xf32> to vector<8x1024xf32>
      %33 = arith.addf %30, %32 : vector<8x1024xf32>
      %cst_21 = arith.constant 0.000000e+00 : f32
      %34 = vector.broadcast %cst_21 : f32 to vector<8x1024xf32>
      %35 = arith.cmpf ogt, %33, %34 : vector<8x1024xf32>
      %cst_22 = arith.constant 2.000000e-01 : f32
      %36 = vector.broadcast %cst_22 : f32 to vector<8x1024xf32>
      %37 = arith.mulf %36, %33 : vector<8x1024xf32>
      %38 = arith.select %35, %33, %37 : vector<8x1024xi1>, vector<8x1024xf32>
      %39 = arith.truncf %38 : vector<8x1024xf32> to vector<8x1024xbf16>
      %c0_23 = arith.constant 0 : index
      %c0_24 = arith.constant 0 : index
      %40 = vector.load %arg15[%c0_23, %c0_24] : memref<1024x512xbf16, #tpu.memory_space<vmem>>, vector<1024x512xbf16>
      %cst_25 = arith.constant dense<0.000000e+00> : vector<8x512xf32>
      %41 = tpu.matmul %39, %40, %cst_25 {dimension_numbers = #tpu.dot_dimension_numbers<[1], [0], [0], [1], [0, 0, 1, 1], [], []>} : vector<8x1024xbf16>, vector<1024x512xbf16>, vector<8x512xf32> -> vector<8x512xf32>
      %c0_26 = arith.constant 0 : index
      %c0_27 = arith.constant 0 : index
      %42 = vector.load %arg7[%c0_26, %c0_27] : memref<1x512xf32, #tpu.memory_space<vmem>>, vector<1x512xf32>
      %43 = vector.broadcast %42 : vector<1x512xf32> to vector<8x512xf32>
      %44 = arith.addf %41, %43 : vector<8x512xf32>
      %cst_28 = arith.constant 0.000000e+00 : f32
      %45 = vector.broadcast %cst_28 : f32 to vector<8x512xf32>
      %46 = arith.cmpf ogt, %44, %45 : vector<8x512xf32>
      %cst_29 = arith.constant 2.000000e-01 : f32
      %47 = vector.broadcast %cst_29 : f32 to vector<8x512xf32>
      %48 = arith.mulf %47, %44 : vector<8x512xf32>
      %49 = arith.select %46, %44, %48 : vector<8x512xi1>, vector<8x512xf32>
      %50 = arith.truncf %49 : vector<8x512xf32> to vector<8x512xbf16>
      %c0_30 = arith.constant 0 : index
      %c0_31 = arith.constant 0 : index
      %51 = vector.load %arg16[%c0_30, %c0_31] : memref<512x256xbf16, #tpu.memory_space<vmem>>, vector<512x256xbf16>
      %cst_32 = arith.constant dense<0.000000e+00> : vector<8x256xf32>
      %52 = tpu.matmul %50, %51, %cst_32 {dimension_numbers = #tpu.dot_dimension_numbers<[1], [0], [0], [1], [0, 0, 1, 1], [], []>} : vector<8x512xbf16>, vector<512x256xbf16>, vector<8x256xf32> -> vector<8x256xf32>
      %c0_33 = arith.constant 0 : index
      %c0_34 = arith.constant 0 : index
      %53 = vector.load %arg9[%c0_33, %c0_34] : memref<1x256xf32, #tpu.memory_space<vmem>>, vector<1x256xf32>
      %54 = vector.broadcast %53 : vector<1x256xf32> to vector<8x256xf32>
      %55 = arith.addf %52, %54 : vector<8x256xf32>
      %cst_35 = arith.constant 0.000000e+00 : f32
      %56 = vector.broadcast %cst_35 : f32 to vector<8x256xf32>
      %57 = arith.cmpf ogt, %55, %56 : vector<8x256xf32>
      %cst_36 = arith.constant 2.000000e-01 : f32
      %58 = vector.broadcast %cst_36 : f32 to vector<8x256xf32>
      %59 = arith.mulf %58, %55 : vector<8x256xf32>
      %60 = arith.select %57, %55, %59 : vector<8x256xi1>, vector<8x256xf32>
      %c0_37 = arith.constant 0 : index
      %c0_38 = arith.constant 0 : index
      %61 = vector.load %arg10[%c0_37, %c0_38] : memref<1x256xf32, #tpu.memory_space<vmem>>, vector<1x256xf32>
      %62 = vector.broadcast %61 : vector<1x256xf32> to vector<8x256xf32>
      %63 = arith.mulf %60, %62 : vector<8x256xf32>
      %cst_39 = arith.constant dense<0.000000e+00> : vector<8xf32>
      %64 = vector.multi_reduction <add>, %63, %cst_39 [1] : vector<8x256xf32> to vector<8xf32>
      %65 = vector.shape_cast %64 : vector<8xf32> to vector<8x1xf32>
      %c0_40 = arith.constant 0 : index
      %c0_41 = arith.constant 0 : index
      %66 = vector.load %arg11[%c0_40, %c0_41] : memref<1x1xf32, #tpu.memory_space<vmem>>, vector<1x1xf32>
      %67 = vector.broadcast %66 : vector<1x1xf32> to vector<8x1xf32>
      %68 = arith.addf %65, %67 : vector<8x1xf32>
      %69 = arith.negf %68 : vector<8x1xf32>
      %70 = math.exp %69 : vector<8x1xf32>
      %cst_42 = arith.constant 1.000000e+00 : f32
      %71 = vector.broadcast %cst_42 : f32 to vector<8x1xf32>
      %72 = arith.addf %71, %70 : vector<8x1xf32>
      %73 = arith.divf %71, %72 : vector<8x1xf32>
      %c0_43 = arith.constant 0 : index
      %c0_44 = arith.constant 0 : index
      %74 = vector.load %arg12[%c0_43, %c0_44] : memref<8x1xf32, #tpu.memory_space<vmem>>, vector<8x1xf32>
      tpu.vector_store %arg12[%c0_43, %c0_44], %73 {strides = array<i32>} : memref<8x1xf32, #tpu.memory_space<vmem>>, vector<8x1xf32>,
    } else {
    }
    return
  }
  func.func @transform_0(%arg0: i32) -> (i32, i32) {
    %c0_i32 = arith.constant 0 : i32
    %c0_i32_0 = arith.constant 0 : i32
    return %c0_i32, %arg0 : i32, i32
  }
  func.func @transform_1(%arg0: i32) -> (i32, i32) {
    %c0_i32 = arith.constant 0 : i32
    %c0_i32_0 = arith.constant 0 : i32
    return %arg0, %c0_i32 : i32, i32
  }
  func.func @transform_2(%arg0: i32) -> (i32, i32) {
    %c0_i32 = arith.constant 0 : i32
    %c0_i32_0 = arith.constant 0 : i32
    %c0_i32_1 = arith.constant 0 : i32
    return %c0_i32, %c0_i32_0 : i32, i32
  }
  func.func @transform_4(%arg0: i32) -> (i32, i32) {
    %c0_i32 = arith.constant 0 : i32
    %c0_i32_0 = arith.constant 0 : i32
    %c0_i32_1 = arith.constant 0 : i32
    return %c0_i32, %c0_i32_0 : i32, i32
  }
  func.func @transform_6(%arg0: i32) -> (i32, i32) {
    %c0_i32 = arith.constant 0 : i32
    %c0_i32_0 = arith.constant 0 : i32
    %c0_i32_1 = arith.constant 0 : i32
    return %c0_i32, %c0_i32_0 : i32, i32
  }
  func.func @transform_8(%arg0: i32) -> (i32, i32) {
    %c0_i32 = arith.constant 0 : i32
    %c0_i32_0 = arith.constant 0 : i32
    %c0_i32_1 = arith.constant 0 : i32
    return %c0_i32, %c0_i32_0 : i32, i32
  }
  func.func @transform_9(%arg0: i32) -> (i32, i32) {
    %c0_i32 = arith.constant 0 : i32
    %c0_i32_0 = arith.constant 0 : i32
    %c0_i32_1 = arith.constant 0 : i32
    return %c0_i32, %c0_i32_0 : i32, i32
  }
  func.func @transform_10(%arg0: i32) -> (i32, i32) {
    %c0_i32 = arith.constant 0 : i32
    %c0_i32_0 = arith.constant 0 : i32
    %c0_i32_1 = arith.constant 0 : i32
    return %c0_i32, %c0_i32_0 : i32, i32
  }
  func.func @transform_11(%arg0: i32) -> (i32, i32) {
    %c0_i32 = arith.constant 0 : i32
    %c0_i32_0 = arith.constant 0 : i32
    %c0_i32_1 = arith.constant 0 : i32
    return %c0_i32, %c0_i32_0 : i32, i32
  }
}

</mosaic_0001>

<llo_original>
// kernel: discriminator_forward.1
$region0: #{discriminator_forward.1}
  #allocation0 [shape = 'u32[]', space=smem, size = 0x4, offset = 0x4, fixed_abs, tag = 'smem constant byte address 0x4 - core index']
  #allocation1 [shape = 'u32[144,128]{1,0:T(1,128)}', space=vmem, size = 0x12000, scoped, tag = 'internal scratch']
  #allocation2 [shape = 'f32[8,2048]{1,0:T(8,128)}', space=vmem, size = 0x10000, scoped, tag = 'scratch operand']
  #allocation3 [shape = 'bf16[2048,1024]{1,0:T(16,128)(2,1)}', space=vmem, size = 0x400000, scoped, tag = 'scratch operand']
  #allocation4 [shape = 'bf16[1024,512]{1,0:T(16,128)(2,1)}', space=vmem, size = 0x100000, scoped, tag = 'scratch operand']
  #allocation5 [shape = 'bf16[512,256]{1,0:T(16,128)(2,1)}', space=vmem, size = 0x40000, scoped, tag = 'scratch operand']
  #allocation6 [shape = 's32[3]{0}', space=sflag, size = 0xc, scoped, tag = 'scratch operand']
  #allocation7 [shape = 'f32[1,1]{1,0:T(1,128)S(1)}', space=vmem, size = 0x200, scoped, tag = 'scoped memory for discriminator_forward.1']
  #allocation18 [shape = 's32[]', space=sflag, size = 0x4, offset = 0, fixed_abs, tag = 'sflag constant byte address 0x0 - dummy sync flag']
  #allocation20 [shape = 's32[]', space=sflag, size = 0x4, offset = 0, fixed_abs, tag = 'sflag constant byte address 0x0 - dummy sync flag']
  #allocation22 [shape = 's32[]', space=sflag, size = 0x4, offset = 0, fixed_abs, tag = 'sflag constant byte address 0x0 - dummy sync flag']
  %s0 = inlined_call_operand.vmem [shape: f32[8,4096], index: 0, kind: input, shape index: {}]
  %s1 = inlined_call_operand.hbm [shape: bf16[4096,2048], index: 1, kind: input, shape index: {}]
  %s2 = inlined_call_operand.hbm [shape: f32[1,2048], index: 2, kind: input, shape index: {}]
  %s3 = inlined_call_operand.hbm [shape: bf16[2048,1024], index: 3, kind: input, shape index: {}]
  %s4 = inlined_call_operand.hbm [shape: f32[1,1024], index: 4, kind: input, shape index: {}]
  %s5 = inlined_call_operand.hbm [shape: bf16[1024,512], index: 5, kind: input, shape index: {}]
  %s6 = inlined_call_operand.hbm [shape: f32[1,512], index: 6, kind: input, shape index: {}]
  %s7 = inlined_call_operand.hbm [shape: bf16[512,256], index: 7, kind: input, shape index: {}]
  %s8 = inlined_call_operand.hbm [shape: f32[1,256], index: 8, kind: input, shape index: {}]
  %s9 = inlined_call_operand.hbm [shape: f32[1,256], index: 9, kind: input, shape index: {}]
  %s10 = inlined_call_operand.<no memory space> [shape: f32[1,1], index: 10, kind: input, shape index: {}]
  %s11 = inlined_call_operand.vmem [shape: f32[8,1], index: 11, kind: output, shape index: {}]
  %s12 = sld [smem:[#allocation0]]
  $region97: #{discriminator_forward.1} parent=0
    _
  %s14 = ssub.s32 1, %s12
  %s15 = scalar_select 0, %s14, %s12
  %v16 = vstv %s10
  %17 = vst [vmem:[#allocation7] sm:$0x1] %v16
  $region1: #{discriminator_forward.1} parent=0
    #allocation8 [shape = 'u8[8388608]{0}', space=vmem, size = 0x800000, scoped, tag = 'input window, operand 1']
    #allocation9 [shape = 's32[2]{0}', space=sflag, size = 0x8, scoped, tag = 'scoped memory for discriminator_forward.1']
    #allocation10 [shape = 'u8[8192]{0}', space=vmem, size = 0x2000, scoped, tag = 'input window, operand 2, single buffered']
    #allocation11 [shape = 's32[1]{0}', space=sflag, size = 0x4, scoped, tag = 'scoped memory for discriminator_forward.1']
    #allocation12 [shape = 'u8[4096]{0}', space=vmem, size = 0x1000, scoped, tag = 'input window, operand 4, single buffered']
    #allocation13 [shape = 'u8[2048]{0}', space=vmem, size = 0x800, scoped, tag = 'input window, operand 6, single buffered']
    #allocation14 [shape = 's32[1]{0}', space=sflag, size = 0x4, scoped, tag = 'scoped memory for discriminator_forward.1']
    #allocation15 [shape = 'u8[1024]{0}', space=vmem, size = 0x400, scoped, tag = 'input window, operand 8, single buffered']
    #allocation16 [shape = 'u8[1024]{0}', space=vmem, size = 0x400, scoped, tag = 'input window, operand 9, single buffered']
    #allocation17 [shape = 's32[1]{0}', space=sflag, size = 0x4, scoped, tag = 'scoped memory for discriminator_forward.1']
    %18 = vsyncpa [#allocation9], 0
    %s19 = scalar_lea.sflag [#allocation9], 1
    %20 = vsyncpa %s19, 0
    %21 = vsyncpa [#allocation11], 0
    %22 = vsyncpa [#allocation14], 0
    %23 = vsyncpa [#allocation17], 0
    loop: start=0, step=1, limit=6
    $region2: #{discriminator_forward.1} parent=1 // loop_pre_header
      _
    $region3: #{discriminator_forward.1} parent=1 // loop_header
      %s25 = sphi 0, %s29
      %p26 = scmp.ge.s32.totalorder %s25, 6
      %s35 = sphi 0, %s37
      %s38 = sphi 0, %s35
      %s39 = sphi 0, %s38
      %s55 = sphi 0, %s39
      %s61 = sphi 0, %s63
      %s64 = sphi 0, %s61
      %s65 = sphi 0, %s64
      %s81 = sphi 0, %s65
      %s85 = sphi 0, %s85
      %s87 = sphi 0, %s85
      %s88 = sphi 0, %s87
      %s102 = sphi 0, %s88
      %s106 = sphi 0, %s106
      %s108 = sphi 0, %s106
      %s109 = sphi 0, %s108
      %s123 = sphi 0, %s109
      %s127 = sphi 0, %s127
      %s129 = sphi 0, %s127
      %s130 = sphi 0, %s129
      %s144 = sphi 0, %s130
      %s148 = sphi 0, %s148
      %s150 = sphi 0, %s148
      %s151 = sphi 0, %s150
      %s165 = sphi 0, %s151
      %s169 = sphi 0, %s169
      %s171 = sphi 0, %s169
      %s172 = sphi 0, %s171
      %s186 = sphi 0, %s172
      %s190 = sphi 0, %s190
      %s192 = sphi 0, %s190
      %s193 = sphi 0, %s192
      %s207 = sphi 0, %s193
      %s211 = sphi 0, %s211
      %s213 = sphi 0, %s211
      %s214 = sphi 0, %s213
      %s228 = sphi 0, %s214
    $region4: #{discriminator_forward.1} parent=1 // loop_header_branch
      %28 = sbr.rel (%p26) target = $region8
    $region5: #{discriminator_forward.1} parent=1 // loop_body
      %s30 = ssub.s32 %s25, 1
      %s31 = ssub.s32 %s25, 2
      %s32 = sadd.s32 %s25, 1
      %s33 = ssub.s32 %s25, %s32
      %p34 = scmp.eq.s32.totalorder %s33, 0
      %s36 = sadd.s32 %s35, 1
      %s37 = scalar_select %p34, %s35, %s36
      %p40 = pneg %p34
      %p41 = scmp.eq.s32.totalorder %s25, 3
      %p42 = por %p40, %p41
      %p43 = scmp.ne.s32.totalorder %s35, %s38
      %p44 = scmp.eq.s32.totalorder %s25, 0
      %p45 = por %p43, %p44
      %p46 = scmp.ne.s32.totalorder %s35, %s38
      %p47 = scmp.eq.s32.totalorder %s30, 3
      %p48 = por %p46, %p47
      %p49 = scmp.ne.s32.totalorder %s38, %s39
      %p50 = scmp.eq.s32.totalorder %s30, 0
      %p51 = por %p49, %p50
      %p52 = scmp.ne.s32.totalorder %s38, %s39
      %p53 = scmp.eq.s32.totalorder %s31, 3
      %p54 = por %p52, %p53
      %p56 = scmp.ne.s32.totalorder %s39, %s55
      %p57 = scmp.eq.s32.totalorder %s31, 0
      %p58 = por %p56, %p57
      %s59 = ssub.s32 %s25, %s32
      %p60 = scmp.eq.s32.totalorder %s59, 0
      %s62 = sadd.s32 %s61, 1
      %s63 = scalar_select %p60, %s61, %s62
      %p66 = pneg %p60
      %p67 = scmp.eq.s32.totalorder %s25, 3
      %p68 = por %p66, %p67
      %p69 = scmp.ne.s32.totalorder %s61, %s64
      %p70 = scmp.eq.s32.totalorder %s25, 0
      %p71 = por %p69, %p70
      %p72 = scmp.ne.s32.totalorder %s61, %s64
      %p73 = scmp.eq.s32.totalorder %s30, 3
      %p74 = por %p72, %p73
      %p75 = scmp.ne.s32.totalorder %s64, %s65
      %p76 = scmp.eq.s32.totalorder %s30, 0
      %p77 = por %p75, %p76
      %p78 = scmp.ne.s32.totalorder %s64, %s65
      %p79 = scmp.eq.s32.totalorder %s31, 3
      %p80 = por %p78, %p79
      %p82 = scmp.ne.s32.totalorder %s65, %s81
      %p83 = scmp.eq.s32.totalorder %s31, 0
      %p84 = por %p82, %p83
      %s86 = sadd.s32 %s85, 1
      %p89 = scmp.eq.s32.totalorder %s25, 3
      %p90 = scmp.ne.s32.totalorder %s85, %s87
      %p91 = scmp.eq.s32.totalorder %s25, 0
      %p92 = por %p90, %p91
      %p93 = scmp.ne.s32.totalorder %s85, %s87
      %p94 = scmp.eq.s32.totalorder %s30, 3
      %p95 = por %p93, %p94
      %p96 = scmp.ne.s32.totalorder %s87, %s88
      %p97 = scmp.eq.s32.totalorder %s30, 0
      %p98 = por %p96, %p97
      %p99 = scmp.ne.s32.totalorder %s87, %s88
      %p100 = scmp.eq.s32.totalorder %s31, 3
      %p101 = por %p99, %p100
      %p103 = scmp.ne.s32.totalorder %s88, %s102
      %p104 = scmp.eq.s32.totalorder %s31, 0
      %p105 = por %p103, %p104
      %s107 = sadd.s32 %s106, 1
      %p110 = scmp.eq.s32.totalorder %s25, 3
      %p111 = scmp.ne.s32.totalorder %s106, %s108
      %p112 = scmp.eq.s32.totalorder %s25, 0
      %p113 = por %p111, %p112
      %p114 = scmp.ne.s32.totalorder %s106, %s108
      %p115 = scmp.eq.s32.totalorder %s30, 3
      %p116 = por %p114, %p115
      %p117 = scmp.ne.s32.totalorder %s108, %s109
      %p118 = scmp.eq.s32.totalorder %s30, 0
      %p119 = por %p117, %p118
      %p120 = scmp.ne.s32.totalorder %s108, %s109
      %p121 = scmp.eq.s32.totalorder %s31, 3
      %p122 = por %p120, %p121
      %p124 = scmp.ne.s32.totalorder %s109, %s123
      %p125 = scmp.eq.s32.totalorder %s31, 0
      %p126 = por %p124, %p125
      %s128 = sadd.s32 %s127, 1
      %p131 = scmp.eq.s32.totalorder %s25, 3
      %p132 = scmp.ne.s32.totalorder %s127, %s129
      %p133 = scmp.eq.s32.totalorder %s25, 0
      %p134 = por %p132, %p133
      %p135 = scmp.ne.s32.totalorder %s127, %s129
      %p136 = scmp.eq.s32.totalorder %s30, 3
      %p137 = por %p135, %p136
      %p138 = scmp.ne.s32.totalorder %s129, %s130
      %p139 = scmp.eq.s32.totalorder %s30, 0
      %p140 = por %p138, %p139
      %p141 = scmp.ne.s32.totalorder %s129, %s130
      %p142 = scmp.eq.s32.totalorder %s31, 3
      %p143 = por %p141, %p142
      %p145 = scmp.ne.s32.totalorder %s130, %s144
      %p146 = scmp.eq.s32.totalorder %s31, 0
      %p147 = por %p145, %p146
      %s149 = sadd.s32 %s148, 1
      %p152 = scmp.eq.s32.totalorder %s25, 3
      %p153 = scmp.ne.s32.totalorder %s148, %s150
      %p154 = scmp.eq.s32.totalorder %s25, 0
      %p155 = por %p153, %p154
      %p156 = scmp.ne.s32.totalorder %s148, %s150
      %p157 = scmp.eq.s32.totalorder %s30, 3
      %p158 = por %p156, %p157
      %p159 = scmp.ne.s32.totalorder %s150, %s151
      %p160 = scmp.eq.s32.totalorder %s30, 0
      %p161 = por %p159, %p160
      %p162 = scmp.ne.s32.totalorder %s150, %s151
      %p163 = scmp.eq.s32.totalorder %s31, 3
      %p164 = por %p162, %p163
      %p166 = scmp.ne.s32.totalorder %s151, %s165
      %p167 = scmp.eq.s32.totalorder %s31, 0
      %p168 = por %p166, %p167
      %s170 = sadd.s32 %s169, 1
      %p173 = scmp.eq.s32.totalorder %s25, 3
      %p174 = scmp.ne.s32.totalorder %s169, %s171
      %p175 = scmp.eq.s32.totalorder %s25, 0
      %p176 = por %p174, %p175
      %p177 = scmp.ne.s32.totalorder %s169, %s171
      %p178 = scmp.eq.s32.totalorder %s30, 3
      %p179 = por %p177, %p178
      %p180 = scmp.ne.s32.totalorder %s171, %s172
      %p181 = scmp.eq.s32.totalorder %s30, 0
      %p182 = por %p180, %p181
      %p183 = scmp.ne.s32.totalorder %s171, %s172
      %p184 = scmp.eq.s32.totalorder %s31, 3
      %p185 = por %p183, %p184
      %p187 = scmp.ne.s32.totalorder %s172, %s186
      %p188 = scmp.eq.s32.totalorder %s31, 0
      %p189 = por %p187, %p188
      %s191 = sadd.s32 %s190, 1
      %p194 = scmp.eq.s32.totalorder %s25, 3
      %p195 = scmp.ne.s32.totalorder %s190, %s192
      %p196 = scmp.eq.s32.totalorder %s25, 0
      %p197 = por %p195, %p196
      %p198 = scmp.ne.s32.totalorder %s190, %s192
      %p199 = scmp.eq.s32.totalorder %s30, 3
      %p200 = por %p198, %p199
      %p201 = scmp.ne.s32.totalorder %s192, %s193
      %p202 = scmp.eq.s32.totalorder %s30, 0
      %p203 = por %p201, %p202
      %p204 = scmp.ne.s32.totalorder %s192, %s193
      %p205 = scmp.eq.s32.totalorder %s31, 3
      %p206 = por %p204, %p205
      %p208 = scmp.ne.s32.totalorder %s193, %s207
      %p209 = scmp.eq.s32.totalorder %s31, 0
      %p210 = por %p208, %p209
      %s212 = sadd.s32 %s211, 1
      %p215 = scmp.eq.s32.totalorder %s25, 3
      %p216 = scmp.ne.s32.totalorder %s211, %s213
      %p217 = scmp.eq.s32.totalorder %s25, 0
      %p218 = por %p216, %p217
      %p219 = scmp.ne.s32.totalorder %s211, %s213
      %p220 = scmp.eq.s32.totalorder %s30, 3
      %p221 = por %p219, %p220
      %p222 = scmp.ne.s32.totalorder %s213, %s214
      %p223 = scmp.eq.s32.totalorder %s30, 0
      %p224 = por %p222, %p223
      %p225 = scmp.ne.s32.totalorder %s213, %s214
      %p226 = scmp.eq.s32.totalorder %s31, 3
      %p227 = por %p225, %p226
      %p229 = scmp.ne.s32.totalorder %s214, %s228
      %p230 = scmp.eq.s32.totalorder %s31, 0
      %p231 = por %p229, %p230
      %p232 = scmp.le.s32.totalorder 1, %s25
      %p233 = scmp.lt.s32.totalorder %s25, 5
      %p234 = pnand %p232, %p233
      %p235 = pneg %p234
      // Predicated region
      $region9: #{discriminator_forward.1} parent=5 // pred_check
        _
      $region10: #{discriminator_forward.1} parent=5 // pred_check_branch
        %237 = sbr.rel (%p234) target = $region12
      $region11: #{discriminator_forward.1} parent=5 // pred_region
        %s238 = ssub.s32 %s25, 1
        // Predicated region
        $region13: #{discriminator_forward.1} parent=11 // pred_check
          %p239 = pneg %p98
        $region14: #{discriminator_forward.1} parent=11 // pred_check_branch
          %241 = sbr.rel (%p239) target = $region16
        $region15: #{discriminator_forward.1} parent=11 // pred_region
          %s243 = ssub.s32 256, 256
          %244 = vsyncadd [#allocation11], %s243
          %s246 = sshll.u32 [#allocation10], 4
          %s247 = int_to_ptr.vmem [resolvable:$true] %s246
          %249 = dma.hbm_to_vmem [thread:$0]  %s2, 256, %s247, [#allocation11]
        $region16: #{discriminator_forward.1} parent=11 // pred_fallthru
          _
        // Predicated region
        $region17: #{discriminator_forward.1} parent=11 // pred_check
          %p250 = pneg %p119
        $region18: #{discriminator_forward.1} parent=11 // pred_check_branch
          %252 = sbr.rel (%p250) target = $region20
        $region19: #{discriminator_forward.1} parent=11 // pred_region
          %s254 = ssub.s32 128, 128
          %255 = vsyncadd [#allocation11], %s254
          %s257 = sshll.u32 [#allocation12], 4
          %s258 = int_to_ptr.vmem [resolvable:$true] %s257
          %260 = dma.hbm_to_vmem [thread:$0]  %s4, 128, %s258, [#allocation11]
        $region20: #{discriminator_forward.1} parent=11 // pred_fallthru
          _
        // Predicated region
        $region21: #{discriminator_forward.1} parent=11 // pred_check
          %p261 = pneg %p140
        $region22: #{discriminator_forward.1} parent=11 // pred_check_branch
          %263 = sbr.rel (%p261) target = $region24
        $region23: #{discriminator_forward.1} parent=11 // pred_region
          %s265 = ssub.s32 64, 64
          %266 = vsyncadd [#allocation14], %s265
          %s268 = sshll.u32 [#allocation13], 4
          %s269 = int_to_ptr.vmem [resolvable:$true] %s268
          %271 = dma.hbm_to_vmem [thread:$0]  %s6, 64, %s269, [#allocation14]
        $region24: #{discriminator_forward.1} parent=11 // pred_fallthru
          _
        // Predicated region
        $region25: #{discriminator_forward.1} parent=11 // pred_check
          %p272 = pneg %p161
        $region26: #{discriminator_forward.1} parent=11 // pred_check_branch
          %274 = sbr.rel (%p272) target = $region28
        $region27: #{discriminator_forward.1} parent=11 // pred_region
          %s276 = ssub.s32 32, 32
          %277 = vsyncadd [#allocation14], %s276
          %s279 = sshll.u32 [#allocation15], 4
          %s280 = int_to_ptr.vmem [resolvable:$true] %s279
          %282 = dma.hbm_to_vmem [thread:$0]  %s8, 32, %s280, [#allocation14]
        $region28: #{discriminator_forward.1} parent=11 // pred_fallthru
          _
        // Predicated region
        $region29: #{discriminator_forward.1} parent=11 // pred_check
          %p283 = pneg %p182
        $region30: #{discriminator_forward.1} parent=11 // pred_check_branch
          %285 = sbr.rel (%p283) target = $region32
        $region31: #{discriminator_forward.1} parent=11 // pred_region
          %s287 = ssub.s32 32, 32
          %288 = vsyncadd [#allocation17], %s287
          %s290 = sshll.u32 [#allocation16], 4
          %s291 = int_to_ptr.vmem [resolvable:$true] %s290
          %293 = dma.hbm_to_vmem [thread:$0]  %s9, 32, %s291, [#allocation17]
        $region32: #{discriminator_forward.1} parent=11 // pred_fallthru
          _
        // Predicated region
        $region33: #{discriminator_forward.1} parent=11 // pred_check
          %p294 = pneg %p203
        $region34: #{discriminator_forward.1} parent=11 // pred_check_branch
          %296 = sbr.rel (%p294) target = $region36
        $region35: #{discriminator_forward.1} parent=11 // pred_region
          _
        $region36: #{discriminator_forward.1} parent=11 // pred_fallthru
          _
      $region12: #{discriminator_forward.1} parent=5 // pred_fallthru
        _
      %p297 = scmp.lt.s32.totalorder %s25, 4
      // Predicated region
      $region37: #{discriminator_forward.1} parent=5 // pred_check
        %p298 = pneg %p297
      $region38: #{discriminator_forward.1} parent=5 // pred_check_branch
        %300 = sbr.rel (%p298) target = $region40
      $region39: #{discriminator_forward.1} parent=5 // pred_region
        // Predicated region
        $region41: #{discriminator_forward.1} parent=39 // pred_check
          %p301 = pneg %p45
        $region42: #{discriminator_forward.1} parent=39 // pred_check_branch
          %303 = sbr.rel (%p301) target = $region44
        $region43: #{discriminator_forward.1} parent=39 // pred_region
          %s304 = smul.u32 8, %s25
          %p305 = scmp.lt.s32.totalorder %s304, 31
          %s306 = scalar_select %p305, %s304, 31
          %s307 = smul.addr %s306, 8
          %s308 = scalar_lea.vmem %s0, %s307
          %s309 = smul.u32 8, %s25
        $region44: #{discriminator_forward.1} parent=39 // pred_fallthru
          _
        // Predicated region
        $region45: #{discriminator_forward.1} parent=39 // pred_check
          %p310 = pneg %p71
        $region46: #{discriminator_forward.1} parent=39 // pred_check_branch
          %312 = sbr.rel (%p310) target = $region48
        $region47: #{discriminator_forward.1} parent=39 // pred_region
          %s313 = sand.u32 %s61, 1
          %s314 = scalar_lea.sflag [#allocation9], %s313
          %s315 = sand.u32 %s61, 1
          %s316 = smul.addr %s315, 8192
          %s317 = scalar_lea.vmem [#allocation8], %s316
          %s318 = smul.u32 128, %s25
          %s320 = ssub.s32 131072, 131072
          %321 = vsyncadd %s314, %s320
          %s322 = smul.addr %s318, 16
          %s323 = smul.addr %s322, 64
          %s324 = scalar_lea.hbm %s1, %s323
          %s325 = sshll.u32 %s317, 4
          %s326 = int_to_ptr.vmem [resolvable:$true] %s325
          %331 = dma.hbm_to_vmem [thread:$0]  %s324, 131072, %s326, %s314, 1024, 1024, 64
        $region48: #{discriminator_forward.1} parent=39 // pred_fallthru
          _
      $region40: #{discriminator_forward.1} parent=5 // pred_fallthru
        _
      %p332 = scmp.le.s32.totalorder 1, %s25
      %p333 = scmp.lt.s32.totalorder %s25, 5
      %p334 = pnand %p332, %p333
      %p335 = pneg %p334
      // Predicated region
      $region49: #{discriminator_forward.1} parent=5 // pred_check
        _
      $region50: #{discriminator_forward.1} parent=5 // pred_check_branch
        %337 = sbr.rel (%p334) target = $region52
      $region51: #{discriminator_forward.1} parent=5 // pred_region
        %s338 = ssub.s32 %s25, 1
        %s339 = sand.u32 %s64, 1
        %s340 = scalar_lea.sflag [#allocation9], %s339
        %s341 = sand.u32 %s64, 1
        %s342 = smul.addr %s341, 8192
        %s343 = scalar_lea.vmem [#allocation8], %s342
        // Predicated region
        $region53: #{discriminator_forward.1} parent=51 // pred_check
          %p344 = pneg %p77
        $region54: #{discriminator_forward.1} parent=51 // pred_check_branch
          %346 = sbr.rel (%p344) target = $region56
        $region55: #{discriminator_forward.1} parent=51 // pred_region
          %347 = dma.done %s340, 131072
        $region56: #{discriminator_forward.1} parent=51 // pred_fallthru
          _
        // Predicated region
        $region57: #{discriminator_forward.1} parent=51 // pred_check
          %p348 = pneg %p98
        $region58: #{discriminator_forward.1} parent=51 // pred_check_branch
          %350 = sbr.rel (%p348) target = $region60
        $region59: #{discriminator_forward.1} parent=51 // pred_region
          %351 = dma.done [#allocation11], 256
        $region60: #{discriminator_forward.1} parent=51 // pred_fallthru
          _
        // Predicated region
        $region61: #{discriminator_forward.1} parent=51 // pred_check
          %p352 = pneg %p119
        $region62: #{discriminator_forward.1} parent=51 // pred_check_branch
          %354 = sbr.rel (%p352) target = $region64
        $region63: #{discriminator_forward.1} parent=51 // pred_region
          %355 = dma.done [#allocation11], 128
        $region64: #{discriminator_forward.1} parent=51 // pred_fallthru
          _
        // Predicated region
        $region65: #{discriminator_forward.1} parent=51 // pred_check
          %p356 = pneg %p140
        $region66: #{discriminator_forward.1} parent=51 // pred_check_branch
          %358 = sbr.rel (%p356) target = $region68
        $region67: #{discriminator_forward.1} parent=51 // pred_region
          %359 = dma.done [#allocation14], 64
        $region68: #{discriminator_forward.1} parent=51 // pred_fallthru
          _
        // Predicated region
        $region69: #{discriminator_forward.1} parent=51 // pred_check
          %p360 = pneg %p161
        $region70: #{discriminator_forward.1} parent=51 // pred_check_branch
          %362 = sbr.rel (%p360) target = $region72
        $region71: #{discriminator_forward.1} parent=51 // pred_region
          %363 = dma.done [#allocation14], 32
        $region72: #{discriminator_forward.1} parent=51 // pred_fallthru
          _
        // Predicated region
        $region73: #{discriminator_forward.1} parent=51 // pred_check
          %p364 = pneg %p182
        $region74: #{discriminator_forward.1} parent=51 // pred_check_branch
          %366 = sbr.rel (%p364) target = $region76
        $region75: #{discriminator_forward.1} parent=51 // pred_region
          %367 = dma.done [#allocation17], 32
        $region76: #{discriminator_forward.1} parent=51 // pred_fallthru
          _
        %s368 = smul.u32 8, %s30
        %p369 = scmp.lt.s32.totalorder %s368, 31
        %s370 = scalar_select %p369, %s368, 31
        %s371 = smul.addr %s370, 8
        %s372 = scalar_lea.vmem %s0, %s371
        %p373 = pneg %p51
        %p374 = pneg %p48
        %s375 = sand.u32 %s64, 1
        %s376 = scalar_lea.sflag [#allocation9], %s375
        %s377 = sand.u32 %s64, 1
        %s378 = smul.addr %s377, 8192
        %s379 = scalar_lea.vmem [#allocation8], %s378
        %p380 = pneg %p77
        %p381 = pneg %p74
        %p382 = pneg %p98
        %p383 = pneg %p95
        %p384 = pneg %p119
        %p385 = pneg %p116
        %p386 = pneg %p140
        %p387 = pneg %p137
        %p388 = pneg %p161
        %p389 = pneg %p158
        %p390 = pneg %p182
        %p391 = pneg %p179
        %p392 = pneg %p203
        %p393 = pneg %p200
        %p394 = pneg %p224
        %p395 = pneg %p221
        %s396 = smul.u32 8, %s30
        %p397 = scmp.lt.s32.totalorder %s396, 31
        %s398 = scalar_select %p397, %s396, 31
        %s399 = smul.addr %s398, 8
        %s400 = scalar_lea.vmem %s0, %s399
        %s401 = smul.u32 8, %s30
        %s402 = smul.u32 128, %s30
        %p403 = scmp.eq.s32.totalorder %s30, 0
        // Predicated region
        $region77: #{discriminator_forward.1} parent=51 // pred_check
          %p404 = pneg %p403
        $region78: #{discriminator_forward.1} parent=51 // pred_check_branch
          %406 = sbr.rel (%p404) target = $region80
        $region79: #{discriminator_forward.1} parent=51 // pred_region
          #allocation19 [shape = 'u32[9]{0}', space=smem, size = 0x24, scoped, tag = 'DMA stride descriptor']
          #allocation21 [shape = 'u32[9]{0}', space=smem, size = 0x24, scoped, tag = 'DMA stride descriptor']
          #allocation23 [shape = 'u32[9]{0}', space=smem, size = 0x24, scoped, tag = 'DMA stride descriptor']
          %407 = vst [vmem:[#allocation2] sm:$0xff] 0.0
          %408 = vst [vmem:[#allocation2 + $0x8] sm:$0xff] 0.0
          %409 = vst [vmem:[#allocation2 + $0x10] sm:$0xff] 0.0
          %410 = vst [vmem:[#allocation2 + $0x18] sm:$0xff] 0.0
          %411 = vst [vmem:[#allocation2 + $0x20] sm:$0xff] 0.0
          %412 = vst [vmem:[#allocation2 + $0x28] sm:$0xff] 0.0
          %413 = vst [vmem:[#allocation2 + $0x30] sm:$0xff] 0.0
          %414 = vst [vmem:[#allocation2 + $0x38] sm:$0xff] 0.0
          %415 = vst [vmem:[#allocation2 + $0x40] sm:$0xff] 0.0
          %416 = vst [vmem:[#allocation2 + $0x48] sm:$0xff] 0.0
          %417 = vst [vmem:[#allocation2 + $0x50] sm:$0xff] 0.0
          %418 = vst [vmem:[#allocation2 + $0x58] sm:$0xff] 0.0
          %419 = vst [vmem:[#allocation2 + $0x60] sm:$0xff] 0.0
          %420 = vst [vmem:[#allocation2 + $0x68] sm:$0xff] 0.0
          %421 = vst [vmem:[#allocation2 + $0x70] sm:$0xff] 0.0
          %422 = vst [vmem:[#allocation2 + $0x78] sm:$0xff] 0.0
          %vm423 = vcmask 7168
          %424 = vst.msk [vmem:[%s11] sm:$0xff] %vm423, 0.0
          %s426 = sshll.u32 1, 14
          %s427 = sxor.u32 4294967295, %s426
          %s429 = sld [smem:[#allocation0]]
          %s430 = sadd.s32 2, %s429
          %s432 = sshll.u32 7, 26
          %s433 = sxor.u32 4294967295, %s432
          %s434 = sand.u32 0, %s433
          %s435 = sshll.u32 %s430, 26
          %s436 = sor.u32 %s434, %s435
          %s437 = sshll.u32 [#allocation3], 4
          %s438 = int_to_ptr.vmem [resolvable:$true] %s437
          %441 = sst [smem:[#allocation19]] 1024
          %s442 = scalar_lea.smem [#allocation19], 1
          %443 = sst [smem:[%s442]] 1024
          %s444 = scalar_lea.smem [#allocation19], 2
          %445 = sst [smem:[%s444]] 8
          %s446 = scalar_lea.smem [#allocation19], 3
          %447 = sst [smem:[%s446]] 64
          %s448 = scalar_lea.smem [#allocation19], 4
          %449 = sst [smem:[%s448]] 128
          %s450 = scalar_lea.smem [#allocation19], 5
          %451 = sst [smem:[%s450]] 2
          %s452 = scalar_lea.smem [#allocation19], 6
          %453 = sst [smem:[%s452]] 512
          %s454 = scalar_lea.smem [#allocation19], 7
          %455 = sst [smem:[%s454]] 64
          %s456 = scalar_lea.smem [#allocation19], 8
          %457 = sst [smem:[%s456]] 4
          %459 = dma.general %s3, 131072, %s438, [#allocation6], [#allocation18], [#allocation19], %s436, 0
          %s460 = scalar_lea.sflag [#allocation6], 1
          %s462 = sshll.u32 1, 14
          %s463 = sxor.u32 4294967295, %s462
          %s465 = sadd.s32 2, %s429
          %s467 = sshll.u32 7, 26
          %s468 = sxor.u32 4294967295, %s467
          %s469 = sand.u32 0, %s468
          %s470 = sshll.u32 %s465, 26
          %s471 = sor.u32 %s469, %s470
          %s472 = sshll.u32 [#allocation4], 4
          %s473 = int_to_ptr.vmem [resolvable:$true] %s472
          %476 = sst [smem:[#allocation21]] 512
          %s477 = scalar_lea.smem [#allocation21], 1
          %478 = sst [smem:[%s477]] 512
          %s479 = scalar_lea.smem [#allocation21], 2
          %480 = sst [smem:[%s479]] 4
          %s481 = scalar_lea.smem [#allocation21], 3
          %482 = sst [smem:[%s481]] 64
          %s483 = scalar_lea.smem [#allocation21], 4
          %484 = sst [smem:[%s483]] 128
          %s485 = scalar_lea.smem [#allocation21], 5
          %486 = sst [smem:[%s485]] 2
          %s487 = scalar_lea.smem [#allocation21], 6
          %488 = sst [smem:[%s487]] 256
          %s489 = scalar_lea.smem [#allocation21], 7
          %490 = sst [smem:[%s489]] 64
          %s491 = scalar_lea.smem [#allocation21], 8
          %492 = sst [smem:[%s491]] 4
          %494 = dma.general %s5, 32768, %s473, %s460, [#allocation20], [#allocation21], %s471, 0
          %s495 = scalar_lea.sflag [#allocation6], 2
          %s497 = sshll.u32 1, 14
          %s498 = sxor.u32 4294967295, %s497
          %s500 = sadd.s32 2, %s429
          %s502 = sshll.u32 7, 26
          %s503 = sxor.u32 4294967295, %s502
          %s504 = sand.u32 0, %s503
          %s505 = sshll.u32 %s500, 26
          %s506 = sor.u32 %s504, %s505
          %s507 = sshll.u32 [#allocation5], 4
          %s508 = int_to_ptr.vmem [resolvable:$true] %s507
          %511 = sst [smem:[#allocation23]] 256
          %s512 = scalar_lea.smem [#allocation23], 1
          %513 = sst [smem:[%s512]] 256
          %s514 = scalar_lea.smem [#allocation23], 2
          %515 = sst [smem:[%s514]] 2
          %s516 = scalar_lea.smem [#allocation23], 3
          %517 = sst [smem:[%s516]] 64
          %s518 = scalar_lea.smem [#allocation23], 4
          %519 = sst [smem:[%s518]] 128
          %s520 = scalar_lea.smem [#allocation23], 5
          %521 = sst [smem:[%s520]] 2
          %s522 = scalar_lea.smem [#allocation23], 6
          %523 = sst [smem:[%s522]] 128
          %s524 = scalar_lea.smem [#allocation23], 7
          %525 = sst [smem:[%s524]] 64
          %s526 = scalar_lea.smem [#allocation23], 8
          %527 = sst [smem:[%s526]] 4
          %529 = dma.general %s7, 8192, %s508, %s495, [#allocation22], [#allocation23], %s506, 0
        $region80: #{discriminator_forward.1} parent=51 // pred_fallthru
          _
        %v530 = vld [vmem:[#allocation2] sm:$0xff]
        %v531 = vld [vmem:[#allocation2 + $0x8] sm:$0xff]
        %v532 = vld [vmem:[#allocation2 + $0x10] sm:$0xff]
        %v533 = vld [vmem:[#allocation2 + $0x18] sm:$0xff]
        %v534 = vld [vmem:[#allocation2 + $0x20] sm:$0xff]
        %v535 = vld [vmem:[#allocation2 + $0x28] sm:$0xff]
        %v536 = vld [vmem:[#allocation2 + $0x30] sm:$0xff]
        %v537 = vld [vmem:[#allocation2 + $0x38] sm:$0xff]
        %v538 = vld [vmem:[#allocation2 + $0x40] sm:$0xff]
        %v539 = vld [vmem:[#allocation2 + $0x48] sm:$0xff]
        %v540 = vld [vmem:[#allocation2 + $0x50] sm:$0xff]
        %v541 = vld [vmem:[#allocation2 + $0x58] sm:$0xff]
        %v542 = vld [vmem:[#allocation2 + $0x60] sm:$0xff]
        %v543 = vld [vmem:[#allocation2 + $0x68] sm:$0xff]
        %v544 = vld [vmem:[#allocation2 + $0x70] sm:$0xff]
        %v545 = vld [vmem:[#allocation2 + $0x78] sm:$0xff]
        %v546 = vld [vmem:[%s400] sm:$0xff]
        %v547 = vld [vmem:[%s400 + $0x8] sm:$0xff]
        %v548 = vld [vmem:[%s400 + $0x10] sm:$0xff]
        %v549 = vld [vmem:[%s400 + $0x18] sm:$0xff]
        %v550 = vld [vmem:[%s400 + $0x20] sm:$0xff]
        %v551 = vld [vmem:[%s400 + $0x28] sm:$0xff]
        %v552 = vld [vmem:[%s400 + $0x30] sm:$0xff]
        %v553 = vld [vmem:[%s400 + $0x38] sm:$0xff]
        %v554 = vpack.c.bf16 %v546, %v546
        %v555 = vpack.c.bf16 %v547, %v547
        %v556 = vpack.c.bf16 %v548, %v548
        %v557 = vpack.c.bf16 %v549, %v549
        %v558 = vpack.c.bf16 %v550, %v550
        %v559 = vpack.c.bf16 %v551, %v551
        %v560 = vpack.c.bf16 %v552, %v552
        %v561 = vpack.c.bf16 %v553, %v553
        %v562 = vld [vmem:[%s343] sm:$0xff]
        %v563 = vld [vmem:[%s343 + $0x8] sm:$0xff]
        %v564 = vld [vmem:[%s343 + $0x10] sm:$0xff]
        %v565 = vld [vmem:[%s343 + $0x18] sm:$0xff]
        %v566 = vld [vmem:[%s343 + $0x20] sm:$0xff]
        %v567 = vld [vmem:[%s343 + $0x28] sm:$0xff]
        %v568 = vld [vmem:[%s343 + $0x30] sm:$0xff]
        %v569 = vld [vmem:[%s343 + $0x38] sm:$0xff]
        %v570 = vld [vmem:[%s343 + $0x40] sm:$0xff]
        %v571 = vld [vmem:[%s343 + $0x48] sm:$0xff]
        %v572 = vld [vmem:[%s343 + $0x50] sm:$0xff]
        %v573 = vld [vmem:[%s343 + $0x58] sm:$0xff]
        %v574 = vld [vmem:[%s343 + $0x60] sm:$0xff]
        %v575 = vld [vmem:[%s343 + $0x68] sm:$0xff]
        %v576 = vld [vmem:[%s343 + $0x70] sm:$0xff]
        %v577 = vld [vmem:[%s343 + $0x78] sm:$0xff]
        %v578 = vld [vmem:[%s343 + $0x80] sm:$0xff]
        %v579 = vld [vmem:[%s343 + $0x88] sm:$0xff]
        %v580 = vld [vmem:[%s343 + $0x90] sm:$0xff]
        %v581 = vld [vmem:[%s343 + $0x98] sm:$0xff]
        %v582 = vld [vmem:[%s343 + $0xa0] sm:$0xff]
        %v583 = vld [vmem:[%s343 + $0xa8] sm:$0xff]
        %v584 = vld [vmem:[%s343 + $0xb0] sm:$0xff]
        %v585 = vld [vmem:[%s343 + $0xb8] sm:$0xff]
        %v586 = vld [vmem:[%s343 + $0xc0] sm:$0xff]
        %v587 = vld [vmem:[%s343 + $0xc8] sm:$0xff]
        %v588 = vld [vmem:[%s343 + $0xd0] sm:$0xff]
        %v589 = vld [vmem:[%s343 + $0xd8] sm:$0xff]
        %v590 = vld [vmem:[%s343 + $0xe0] sm:$0xff]
        %v591 = vld [vmem:[%s343 + $0xe8] sm:$0xff]
        %v592 = vld [vmem:[%s343 + $0xf0] sm:$0xff]
        %v593 = vld [vmem:[%s343 + $0xf8] sm:$0xff]
        %v594 = vld [vmem:[%s343 + $0x100] sm:$0xff]
        %v595 = vld [vmem:[%s343 + $0x108] sm:$0xff]
        %v596 = vld [vmem:[%s343 + $0x110] sm:$0xff]
        %v597 = vld [vmem:[%s343 + $0x118] sm:$0xff]
        %v598 = vld [vmem:[%s343 + $0x120] sm:$0xff]
        %v599 = vld [vmem:[%s343 + $0x128] sm:$0xff]
        %v600 = vld [vmem:[%s343 + $0x130] sm:$0xff]
        %v601 = vld [vmem:[%s343 + $0x138] sm:$0xff]
        %v602 = vld [vmem:[%s343 + $0x140] sm:$0xff]
        %v603 = vld [vmem:[%s343 + $0x148] sm:$0xff]
        %v604 = vld [vmem:[%s343 + $0x150] sm:$0xff]
        %v605 = vld [vmem:[%s343 + $0x158] sm:$0xff]
        %v606 = vld [vmem:[%s343 + $0x160] sm:$0xff]
        %v607 = vld [vmem:[%s343 + $0x168] sm:$0xff]
        %v608 = vld [vmem:[%s343 + $0x170] sm:$0xff]
        %v609 = vld [vmem:[%s343 + $0x178] sm:$0xff]
        %v610 = vld [vmem:[%s343 + $0x180] sm:$0xff]
        %v611 = vld [vmem:[%s343 + $0x188] sm:$0xff]
        %v612 = vld [vmem:[%s343 + $0x190] sm:$0xff]
        %v613 = vld [vmem:[%s343 + $0x198] sm:$0xff]
        %v614 = vld [vmem:[%s343 + $0x1a0] sm:$0xff]
        %v615 = vld [vmem:[%s343 + $0x1a8] sm:$0xff]
        %v616 = vld [vmem:[%s343 + $0x1b0] sm:$0xff]
        %v617 = vld [vmem:[%s343 + $0x1b8] sm:$0xff]
        %v618 = vld [vmem:[%s343 + $0x1c0] sm:$0xff]
        %v619 = vld [vmem:[%s343 + $0x1c8] sm:$0xff]
        %v620 = vld [vmem:[%s343 + $0x1d0] sm:$0xff]
        %v621 = vld [vmem:[%s343 + $0x1d8] sm:$0xff]
        %v622 = vld [vmem:[%s343 + $0x1e0] sm:$0xff]
        %v623 = vld [vmem:[%s343 + $0x1e8] sm:$0xff]
        %v624 = vld [vmem:[%s343 + $0x1f0] sm:$0xff]
        %v625 = vld [vmem:[%s343 + $0x1f8] sm:$0xff]
        %v626 = vld [vmem:[%s343 + $0x200] sm:$0xff]
        %v627 = vld [vmem:[%s343 + $0x208] sm:$0xff]
        %v628 = vld [vmem:[%s343 + $0x210] sm:$0xff]
        %v629 = vld [vmem:[%s343 + $0x218] sm:$0xff]
        %v630 = vld [vmem:[%s343 + $0x220] sm:$0xff]
        %v631 = vld [vmem:[%s343 + $0x228] sm:$0xff]
        %v632 = vld [vmem:[%s343 + $0x230] sm:$0xff]
        %v633 = vld [vmem:[%s343 + $0x238] sm:$0xff]
        %v634 = vld [vmem:[%s343 + $0x240] sm:$0xff]
        %v635 = vld [vmem:[%s343 + $0x248] sm:$0xff]
        %v636 = vld [vmem:[%s343 + $0x250] sm:$0xff]
        %v637 = vld [vmem:[%s343 + $0x258] sm:$0xff]
        %v638 = vld [vmem:[%s343 + $0x260] sm:$0xff]
        %v639 = vld [vmem:[%s343 + $0x268] sm:$0xff]
        %v640 = vld [vmem:[%s343 + $0x270] sm:$0xff]
        %v641 = vld [vmem:[%s343 + $0x278] sm:$0xff]
        %v642 = vld [vmem:[%s343 + $0x280] sm:$0xff]
        %v643 = vld [vmem:[%s343 + $0x288] sm:$0xff]
        %v644 = vld [vmem:[%s343 + $0x290] sm:$0xff]
        %v645 = vld [vmem:[%s343 + $0x298] sm:$0xff]
        %v646 = vld [vmem:[%s343 + $0x2a0] sm:$0xff]
        %v647 = vld [vmem:[%s343 + $0x2a8] sm:$0xff]
        %v648 = vld [vmem:[%s343 + $0x2b0] sm:$0xff]
        %v649 = vld [vmem:[%s343 + $0x2b8] sm:$0xff]
        %v650 = vld [vmem:[%s343 + $0x2c0] sm:$0xff]
        %v651 = vld [vmem:[%s343 + $0x2c8] sm:$0xff]
        %v652 = vld [vmem:[%s343 + $0x2d0] sm:$0xff]
        %v653 = vld [vmem:[%s343 + $0x2d8] sm:$0xff]
        %v654 = vld [vmem:[%s343 + $0x2e0] sm:$0xff]
        %v655 = vld [vmem:[%s343 + $0x2e8] sm:$0xff]
        %v656 = vld [vmem:[%s343 + $0x2f0] sm:$0xff]
        %v657 = vld [vmem:[%s343 + $0x2f8] sm:$0xff]
        %v658 = vld [vmem:[%s343 + $0x300] sm:$0xff]
        %v659 = vld [vmem:[%s343 + $0x308] sm:$0xff]
        %v660 = vld [vmem:[%s343 + $0x310] sm:$0xff]
        %v661 = vld [vmem:[%s343 + $0x318] sm:$0xff]
        %v662 = vld [vmem:[%s343 + $0x320] sm:$0xff]
        %v663 = vld [vmem:[%s343 + $0x328] sm:$0xff]
        %v664 = vld [vmem:[%s343 + $0x330] sm:$0xff]
        %v665 = vld [vmem:[%s343 + $0x338] sm:$0xff]
        %v666 = vld [vmem:[%s343 + $0x340] sm:$0xff]
        %v667 = vld [vmem:[%s343 + $0x348] sm:$0xff]
        %v668 = vld [vmem:[%s343 + $0x350] sm:$0xff]
        %v669 = vld [vmem:[%s343 + $0x358] sm:$0xff]
        %v670 = vld [vmem:[%s343 + $0x360] sm:$0xff]
        %v671 = vld [vmem:[%s343 + $0x368] sm:$0xff]
        %v672 = vld [vmem:[%s343 + $0x370] sm:$0xff]
        %v673 = vld [vmem:[%s343 + $0x378] sm:$0xff]
        %v674 = vld [vmem:[%s343 + $0x380] sm:$0xff]
        %v675 = vld [vmem:[%s343 + $0x388] sm:$0xff]
        %v676 = vld [vmem:[%s343 + $0x390] sm:$0xff]
        %v677 = vld [vmem:[%s343 + $0x398] sm:$0xff]
        %v678 = vld [vmem:[%s343 + $0x3a0] sm:$0xff]
        %v679 = vld [vmem:[%s343 + $0x3a8] sm:$0xff]
        %v680 = vld [vmem:[%s343 + $0x3b0] sm:$0xff]
        %v681 = vld [vmem:[%s343 + $0x3b8] sm:$0xff]
        %v682 = vld [vmem:[%s343 + $0x3c0] sm:$0xff]
        %v683 = vld [vmem:[%s343 + $0x3c8] sm:$0xff]
        %v684 = vld [vmem:[%s343 + $0x3d0] sm:$0xff]
        %v685 = vld [vmem:[%s343 + $0x3d8] sm:$0xff]
        %v686 = vld [vmem:[%s343 + $0x3e0] sm:$0xff]
        %v687 = vld [vmem:[%s343 + $0x3e8] sm:$0xff]
        %v688 = vld [vmem:[%s343 + $0x3f0] sm:$0xff]
        %v689 = vld [vmem:[%s343 + $0x3f8] sm:$0xff]
        %v690 = vld [vmem:[%s343 + $0x400] sm:$0xff]
        %v691 = vld [vmem:[%s343 + $0x408] sm:$0xff]
        %v692 = vld [vmem:[%s343 + $0x410] sm:$0xff]
        %v693 = vld [vmem:[%s343 + $0x418] sm:$0xff]
        %v694 = vld [vmem:[%s343 + $0x420] sm:$0xff]
        %v695 = vld [vmem:[%s343 + $0x428] sm:$0xff]
        %v696 = vld [vmem:[%s343 + $0x430] sm:$0xff]
        %v697 = vld [vmem:[%s343 + $0x438] sm:$0xff]
        %v698 = vld [vmem:[%s343 + $0x440] sm:$0xff]
        %v699 = vld [vmem:[%s343 + $0x448] sm:$0xff]
        %v700 = vld [vmem:[%s343 + $0x450] sm:$0xff]
        %v701 = vld [vmem:[%s343 + $0x458] sm:$0xff]
        %v702 = vld [vmem:[%s343 + $0x460] sm:$0xff]
        %v703 = vld [vmem:[%s343 + $0x468] sm:$0xff]
        %v704 = vld [vmem:[%s343 + $0x470] sm:$0xff]
        %v705 = vld [vmem:[%s343 + $0x478] sm:$0xff]
        %v706 = vld [vmem:[%s343 + $0x480] sm:$0xff]
        %v707 = vld [vmem:[%s343 + $0x488] sm:$0xff]
        %v708 = vld [vmem:[%s343 + $0x490] sm:$0xff]
        %v709 = vld [vmem:[%s343 + $0x498] sm:$0xff]
        %v710 = vld [vmem:[%s343 + $0x4a0] sm:$0xff]
        %v711 = vld [vmem:[%s343 + $0x4a8] sm:$0xff]
        %v712 = vld [vmem:[%s343 + $0x4b0] sm:$0xff]
        %v713 = vld [vmem:[%s343 + $0x4b8] sm:$0xff]
        %v714 = vld [vmem:[%s343 + $0x4c0] sm:$0xff]
        %v715 = vld [vmem:[%s343 + $0x4c8] sm:$0xff]
        %v716 = vld [vmem:[%s343 + $0x4d0] sm:$0xff]
        %v717 = vld [vmem:[%s343 + $0x4d8] sm:$0xff]
        %v718 = vld [vmem:[%s343 + $0x4e0] sm:$0xff]
        %v719 = vld [vmem:[%s343 + $0x4e8] sm:$0xff]
        %v720 = vld [vmem:[%s343 + $0x4f0] sm:$0xff]
        %v721 = vld [vmem:[%s343 + $0x4f8] sm:$0xff]
        %v722 = vld [vmem:[%s343 + $0x500] sm:$0xff]
        %v723 = vld [vmem:[%s343 + $0x508] sm:$0xff]
        %v724 = vld [vmem:[%s343 + $0x510] sm:$0xff]
        %v725 = vld [vmem:[%s343 + $0x518] sm:$0xff]
        %v726 = vld [vmem:[%s343 + $0x520] sm:$0xff]
        %v727 = vld [vmem:[%s343 + $0x528] sm:$0xff]
        %v728 = vld [vmem:[%s343 + $0x530] sm:$0xff]
        %v729 = vld [vmem:[%s343 + $0x538] sm:$0xff]
        %v730 = vld [vmem:[%s343 + $0x540] sm:$0xff]
        %v731 = vld [vmem:[%s343 + $0x548] sm:$0xff]
        %v732 = vld [vmem:[%s343 + $0x550] sm:$0xff]
        %v733 = vld [vmem:[%s343 + $0x558] sm:$0xff]
        %v734 = vld [vmem:[%s343 + $0x560] sm:$0xff]
        %v735 = vld [vmem:[%s343 + $0x568] sm:$0xff]
        %v736 = vld [vmem:[%s343 + $0x570] sm:$0xff]
        %v737 = vld [vmem:[%s343 + $0x578] sm:$0xff]
        %v738 = vld [vmem:[%s343 + $0x580] sm:$0xff]
        %v739 = vld [vmem:[%s343 + $0x588] sm:$0xff]
        %v740 = vld [vmem:[%s343 + $0x590] sm:$0xff]
        %v741 = vld [vmem:[%s343 + $0x598] sm:$0xff]
        %v742 = vld [vmem:[%s343 + $0x5a0] sm:$0xff]
        %v743 = vld [vmem:[%s343 + $0x5a8] sm:$0xff]
        %v744 = vld [vmem:[%s343 + $0x5b0] sm:$0xff]
        %v745 = vld [vmem:[%s343 + $0x5b8] sm:$0xff]
        %v746 = vld [vmem:[%s343 + $0x5c0] sm:$0xff]
        %v747 = vld [vmem:[%s343 + $0x5c8] sm:$0xff]
        %v748 = vld [vmem:[%s343 + $0x5d0] sm:$0xff]
        %v749 = vld [vmem:[%s343 + $0x5d8] sm:$0xff]
        %v750 = vld [vmem:[%s343 + $0x5e0] sm:$0xff]
        %v751 = vld [vmem:[%s343 + $0x5e8] sm:$0xff]
        %v752 = vld [vmem:[%s343 + $0x5f0] sm:$0xff]
        %v753 = vld [vmem:[%s343 + $0x5f8] sm:$0xff]
        %v754 = vld [vmem:[%s343 + $0x600] sm:$0xff]
        %v755 = vld [vmem:[%s343 + $0x608] sm:$0xff]
        %v756 = vld [vmem:[%s343 + $0x610] sm:$0xff]
        %v757 = vld [vmem:[%s343 + $0x618] sm:$0xff]
        %v758 = vld [vmem:[%s343 + $0x620] sm:$0xff]
        %v759 = vld [vmem:[%s343 + $0x628] sm:$0xff]
        %v760 = vld [vmem:[%s343 + $0x630] sm:$0xff]
        %v761 = vld [vmem:[%s343 + $0x638] sm:$0xff]
        %v762 = vld [vmem:[%s343 + $0x640] sm:$0xff]
        %v763 = vld [vmem:[%s343 + $0x648] sm:$0xff]
        %v764 = vld [vmem:[%s343 + $0x650] sm:$0xff]
        %v765 = vld [vmem:[%s343 + $0x658] sm:$0xff]
        %v766 = vld [vmem:[%s343 + $0x660] sm:$0xff]
        %v767 = vld [vmem:[%s343 + $0x668] sm:$0xff]
        %v768 = vld [vmem:[%s343 + $0x670] sm:$0xff]
        %v769 = vld [vmem:[%s343 + $0x678] sm:$0xff]
        %v770 = vld [vmem:[%s343 + $0x680] sm:$0xff]
        %v771 = vld [vmem:[%s343 + $0x688] sm:$0xff]
        %v772 = vld [vmem:[%s343 + $0x690] sm:$0xff]
        %v773 = vld [vmem:[%s343 + $0x698] sm:$0xff]
        %v774 = vld [vmem:[%s343 + $0x6a0] sm:$0xff]
        %v775 = vld [vmem:[%s343 + $0x6a8] sm:$0xff]
        %v776 = vld [vmem:[%s343 + $0x6b0] sm:$0xff]
        %v777 = vld [vmem:[%s343 + $0x6b8] sm:$0xff]
        %v778 = vld [vmem:[%s343 + $0x6c0] sm:$0xff]
        %v779 = vld [vmem:[%s343 + $0x6c8] sm:$0xff]
        %v780 = vld [vmem:[%s343 + $0x6d0] sm:$0xff]
        %v781 = vld [vmem:[%s343 + $0x6d8] sm:$0xff]
        %v782 = vld [vmem:[%s343 + $0x6e0] sm:$0xff]
        %v783 = vld [vmem:[%s343 + $0x6e8] sm:$0xff]
        %v784 = vld [vmem:[%s343 + $0x6f0] sm:$0xff]
        %v785 = vld [vmem:[%s343 + $0x6f8] sm:$0xff]
        %v786 = vld [vmem:[%s343 + $0x700] sm:$0xff]
        %v787 = vld [vmem:[%s343 + $0x708] sm:$0xff]
        %v788 = vld [vmem:[%s343 + $0x710] sm:$0xff]
        %v789 = vld [vmem:[%s343 + $0x718] sm:$0xff]
        %v790 = vld [vmem:[%s343 + $0x720] sm:$0xff]
        %v791 = vld [vmem:[%s343 + $0x728] sm:$0xff]
        %v792 = vld [vmem:[%s343 + $0x730] sm:$0xff]
        %v793 = vld [vmem:[%s343 + $0x738] sm:$0xff]
        %v794 = vld [vmem:[%s343 + $0x740] sm:$0xff]
        %v795 = vld [vmem:[%s343 + $0x748] sm:$0xff]
        %v796 = vld [vmem:[%s343 + $0x750] sm:$0xff]
        %v797 = vld [vmem:[%s343 + $0x758] sm:$0xff]
        %v798 = vld [vmem:[%s343 + $0x760] sm:$0xff]
        %v799 = vld [vmem:[%s343 + $0x768] sm:$0xff]
        %v800 = vld [vmem:[%s343 + $0x770] sm:$0xff]
        %v801 = vld [vmem:[%s343 + $0x778] sm:$0xff]
        %v802 = vld [vmem:[%s343 + $0x780] sm:$0xff]
        %v803 = vld [vmem:[%s343 + $0x788] sm:$0xff]
        %v804 = vld [vmem:[%s343 + $0x790] sm:$0xff]
        %v805 = vld [vmem:[%s343 + $0x798] sm:$0xff]
        %v806 = vld [vmem:[%s343 + $0x7a0] sm:$0xff]
        %v807 = vld [vmem:[%s343 + $0x7a8] sm:$0xff]
        %v808 = vld [vmem:[%s343 + $0x7b0] sm:$0xff]
        %v809 = vld [vmem:[%s343 + $0x7b8] sm:$0xff]
        %v810 = vld [vmem:[%s343 + $0x7c0] sm:$0xff]
        %v811 = vld [vmem:[%s343 + $0x7c8] sm:$0xff]
        %v812 = vld [vmem:[%s343 + $0x7d0] sm:$0xff]
        %v813 = vld [vmem:[%s343 + $0x7d8] sm:$0xff]
        %v814 = vld [vmem:[%s343 + $0x7e0] sm:$0xff]
        %v815 = vld [vmem:[%s343 + $0x7e8] sm:$0xff]
        %v816 = vld [vmem:[%s343 + $0x7f0] sm:$0xff]
        %v817 = vld [vmem:[%s343 + $0x7f8] sm:$0xff]
        %v818 = vld [vmem:[%s343 + $0x800] sm:$0xff]
        %v819 = vld [vmem:[%s343 + $0x808] sm:$0xff]
        %v820 = vld [vmem:[%s343 + $0x810] sm:$0xff]
        %v821 = vld [vmem:[%s343 + $0x818] sm:$0xff]
        %v822 = vld [vmem:[%s343 + $0x820] sm:$0xff]
        %v823 = vld [vmem:[%s343 + $0x828] sm:$0xff]
        %v824 = vld [vmem:[%s343 + $0x830] sm:$0xff]
        %v825 = vld [vmem:[%s343 + $0x838] sm:$0xff]
        %v826 = vld [vmem:[%s343 + $0x840] sm:$0xff]
        %v827 = vld [vmem:[%s343 + $0x848] sm:$0xff]
        %v828 = vld [vmem:[%s343 + $0x850] sm:$0xff]
        %v829 = vld [vmem:[%s343 + $0x858] sm:$0xff]
        %v830 = vld [vmem:[%s343 + $0x860] sm:$0xff]
        %v831 = vld [vmem:[%s343 + $0x868] sm:$0xff]
        %v832 = vld [vmem:[%s343 + $0x870] sm:$0xff]
        %v833 = vld [vmem:[%s343 + $0x878] sm:$0xff]
        %v834 = vld [vmem:[%s343 + $0x880] sm:$0xff]
        %v835 = vld [vmem:[%s343 + $0x888] sm:$0xff]
        %v836 = vld [vmem:[%s343 + $0x890] sm:$0xff]
        %v837 = vld [vmem:[%s343 + $0x898] sm:$0xff]
        %v838 = vld [vmem:[%s343 + $0x8a0] sm:$0xff]
        %v839 = vld [vmem:[%s343 + $0x8a8] sm:$0xff]
        %v840 = vld [vmem:[%s343 + $0x8b0] sm:$0xff]
        %v841 = vld [vmem:[%s343 + $0x8b8] sm:$0xff]
        %v842 = vld [vmem:[%s343 + $0x8c0] sm:$0xff]
        %v843 = vld [vmem:[%s343 + $0x8c8] sm:$0xff]
        %v844 = vld [vmem:[%s343 + $0x8d0] sm:$0xff]
        %v845 = vld [vmem:[%s343 + $0x8d8] sm:$0xff]
        %v846 = vld [vmem:[%s343 + $0x8e0] sm:$0xff]
        %v847 = vld [vmem:[%s343 + $0x8e8] sm:$0xff]
        %v848 = vld [vmem:[%s343 + $0x8f0] sm:$0xff]
        %v849 = vld [vmem:[%s343 + $0x8f8] sm:$0xff]
        %v850 = vld [vmem:[%s343 + $0x900] sm:$0xff]
        %v851 = vld [vmem:[%s343 + $0x908] sm:$0xff]
        %v852 = vld [vmem:[%s343 + $0x910] sm:$0xff]
        %v853 = vld [vmem:[%s343 + $0x918] sm:$0xff]
        %v854 = vld [vmem:[%s343 + $0x920] sm:$0xff]
        %v855 = vld [vmem:[%s343 + $0x928] sm:$0xff]
        %v856 = vld [vmem:[%s343 + $0x930] sm:$0xff]
        %v857 = vld [vmem:[%s343 + $0x938] sm:$0xff]
        %v858 = vld [vmem:[%s343 + $0x940] sm:$0xff]
        %v859 = vld [vmem:[%s343 + $0x948] sm:$0xff]
        %v860 = vld [vmem:[%s343 + $0x950] sm:$0xff]
        %v861 = vld [vmem:[%s343 + $0x958] sm:$0xff]
        %v862 = vld [vmem:[%s343 + $0x960] sm:$0xff]
        %v863 = vld [vmem:[%s343 + $0x968] sm:$0xff]
        %v864 = vld [vmem:[%s343 + $0x970] sm:$0xff]
        %v865 = vld [vmem:[%s343 + $0x978] sm:$0xff]
        %v866 = vld [vmem:[%s343 + $0x980] sm:$0xff]
        %v867 = vld [vmem:[%s343 + $0x988] sm:$0xff]
        %v868 = vld [vmem:[%s343 + $0x990] sm:$0xff]
        %v869 = vld [vmem:[%s343 + $0x998] sm:$0xff]
        %v870 = vld [vmem:[%s343 + $0x9a0] sm:$0xff]
        %v871 = vld [vmem:[%s343 + $0x9a8] sm:$0xff]
        %v872 = vld [vmem:[%s343 + $0x9b0] sm:$0xff]
        %v873 = vld [vmem:[%s343 + $0x9b8] sm:$0xff]
        %v874 = vld [vmem:[%s343 + $0x9c0] sm:$0xff]
        %v875 = vld [vmem:[%s343 + $0x9c8] sm:$0xff]
        %v876 = vld [vmem:[%s343 + $0x9d0] sm:$0xff]
        %v877 = vld [vmem:[%s343 + $0x9d8] sm:$0xff]
        %v878 = vld [vmem:[%s343 + $0x9e0] sm:$0xff]
        %v879 = vld [vmem:[%s343 + $0x9e8] sm:$0xff]
        %v880 = vld [vmem:[%s343 + $0x9f0] sm:$0xff]
        %v881 = vld [vmem:[%s343 + $0x9f8] sm:$0xff]
        %v882 = vld [vmem:[%s343 + $0xa00] sm:$0xff]
        %v883 = vld [vmem:[%s343 + $0xa08] sm:$0xff]
        %v884 = vld [vmem:[%s343 + $0xa10] sm:$0xff]
        %v885 = vld [vmem:[%s343 + $0xa18] sm:$0xff]
        %v886 = vld [vmem:[%s343 + $0xa20] sm:$0xff]
        %v887 = vld [vmem:[%s343 + $0xa28] sm:$0xff]
        %v888 = vld [vmem:[%s343 + $0xa30] sm:$0xff]
        %v889 = vld [vmem:[%s343 + $0xa38] sm:$0xff]
        %v890 = vld [vmem:[%s343 + $0xa40] sm:$0xff]
        %v891 = vld [vmem:[%s343 + $0xa48] sm:$0xff]
        %v892 = vld [vmem:[%s343 + $0xa50] sm:$0xff]
        %v893 = vld [vmem:[%s343 + $0xa58] sm:$0xff]
        %v894 = vld [vmem:[%s343 + $0xa60] sm:$0xff]
        %v895 = vld [vmem:[%s343 + $0xa68] sm:$0xff]
        %v896 = vld [vmem:[%s343 + $0xa70] sm:$0xff]
        %v897 = vld [vmem:[%s343 + $0xa78] sm:$0xff]
        %v898 = vld [vmem:[%s343 + $0xa80] sm:$0xff]
        %v899 = vld [vmem:[%s343 + $0xa88] sm:$0xff]
        %v900 = vld [vmem:[%s343 + $0xa90] sm:$0xff]
        %v901 = vld [vmem:[%s343 + $0xa98] sm:$0xff]
        %v902 = vld [vmem:[%s343 + $0xaa0] sm:$0xff]
        %v903 = vld [vmem:[%s343 + $0xaa8] sm:$0xff]
        %v904 = vld [vmem:[%s343 + $0xab0] sm:$0xff]
        %v905 = vld [vmem:[%s343 + $0xab8] sm:$0xff]
        %v906 = vld [vmem:[%s343 + $0xac0] sm:$0xff]
        %v907 = vld [vmem:[%s343 + $0xac8] sm:$0xff]
        %v908 = vld [vmem:[%s343 + $0xad0] sm:$0xff]
        %v909 = vld [vmem:[%s343 + $0xad8] sm:$0xff]
        %v910 = vld [vmem:[%s343 + $0xae0] sm:$0xff]
        %v911 = vld [vmem:[%s343 + $0xae8] sm:$0xff]
        %v912 = vld [vmem:[%s343 + $0xaf0] sm:$0xff]
        %v913 = vld [vmem:[%s343 + $0xaf8] sm:$0xff]
        %v914 = vld [vmem:[%s343 + $0xb00] sm:$0xff]
        %v915 = vld [vmem:[%s343 + $0xb08] sm:$0xff]
        %v916 = vld [vmem:[%s343 + $0xb10] sm:$0xff]
        %v917 = vld [vmem:[%s343 + $0xb18] sm:$0xff]
        %v918 = vld [vmem:[%s343 + $0xb20] sm:$0xff]
        %v919 = vld [vmem:[%s343 + $0xb28] sm:$0xff]
        %v920 = vld [vmem:[%s343 + $0xb30] sm:$0xff]
        %v921 = vld [vmem:[%s343 + $0xb38] sm:$0xff]
        %v922 = vld [vmem:[%s343 + $0xb40] sm:$0xff]
        %v923 = vld [vmem:[%s343 + $0xb48] sm:$0xff]
        %v924 = vld [vmem:[%s343 + $0xb50] sm:$0xff]
        %v925 = vld [vmem:[%s343 + $0xb58] sm:$0xff]
        %v926 = vld [vmem:[%s343 + $0xb60] sm:$0xff]
        %v927 = vld [vmem:[%s343 + $0xb68] sm:$0xff]
        %v928 = vld [vmem:[%s343 + $0xb70] sm:$0xff]
        %v929 = vld [vmem:[%s343 + $0xb78] sm:$0xff]
        %v930 = vld [vmem:[%s343 + $0xb80] sm:$0xff]
        %v931 = vld [vmem:[%s343 + $0xb88] sm:$0xff]
        %v932 = vld [vmem:[%s343 + $0xb90] sm:$0xff]
        %v933 = vld [vmem:[%s343 + $0xb98] sm:$0xff]
        %v934 = vld [vmem:[%s343 + $0xba0] sm:$0xff]
        %v935 = vld [vmem:[%s343 + $0xba8] sm:$0xff]
        %v936 = vld [vmem:[%s343 + $0xbb0] sm:$0xff]
        %v937 = vld [vmem:[%s343 + $0xbb8] sm:$0xff]
        %v938 = vld [vmem:[%s343 + $0xbc0] sm:$0xff]
        %v939 = vld [vmem:[%s343 + $0xbc8] sm:$0xff]
        %v940 = vld [vmem:[%s343 + $0xbd0] sm:$0xff]
        %v941 = vld [vmem:[%s343 + $0xbd8] sm:$0xff]
        %v942 = vld [vmem:[%s343 + $0xbe0] sm:$0xff]
        %v943 = vld [vmem:[%s343 + $0xbe8] sm:$0xff]
        %v944 = vld [vmem:[%s343 + $0xbf0] sm:$0xff]
        %v945 = vld [vmem:[%s343 + $0xbf8] sm:$0xff]
        %v946 = vld [vmem:[%s343 + $0xc00] sm:$0xff]
        %v947 = vld [vmem:[%s343 + $0xc08] sm:$0xff]
        %v948 = vld [vmem:[%s343 + $0xc10] sm:$0xff]
        %v949 = vld [vmem:[%s343 + $0xc18] sm:$0xff]
        %v950 = vld [vmem:[%s343 + $0xc20] sm:$0xff]
        %v951 = vld [vmem:[%s343 + $0xc28] sm:$0xff]
        %v952 = vld [vmem:[%s343 + $0xc30] sm:$0xff]
        %v953 = vld [vmem:[%s343 + $0xc38] sm:$0xff]
        %v954 = vld [vmem:[%s343 + $0xc40] sm:$0xff]
        %v955 = vld [vmem:[%s343 + $0xc48] sm:$0xff]
        %v956 = vld [vmem:[%s343 + $0xc50] sm:$0xff]
        %v957 = vld [vmem:[%s343 + $0xc58] sm:$0xff]
        %v958 = vld [vmem:[%s343 + $0xc60] sm:$0xff]
        %v959 = vld [vmem:[%s343 + $0xc68] sm:$0xff]
        %v960 = vld [vmem:[%s343 + $0xc70] sm:$0xff]
        %v961 = vld [vmem:[%s343 + $0xc78] sm:$0xff]
        %v962 = vld [vmem:[%s343 + $0xc80] sm:$0xff]
        %v963 = vld [vmem:[%s343 + $0xc88] sm:$0xff]
        %v964 = vld [vmem:[%s343 + $0xc90] sm:$0xff]
        %v965 = vld [vmem:[%s343 + $0xc98] sm:$0xff]
        %v966 = vld [vmem:[%s343 + $0xca0] sm:$0xff]
        %v967 = vld [vmem:[%s343 + $0xca8] sm:$0xff]
        %v968 = vld [vmem:[%s343 + $0xcb0] sm:$0xff]
        %v969 = vld [vmem:[%s343 + $0xcb8] sm:$0xff]
        %v970 = vld [vmem:[%s343 + $0xcc0] sm:$0xff]
        %v971 = vld [vmem:[%s343 + $0xcc8] sm:$0xff]
        %v972 = vld [vmem:[%s343 + $0xcd0] sm:$0xff]
        %v973 = vld [vmem:[%s343 + $0xcd8] sm:$0xff]
        %v974 = vld [vmem:[%s343 + $0xce0] sm:$0xff]
        %v975 = vld [vmem:[%s343 + $0xce8] sm:$0xff]
        %v976 = vld [vmem:[%s343 + $0xcf0] sm:$0xff]
        %v977 = vld [vmem:[%s343 + $0xcf8] sm:$0xff]
        %v978 = vld [vmem:[%s343 + $0xd00] sm:$0xff]
        %v979 = vld [vmem:[%s343 + $0xd08] sm:$0xff]
        %v980 = vld [vmem:[%s343 + $0xd10] sm:$0xff]
        %v981 = vld [vmem:[%s343 + $0xd18] sm:$0xff]
        %v982 = vld [vmem:[%s343 + $0xd20] sm:$0xff]
        %v983 = vld [vmem:[%s343 + $0xd28] sm:$0xff]
        %v984 = vld [vmem:[%s343 + $0xd30] sm:$0xff]
        %v985 = vld [vmem:[%s343 + $0xd38] sm:$0xff]
        %v986 = vld [vmem:[%s343 + $0xd40] sm:$0xff]
        %v987 = vld [vmem:[%s343 + $0xd48] sm:$0xff]
        %v988 = vld [vmem:[%s343 + $0xd50] sm:$0xff]
        %v989 = vld [vmem:[%s343 + $0xd58] sm:$0xff]
        %v990 = vld [vmem:[%s343 + $0xd60] sm:$0xff]
        %v991 = vld [vmem:[%s343 + $0xd68] sm:$0xff]
        %v992 = vld [vmem:[%s343 + $0xd70] sm:$0xff]
        %v993 = vld [vmem:[%s343 + $0xd78] sm:$0xff]
        %v994 = vld [vmem:[%s343 + $0xd80] sm:$0xff]
        %v995 = vld [vmem:[%s343 + $0xd88] sm:$0xff]
        %v996 = vld [vmem:[%s343 + $0xd90] sm:$0xff]
        %v997 = vld [vmem:[%s343 + $0xd98] sm:$0xff]
        %v998 = vld [vmem:[%s343 + $0xda0] sm:$0xff]
        %v999 = vld [vmem:[%s343 + $0xda8] sm:$0xff]
        %v1000 = vld [vmem:[%s343 + $0xdb0] sm:$0xff]
        %v1001 = vld [vmem:[%s343 + $0xdb8] sm:$0xff]
        %v1002 = vld [vmem:[%s343 + $0xdc0] sm:$0xff]
        %v1003 = vld [vmem:[%s343 + $0xdc8] sm:$0xff]
        %v1004 = vld [vmem:[%s343 + $0xdd0] sm:$0xff]
        %v1005 = vld [vmem:[%s343 + $0xdd8] sm:$0xff]
        %v1006 = vld [vmem:[%s343 + $0xde0] sm:$0xff]
        %v1007 = vld [vmem:[%s343 + $0xde8] sm:$0xff]
        %v1008 = vld [vmem:[%s343 + $0xdf0] sm:$0xff]
        %v1009 = vld [vmem:[%s343 + $0xdf8] sm:$0xff]
        %v1010 = vld [vmem:[%s343 + $0xe00] sm:$0xff]
        %v1011 = vld [vmem:[%s343 + $0xe08] sm:$0xff]
        %v1012 = vld [vmem:[%s343 + $0xe10] sm:$0xff]
        %v1013 = vld [vmem:[%s343 + $0xe18] sm:$0xff]
        %v1014 = vld [vmem:[%s343 + $0xe20] sm:$0xff]
        %v1015 = vld [vmem:[%s343 + $0xe28] sm:$0xff]
        %v1016 = vld [vmem:[%s343 + $0xe30] sm:$0xff]
        %v1017 = vld [vmem:[%s343 + $0xe38] sm:$0xff]
        %v1018 = vld [vmem:[%s343 + $0xe40] sm:$0xff]
        %v1019 = vld [vmem:[%s343 + $0xe48] sm:$0xff]
        %v1020 = vld [vmem:[%s343 + $0xe50] sm:$0xff]
        %v1021 = vld [vmem:[%s343 + $0xe58] sm:$0xff]
        %v1022 = vld [vmem:[%s343 + $0xe60] sm:$0xff]
        %v1023 = vld [vmem:[%s343 + $0xe68] sm:$0xff]
        %v1024 = vld [vmem:[%s343 + $0xe70] sm:$0xff]
        %v1025 = vld [vmem:[%s343 + $0xe78] sm:$0xff]
        %v1026 = vld [vmem:[%s343 + $0xe80] sm:$0xff]
        %v1027 = vld [vmem:[%s343 + $0xe88] sm:$0xff]
        %v1028 = vld [vmem:[%s343 + $0xe90] sm:$0xff]
        %v1029 = vld [vmem:[%s343 + $0xe98] sm:$0xff]
        %v1030 = vld [vmem:[%s343 + $0xea0] sm:$0xff]
        %v1031 = vld [vmem:[%s343 + $0xea8] sm:$0xff]
        %v1032 = vld [vmem:[%s343 + $0xeb0] sm:$0xff]
        %v1033 = vld [vmem:[%s343 + $0xeb8] sm:$0xff]
        %v1034 = vld [vmem:[%s343 + $0xec0] sm:$0xff]
        %v1035 = vld [vmem:[%s343 + $0xec8] sm:$0xff]
        %v1036 = vld [vmem:[%s343 + $0xed0] sm:$0xff]
        %v1037 = vld [vmem:[%s343 + $0xed8] sm:$0xff]
        %v1038 = vld [vmem:[%s343 + $0xee0] sm:$0xff]
        %v1039 = vld [vmem:[%s343 + $0xee8] sm:$0xff]
        %v1040 = vld [vmem:[%s343 + $0xef0] sm:$0xff]
        %v1041 = vld [vmem:[%s343 + $0xef8] sm:$0xff]
        %v1042 = vld [vmem:[%s343 + $0xf00] sm:$0xff]
        %v1043 = vld [vmem:[%s343 + $0xf08] sm:$0xff]
        %v1044 = vld [vmem:[%s343 + $0xf10] sm:$0xff]
        %v1045 = vld [vmem:[%s343 + $0xf18] sm:$0xff]
        %v1046 = vld [vmem:[%s343 + $0xf20] sm:$0xff]
        %v1047 = vld [vmem:[%s343 + $0xf28] sm:$0xff]
        %v1048 = vld [vmem:[%s343 + $0xf30] sm:$0xff]
        %v1049 = vld [vmem:[%s343 + $0xf38] sm:$0xff]
        %v1050 = vld [vmem:[%s343 + $0xf40] sm:$0xff]
        %v1051 = vld [vmem:[%s343 + $0xf48] sm:$0xff]
        %v1052 = vld [vmem:[%s343 + $0xf50] sm:$0xff]
        %v1053 = vld [vmem:[%s343 + $0xf58] sm:$0xff]
        %v1054 = vld [vmem:[%s343 + $0xf60] sm:$0xff]
        %v1055 = vld [vmem:[%s343 + $0xf68] sm:$0xff]
        %v1056 = vld [vmem:[%s343 + $0xf70] sm:$0xff]
        %v1057 = vld [vmem:[%s343 + $0xf78] sm:$0xff]
        %v1058 = vld [vmem:[%s343 + $0xf80] sm:$0xff]
        %v1059 = vld [vmem:[%s343 + $0xf88] sm:$0xff]
        %v1060 = vld [vmem:[%s343 + $0xf90] sm:$0xff]
        %v1061 = vld [vmem:[%s343 + $0xf98] sm:$0xff]
        %v1062 = vld [vmem:[%s343 + $0xfa0] sm:$0xff]
        %v1063 = vld [vmem:[%s343 + $0xfa8] sm:$0xff]
        %v1064 = vld [vmem:[%s343 + $0xfb0] sm:$0xff]
        %v1065 = vld [vmem:[%s343 + $0xfb8] sm:$0xff]
        %v1066 = vld [vmem:[%s343 + $0xfc0] sm:$0xff]
        %v1067 = vld [vmem:[%s343 + $0xfc8] sm:$0xff]
        %v1068 = vld [vmem:[%s343 + $0xfd0] sm:$0xff]
        %v1069 = vld [vmem:[%s343 + $0xfd8] sm:$0xff]
        %v1070 = vld [vmem:[%s343 + $0xfe0] sm:$0xff]
        %v1071 = vld [vmem:[%s343 + $0xfe8] sm:$0xff]
        %v1072 = vld [vmem:[%s343 + $0xff0] sm:$0xff]
        %v1073 = vld [vmem:[%s343 + $0xff8] sm:$0xff]
        %v1074 = vld [vmem:[%s343 + $0x1000] sm:$0xff]
        %v1075 = vld [vmem:[%s343 + $0x1008] sm:$0xff]
        %v1076 = vld [vmem:[%s343 + $0x1010] sm:$0xff]
        %v1077 = vld [vmem:[%s343 + $0x1018] sm:$0xff]
        %v1078 = vld [vmem:[%s343 + $0x1020] sm:$0xff]
        %v1079 = vld [vmem:[%s343 + $0x1028] sm:$0xff]
        %v1080 = vld [vmem:[%s343 + $0x1030] sm:$0xff]
        %v1081 = vld [vmem:[%s343 + $0x1038] sm:$0xff]
        %v1082 = vld [vmem:[%s343 + $0x1040] sm:$0xff]
        %v1083 = vld [vmem:[%s343 + $0x1048] sm:$0xff]
        %v1084 = vld [vmem:[%s343 + $0x1050] sm:$0xff]
        %v1085 = vld [vmem:[%s343 + $0x1058] sm:$0xff]
        %v1086 = vld [vmem:[%s343 + $0x1060] sm:$0xff]
        %v1087 = vld [vmem:[%s343 + $0x1068] sm:$0xff]
        %v1088 = vld [vmem:[%s343 + $0x1070] sm:$0xff]
        %v1089 = vld [vmem:[%s343 + $0x1078] sm:$0xff]
        %v1090 = vld [vmem:[%s343 + $0x1080] sm:$0xff]
        %v1091 = vld [vmem:[%s343 + $0x1088] sm:$0xff]
        %v1092 = vld [vmem:[%s343 + $0x1090] sm:$0xff]
        %v1093 = vld [vmem:[%s343 + $0x1098] sm:$0xff]
        %v1094 = vld [vmem:[%s343 + $0x10a0] sm:$0xff]
        %v1095 = vld [vmem:[%s343 + $0x10a8] sm:$0xff]
        %v1096 = vld [vmem:[%s343 + $0x10b0] sm:$0xff]
        %v1097 = vld [vmem:[%s343 + $0x10b8] sm:$0xff]
        %v1098 = vld [vmem:[%s343 + $0x10c0] sm:$0xff]
        %v1099 = vld [vmem:[%s343 + $0x10c8] sm:$0xff]
        %v1100 = vld [vmem:[%s343 + $0x10d0] sm:$0xff]
        %v1101 = vld [vmem:[%s343 + $0x10d8] sm:$0xff]
        %v1102 = vld [vmem:[%s343 + $0x10e0] sm:$0xff]
        %v1103 = vld [vmem:[%s343 + $0x10e8] sm:$0xff]
        %v1104 = vld [vmem:[%s343 + $0x10f0] sm:$0xff]
        %v1105 = vld [vmem:[%s343 + $0x10f8] sm:$0xff]
        %v1106 = vld [vmem:[%s343 + $0x1100] sm:$0xff]
        %v1107 = vld [vmem:[%s343 + $0x1108] sm:$0xff]
        %v1108 = vld [vmem:[%s343 + $0x1110] sm:$0xff]
        %v1109 = vld [vmem:[%s343 + $0x1118] sm:$0xff]
        %v1110 = vld [vmem:[%s343 + $0x1120] sm:$0xff]
        %v1111 = vld [vmem:[%s343 + $0x1128] sm:$0xff]
        %v1112 = vld [vmem:[%s343 + $0x1130] sm:$0xff]
        %v1113 = vld [vmem:[%s343 + $0x1138] sm:$0xff]
        %v1114 = vld [vmem:[%s343 + $0x1140] sm:$0xff]
        %v1115 = vld [vmem:[%s343 + $0x1148] sm:$0xff]
        %v1116 = vld [vmem:[%s343 + $0x1150] sm:$0xff]
        %v1117 = vld [vmem:[%s343 + $0x1158] sm:$0xff]
        %v1118 = vld [vmem:[%s343 + $0x1160] sm:$0xff]
        %v1119 = vld [vmem:[%s343 + $0x1168] sm:$0xff]
        %v1120 = vld [vmem:[%s343 + $0x1170] sm:$0xff]
        %v1121 = vld [vmem:[%s343 + $0x1178] sm:$0xff]
        %v1122 = vld [vmem:[%s343 + $0x1180] sm:$0xff]
        %v1123 = vld [vmem:[%s343 + $0x1188] sm:$0xff]
        %v1124 = vld [vmem:[%s343 + $0x1190] sm:$0xff]
        %v1125 = vld [vmem:[%s343 + $0x1198] sm:$0xff]
        %v1126 = vld [vmem:[%s343 + $0x11a0] sm:$0xff]
        %v1127 = vld [vmem:[%s343 + $0x11a8] sm:$0xff]
        %v1128 = vld [vmem:[%s343 + $0x11b0] sm:$0xff]
        %v1129 = vld [vmem:[%s343 + $0x11b8] sm:$0xff]
        %v1130 = vld [vmem:[%s343 + $0x11c0] sm:$0xff]
        %v1131 = vld [vmem:[%s343 + $0x11c8] sm:$0xff]
        %v1132 = vld [vmem:[%s343 + $0x11d0] sm:$0xff]
        %v1133 = vld [vmem:[%s343 + $0x11d8] sm:$0xff]
        %v1134 = vld [vmem:[%s343 + $0x11e0] sm:$0xff]
        %v1135 = vld [vmem:[%s343 + $0x11e8] sm:$0xff]
        %v1136 = vld [vmem:[%s343 + $0x11f0] sm:$0xff]
        %v1137 = vld [vmem:[%s343 + $0x11f8] sm:$0xff]
        %v1138 = vld [vmem:[%s343 + $0x1200] sm:$0xff]
        %v1139 = vld [vmem:[%s343 + $0x1208] sm:$0xff]
        %v1140 = vld [vmem:[%s343 + $0x1210] sm:$0xff]
        %v1141 = vld [vmem:[%s343 + $0x1218] sm:$0xff]
        %v1142 = vld [vmem:[%s343 + $0x1220] sm:$0xff]
        %v1143 = vld [vmem:[%s343 + $0x1228] sm:$0xff]
        %v1144 = vld [vmem:[%s343 + $0x1230] sm:$0xff]
        %v1145 = vld [vmem:[%s343 + $0x1238] sm:$0xff]
        %v1146 = vld [vmem:[%s343 + $0x1240] sm:$0xff]
        %v1147 = vld [vmem:[%s343 + $0x1248] sm:$0xff]
        %v1148 = vld [vmem:[%s343 + $0x1250] sm:$0xff]
        %v1149 = vld [vmem:[%s343 + $0x1258] sm:$0xff]
        %v1150 = vld [vmem:[%s343 + $0x1260] sm:$0xff]
        %v1151 = vld [vmem:[%s343 + $0x1268] sm:$0xff]
        %v1152 = vld [vmem:[%s343 + $0x1270] sm:$0xff]
        %v1153 = vld [vmem:[%s343 + $0x1278] sm:$0xff]
        %v1154 = vld [vmem:[%s343 + $0x1280] sm:$0xff]
        %v1155 = vld [vmem:[%s343 + $0x1288] sm:$0xff]
        %v1156 = vld [vmem:[%s343 + $0x1290] sm:$0xff]
        %v1157 = vld [vmem:[%s343 + $0x1298] sm:$0xff]
        %v1158 = vld [vmem:[%s343 + $0x12a0] sm:$0xff]
        %v1159 = vld [vmem:[%s343 + $0x12a8] sm:$0xff]
        %v1160 = vld [vmem:[%s343 + $0x12b0] sm:$0xff]
        %v1161 = vld [vmem:[%s343 + $0x12b8] sm:$0xff]
        %v1162 = vld [vmem:[%s343 + $0x12c0] sm:$0xff]
        %v1163 = vld [vmem:[%s343 + $0x12c8] sm:$0xff]
        %v1164 = vld [vmem:[%s343 + $0x12d0] sm:$0xff]
        %v1165 = vld [vmem:[%s343 + $0x12d8] sm:$0xff]
        %v1166 = vld [vmem:[%s343 + $0x12e0] sm:$0xff]
        %v1167 = vld [vmem:[%s343 + $0x12e8] sm:$0xff]
        %v1168 = vld [vmem:[%s343 + $0x12f0] sm:$0xff]
        %v1169 = vld [vmem:[%s343 + $0x12f8] sm:$0xff]
        %v1170 = vld [vmem:[%s343 + $0x1300] sm:$0xff]
        %v1171 = vld [vmem:[%s343 + $0x1308] sm:$0xff]
        %v1172 = vld [vmem:[%s343 + $0x1310] sm:$0xff]
        %v1173 = vld [vmem:[%s343 + $0x1318] sm:$0xff]
        %v1174 = vld [vmem:[%s343 + $0x1320] sm:$0xff]
        %v1175 = vld [vmem:[%s343 + $0x1328] sm:$0xff]
        %v1176 = vld [vmem:[%s343 + $0x1330] sm:$0xff]
        %v1177 = vld [vmem:[%s343 + $0x1338] sm:$0xff]
        %v1178 = vld [vmem:[%s343 + $0x1340] sm:$0xff]
        %v1179 = vld [vmem:[%s343 + $0x1348] sm:$0xff]
        %v1180 = vld [vmem:[%s343 + $0x1350] sm:$0xff]
        %v1181 = vld [vmem:[%s343 + $0x1358] sm:$0xff]
        %v1182 = vld [vmem:[%s343 + $0x1360] sm:$0xff]
        %v1183 = vld [vmem:[%s343 + $0x1368] sm:$0xff]
        %v1184 = vld [vmem:[%s343 + $0x1370] sm:$0xff]
        %v1185 = vld [vmem:[%s343 + $0x1378] sm:$0xff]
        %v1186 = vld [vmem:[%s343 + $0x1380] sm:$0xff]
        %v1187 = vld [vmem:[%s343 + $0x1388] sm:$0xff]
        %v1188 = vld [vmem:[%s343 + $0x1390] sm:$0xff]
        %v1189 = vld [vmem:[%s343 + $0x1398] sm:$0xff]
        %v1190 = vld [vmem:[%s343 + $0x13a0] sm:$0xff]
        %v1191 = vld [vmem:[%s343 + $0x13a8] sm:$0xff]
        %v1192 = vld [vmem:[%s343 + $0x13b0] sm:$0xff]
        %v1193 = vld [vmem:[%s343 + $0x13b8] sm:$0xff]
        %v1194 = vld [vmem:[%s343 + $0x13c0] sm:$0xff]
        %v1195 = vld [vmem:[%s343 + $0x13c8] sm:$0xff]
        %v1196 = vld [vmem:[%s343 + $0x13d0] sm:$0xff]
        %v1197 = vld [vmem:[%s343 + $0x13d8] sm:$0xff]
        %v1198 = vld [vmem:[%s343 + $0x13e0] sm:$0xff]
        %v1199 = vld [vmem:[%s343 + $0x13e8] sm:$0xff]
        %v1200 = vld [vmem:[%s343 + $0x13f0] sm:$0xff]
        %v1201 = vld [vmem:[%s343 + $0x13f8] sm:$0xff]
        %v1202 = vld [vmem:[%s343 + $0x1400] sm:$0xff]
        %v1203 = vld [vmem:[%s343 + $0x1408] sm:$0xff]
        %v1204 = vld [vmem:[%s343 + $0x1410] sm:$0xff]
        %v1205 = vld [vmem:[%s343 + $0x1418] sm:$0xff]
        %v1206 = vld [vmem:[%s343 + $0x1420] sm:$0xff]
        %v1207 = vld [vmem:[%s343 + $0x1428] sm:$0xff]
        %v1208 = vld [vmem:[%s343 + $0x1430] sm:$0xff]
        %v1209 = vld [vmem:[%s343 + $0x1438] sm:$0xff]
        %v1210 = vld [vmem:[%s343 + $0x1440] sm:$0xff]
        %v1211 = vld [vmem:[%s343 + $0x1448] sm:$0xff]
        %v1212 = vld [vmem:[%s343 + $0x1450] sm:$0xff]
        %v1213 = vld [vmem:[%s343 + $0x1458] sm:$0xff]
        %v1214 = vld [vmem:[%s343 + $0x1460] sm:$0xff]
        %v1215 = vld [vmem:[%s343 + $0x1468] sm:$0xff]
        %v1216 = vld [vmem:[%s343 + $0x1470] sm:$0xff]
        %v1217 = vld [vmem:[%s343 + $0x1478] sm:$0xff]
        %v1218 = vld [vmem:[%s343 + $0x1480] sm:$0xff]
        %v1219 = vld [vmem:[%s343 + $0x1488] sm:$0xff]
        %v1220 = vld [vmem:[%s343 + $0x1490] sm:$0xff]
        %v1221 = vld [vmem:[%s343 + $0x1498] sm:$0xff]
        %v1222 = vld [vmem:[%s343 + $0x14a0] sm:$0xff]
        %v1223 = vld [vmem:[%s343 + $0x14a8] sm:$0xff]
        %v1224 = vld [vmem:[%s343 + $0x14b0] sm:$0xff]
        %v1225 = vld [vmem:[%s343 + $0x14b8] sm:$0xff]
        %v1226 = vld [vmem:[%s343 + $0x14c0] sm:$0xff]
        %v1227 = vld [vmem:[%s343 + $0x14c8] sm:$0xff]
        %v1228 = vld [vmem:[%s343 + $0x14d0] sm:$0xff]
        %v1229 = vld [vmem:[%s343 + $0x14d8] sm:$0xff]
        %v1230 = vld [vmem:[%s343 + $0x14e0] sm:$0xff]
        %v1231 = vld [vmem:[%s343 + $0x14e8] sm:$0xff]
        %v1232 = vld [vmem:[%s343 + $0x14f0] sm:$0xff]
        %v1233 = vld [vmem:[%s343 + $0x14f8] sm:$0xff]
        %v1234 = vld [vmem:[%s343 + $0x1500] sm:$0xff]
        %v1235 = vld [vmem:[%s343 + $0x1508] sm:$0xff]
        %v1236 = vld [vmem:[%s343 + $0x1510] sm:$0xff]
        %v1237 = vld [vmem:[%s343 + $0x1518] sm:$0xff]
        %v1238 = vld [vmem:[%s343 + $0x1520] sm:$0xff]
        %v1239 = vld [vmem:[%s343 + $0x1528] sm:$0xff]
        %v1240 = vld [vmem:[%s343 + $0x1530] sm:$0xff]
        %v1241 = vld [vmem:[%s343 + $0x1538] sm:$0xff]
        %v1242 = vld [vmem:[%s343 + $0x1540] sm:$0xff]
        %v1243 = vld [vmem:[%s343 + $0x1548] sm:$0xff]
        %v1244 = vld [vmem:[%s343 + $0x1550] sm:$0xff]
        %v1245 = vld [vmem:[%s343 + $0x1558] sm:$0xff]
        %v1246 = vld [vmem:[%s343 + $0x1560] sm:$0xff]
        %v1247 = vld [vmem:[%s343 + $0x1568] sm:$0xff]
        %v1248 = vld [vmem:[%s343 + $0x1570] sm:$0xff]
        %v1249 = vld [vmem:[%s343 + $0x1578] sm:$0xff]
        %v1250 = vld [vmem:[%s343 + $0x1580] sm:$0xff]
        %v1251 = vld [vmem:[%s343 + $0x1588] sm:$0xff]
        %v1252 = vld [vmem:[%s343 + $0x1590] sm:$0xff]
        %v1253 = vld [vmem:[%s343 + $0x1598] sm:$0xff]
        %v1254 = vld [vmem:[%s343 + $0x15a0] sm:$0xff]
        %v1255 = vld [vmem:[%s343 + $0x15a8] sm:$0xff]
        %v1256 = vld [vmem:[%s343 + $0x15b0] sm:$0xff]
        %v1257 = vld [vmem:[%s343 + $0x15b8] sm:$0xff]
        %v1258 = vld [vmem:[%s343 + $0x15c0] sm:$0xff]
        %v1259 = vld [vmem:[%s343 + $0x15c8] sm:$0xff]
        %v1260 = vld [vmem:[%s343 + $0x15d0] sm:$0xff]
        %v1261 = vld [vmem:[%s343 + $0x15d8] sm:$0xff]
        %v1262 = vld [vmem:[%s343 + $0x15e0] sm:$0xff]
        %v1263 = vld [vmem:[%s343 + $0x15e8] sm:$0xff]
        %v1264 = vld [vmem:[%s343 + $0x15f0] sm:$0xff]
        %v1265 = vld [vmem:[%s343 + $0x15f8] sm:$0xff]
        %v1266 = vld [vmem:[%s343 + $0x1600] sm:$0xff]
        %v1267 = vld [vmem:[%s343 + $0x1608] sm:$0xff]
        %v1268 = vld [vmem:[%s343 + $0x1610] sm:$0xff]
        %v1269 = vld [vmem:[%s343 + $0x1618] sm:$0xff]
        %v1270 = vld [vmem:[%s343 + $0x1620] sm:$0xff]
        %v1271 = vld [vmem:[%s343 + $0x1628] sm:$0xff]
        %v1272 = vld [vmem:[%s343 + $0x1630] sm:$0xff]
        %v1273 = vld [vmem:[%s343 + $0x1638] sm:$0xff]
        %v1274 = vld [vmem:[%s343 + $0x1640] sm:$0xff]
        %v1275 = vld [vmem:[%s343 + $0x1648] sm:$0xff]
        %v1276 = vld [vmem:[%s343 + $0x1650] sm:$0xff]
        %v1277 = vld [vmem:[%s343 + $0x1658] sm:$0xff]
        %v1278 = vld [vmem:[%s343 + $0x1660] sm:$0xff]
        %v1279 = vld [vmem:[%s343 + $0x1668] sm:$0xff]
        %v1280 = vld [vmem:[%s343 + $0x1670] sm:$0xff]
        %v1281 = vld [vmem:[%s343 + $0x1678] sm:$0xff]
        %v1282 = vld [vmem:[%s343 + $0x1680] sm:$0xff]
        %v1283 = vld [vmem:[%s343 + $0x1688] sm:$0xff]
        %v1284 = vld [vmem:[%s343 + $0x1690] sm:$0xff]
        %v1285 = vld [vmem:[%s343 + $0x1698] sm:$0xff]
        %v1286 = vld [vmem:[%s343 + $0x16a0] sm:$0xff]
        %v1287 = vld [vmem:[%s343 + $0x16a8] sm:$0xff]
        %v1288 = vld [vmem:[%s343 + $0x16b0] sm:$0xff]
        %v1289 = vld [vmem:[%s343 + $0x16b8] sm:$0xff]
        %v1290 = vld [vmem:[%s343 + $0x16c0] sm:$0xff]
        %v1291 = vld [vmem:[%s343 + $0x16c8] sm:$0xff]
        %v1292 = vld [vmem:[%s343 + $0x16d0] sm:$0xff]
        %v1293 = vld [vmem:[%s343 + $0x16d8] sm:$0xff]
        %v1294 = vld [vmem:[%s343 + $0x16e0] sm:$0xff]
        %v1295 = vld [vmem:[%s343 + $0x16e8] sm:$0xff]
        %v1296 = vld [vmem:[%s343 + $0x16f0] sm:$0xff]
        %v1297 = vld [vmem:[%s343 + $0x16f8] sm:$0xff]
        %v1298 = vld [vmem:[%s343 + $0x1700] sm:$0xff]
        %v1299 = vld [vmem:[%s343 + $0x1708] sm:$0xff]
        %v1300 = vld [vmem:[%s343 + $0x1710] sm:$0xff]
        %v1301 = vld [vmem:[%s343 + $0x1718] sm:$0xff]
        %v1302 = vld [vmem:[%s343 + $0x1720] sm:$0xff]
        %v1303 = vld [vmem:[%s343 + $0x1728] sm:$0xff]
        %v1304 = vld [vmem:[%s343 + $0x1730] sm:$0xff]
        %v1305 = vld [vmem:[%s343 + $0x1738] sm:$0xff]
        %v1306 = vld [vmem:[%s343 + $0x1740] sm:$0xff]
        %v1307 = vld [vmem:[%s343 + $0x1748] sm:$0xff]
        %v1308 = vld [vmem:[%s343 + $0x1750] sm:$0xff]
        %v1309 = vld [vmem:[%s343 + $0x1758] sm:$0xff]
        %v1310 = vld [vmem:[%s343 + $0x1760] sm:$0xff]
        %v1311 = vld [vmem:[%s343 + $0x1768] sm:$0xff]
        %v1312 = vld [vmem:[%s343 + $0x1770] sm:$0xff]
        %v1313 = vld [vmem:[%s343 + $0x1778] sm:$0xff]
        %v1314 = vld [vmem:[%s343 + $0x1780] sm:$0xff]
        %v1315 = vld [vmem:[%s343 + $0x1788] sm:$0xff]
        %v1316 = vld [vmem:[%s343 + $0x1790] sm:$0xff]
        %v1317 = vld [vmem:[%s343 + $0x1798] sm:$0xff]
        %v1318 = vld [vmem:[%s343 + $0x17a0] sm:$0xff]
        %v1319 = vld [vmem:[%s343 + $0x17a8] sm:$0xff]
        %v1320 = vld [vmem:[%s343 + $0x17b0] sm:$0xff]
        %v1321 = vld [vmem:[%s343 + $0x17b8] sm:$0xff]
        %v1322 = vld [vmem:[%s343 + $0x17c0] sm:$0xff]
        %v1323 = vld [vmem:[%s343 + $0x17c8] sm:$0xff]
        %v1324 = vld [vmem:[%s343 + $0x17d0] sm:$0xff]
        %v1325 = vld [vmem:[%s343 + $0x17d8] sm:$0xff]
        %v1326 = vld [vmem:[%s343 + $0x17e0] sm:$0xff]
        %v1327 = vld [vmem:[%s343 + $0x17e8] sm:$0xff]
        %v1328 = vld [vmem:[%s343 + $0x17f0] sm:$0xff]
        %v1329 = vld [vmem:[%s343 + $0x17f8] sm:$0xff]
        %v1330 = vld [vmem:[%s343 + $0x1800] sm:$0xff]
        %v1331 = vld [vmem:[%s343 + $0x1808] sm:$0xff]
        %v1332 = vld [vmem:[%s343 + $0x1810] sm:$0xff]
        %v1333 = vld [vmem:[%s343 + $0x1818] sm:$0xff]
        %v1334 = vld [vmem:[%s343 + $0x1820] sm:$0xff]
        %v1335 = vld [vmem:[%s343 + $0x1828] sm:$0xff]
        %v1336 = vld [vmem:[%s343 + $0x1830] sm:$0xff]
        %v1337 = vld [vmem:[%s343 + $0x1838] sm:$0xff]
        %v1338 = vld [vmem:[%s343 + $0x1840] sm:$0xff]
        %v1339 = vld [vmem:[%s343 + $0x1848] sm:$0xff]
        %v1340 = vld [vmem:[%s343 + $0x1850] sm:$0xff]
        %v1341 = vld [vmem:[%s343 + $0x1858] sm:$0xff]
        %v1342 = vld [vmem:[%s343 + $0x1860] sm:$0xff]
        %v1343 = vld [vmem:[%s343 + $0x1868] sm:$0xff]
        %v1344 = vld [vmem:[%s343 + $0x1870] sm:$0xff]
        %v1345 = vld [vmem:[%s343 + $0x1878] sm:$0xff]
        %v1346 = vld [vmem:[%s343 + $0x1880] sm:$0xff]
        %v1347 = vld [vmem:[%s343 + $0x1888] sm:$0xff]
        %v1348 = vld [vmem:[%s343 + $0x1890] sm:$0xff]
        %v1349 = vld [vmem:[%s343 + $0x1898] sm:$0xff]
        %v1350 = vld [vmem:[%s343 + $0x18a0] sm:$0xff]
        %v1351 = vld [vmem:[%s343 + $0x18a8] sm:$0xff]
        %v1352 = vld [vmem:[%s343 + $0x18b0] sm:$0xff]
        %v1353 = vld [vmem:[%s343 + $0x18b8] sm:$0xff]
        %v1354 = vld [vmem:[%s343 + $0x18c0] sm:$0xff]
        %v1355 = vld [vmem:[%s343 + $0x18c8] sm:$0xff]
        %v1356 = vld [vmem:[%s343 + $0x18d0] sm:$0xff]
        %v1357 = vld [vmem:[%s343 + $0x18d8] sm:$0xff]
        %v1358 = vld [vmem:[%s343 + $0x18e0] sm:$0xff]
        %v1359 = vld [vmem:[%s343 + $0x18e8] sm:$0xff]
        %v1360 = vld [vmem:[%s343 + $0x18f0] sm:$0xff]
        %v1361 = vld [vmem:[%s343 + $0x18f8] sm:$0xff]
        %v1362 = vld [vmem:[%s343 + $0x1900] sm:$0xff]
        %v1363 = vld [vmem:[%s343 + $0x1908] sm:$0xff]
        %v1364 = vld [vmem:[%s343 + $0x1910] sm:$0xff]
        %v1365 = vld [vmem:[%s343 + $0x1918] sm:$0xff]
        %v1366 = vld [vmem:[%s343 + $0x1920] sm:$0xff]
        %v1367 = vld [vmem:[%s343 + $0x1928] sm:$0xff]
        %v1368 = vld [vmem:[%s343 + $0x1930] sm:$0xff]
        %v1369 = vld [vmem:[%s343 + $0x1938] sm:$0xff]
        %v1370 = vld [vmem:[%s343 + $0x1940] sm:$0xff]
        %v1371 = vld [vmem:[%s343 + $0x1948] sm:$0xff]
        %v1372 = vld [vmem:[%s343 + $0x1950] sm:$0xff]
        %v1373 = vld [vmem:[%s343 + $0x1958] sm:$0xff]
        %v1374 = vld [vmem:[%s343 + $0x1960] sm:$0xff]
        %v1375 = vld [vmem:[%s343 + $0x1968] sm:$0xff]
        %v1376 = vld [vmem:[%s343 + $0x1970] sm:$0xff]
        %v1377 = vld [vmem:[%s343 + $0x1978] sm:$0xff]
        %v1378 = vld [vmem:[%s343 + $0x1980] sm:$0xff]
        %v1379 = vld [vmem:[%s343 + $0x1988] sm:$0xff]
        %v1380 = vld [vmem:[%s343 + $0x1990] sm:$0xff]
        %v1381 = vld [vmem:[%s343 + $0x1998] sm:$0xff]
        %v1382 = vld [vmem:[%s343 + $0x19a0] sm:$0xff]
        %v1383 = vld [vmem:[%s343 + $0x19a8] sm:$0xff]
        %v1384 = vld [vmem:[%s343 + $0x19b0] sm:$0xff]
        %v1385 = vld [vmem:[%s343 + $0x19b8] sm:$0xff]
        %v1386 = vld [vmem:[%s343 + $0x19c0] sm:$0xff]
        %v1387 = vld [vmem:[%s343 + $0x19c8] sm:$0xff]
        %v1388 = vld [vmem:[%s343 + $0x19d0] sm:$0xff]
        %v1389 = vld [vmem:[%s343 + $0x19d8] sm:$0xff]
        %v1390 = vld [vmem:[%s343 + $0x19e0] sm:$0xff]
        %v1391 = vld [vmem:[%s343 + $0x19e8] sm:$0xff]
        %v1392 = vld [vmem:[%s343 + $0x19f0] sm:$0xff]
        %v1393 = vld [vmem:[%s343 + $0x19f8] sm:$0xff]
        %v1394 = vld [vmem:[%s343 + $0x1a00] sm:$0xff]
        %v1395 = vld [vmem:[%s343 + $0x1a08] sm:$0xff]
        %v1396 = vld [vmem:[%s343 + $0x1a10] sm:$0xff]
        %v1397 = vld [vmem:[%s343 + $0x1a18] sm:$0xff]
        %v1398 = vld [vmem:[%s343 + $0x1a20] sm:$0xff]
        %v1399 = vld [vmem:[%s343 + $0x1a28] sm:$0xff]
        %v1400 = vld [vmem:[%s343 + $0x1a30] sm:$0xff]
        %v1401 = vld [vmem:[%s343 + $0x1a38] sm:$0xff]
        %v1402 = vld [vmem:[%s343 + $0x1a40] sm:$0xff]
        %v1403 = vld [vmem:[%s343 + $0x1a48] sm:$0xff]
        %v1404 = vld [vmem:[%s343 + $0x1a50] sm:$0xff]
        %v1405 = vld [vmem:[%s343 + $0x1a58] sm:$0xff]
        %v1406 = vld [vmem:[%s343 + $0x1a60] sm:$0xff]
        %v1407 = vld [vmem:[%s343 + $0x1a68] sm:$0xff]
        %v1408 = vld [vmem:[%s343 + $0x1a70] sm:$0xff]
        %v1409 = vld [vmem:[%s343 + $0x1a78] sm:$0xff]
        %v1410 = vld [vmem:[%s343 + $0x1a80] sm:$0xff]
        %v1411 = vld [vmem:[%s343 + $0x1a88] sm:$0xff]
        %v1412 = vld [vmem:[%s343 + $0x1a90] sm:$0xff]
        %v1413 = vld [vmem:[%s343 + $0x1a98] sm:$0xff]
        %v1414 = vld [vmem:[%s343 + $0x1aa0] sm:$0xff]
        %v1415 = vld [vmem:[%s343 + $0x1aa8] sm:$0xff]
        %v1416 = vld [vmem:[%s343 + $0x1ab0] sm:$0xff]
        %v1417 = vld [vmem:[%s343 + $0x1ab8] sm:$0xff]
        %v1418 = vld [vmem:[%s343 + $0x1ac0] sm:$0xff]
        %v1419 = vld [vmem:[%s343 + $0x1ac8] sm:$0xff]
        %v1420 = vld [vmem:[%s343 + $0x1ad0] sm:$0xff]
        %v1421 = vld [vmem:[%s343 + $0x1ad8] sm:$0xff]
        %v1422 = vld [vmem:[%s343 + $0x1ae0] sm:$0xff]
        %v1423 = vld [vmem:[%s343 + $0x1ae8] sm:$0xff]
        %v1424 = vld [vmem:[%s343 + $0x1af0] sm:$0xff]
        %v1425 = vld [vmem:[%s343 + $0x1af8] sm:$0xff]
        %v1426 = vld [vmem:[%s343 + $0x1b00] sm:$0xff]
        %v1427 = vld [vmem:[%s343 + $0x1b08] sm:$0xff]
        %v1428 = vld [vmem:[%s343 + $0x1b10] sm:$0xff]
        %v1429 = vld [vmem:[%s343 + $0x1b18] sm:$0xff]
        %v1430 = vld [vmem:[%s343 + $0x1b20] sm:$0xff]
        %v1431 = vld [vmem:[%s343 + $0x1b28] sm:$0xff]
        %v1432 = vld [vmem:[%s343 + $0x1b30] sm:$0xff]
        %v1433 = vld [vmem:[%s343 + $0x1b38] sm:$0xff]
        %v1434 = vld [vmem:[%s343 + $0x1b40] sm:$0xff]
        %v1435 = vld [vmem:[%s343 + $0x1b48] sm:$0xff]
        %v1436 = vld [vmem:[%s343 + $0x1b50] sm:$0xff]
        %v1437 = vld [vmem:[%s343 + $0x1b58] sm:$0xff]
        %v1438 = vld [vmem:[%s343 + $0x1b60] sm:$0xff]
        %v1439 = vld [vmem:[%s343 + $0x1b68] sm:$0xff]
        %v1440 = vld [vmem:[%s343 + $0x1b70] sm:$0xff]
        %v1441 = vld [vmem:[%s343 + $0x1b78] sm:$0xff]
        %v1442 = vld [vmem:[%s343 + $0x1b80] sm:$0xff]
        %v1443 = vld [vmem:[%s343 + $0x1b88] sm:$0xff]
        %v1444 = vld [vmem:[%s343 + $0x1b90] sm:$0xff]
        %v1445 = vld [vmem:[%s343 + $0x1b98] sm:$0xff]
        %v1446 = vld [vmem:[%s343 + $0x1ba0] sm:$0xff]
        %v1447 = vld [vmem:[%s343 + $0x1ba8] sm:$0xff]
        %v1448 = vld [vmem:[%s343 + $0x1bb0] sm:$0xff]
        %v1449 = vld [vmem:[%s343 + $0x1bb8] sm:$0xff]
        %v1450 = vld [vmem:[%s343 + $0x1bc0] sm:$0xff]
        %v1451 = vld [vmem:[%s343 + $0x1bc8] sm:$0xff]
        %v1452 = vld [vmem:[%s343 + $0x1bd0] sm:$0xff]
        %v1453 = vld [vmem:[%s343 + $0x1bd8] sm:$0xff]
        %v1454 = vld [vmem:[%s343 + $0x1be0] sm:$0xff]
        %v1455 = vld [vmem:[%s343 + $0x1be8] sm:$0xff]
        %v1456 = vld [vmem:[%s343 + $0x1bf0] sm:$0xff]
        %v1457 = vld [vmem:[%s343 + $0x1bf8] sm:$0xff]
        %v1458 = vld [vmem:[%s343 + $0x1c00] sm:$0xff]
        %v1459 = vld [vmem:[%s343 + $0x1c08] sm:$0xff]
        %v1460 = vld [vmem:[%s343 + $0x1c10] sm:$0xff]
        %v1461 = vld [vmem:[%s343 + $0x1c18] sm:$0xff]
        %v1462 = vld [vmem:[%s343 + $0x1c20] sm:$0xff]
        %v1463 = vld [vmem:[%s343 + $0x1c28] sm:$0xff]
        %v1464 = vld [vmem:[%s343 + $0x1c30] sm:$0xff]
        %v1465 = vld [vmem:[%s343 + $0x1c38] sm:$0xff]
        %v1466 = vld [vmem:[%s343 + $0x1c40] sm:$0xff]
        %v1467 = vld [vmem:[%s343 + $0x1c48] sm:$0xff]
        %v1468 = vld [vmem:[%s343 + $0x1c50] sm:$0xff]
        %v1469 = vld [vmem:[%s343 + $0x1c58] sm:$0xff]
        %v1470 = vld [vmem:[%s343 + $0x1c60] sm:$0xff]
        %v1471 = vld [vmem:[%s343 + $0x1c68] sm:$0xff]
        %v1472 = vld [vmem:[%s343 + $0x1c70] sm:$0xff]
        %v1473 = vld [vmem:[%s343 + $0x1c78] sm:$0xff]
        %v1474 = vld [vmem:[%s343 + $0x1c80] sm:$0xff]
        %v1475 = vld [vmem:[%s343 + $0x1c88] sm:$0xff]
        %v1476 = vld [vmem:[%s343 + $0x1c90] sm:$0xff]
        %v1477 = vld [vmem:[%s343 + $0x1c98] sm:$0xff]
        %v1478 = vld [vmem:[%s343 + $0x1ca0] sm:$0xff]
        %v1479 = vld [vmem:[%s343 + $0x1ca8] sm:$0xff]
        %v1480 = vld [vmem:[%s343 + $0x1cb0] sm:$0xff]
        %v1481 = vld [vmem:[%s343 + $0x1cb8] sm:$0xff]
        %v1482 = vld [vmem:[%s343 + $0x1cc0] sm:$0xff]
        %v1483 = vld [vmem:[%s343 + $0x1cc8] sm:$0xff]
        %v1484 = vld [vmem:[%s343 + $0x1cd0] sm:$0xff]
        %v1485 = vld [vmem:[%s343 + $0x1cd8] sm:$0xff]
        %v1486 = vld [vmem:[%s343 + $0x1ce0] sm:$0xff]
        %v1487 = vld [vmem:[%s343 + $0x1ce8] sm:$0xff]
        %v1488 = vld [vmem:[%s343 + $0x1cf0] sm:$0xff]
        %v1489 = vld [vmem:[%s343 + $0x1cf8] sm:$0xff]
        %v1490 = vld [vmem:[%s343 + $0x1d00] sm:$0xff]
        %v1491 = vld [vmem:[%s343 + $0x1d08] sm:$0xff]
        %v1492 = vld [vmem:[%s343 + $0x1d10] sm:$0xff]
        %v1493 = vld [vmem:[%s343 + $0x1d18] sm:$0xff]
        %v1494 = vld [vmem:[%s343 + $0x1d20] sm:$0xff]
        %v1495 = vld [vmem:[%s343 + $0x1d28] sm:$0xff]
        %v1496 = vld [vmem:[%s343 + $0x1d30] sm:$0xff]
        %v1497 = vld [vmem:[%s343 + $0x1d38] sm:$0xff]
        %v1498 = vld [vmem:[%s343 + $0x1d40] sm:$0xff]
        %v1499 = vld [vmem:[%s343 + $0x1d48] sm:$0xff]
        %v1500 = vld [vmem:[%s343 + $0x1d50] sm:$0xff]
        %v1501 = vld [vmem:[%s343 + $0x1d58] sm:$0xff]
        %v1502 = vld [vmem:[%s343 + $0x1d60] sm:$0xff]
        %v1503 = vld [vmem:[%s343 + $0x1d68] sm:$0xff]
        %v1504 = vld [vmem:[%s343 + $0x1d70] sm:$0xff]
        %v1505 = vld [vmem:[%s343 + $0x1d78] sm:$0xff]
        %v1506 = vld [vmem:[%s343 + $0x1d80] sm:$0xff]
        %v1507 = vld [vmem:[%s343 + $0x1d88] sm:$0xff]
        %v1508 = vld [vmem:[%s343 + $0x1d90] sm:$0xff]
        %v1509 = vld [vmem:[%s343 + $0x1d98] sm:$0xff]
        %v1510 = vld [vmem:[%s343 + $0x1da0] sm:$0xff]
        %v1511 = vld [vmem:[%s343 + $0x1da8] sm:$0xff]
        %v1512 = vld [vmem:[%s343 + $0x1db0] sm:$0xff]
        %v1513 = vld [vmem:[%s343 + $0x1db8] sm:$0xff]
        %v1514 = vld [vmem:[%s343 + $0x1dc0] sm:$0xff]
        %v1515 = vld [vmem:[%s343 + $0x1dc8] sm:$0xff]
        %v1516 = vld [vmem:[%s343 + $0x1dd0] sm:$0xff]
        %v1517 = vld [vmem:[%s343 + $0x1dd8] sm:$0xff]
        %v1518 = vld [vmem:[%s343 + $0x1de0] sm:$0xff]
        %v1519 = vld [vmem:[%s343 + $0x1de8] sm:$0xff]
        %v1520 = vld [vmem:[%s343 + $0x1df0] sm:$0xff]
        %v1521 = vld [vmem:[%s343 + $0x1df8] sm:$0xff]
        %v1522 = vld [vmem:[%s343 + $0x1e00] sm:$0xff]
        %v1523 = vld [vmem:[%s343 + $0x1e08] sm:$0xff]
        %v1524 = vld [vmem:[%s343 + $0x1e10] sm:$0xff]
        %v1525 = vld [vmem:[%s343 + $0x1e18] sm:$0xff]
        %v1526 = vld [vmem:[%s343 + $0x1e20] sm:$0xff]
        %v1527 = vld [vmem:[%s343 + $0x1e28] sm:$0xff]
        %v1528 = vld [vmem:[%s343 + $0x1e30] sm:$0xff]
        %v1529 = vld [vmem:[%s343 + $0x1e38] sm:$0xff]
        %v1530 = vld [vmem:[%s343 + $0x1e40] sm:$0xff]
        %v1531 = vld [vmem:[%s343 + $0x1e48] sm:$0xff]
        %v1532 = vld [vmem:[%s343 + $0x1e50] sm:$0xff]
        %v1533 = vld [vmem:[%s343 + $0x1e58] sm:$0xff]
        %v1534 = vld [vmem:[%s343 + $0x1e60] sm:$0xff]
        %v1535 = vld [vmem:[%s343 + $0x1e68] sm:$0xff]
        %v1536 = vld [vmem:[%s343 + $0x1e70] sm:$0xff]
        %v1537 = vld [vmem:[%s343 + $0x1e78] sm:$0xff]
        %v1538 = vld [vmem:[%s343 + $0x1e80] sm:$0xff]
        %v1539 = vld [vmem:[%s343 + $0x1e88] sm:$0xff]
        %v1540 = vld [vmem:[%s343 + $0x1e90] sm:$0xff]
        %v1541 = vld [vmem:[%s343 + $0x1e98] sm:$0xff]
        %v1542 = vld [vmem:[%s343 + $0x1ea0] sm:$0xff]
        %v1543 = vld [vmem:[%s343 + $0x1ea8] sm:$0xff]
        %v1544 = vld [vmem:[%s343 + $0x1eb0] sm:$0xff]
        %v1545 = vld [vmem:[%s343 + $0x1eb8] sm:$0xff]
        %v1546 = vld [vmem:[%s343 + $0x1ec0] sm:$0xff]
        %v1547 = vld [vmem:[%s343 + $0x1ec8] sm:$0xff]
        %v1548 = vld [vmem:[%s343 + $0x1ed0] sm:$0xff]
        %v1549 = vld [vmem:[%s343 + $0x1ed8] sm:$0xff]
        %v1550 = vld [vmem:[%s343 + $0x1ee0] sm:$0xff]
        %v1551 = vld [vmem:[%s343 + $0x1ee8] sm:$0xff]
        %v1552 = vld [vmem:[%s343 + $0x1ef0] sm:$0xff]
        %v1553 = vld [vmem:[%s343 + $0x1ef8] sm:$0xff]
        %v1554 = vld [vmem:[%s343 + $0x1f00] sm:$0xff]
        %v1555 = vld [vmem:[%s343 + $0x1f08] sm:$0xff]
        %v1556 = vld [vmem:[%s343 + $0x1f10] sm:$0xff]
        %v1557 = vld [vmem:[%s343 + $0x1f18] sm:$0xff]
        %v1558 = vld [vmem:[%s343 + $0x1f20] sm:$0xff]
        %v1559 = vld [vmem:[%s343 + $0x1f28] sm:$0xff]
        %v1560 = vld [vmem:[%s343 + $0x1f30] sm:$0xff]
        %v1561 = vld [vmem:[%s343 + $0x1f38] sm:$0xff]
        %v1562 = vld [vmem:[%s343 + $0x1f40] sm:$0xff]
        %v1563 = vld [vmem:[%s343 + $0x1f48] sm:$0xff]
        %v1564 = vld [vmem:[%s343 + $0x1f50] sm:$0xff]
        %v1565 = vld [vmem:[%s343 + $0x1f58] sm:$0xff]
        %v1566 = vld [vmem:[%s343 + $0x1f60] sm:$0xff]
        %v1567 = vld [vmem:[%s343 + $0x1f68] sm:$0xff]
        %v1568 = vld [vmem:[%s343 + $0x1f70] sm:$0xff]
        %v1569 = vld [vmem:[%s343 + $0x1f78] sm:$0xff]
        %v1570 = vld [vmem:[%s343 + $0x1f80] sm:$0xff]
        %v1571 = vld [vmem:[%s343 + $0x1f88] sm:$0xff]
        %v1572 = vld [vmem:[%s343 + $0x1f90] sm:$0xff]
        %v1573 = vld [vmem:[%s343 + $0x1f98] sm:$0xff]
        %v1574 = vld [vmem:[%s343 + $0x1fa0] sm:$0xff]
        %v1575 = vld [vmem:[%s343 + $0x1fa8] sm:$0xff]
        %v1576 = vld [vmem:[%s343 + $0x1fb0] sm:$0xff]
        %v1577 = vld [vmem:[%s343 + $0x1fb8] sm:$0xff]
        %v1578 = vld [vmem:[%s343 + $0x1fc0] sm:$0xff]
        %v1579 = vld [vmem:[%s343 + $0x1fc8] sm:$0xff]
        %v1580 = vld [vmem:[%s343 + $0x1fd0] sm:$0xff]
        %v1581 = vld [vmem:[%s343 + $0x1fd8] sm:$0xff]
        %v1582 = vld [vmem:[%s343 + $0x1fe0] sm:$0xff]
        %v1583 = vld [vmem:[%s343 + $0x1fe8] sm:$0xff]
        %v1584 = vld [vmem:[%s343 + $0x1ff0] sm:$0xff]
        %v1585 = vld [vmem:[%s343 + $0x1ff8] sm:$0xff]
        %v2610 = vunpack.c.l.b16 %v562
        %v2611 = vunpack.c.h.b16 %v562
        %v2612 = vunpack.c.l.b16 %v563
        %v2613 = vunpack.c.h.b16 %v563
        %v2614 = vunpack.c.l.b16 %v564
        %v2615 = vunpack.c.h.b16 %v564
        %v2616 = vunpack.c.l.b16 %v565
        %v2617 = vunpack.c.h.b16 %v565
        %v2618 = vunpack.c.l.b16 %v566
        %v2619 = vunpack.c.h.b16 %v566
        %v2620 = vunpack.c.l.b16 %v567
        %v2621 = vunpack.c.h.b16 %v567
        %v2622 = vunpack.c.l.b16 %v568
        %v2623 = vunpack.c.h.b16 %v568
        %v2624 = vunpack.c.l.b16 %v569
        %v2625 = vunpack.c.h.b16 %v569
        %v2626 = vunpack.c.l.b16 %v570
        %v2627 = vunpack.c.h.b16 %v570
        %v2628 = vunpack.c.l.b16 %v571
        %v2629 = vunpack.c.h.b16 %v571
        %v2630 = vunpack.c.l.b16 %v572
        %v2631 = vunpack.c.h.b16 %v572
        %v2632 = vunpack.c.l.b16 %v573
        %v2633 = vunpack.c.h.b16 %v573
        %v2634 = vunpack.c.l.b16 %v574
        %v2635 = vunpack.c.h.b16 %v574
        %v2636 = vunpack.c.l.b16 %v575
        %v2637 = vunpack.c.h.b16 %v575
        %v2638 = vunpack.c.l.b16 %v576
        %v2639 = vunpack.c.h.b16 %v576
        %v2640 = vunpack.c.l.b16 %v577
        %v2641 = vunpack.c.h.b16 %v577
        %v2642 = vunpack.c.l.b16 %v578
        %v2643 = vunpack.c.h.b16 %v578
        %v2644 = vunpack.c.l.b16 %v579
        %v2645 = vunpack.c.h.b16 %v579
        %v2646 = vunpack.c.l.b16 %v580
        %v2647 = vunpack.c.h.b16 %v580
        %v2648 = vunpack.c.l.b16 %v581
        %v2649 = vunpack.c.h.b16 %v581
        %v2650 = vunpack.c.l.b16 %v582
        %v2651 = vunpack.c.h.b16 %v582
        %v2652 = vunpack.c.l.b16 %v583
        %v2653 = vunpack.c.h.b16 %v583
        %v2654 = vunpack.c.l.b16 %v584
        %v2655 = vunpack.c.h.b16 %v584
        %v2656 = vunpack.c.l.b16 %v585
        %v2657 = vunpack.c.h.b16 %v585
        %v2658 = vunpack.c.l.b16 %v586
        %v2659 = vunpack.c.h.b16 %v586
        %v2660 = vunpack.c.l.b16 %v587
        %v2661 = vunpack.c.h.b16 %v587
        %v2662 = vunpack.c.l.b16 %v588
        %v2663 = vunpack.c.h.b16 %v588
        %v2664 = vunpack.c.l.b16 %v589
        %v2665 = vunpack.c.h.b16 %v589
        %v2666 = vunpack.c.l.b16 %v590
        %v2667 = vunpack.c.h.b16 %v590
        %v2668 = vunpack.c.l.b16 %v591
        %v2669 = vunpack.c.h.b16 %v591
        %v2670 = vunpack.c.l.b16 %v592
        %v2671 = vunpack.c.h.b16 %v592
        %v2672 = vunpack.c.l.b16 %v593
        %v2673 = vunpack.c.h.b16 %v593
        %v2674 = vunpack.c.l.b16 %v594
        %v2675 = vunpack.c.h.b16 %v594
        %v2676 = vunpack.c.l.b16 %v595
        %v2677 = vunpack.c.h.b16 %v595
        %v2678 = vunpack.c.l.b16 %v596
        %v2679 = vunpack.c.h.b16 %v596
        %v2680 = vunpack.c.l.b16 %v597
        %v2681 = vunpack.c.h.b16 %v597
        %v2682 = vunpack.c.l.b16 %v598
        %v2683 = vunpack.c.h.b16 %v598
        %v2684 = vunpack.c.l.b16 %v599
        %v2685 = vunpack.c.h.b16 %v599
        %v2686 = vunpack.c.l.b16 %v600
        %v2687 = vunpack.c.h.b16 %v600
        %v2688 = vunpack.c.l.b16 %v601
        %v2689 = vunpack.c.h.b16 %v601
        %v2690 = vunpack.c.l.b16 %v602
        %v2691 = vunpack.c.h.b16 %v602
        %v2692 = vunpack.c.l.b16 %v603
        %v2693 = vunpack.c.h.b16 %v603
        %v2694 = vunpack.c.l.b16 %v604
        %v2695 = vunpack.c.h.b16 %v604
        %v2696 = vunpack.c.l.b16 %v605
        %v2697 = vunpack.c.h.b16 %v605
        %v2698 = vunpack.c.l.b16 %v606
        %v2699 = vunpack.c.h.b16 %v606
        %v2700 = vunpack.c.l.b16 %v607
        %v2701 = vunpack.c.h.b16 %v607
        %v2702 = vunpack.c.l.b16 %v608
        %v2703 = vunpack.c.h.b16 %v608
        %v2704 = vunpack.c.l.b16 %v609
        %v2705 = vunpack.c.h.b16 %v609
        %v2706 = vunpack.c.l.b16 %v610
        %v2707 = vunpack.c.h.b16 %v610
        %v2708 = vunpack.c.l.b16 %v611
        %v2709 = vunpack.c.h.b16 %v611
        %v2710 = vunpack.c.l.b16 %v612
        %v2711 = vunpack.c.h.b16 %v612
        %v2712 = vunpack.c.l.b16 %v613
        %v2713 = vunpack.c.h.b16 %v613
        %v2714 = vunpack.c.l.b16 %v614
        %v2715 = vunpack.c.h.b16 %v614
        %v2716 = vunpack.c.l.b16 %v615
        %v2717 = vunpack.c.h.b16 %v615
        %v2718 = vunpack.c.l.b16 %v616
        %v2719 = vunpack.c.h.b16 %v616
        %v2720 = vunpack.c.l.b16 %v617
        %v2721 = vunpack.c.h.b16 %v617
        %v2722 = vunpack.c.l.b16 %v618
        %v2723 = vunpack.c.h.b16 %v618
        %v2724 = vunpack.c.l.b16 %v619
        %v2725 = vunpack.c.h.b16 %v619
        %v2726 = vunpack.c.l.b16 %v620
        %v2727 = vunpack.c.h.b16 %v620
        %v2728 = vunpack.c.l.b16 %v621
        %v2729 = vunpack.c.h.b16 %v621
        %v2730 = vunpack.c.l.b16 %v622
        %v2731 = vunpack.c.h.b16 %v622
        %v2732 = vunpack.c.l.b16 %v623
        %v2733 = vunpack.c.h.b16 %v623
        %v2734 = vunpack.c.l.b16 %v624
        %v2735 = vunpack.c.h.b16 %v624
        %v2736 = vunpack.c.l.b16 %v625
        %v2737 = vunpack.c.h.b16 %v625
        %v2738 = vunpack.c.l.b16 %v626
        %v2739 = vunpack.c.h.b16 %v626
        %v2740 = vunpack.c.l.b16 %v627
        %v2741 = vunpack.c.h.b16 %v627
        %v2742 = vunpack.c.l.b16 %v628
        %v2743 = vunpack.c.h.b16 %v628
        %v2744 = vunpack.c.l.b16 %v629
        %v2745 = vunpack.c.h.b16 %v629
        %v2746 = vunpack.c.l.b16 %v630
        %v2747 = vunpack.c.h.b16 %v630
        %v2748 = vunpack.c.l.b16 %v631
        %v2749 = vunpack.c.h.b16 %v631
        %v2750 = vunpack.c.l.b16 %v632
        %v2751 = vunpack.c.h.b16 %v632
        %v2752 = vunpack.c.l.b16 %v633
        %v2753 = vunpack.c.h.b16 %v633
        %v2754 = vunpack.c.l.b16 %v634
        %v2755 = vunpack.c.h.b16 %v634
        %v2756 = vunpack.c.l.b16 %v635
        %v2757 = vunpack.c.h.b16 %v635
        %v2758 = vunpack.c.l.b16 %v636
        %v2759 = vunpack.c.h.b16 %v636
        %v2760 = vunpack.c.l.b16 %v637
        %v2761 = vunpack.c.h.b16 %v637
        %v2762 = vunpack.c.l.b16 %v638
        %v2763 = vunpack.c.h.b16 %v638
        %v2764 = vunpack.c.l.b16 %v639
        %v2765 = vunpack.c.h.b16 %v639
        %v2766 = vunpack.c.l.b16 %v640
        %v2767 = vunpack.c.h.b16 %v640
        %v2768 = vunpack.c.l.b16 %v641
        %v2769 = vunpack.c.h.b16 %v641
        %v2770 = vunpack.c.l.b16 %v642
        %v2771 = vunpack.c.h.b16 %v642
        %v2772 = vunpack.c.l.b16 %v643
        %v2773 = vunpack.c.h.b16 %v643
        %v2774 = vunpack.c.l.b16 %v644
        %v2775 = vunpack.c.h.b16 %v644
        %v2776 = vunpack.c.l.b16 %v645
        %v2777 = vunpack.c.h.b16 %v645
        %v2778 = vunpack.c.l.b16 %v646
        %v2779 = vunpack.c.h.b16 %v646
        %v2780 = vunpack.c.l.b16 %v647
        %v2781 = vunpack.c.h.b16 %v647
        %v2782 = vunpack.c.l.b16 %v648
        %v2783 = vunpack.c.h.b16 %v648
        %v2784 = vunpack.c.l.b16 %v649
        %v2785 = vunpack.c.h.b16 %v649
        %v2786 = vunpack.c.l.b16 %v650
        %v2787 = vunpack.c.h.b16 %v650
        %v2788 = vunpack.c.l.b16 %v651
        %v2789 = vunpack.c.h.b16 %v651
        %v2790 = vunpack.c.l.b16 %v652
        %v2791 = vunpack.c.h.b16 %v652
        %v2792 = vunpack.c.l.b16 %v653
        %v2793 = vunpack.c.h.b16 %v653
        %v2794 = vunpack.c.l.b16 %v654
        %v2795 = vunpack.c.h.b16 %v654
        %v2796 = vunpack.c.l.b16 %v655
        %v2797 = vunpack.c.h.b16 %v655
        %v2798 = vunpack.c.l.b16 %v656
        %v2799 = vunpack.c.h.b16 %v656
        %v2800 = vunpack.c.l.b16 %v657
        %v2801 = vunpack.c.h.b16 %v657
        %v2802 = vunpack.c.l.b16 %v658
        %v2803 = vunpack.c.h.b16 %v658
        %v2804 = vunpack.c.l.b16 %v659
        %v2805 = vunpack.c.h.b16 %v659
        %v2806 = vunpack.c.l.b16 %v660
        %v2807 = vunpack.c.h.b16 %v660
        %v2808 = vunpack.c.l.b16 %v661
        %v2809 = vunpack.c.h.b16 %v661
        %v2810 = vunpack.c.l.b16 %v662
        %v2811 = vunpack.c.h.b16 %v662
        %v2812 = vunpack.c.l.b16 %v663
        %v2813 = vunpack.c.h.b16 %v663
        %v2814 = vunpack.c.l.b16 %v664
        %v2815 = vunpack.c.h.b16 %v664
        %v2816 = vunpack.c.l.b16 %v665
        %v2817 = vunpack.c.h.b16 %v665
        %v2818 = vunpack.c.l.b16 %v666
        %v2819 = vunpack.c.h.b16 %v666
        %v2820 = vunpack.c.l.b16 %v667
        %v2821 = vunpack.c.h.b16 %v667
        %v2822 = vunpack.c.l.b16 %v668
        %v2823 = vunpack.c.h.b16 %v668
        %v2824 = vunpack.c.l.b16 %v669
        %v2825 = vunpack.c.h.b16 %v669
        %v2826 = vunpack.c.l.b16 %v670
        %v2827 = vunpack.c.h.b16 %v670
        %v2828 = vunpack.c.l.b16 %v671
        %v2829 = vunpack.c.h.b16 %v671
        %v2830 = vunpack.c.l.b16 %v672
        %v2831 = vunpack.c.h.b16 %v672
        %v2832 = vunpack.c.l.b16 %v673
        %v2833 = vunpack.c.h.b16 %v673
        %v2834 = vunpack.c.l.b16 %v674
        %v2835 = vunpack.c.h.b16 %v674
        %v2836 = vunpack.c.l.b16 %v675
        %v2837 = vunpack.c.h.b16 %v675
        %v2838 = vunpack.c.l.b16 %v676
        %v2839 = vunpack.c.h.b16 %v676
        %v2840 = vunpack.c.l.b16 %v677
        %v2841 = vunpack.c.h.b16 %v677
        %v2842 = vunpack.c.l.b16 %v678
        %v2843 = vunpack.c.h.b16 %v678
        %v2844 = vunpack.c.l.b16 %v679
        %v2845 = vunpack.c.h.b16 %v679
        %v2846 = vunpack.c.l.b16 %v680
        %v2847 = vunpack.c.h.b16 %v680
        %v2848 = vunpack.c.l.b16 %v681
        %v2849 = vunpack.c.h.b16 %v681
        %v2850 = vunpack.c.l.b16 %v682
        %v2851 = vunpack.c.h.b16 %v682
        %v2852 = vunpack.c.l.b16 %v683
        %v2853 = vunpack.c.h.b16 %v683
        %v2854 = vunpack.c.l.b16 %v684
        %v2855 = vunpack.c.h.b16 %v684
        %v2856 = vunpack.c.l.b16 %v685
        %v2857 = vunpack.c.h.b16 %v685
        %v2858 = vunpack.c.l.b16 %v686
        %v2859 = vunpack.c.h.b16 %v686
        %v2860 = vunpack.c.l.b16 %v687
        %v2861 = vunpack.c.h.b16 %v687
        %v2862 = vunpack.c.l.b16 %v688
        %v2863 = vunpack.c.h.b16 %v688
        %v2864 = vunpack.c.l.b16 %v689
        %v2865 = vunpack.c.h.b16 %v689
        %v2866 = vunpack.c.l.b16 %v690
        %v2867 = vunpack.c.h.b16 %v690
        %v2868 = vunpack.c.l.b16 %v691
        %v2869 = vunpack.c.h.b16 %v691
        %v2870 = vunpack.c.l.b16 %v692
        %v2871 = vunpack.c.h.b16 %v692
        %v2872 = vunpack.c.l.b16 %v693
        %v2873 = vunpack.c.h.b16 %v693
        %v2874 = vunpack.c.l.b16 %v694
        %v2875 = vunpack.c.h.b16 %v694
        %v2876 = vunpack.c.l.b16 %v695
        %v2877 = vunpack.c.h.b16 %v695
        %v2878 = vunpack.c.l.b16 %v696
        %v2879 = vunpack.c.h.b16 %v696
        %v2880 = vunpack.c.l.b16 %v697
        %v2881 = vunpack.c.h.b16 %v697
        %v2882 = vunpack.c.l.b16 %v698
        %v2883 = vunpack.c.h.b16 %v698
        %v2884 = vunpack.c.l.b16 %v699
        %v2885 = vunpack.c.h.b16 %v699
        %v2886 = vunpack.c.l.b16 %v700
        %v2887 = vunpack.c.h.b16 %v700
        %v2888 = vunpack.c.l.b16 %v701
        %v2889 = vunpack.c.h.b16 %v701
        %v2890 = vunpack.c.l.b16 %v702
        %v2891 = vunpack.c.h.b16 %v702
        %v2892 = vunpack.c.l.b16 %v703
        %v2893 = vunpack.c.h.b16 %v703
        %v2894 = vunpack.c.l.b16 %v704
        %v2895 = vunpack.c.h.b16 %v704
        %v2896 = vunpack.c.l.b16 %v705
        %v2897 = vunpack.c.h.b16 %v705
        %v2898 = vunpack.c.l.b16 %v706
        %v2899 = vunpack.c.h.b16 %v706
        %v2900 = vunpack.c.l.b16 %v707
        %v2901 = vunpack.c.h.b16 %v707
        %v2902 = vunpack.c.l.b16 %v708
        %v2903 = vunpack.c.h.b16 %v708
        %v2904 = vunpack.c.l.b16 %v709
        %v2905 = vunpack.c.h.b16 %v709
        %v2906 = vunpack.c.l.b16 %v710
        %v2907 = vunpack.c.h.b16 %v710
        %v2908 = vunpack.c.l.b16 %v711
        %v2909 = vunpack.c.h.b16 %v711
        %v2910 = vunpack.c.l.b16 %v712
        %v2911 = vunpack.c.h.b16 %v712
        %v2912 = vunpack.c.l.b16 %v713
        %v2913 = vunpack.c.h.b16 %v713
        %v2914 = vunpack.c.l.b16 %v714
        %v2915 = vunpack.c.h.b16 %v714
        %v2916 = vunpack.c.l.b16 %v715
        %v2917 = vunpack.c.h.b16 %v715
        %v2918 = vunpack.c.l.b16 %v716
        %v2919 = vunpack.c.h.b16 %v716
        %v2920 = vunpack.c.l.b16 %v717
        %v2921 = vunpack.c.h.b16 %v717
        %v2922 = vunpack.c.l.b16 %v718
        %v2923 = vunpack.c.h.b16 %v718
        %v2924 = vunpack.c.l.b16 %v719
        %v2925 = vunpack.c.h.b16 %v719
        %v2926 = vunpack.c.l.b16 %v720
        %v2927 = vunpack.c.h.b16 %v720
        %v2928 = vunpack.c.l.b16 %v721
        %v2929 = vunpack.c.h.b16 %v721
        %v2930 = vunpack.c.l.b16 %v722
        %v2931 = vunpack.c.h.b16 %v722
        %v2932 = vunpack.c.l.b16 %v723
        %v2933 = vunpack.c.h.b16 %v723
        %v2934 = vunpack.c.l.b16 %v724
        %v2935 = vunpack.c.h.b16 %v724
        %v2936 = vunpack.c.l.b16 %v725
        %v2937 = vunpack.c.h.b16 %v725
        %v2938 = vunpack.c.l.b16 %v726
        %v2939 = vunpack.c.h.b16 %v726
        %v2940 = vunpack.c.l.b16 %v727
        %v2941 = vunpack.c.h.b16 %v727
        %v2942 = vunpack.c.l.b16 %v728
        %v2943 = vunpack.c.h.b16 %v728
        %v2944 = vunpack.c.l.b16 %v729
        %v2945 = vunpack.c.h.b16 %v729
        %v2946 = vunpack.c.l.b16 %v730
        %v2947 = vunpack.c.h.b16 %v730
        %v2948 = vunpack.c.l.b16 %v731
        %v2949 = vunpack.c.h.b16 %v731
        %v2950 = vunpack.c.l.b16 %v732
        %v2951 = vunpack.c.h.b16 %v732
        %v2952 = vunpack.c.l.b16 %v733
        %v2953 = vunpack.c.h.b16 %v733
        %v2954 = vunpack.c.l.b16 %v734
        %v2955 = vunpack.c.h.b16 %v734
        %v2956 = vunpack.c.l.b16 %v735
        %v2957 = vunpack.c.h.b16 %v735
        %v2958 = vunpack.c.l.b16 %v736
        %v2959 = vunpack.c.h.b16 %v736
        %v2960 = vunpack.c.l.b16 %v737
        %v2961 = vunpack.c.h.b16 %v737
        %v2962 = vunpack.c.l.b16 %v738
        %v2963 = vunpack.c.h.b16 %v738
        %v2964 = vunpack.c.l.b16 %v739
        %v2965 = vunpack.c.h.b16 %v739
        %v2966 = vunpack.c.l.b16 %v740
        %v2967 = vunpack.c.h.b16 %v740
        %v2968 = vunpack.c.l.b16 %v741
        %v2969 = vunpack.c.h.b16 %v741
        %v2970 = vunpack.c.l.b16 %v742
        %v2971 = vunpack.c.h.b16 %v742
        %v2972 = vunpack.c.l.b16 %v743
        %v2973 = vunpack.c.h.b16 %v743
        %v2974 = vunpack.c.l.b16 %v744
        %v2975 = vunpack.c.h.b16 %v744
        %v2976 = vunpack.c.l.b16 %v745
        %v2977 = vunpack.c.h.b16 %v745
        %v2978 = vunpack.c.l.b16 %v746
        %v2979 = vunpack.c.h.b16 %v746
        %v2980 = vunpack.c.l.b16 %v747
        %v2981 = vunpack.c.h.b16 %v747
        %v2982 = vunpack.c.l.b16 %v748
        %v2983 = vunpack.c.h.b16 %v748
        %v2984 = vunpack.c.l.b16 %v749
        %v2985 = vunpack.c.h.b16 %v749
        %v2986 = vunpack.c.l.b16 %v750
        %v2987 = vunpack.c.h.b16 %v750
        %v2988 = vunpack.c.l.b16 %v751
        %v2989 = vunpack.c.h.b16 %v751
        %v2990 = vunpack.c.l.b16 %v752
        %v2991 = vunpack.c.h.b16 %v752
        %v2992 = vunpack.c.l.b16 %v753
        %v2993 = vunpack.c.h.b16 %v753
        %v2994 = vunpack.c.l.b16 %v754
        %v2995 = vunpack.c.h.b16 %v754
        %v2996 = vunpack.c.l.b16 %v755
        %v2997 = vunpack.c.h.b16 %v755
        %v2998 = vunpack.c.l.b16 %v756
        %v2999 = vunpack.c.h.b16 %v756
        %v3000 = vunpack.c.l.b16 %v757
        %v3001 = vunpack.c.h.b16 %v757
        %v3002 = vunpack.c.l.b16 %v758
        %v3003 = vunpack.c.h.b16 %v758
        %v3004 = vunpack.c.l.b16 %v759
        %v3005 = vunpack.c.h.b16 %v759
        %v3006 = vunpack.c.l.b16 %v760
        %v3007 = vunpack.c.h.b16 %v760
        %v3008 = vunpack.c.l.b16 %v761
        %v3009 = vunpack.c.h.b16 %v761
        %v3010 = vunpack.c.l.b16 %v762
        %v3011 = vunpack.c.h.b16 %v762
        %v3012 = vunpack.c.l.b16 %v763
        %v3013 = vunpack.c.h.b16 %v763
        %v3014 = vunpack.c.l.b16 %v764
        %v3015 = vunpack.c.h.b16 %v764
        %v3016 = vunpack.c.l.b16 %v765
        %v3017 = vunpack.c.h.b16 %v765
        %v3018 = vunpack.c.l.b16 %v766
        %v3019 = vunpack.c.h.b16 %v766
        %v3020 = vunpack.c.l.b16 %v767
        %v3021 = vunpack.c.h.b16 %v767
        %v3022 = vunpack.c.l.b16 %v768
        %v3023 = vunpack.c.h.b16 %v768
        %v3024 = vunpack.c.l.b16 %v769
        %v3025 = vunpack.c.h.b16 %v769
        %v3026 = vunpack.c.l.b16 %v770
        %v3027 = vunpack.c.h.b16 %v770
        %v3028 = vunpack.c.l.b16 %v771
        %v3029 = vunpack.c.h.b16 %v771
        %v3030 = vunpack.c.l.b16 %v772
        %v3031 = vunpack.c.h.b16 %v772
        %v3032 = vunpack.c.l.b16 %v773
        %v3033 = vunpack.c.h.b16 %v773
        %v3034 = vunpack.c.l.b16 %v774
        %v3035 = vunpack.c.h.b16 %v774
        %v3036 = vunpack.c.l.b16 %v775
        %v3037 = vunpack.c.h.b16 %v775
        %v3038 = vunpack.c.l.b16 %v776
        %v3039 = vunpack.c.h.b16 %v776
        %v3040 = vunpack.c.l.b16 %v777
        %v3041 = vunpack.c.h.b16 %v777
        %v3042 = vunpack.c.l.b16 %v778
        %v3043 = vunpack.c.h.b16 %v778
        %v3044 = vunpack.c.l.b16 %v779
        %v3045 = vunpack.c.h.b16 %v779
        %v3046 = vunpack.c.l.b16 %v780
        %v3047 = vunpack.c.h.b16 %v780
        %v3048 = vunpack.c.l.b16 %v781
        %v3049 = vunpack.c.h.b16 %v781
        %v3050 = vunpack.c.l.b16 %v782
        %v3051 = vunpack.c.h.b16 %v782
        %v3052 = vunpack.c.l.b16 %v783
        %v3053 = vunpack.c.h.b16 %v783
        %v3054 = vunpack.c.l.b16 %v784
        %v3055 = vunpack.c.h.b16 %v784
        %v3056 = vunpack.c.l.b16 %v785
        %v3057 = vunpack.c.h.b16 %v785
        %v3058 = vunpack.c.l.b16 %v786
        %v3059 = vunpack.c.h.b16 %v786
        %v3060 = vunpack.c.l.b16 %v787
        %v3061 = vunpack.c.h.b16 %v787
        %v3062 = vunpack.c.l.b16 %v788
        %v3063 = vunpack.c.h.b16 %v788
        %v3064 = vunpack.c.l.b16 %v789
        %v3065 = vunpack.c.h.b16 %v789
        %v3066 = vunpack.c.l.b16 %v790
        %v3067 = vunpack.c.h.b16 %v790
        %v3068 = vunpack.c.l.b16 %v791
        %v3069 = vunpack.c.h.b16 %v791
        %v3070 = vunpack.c.l.b16 %v792
        %v3071 = vunpack.c.h.b16 %v792
        %v3072 = vunpack.c.l.b16 %v793
        %v3073 = vunpack.c.h.b16 %v793
        %v3074 = vunpack.c.l.b16 %v794
        %v3075 = vunpack.c.h.b16 %v794
        %v3076 = vunpack.c.l.b16 %v795
        %v3077 = vunpack.c.h.b16 %v795
        %v3078 = vunpack.c.l.b16 %v796
        %v3079 = vunpack.c.h.b16 %v796
        %v3080 = vunpack.c.l.b16 %v797
        %v3081 = vunpack.c.h.b16 %v797
        %v3082 = vunpack.c.l.b16 %v798
        %v3083 = vunpack.c.h.b16 %v798
        %v3084 = vunpack.c.l.b16 %v799
        %v3085 = vunpack.c.h.b16 %v799
        %v3086 = vunpack.c.l.b16 %v800
        %v3087 = vunpack.c.h.b16 %v800
        %v3088 = vunpack.c.l.b16 %v801
        %v3089 = vunpack.c.h.b16 %v801
        %v3090 = vunpack.c.l.b16 %v802
        %v3091 = vunpack.c.h.b16 %v802
        %v3092 = vunpack.c.l.b16 %v803
        %v3093 = vunpack.c.h.b16 %v803
        %v3094 = vunpack.c.l.b16 %v804
        %v3095 = vunpack.c.h.b16 %v804
        %v3096 = vunpack.c.l.b16 %v805
        %v3097 = vunpack.c.h.b16 %v805
        %v3098 = vunpack.c.l.b16 %v806
        %v3099 = vunpack.c.h.b16 %v806
        %v3100 = vunpack.c.l.b16 %v807
        %v3101 = vunpack.c.h.b16 %v807
        %v3102 = vunpack.c.l.b16 %v808
        %v3103 = vunpack.c.h.b16 %v808
        %v3104 = vunpack.c.l.b16 %v809
        %v3105 = vunpack.c.h.b16 %v809
        %v3106 = vunpack.c.l.b16 %v810
        %v3107 = vunpack.c.h.b16 %v810
        %v3108 = vunpack.c.l.b16 %v811
        %v3109 = vunpack.c.h.b16 %v811
        %v3110 = vunpack.c.l.b16 %v812
        %v3111 = vunpack.c.h.b16 %v812
        %v3112 = vunpack.c.l.b16 %v813
        %v3113 = vunpack.c.h.b16 %v813
        %v3114 = vunpack.c.l.b16 %v814
        %v3115 = vunpack.c.h.b16 %v814
        %v3116 = vunpack.c.l.b16 %v815
        %v3117 = vunpack.c.h.b16 %v815
        %v3118 = vunpack.c.l.b16 %v816
        %v3119 = vunpack.c.h.b16 %v816
        %v3120 = vunpack.c.l.b16 %v817
        %v3121 = vunpack.c.h.b16 %v817
        %v3122 = vunpack.c.l.b16 %v818
        %v3123 = vunpack.c.h.b16 %v818
        %v3124 = vunpack.c.l.b16 %v819
        %v3125 = vunpack.c.h.b16 %v819
        %v3126 = vunpack.c.l.b16 %v820
        %v3127 = vunpack.c.h.b16 %v820
        %v3128 = vunpack.c.l.b16 %v821
        %v3129 = vunpack.c.h.b16 %v821
        %v3130 = vunpack.c.l.b16 %v822
        %v3131 = vunpack.c.h.b16 %v822
        %v3132 = vunpack.c.l.b16 %v823
        %v3133 = vunpack.c.h.b16 %v823
        %v3134 = vunpack.c.l.b16 %v824
        %v3135 = vunpack.c.h.b16 %v824
        %v3136 = vunpack.c.l.b16 %v825
        %v3137 = vunpack.c.h.b16 %v825
        %v3138 = vunpack.c.l.b16 %v826
        %v3139 = vunpack.c.h.b16 %v826
        %v3140 = vunpack.c.l.b16 %v827
        %v3141 = vunpack.c.h.b16 %v827
        %v3142 = vunpack.c.l.b16 %v828
        %v3143 = vunpack.c.h.b16 %v828
        %v3144 = vunpack.c.l.b16 %v829
        %v3145 = vunpack.c.h.b16 %v829
        %v3146 = vunpack.c.l.b16 %v830
        %v3147 = vunpack.c.h.b16 %v830
        %v3148 = vunpack.c.l.b16 %v831
        %v3149 = vunpack.c.h.b16 %v831
        %v3150 = vunpack.c.l.b16 %v832
        %v3151 = vunpack.c.h.b16 %v832
        %v3152 = vunpack.c.l.b16 %v833
        %v3153 = vunpack.c.h.b16 %v833
        %v3154 = vunpack.c.l.b16 %v834
        %v3155 = vunpack.c.h.b16 %v834
        %v3156 = vunpack.c.l.b16 %v835
        %v3157 = vunpack.c.h.b16 %v835
        %v3158 = vunpack.c.l.b16 %v836
        %v3159 = vunpack.c.h.b16 %v836
        %v3160 = vunpack.c.l.b16 %v837
        %v3161 = vunpack.c.h.b16 %v837
        %v3162 = vunpack.c.l.b16 %v838
        %v3163 = vunpack.c.h.b16 %v838
        %v3164 = vunpack.c.l.b16 %v839
        %v3165 = vunpack.c.h.b16 %v839
        %v3166 = vunpack.c.l.b16 %v840
        %v3167 = vunpack.c.h.b16 %v840
        %v3168 = vunpack.c.l.b16 %v841
        %v3169 = vunpack.c.h.b16 %v841
        %v3170 = vunpack.c.l.b16 %v842
        %v3171 = vunpack.c.h.b16 %v842
        %v3172 = vunpack.c.l.b16 %v843
        %v3173 = vunpack.c.h.b16 %v843
        %v3174 = vunpack.c.l.b16 %v844
        %v3175 = vunpack.c.h.b16 %v844
        %v3176 = vunpack.c.l.b16 %v845
        %v3177 = vunpack.c.h.b16 %v845
        %v3178 = vunpack.c.l.b16 %v846
        %v3179 = vunpack.c.h.b16 %v846
        %v3180 = vunpack.c.l.b16 %v847
        %v3181 = vunpack.c.h.b16 %v847
        %v3182 = vunpack.c.l.b16 %v848
        %v3183 = vunpack.c.h.b16 %v848
        %v3184 = vunpack.c.l.b16 %v849
        %v3185 = vunpack.c.h.b16 %v849
        %v3186 = vunpack.c.l.b16 %v850
        %v3187 = vunpack.c.h.b16 %v850
        %v3188 = vunpack.c.l.b16 %v851
        %v3189 = vunpack.c.h.b16 %v851
        %v3190 = vunpack.c.l.b16 %v852
        %v3191 = vunpack.c.h.b16 %v852
        %v3192 = vunpack.c.l.b16 %v853
        %v3193 = vunpack.c.h.b16 %v853
        %v3194 = vunpack.c.l.b16 %v854
        %v3195 = vunpack.c.h.b16 %v854
        %v3196 = vunpack.c.l.b16 %v855
        %v3197 = vunpack.c.h.b16 %v855
        %v3198 = vunpack.c.l.b16 %v856
        %v3199 = vunpack.c.h.b16 %v856
        %v3200 = vunpack.c.l.b16 %v857
        %v3201 = vunpack.c.h.b16 %v857
        %v3202 = vunpack.c.l.b16 %v858
        %v3203 = vunpack.c.h.b16 %v858
        %v3204 = vunpack.c.l.b16 %v859
        %v3205 = vunpack.c.h.b16 %v859
        %v3206 = vunpack.c.l.b16 %v860
        %v3207 = vunpack.c.h.b16 %v860
        %v3208 = vunpack.c.l.b16 %v861
        %v3209 = vunpack.c.h.b16 %v861
        %v3210 = vunpack.c.l.b16 %v862
        %v3211 = vunpack.c.h.b16 %v862
        %v3212 = vunpack.c.l.b16 %v863
        %v3213 = vunpack.c.h.b16 %v863
        %v3214 = vunpack.c.l.b16 %v864
        %v3215 = vunpack.c.h.b16 %v864
        %v3216 = vunpack.c.l.b16 %v865
        %v3217 = vunpack.c.h.b16 %v865
        %v3218 = vunpack.c.l.b16 %v866
        %v3219 = vunpack.c.h.b16 %v866
        %v3220 = vunpack.c.l.b16 %v867
        %v3221 = vunpack.c.h.b16 %v867
        %v3222 = vunpack.c.l.b16 %v868
        %v3223 = vunpack.c.h.b16 %v868
        %v3224 = vunpack.c.l.b16 %v869
        %v3225 = vunpack.c.h.b16 %v869
        %v3226 = vunpack.c.l.b16 %v870
        %v3227 = vunpack.c.h.b16 %v870
        %v3228 = vunpack.c.l.b16 %v871
        %v3229 = vunpack.c.h.b16 %v871
        %v3230 = vunpack.c.l.b16 %v872
        %v3231 = vunpack.c.h.b16 %v872
        %v3232 = vunpack.c.l.b16 %v873
        %v3233 = vunpack.c.h.b16 %v873
        %v3234 = vunpack.c.l.b16 %v874
        %v3235 = vunpack.c.h.b16 %v874
        %v3236 = vunpack.c.l.b16 %v875
        %v3237 = vunpack.c.h.b16 %v875
        %v3238 = vunpack.c.l.b16 %v876
        %v3239 = vunpack.c.h.b16 %v876
        %v3240 = vunpack.c.l.b16 %v877
        %v3241 = vunpack.c.h.b16 %v877
        %v3242 = vunpack.c.l.b16 %v878
        %v3243 = vunpack.c.h.b16 %v878
        %v3244 = vunpack.c.l.b16 %v879
        %v3245 = vunpack.c.h.b16 %v879
        %v3246 = vunpack.c.l.b16 %v880
        %v3247 = vunpack.c.h.b16 %v880
        %v3248 = vunpack.c.l.b16 %v881
        %v3249 = vunpack.c.h.b16 %v881
        %v3250 = vunpack.c.l.b16 %v882
        %v3251 = vunpack.c.h.b16 %v882
        %v3252 = vunpack.c.l.b16 %v883
        %v3253 = vunpack.c.h.b16 %v883
        %v3254 = vunpack.c.l.b16 %v884
        %v3255 = vunpack.c.h.b16 %v884
        %v3256 = vunpack.c.l.b16 %v885
        %v3257 = vunpack.c.h.b16 %v885
        %v3258 = vunpack.c.l.b16 %v886
        %v3259 = vunpack.c.h.b16 %v886
        %v3260 = vunpack.c.l.b16 %v887
        %v3261 = vunpack.c.h.b16 %v887
        %v3262 = vunpack.c.l.b16 %v888
        %v3263 = vunpack.c.h.b16 %v888
        %v3264 = vunpack.c.l.b16 %v889
        %v3265 = vunpack.c.h.b16 %v889
        %v3266 = vunpack.c.l.b16 %v890
        %v3267 = vunpack.c.h.b16 %v890
        %v3268 = vunpack.c.l.b16 %v891
        %v3269 = vunpack.c.h.b16 %v891
        %v3270 = vunpack.c.l.b16 %v892
        %v3271 = vunpack.c.h.b16 %v892
        %v3272 = vunpack.c.l.b16 %v893
        %v3273 = vunpack.c.h.b16 %v893
        %v3274 = vunpack.c.l.b16 %v894
        %v3275 = vunpack.c.h.b16 %v894
        %v3276 = vunpack.c.l.b16 %v895
        %v3277 = vunpack.c.h.b16 %v895
        %v3278 = vunpack.c.l.b16 %v896
        %v3279 = vunpack.c.h.b16 %v896
        %v3280 = vunpack.c.l.b16 %v897
        %v3281 = vunpack.c.h.b16 %v897
        %v3282 = vunpack.c.l.b16 %v898
        %v3283 = vunpack.c.h.b16 %v898
        %v3284 = vunpack.c.l.b16 %v899
        %v3285 = vunpack.c.h.b16 %v899
        %v3286 = vunpack.c.l.b16 %v900
        %v3287 = vunpack.c.h.b16 %v900
        %v3288 = vunpack.c.l.b16 %v901
        %v3289 = vunpack.c.h.b16 %v901
        %v3290 = vunpack.c.l.b16 %v902
        %v3291 = vunpack.c.h.b16 %v902
        %v3292 = vunpack.c.l.b16 %v903
        %v3293 = vunpack.c.h.b16 %v903
        %v3294 = vunpack.c.l.b16 %v904
        %v3295 = vunpack.c.h.b16 %v904
        %v3296 = vunpack.c.l.b16 %v905
        %v3297 = vunpack.c.h.b16 %v905
        %v3298 = vunpack.c.l.b16 %v906
        %v3299 = vunpack.c.h.b16 %v906
        %v3300 = vunpack.c.l.b16 %v907
        %v3301 = vunpack.c.h.b16 %v907
        %v3302 = vunpack.c.l.b16 %v908
        %v3303 = vunpack.c.h.b16 %v908
        %v3304 = vunpack.c.l.b16 %v909
        %v3305 = vunpack.c.h.b16 %v909
        %v3306 = vunpack.c.l.b16 %v910
        %v3307 = vunpack.c.h.b16 %v910
        %v3308 = vunpack.c.l.b16 %v911
        %v3309 = vunpack.c.h.b16 %v911
        %v3310 = vunpack.c.l.b16 %v912
        %v3311 = vunpack.c.h.b16 %v912
        %v3312 = vunpack.c.l.b16 %v913
        %v3313 = vunpack.c.h.b16 %v913
        %v3314 = vunpack.c.l.b16 %v914
        %v3315 = vunpack.c.h.b16 %v914
        %v3316 = vunpack.c.l.b16 %v915
        %v3317 = vunpack.c.h.b16 %v915
        %v3318 = vunpack.c.l.b16 %v916
        %v3319 = vunpack.c.h.b16 %v916
        %v3320 = vunpack.c.l.b16 %v917
        %v3321 = vunpack.c.h.b16 %v917
        %v3322 = vunpack.c.l.b16 %v918
        %v3323 = vunpack.c.h.b16 %v918
        %v3324 = vunpack.c.l.b16 %v919
        %v3325 = vunpack.c.h.b16 %v919
        %v3326 = vunpack.c.l.b16 %v920
        %v3327 = vunpack.c.h.b16 %v920
        %v3328 = vunpack.c.l.b16 %v921
        %v3329 = vunpack.c.h.b16 %v921
        %v3330 = vunpack.c.l.b16 %v922
        %v3331 = vunpack.c.h.b16 %v922
        %v3332 = vunpack.c.l.b16 %v923
        %v3333 = vunpack.c.h.b16 %v923
        %v3334 = vunpack.c.l.b16 %v924
        %v3335 = vunpack.c.h.b16 %v924
        %v3336 = vunpack.c.l.b16 %v925
        %v3337 = vunpack.c.h.b16 %v925
        %v3338 = vunpack.c.l.b16 %v926
        %v3339 = vunpack.c.h.b16 %v926
        %v3340 = vunpack.c.l.b16 %v927
        %v3341 = vunpack.c.h.b16 %v927
        %v3342 = vunpack.c.l.b16 %v928
        %v3343 = vunpack.c.h.b16 %v928
        %v3344 = vunpack.c.l.b16 %v929
        %v3345 = vunpack.c.h.b16 %v929
        %v3346 = vunpack.c.l.b16 %v930
        %v3347 = vunpack.c.h.b16 %v930
        %v3348 = vunpack.c.l.b16 %v931
        %v3349 = vunpack.c.h.b16 %v931
        %v3350 = vunpack.c.l.b16 %v932
        %v3351 = vunpack.c.h.b16 %v932
        %v3352 = vunpack.c.l.b16 %v933
        %v3353 = vunpack.c.h.b16 %v933
        %v3354 = vunpack.c.l.b16 %v934
        %v3355 = vunpack.c.h.b16 %v934
        %v3356 = vunpack.c.l.b16 %v935
        %v3357 = vunpack.c.h.b16 %v935
        %v3358 = vunpack.c.l.b16 %v936
        %v3359 = vunpack.c.h.b16 %v936
        %v3360 = vunpack.c.l.b16 %v937
        %v3361 = vunpack.c.h.b16 %v937
        %v3362 = vunpack.c.l.b16 %v938
        %v3363 = vunpack.c.h.b16 %v938
        %v3364 = vunpack.c.l.b16 %v939
        %v3365 = vunpack.c.h.b16 %v939
        %v3366 = vunpack.c.l.b16 %v940
        %v3367 = vunpack.c.h.b16 %v940
        %v3368 = vunpack.c.l.b16 %v941
        %v3369 = vunpack.c.h.b16 %v941
        %v3370 = vunpack.c.l.b16 %v942
        %v3371 = vunpack.c.h.b16 %v942
        %v3372 = vunpack.c.l.b16 %v943
        %v3373 = vunpack.c.h.b16 %v943
        %v3374 = vunpack.c.l.b16 %v944
        %v3375 = vunpack.c.h.b16 %v944
        %v3376 = vunpack.c.l.b16 %v945
        %v3377 = vunpack.c.h.b16 %v945
        %v3378 = vunpack.c.l.b16 %v946
        %v3379 = vunpack.c.h.b16 %v946
        %v3380 = vunpack.c.l.b16 %v947
        %v3381 = vunpack.c.h.b16 %v947
        %v3382 = vunpack.c.l.b16 %v948
        %v3383 = vunpack.c.h.b16 %v948
        %v3384 = vunpack.c.l.b16 %v949
        %v3385 = vunpack.c.h.b16 %v949
        %v3386 = vunpack.c.l.b16 %v950
        %v3387 = vunpack.c.h.b16 %v950
        %v3388 = vunpack.c.l.b16 %v951
        %v3389 = vunpack.c.h.b16 %v951
        %v3390 = vunpack.c.l.b16 %v952
        %v3391 = vunpack.c.h.b16 %v952
        %v3392 = vunpack.c.l.b16 %v953
        %v3393 = vunpack.c.h.b16 %v953
        %v3394 = vunpack.c.l.b16 %v954
        %v3395 = vunpack.c.h.b16 %v954
        %v3396 = vunpack.c.l.b16 %v955
        %v3397 = vunpack.c.h.b16 %v955
        %v3398 = vunpack.c.l.b16 %v956
        %v3399 = vunpack.c.h.b16 %v956
        %v3400 = vunpack.c.l.b16 %v957
        %v3401 = vunpack.c.h.b16 %v957
        %v3402 = vunpack.c.l.b16 %v958
        %v3403 = vunpack.c.h.b16 %v958
        %v3404 = vunpack.c.l.b16 %v959
        %v3405 = vunpack.c.h.b16 %v959
        %v3406 = vunpack.c.l.b16 %v960
        %v3407 = vunpack.c.h.b16 %v960
        %v3408 = vunpack.c.l.b16 %v961
        %v3409 = vunpack.c.h.b16 %v961
        %v3410 = vunpack.c.l.b16 %v962
        %v3411 = vunpack.c.h.b16 %v962
        %v3412 = vunpack.c.l.b16 %v963
        %v3413 = vunpack.c.h.b16 %v963
        %v3414 = vunpack.c.l.b16 %v964
        %v3415 = vunpack.c.h.b16 %v964
        %v3416 = vunpack.c.l.b16 %v965
        %v3417 = vunpack.c.h.b16 %v965
        %v3418 = vunpack.c.l.b16 %v966
        %v3419 = vunpack.c.h.b16 %v966
        %v3420 = vunpack.c.l.b16 %v967
        %v3421 = vunpack.c.h.b16 %v967
        %v3422 = vunpack.c.l.b16 %v968
        %v3423 = vunpack.c.h.b16 %v968
        %v3424 = vunpack.c.l.b16 %v969
        %v3425 = vunpack.c.h.b16 %v969
        %v3426 = vunpack.c.l.b16 %v970
        %v3427 = vunpack.c.h.b16 %v970
        %v3428 = vunpack.c.l.b16 %v971
        %v3429 = vunpack.c.h.b16 %v971
        %v3430 = vunpack.c.l.b16 %v972
        %v3431 = vunpack.c.h.b16 %v972
        %v3432 = vunpack.c.l.b16 %v973
        %v3433 = vunpack.c.h.b16 %v973
        %v3434 = vunpack.c.l.b16 %v974
        %v3435 = vunpack.c.h.b16 %v974
        %v3436 = vunpack.c.l.b16 %v975
        %v3437 = vunpack.c.h.b16 %v975
        %v3438 = vunpack.c.l.b16 %v976
        %v3439 = vunpack.c.h.b16 %v976
        %v3440 = vunpack.c.l.b16 %v977
        %v3441 = vunpack.c.h.b16 %v977
        %v3442 = vunpack.c.l.b16 %v978
        %v3443 = vunpack.c.h.b16 %v978
        %v3444 = vunpack.c.l.b16 %v979
        %v3445 = vunpack.c.h.b16 %v979
        %v3446 = vunpack.c.l.b16 %v980
        %v3447 = vunpack.c.h.b16 %v980
        %v3448 = vunpack.c.l.b16 %v981
        %v3449 = vunpack.c.h.b16 %v981
        %v3450 = vunpack.c.l.b16 %v982
        %v3451 = vunpack.c.h.b16 %v982
        %v3452 = vunpack.c.l.b16 %v983
        %v3453 = vunpack.c.h.b16 %v983
        %v3454 = vunpack.c.l.b16 %v984
        %v3455 = vunpack.c.h.b16 %v984
        %v3456 = vunpack.c.l.b16 %v985
        %v3457 = vunpack.c.h.b16 %v985
        %v3458 = vunpack.c.l.b16 %v986
        %v3459 = vunpack.c.h.b16 %v986
        %v3460 = vunpack.c.l.b16 %v987
        %v3461 = vunpack.c.h.b16 %v987
        %v3462 = vunpack.c.l.b16 %v988
        %v3463 = vunpack.c.h.b16 %v988
        %v3464 = vunpack.c.l.b16 %v989
        %v3465 = vunpack.c.h.b16 %v989
        %v3466 = vunpack.c.l.b16 %v990
        %v3467 = vunpack.c.h.b16 %v990
        %v3468 = vunpack.c.l.b16 %v991
        %v3469 = vunpack.c.h.b16 %v991
        %v3470 = vunpack.c.l.b16 %v992
        %v3471 = vunpack.c.h.b16 %v992
        %v3472 = vunpack.c.l.b16 %v993
        %v3473 = vunpack.c.h.b16 %v993
        %v3474 = vunpack.c.l.b16 %v994
        %v3475 = vunpack.c.h.b16 %v994
        %v3476 = vunpack.c.l.b16 %v995
        %v3477 = vunpack.c.h.b16 %v995
        %v3478 = vunpack.c.l.b16 %v996
        %v3479 = vunpack.c.h.b16 %v996
        %v3480 = vunpack.c.l.b16 %v997
        %v3481 = vunpack.c.h.b16 %v997
        %v3482 = vunpack.c.l.b16 %v998
        %v3483 = vunpack.c.h.b16 %v998
        %v3484 = vunpack.c.l.b16 %v999
        %v3485 = vunpack.c.h.b16 %v999
        %v3486 = vunpack.c.l.b16 %v1000
        %v3487 = vunpack.c.h.b16 %v1000
        %v3488 = vunpack.c.l.b16 %v1001
        %v3489 = vunpack.c.h.b16 %v1001
        %v3490 = vunpack.c.l.b16 %v1002
        %v3491 = vunpack.c.h.b16 %v1002
        %v3492 = vunpack.c.l.b16 %v1003
        %v3493 = vunpack.c.h.b16 %v1003
        %v3494 = vunpack.c.l.b16 %v1004
        %v3495 = vunpack.c.h.b16 %v1004
        %v3496 = vunpack.c.l.b16 %v1005
        %v3497 = vunpack.c.h.b16 %v1005
        %v3498 = vunpack.c.l.b16 %v1006
        %v3499 = vunpack.c.h.b16 %v1006
        %v3500 = vunpack.c.l.b16 %v1007
        %v3501 = vunpack.c.h.b16 %v1007
        %v3502 = vunpack.c.l.b16 %v1008
        %v3503 = vunpack.c.h.b16 %v1008
        %v3504 = vunpack.c.l.b16 %v1009
        %v3505 = vunpack.c.h.b16 %v1009
        %v3506 = vunpack.c.l.b16 %v1010
        %v3507 = vunpack.c.h.b16 %v1010
        %v3508 = vunpack.c.l.b16 %v1011
        %v3509 = vunpack.c.h.b16 %v1011
        %v3510 = vunpack.c.l.b16 %v1012
        %v3511 = vunpack.c.h.b16 %v1012
        %v3512 = vunpack.c.l.b16 %v1013
        %v3513 = vunpack.c.h.b16 %v1013
        %v3514 = vunpack.c.l.b16 %v1014
        %v3515 = vunpack.c.h.b16 %v1014
        %v3516 = vunpack.c.l.b16 %v1015
        %v3517 = vunpack.c.h.b16 %v1015
        %v3518 = vunpack.c.l.b16 %v1016
        %v3519 = vunpack.c.h.b16 %v1016
        %v3520 = vunpack.c.l.b16 %v1017
        %v3521 = vunpack.c.h.b16 %v1017
        %v3522 = vunpack.c.l.b16 %v1018
        %v3523 = vunpack.c.h.b16 %v1018
        %v3524 = vunpack.c.l.b16 %v1019
        %v3525 = vunpack.c.h.b16 %v1019
        %v3526 = vunpack.c.l.b16 %v1020
        %v3527 = vunpack.c.h.b16 %v1020
        %v3528 = vunpack.c.l.b16 %v1021
        %v3529 = vunpack.c.h.b16 %v1021
        %v3530 = vunpack.c.l.b16 %v1022
        %v3531 = vunpack.c.h.b16 %v1022
        %v3532 = vunpack.c.l.b16 %v1023
        %v3533 = vunpack.c.h.b16 %v1023
        %v3534 = vunpack.c.l.b16 %v1024
        %v3535 = vunpack.c.h.b16 %v1024
        %v3536 = vunpack.c.l.b16 %v1025
        %v3537 = vunpack.c.h.b16 %v1025
        %v3538 = vunpack.c.l.b16 %v1026
        %v3539 = vunpack.c.h.b16 %v1026
        %v3540 = vunpack.c.l.b16 %v1027
        %v3541 = vunpack.c.h.b16 %v1027
        %v3542 = vunpack.c.l.b16 %v1028
        %v3543 = vunpack.c.h.b16 %v1028
        %v3544 = vunpack.c.l.b16 %v1029
        %v3545 = vunpack.c.h.b16 %v1029
        %v3546 = vunpack.c.l.b16 %v1030
        %v3547 = vunpack.c.h.b16 %v1030
        %v3548 = vunpack.c.l.b16 %v1031
        %v3549 = vunpack.c.h.b16 %v1031
        %v3550 = vunpack.c.l.b16 %v1032
        %v3551 = vunpack.c.h.b16 %v1032
        %v3552 = vunpack.c.l.b16 %v1033
        %v3553 = vunpack.c.h.b16 %v1033
        %v3554 = vunpack.c.l.b16 %v1034
        %v3555 = vunpack.c.h.b16 %v1034
        %v3556 = vunpack.c.l.b16 %v1035
        %v3557 = vunpack.c.h.b16 %v1035
        %v3558 = vunpack.c.l.b16 %v1036
        %v3559 = vunpack.c.h.b16 %v1036
        %v3560 = vunpack.c.l.b16 %v1037
        %v3561 = vunpack.c.h.b16 %v1037
        %v3562 = vunpack.c.l.b16 %v1038
        %v3563 = vunpack.c.h.b16 %v1038
        %v3564 = vunpack.c.l.b16 %v1039
        %v3565 = vunpack.c.h.b16 %v1039
        %v3566 = vunpack.c.l.b16 %v1040
        %v3567 = vunpack.c.h.b16 %v1040
        %v3568 = vunpack.c.l.b16 %v1041
        %v3569 = vunpack.c.h.b16 %v1041
        %v3570 = vunpack.c.l.b16 %v1042
        %v3571 = vunpack.c.h.b16 %v1042
        %v3572 = vunpack.c.l.b16 %v1043
        %v3573 = vunpack.c.h.b16 %v1043
        %v3574 = vunpack.c.l.b16 %v1044
        %v3575 = vunpack.c.h.b16 %v1044
        %v3576 = vunpack.c.l.b16 %v1045
        %v3577 = vunpack.c.h.b16 %v1045
        %v3578 = vunpack.c.l.b16 %v1046
        %v3579 = vunpack.c.h.b16 %v1046
        %v3580 = vunpack.c.l.b16 %v1047
        %v3581 = vunpack.c.h.b16 %v1047
        %v3582 = vunpack.c.l.b16 %v1048
        %v3583 = vunpack.c.h.b16 %v1048
        %v3584 = vunpack.c.l.b16 %v1049
        %v3585 = vunpack.c.h.b16 %v1049
        %v3586 = vunpack.c.l.b16 %v1050
        %v3587 = vunpack.c.h.b16 %v1050
        %v3588 = vunpack.c.l.b16 %v1051
        %v3589 = vunpack.c.h.b16 %v1051
        %v3590 = vunpack.c.l.b16 %v1052
        %v3591 = vunpack.c.h.b16 %v1052
        %v3592 = vunpack.c.l.b16 %v1053
        %v3593 = vunpack.c.h.b16 %v1053
        %v3594 = vunpack.c.l.b16 %v1054
        %v3595 = vunpack.c.h.b16 %v1054
        %v3596 = vunpack.c.l.b16 %v1055
        %v3597 = vunpack.c.h.b16 %v1055
        %v3598 = vunpack.c.l.b16 %v1056
        %v3599 = vunpack.c.h.b16 %v1056
        %v3600 = vunpack.c.l.b16 %v1057
        %v3601 = vunpack.c.h.b16 %v1057
        %v3602 = vunpack.c.l.b16 %v1058
        %v3603 = vunpack.c.h.b16 %v1058
        %v3604 = vunpack.c.l.b16 %v1059
        %v3605 = vunpack.c.h.b16 %v1059
        %v3606 = vunpack.c.l.b16 %v1060
        %v3607 = vunpack.c.h.b16 %v1060
        %v3608 = vunpack.c.l.b16 %v1061
        %v3609 = vunpack.c.h.b16 %v1061
        %v3610 = vunpack.c.l.b16 %v1062
        %v3611 = vunpack.c.h.b16 %v1062
        %v3612 = vunpack.c.l.b16 %v1063
        %v3613 = vunpack.c.h.b16 %v1063
        %v3614 = vunpack.c.l.b16 %v1064
        %v3615 = vunpack.c.h.b16 %v1064
        %v3616 = vunpack.c.l.b16 %v1065
        %v3617 = vunpack.c.h.b16 %v1065
        %v3618 = vunpack.c.l.b16 %v1066
        %v3619 = vunpack.c.h.b16 %v1066
        %v3620 = vunpack.c.l.b16 %v1067
        %v3621 = vunpack.c.h.b16 %v1067
        %v3622 = vunpack.c.l.b16 %v1068
        %v3623 = vunpack.c.h.b16 %v1068
        %v3624 = vunpack.c.l.b16 %v1069
        %v3625 = vunpack.c.h.b16 %v1069
        %v3626 = vunpack.c.l.b16 %v1070
        %v3627 = vunpack.c.h.b16 %v1070
        %v3628 = vunpack.c.l.b16 %v1071
        %v3629 = vunpack.c.h.b16 %v1071
        %v3630 = vunpack.c.l.b16 %v1072
        %v3631 = vunpack.c.h.b16 %v1072
        %v3632 = vunpack.c.l.b16 %v1073
        %v3633 = vunpack.c.h.b16 %v1073
        %v3634 = vunpack.c.l.b16 %v1074
        %v3635 = vunpack.c.h.b16 %v1074
        %v3636 = vunpack.c.l.b16 %v1075
        %v3637 = vunpack.c.h.b16 %v1075
        %v3638 = vunpack.c.l.b16 %v1076
        %v3639 = vunpack.c.h.b16 %v1076
        %v3640 = vunpack.c.l.b16 %v1077
        %v3641 = vunpack.c.h.b16 %v1077
        %v3642 = vunpack.c.l.b16 %v1078
        %v3643 = vunpack.c.h.b16 %v1078
        %v3644 = vunpack.c.l.b16 %v1079
        %v3645 = vunpack.c.h.b16 %v1079
        %v3646 = vunpack.c.l.b16 %v1080
        %v3647 = vunpack.c.h.b16 %v1080
        %v3648 = vunpack.c.l.b16 %v1081
        %v3649 = vunpack.c.h.b16 %v1081
        %v3650 = vunpack.c.l.b16 %v1082
        %v3651 = vunpack.c.h.b16 %v1082
        %v3652 = vunpack.c.l.b16 %v1083
        %v3653 = vunpack.c.h.b16 %v1083
        %v3654 = vunpack.c.l.b16 %v1084
        %v3655 = vunpack.c.h.b16 %v1084
        %v3656 = vunpack.c.l.b16 %v1085
        %v3657 = vunpack.c.h.b16 %v1085
        %v3658 = vunpack.c.l.b16 %v1086
        %v3659 = vunpack.c.h.b16 %v1086
        %v3660 = vunpack.c.l.b16 %v1087
        %v3661 = vunpack.c.h.b16 %v1087
        %v3662 = vunpack.c.l.b16 %v1088
        %v3663 = vunpack.c.h.b16 %v1088
        %v3664 = vunpack.c.l.b16 %v1089
        %v3665 = vunpack.c.h.b16 %v1089
        %v3666 = vunpack.c.l.b16 %v1090
        %v3667 = vunpack.c.h.b16 %v1090
        %v3668 = vunpack.c.l.b16 %v1091
        %v3669 = vunpack.c.h.b16 %v1091
        %v3670 = vunpack.c.l.b16 %v1092
        %v3671 = vunpack.c.h.b16 %v1092
        %v3672 = vunpack.c.l.b16 %v1093
        %v3673 = vunpack.c.h.b16 %v1093
        %v3674 = vunpack.c.l.b16 %v1094
        %v3675 = vunpack.c.h.b16 %v1094
        %v3676 = vunpack.c.l.b16 %v1095
        %v3677 = vunpack.c.h.b16 %v1095
        %v3678 = vunpack.c.l.b16 %v1096
        %v3679 = vunpack.c.h.b16 %v1096
        %v3680 = vunpack.c.l.b16 %v1097
        %v3681 = vunpack.c.h.b16 %v1097
        %v3682 = vunpack.c.l.b16 %v1098
        %v3683 = vunpack.c.h.b16 %v1098
        %v3684 = vunpack.c.l.b16 %v1099
        %v3685 = vunpack.c.h.b16 %v1099
        %v3686 = vunpack.c.l.b16 %v1100
        %v3687 = vunpack.c.h.b16 %v1100
        %v3688 = vunpack.c.l.b16 %v1101
        %v3689 = vunpack.c.h.b16 %v1101
        %v3690 = vunpack.c.l.b16 %v1102
        %v3691 = vunpack.c.h.b16 %v1102
        %v3692 = vunpack.c.l.b16 %v1103
        %v3693 = vunpack.c.h.b16 %v1103
        %v3694 = vunpack.c.l.b16 %v1104
        %v3695 = vunpack.c.h.b16 %v1104
        %v3696 = vunpack.c.l.b16 %v1105
        %v3697 = vunpack.c.h.b16 %v1105
        %v3698 = vunpack.c.l.b16 %v1106
        %v3699 = vunpack.c.h.b16 %v1106
        %v3700 = vunpack.c.l.b16 %v1107
        %v3701 = vunpack.c.h.b16 %v1107
        %v3702 = vunpack.c.l.b16 %v1108
        %v3703 = vunpack.c.h.b16 %v1108
        %v3704 = vunpack.c.l.b16 %v1109
        %v3705 = vunpack.c.h.b16 %v1109
        %v3706 = vunpack.c.l.b16 %v1110
        %v3707 = vunpack.c.h.b16 %v1110
        %v3708 = vunpack.c.l.b16 %v1111
        %v3709 = vunpack.c.h.b16 %v1111
        %v3710 = vunpack.c.l.b16 %v1112
        %v3711 = vunpack.c.h.b16 %v1112
        %v3712 = vunpack.c.l.b16 %v1113
        %v3713 = vunpack.c.h.b16 %v1113
        %v3714 = vunpack.c.l.b16 %v1114
        %v3715 = vunpack.c.h.b16 %v1114
        %v3716 = vunpack.c.l.b16 %v1115
        %v3717 = vunpack.c.h.b16 %v1115
        %v3718 = vunpack.c.l.b16 %v1116
        %v3719 = vunpack.c.h.b16 %v1116
        %v3720 = vunpack.c.l.b16 %v1117
        %v3721 = vunpack.c.h.b16 %v1117
        %v3722 = vunpack.c.l.b16 %v1118
        %v3723 = vunpack.c.h.b16 %v1118
        %v3724 = vunpack.c.l.b16 %v1119
        %v3725 = vunpack.c.h.b16 %v1119
        %v3726 = vunpack.c.l.b16 %v1120
        %v3727 = vunpack.c.h.b16 %v1120
        %v3728 = vunpack.c.l.b16 %v1121
        %v3729 = vunpack.c.h.b16 %v1121
        %v3730 = vunpack.c.l.b16 %v1122
        %v3731 = vunpack.c.h.b16 %v1122
        %v3732 = vunpack.c.l.b16 %v1123
        %v3733 = vunpack.c.h.b16 %v1123
        %v3734 = vunpack.c.l.b16 %v1124
        %v3735 = vunpack.c.h.b16 %v1124
        %v3736 = vunpack.c.l.b16 %v1125
        %v3737 = vunpack.c.h.b16 %v1125
        %v3738 = vunpack.c.l.b16 %v1126
        %v3739 = vunpack.c.h.b16 %v1126
        %v3740 = vunpack.c.l.b16 %v1127
        %v3741 = vunpack.c.h.b16 %v1127
        %v3742 = vunpack.c.l.b16 %v1128
        %v3743 = vunpack.c.h.b16 %v1128
        %v3744 = vunpack.c.l.b16 %v1129
        %v3745 = vunpack.c.h.b16 %v1129
        %v3746 = vunpack.c.l.b16 %v1130
        %v3747 = vunpack.c.h.b16 %v1130
        %v3748 = vunpack.c.l.b16 %v1131
        %v3749 = vunpack.c.h.b16 %v1131
        %v3750 = vunpack.c.l.b16 %v1132
        %v3751 = vunpack.c.h.b16 %v1132
        %v3752 = vunpack.c.l.b16 %v1133
        %v3753 = vunpack.c.h.b16 %v1133
        %v3754 = vunpack.c.l.b16 %v1134
        %v3755 = vunpack.c.h.b16 %v1134
        %v3756 = vunpack.c.l.b16 %v1135
        %v3757 = vunpack.c.h.b16 %v1135
        %v3758 = vunpack.c.l.b16 %v1136
        %v3759 = vunpack.c.h.b16 %v1136
        %v3760 = vunpack.c.l.b16 %v1137
        %v3761 = vunpack.c.h.b16 %v1137
        %v3762 = vunpack.c.l.b16 %v1138
        %v3763 = vunpack.c.h.b16 %v1138
        %v3764 = vunpack.c.l.b16 %v1139
        %v3765 = vunpack.c.h.b16 %v1139
        %v3766 = vunpack.c.l.b16 %v1140
        %v3767 = vunpack.c.h.b16 %v1140
        %v3768 = vunpack.c.l.b16 %v1141
        %v3769 = vunpack.c.h.b16 %v1141
        %v3770 = vunpack.c.l.b16 %v1142
        %v3771 = vunpack.c.h.b16 %v1142
        %v3772 = vunpack.c.l.b16 %v1143
        %v3773 = vunpack.c.h.b16 %v1143
        %v3774 = vunpack.c.l.b16 %v1144
        %v3775 = vunpack.c.h.b16 %v1144
        %v3776 = vunpack.c.l.b16 %v1145
        %v3777 = vunpack.c.h.b16 %v1145
        %v3778 = vunpack.c.l.b16 %v1146
        %v3779 = vunpack.c.h.b16 %v1146
        %v3780 = vunpack.c.l.b16 %v1147
        %v3781 = vunpack.c.h.b16 %v1147
        %v3782 = vunpack.c.l.b16 %v1148
        %v3783 = vunpack.c.h.b16 %v1148
        %v3784 = vunpack.c.l.b16 %v1149
        %v3785 = vunpack.c.h.b16 %v1149
        %v3786 = vunpack.c.l.b16 %v1150
        %v3787 = vunpack.c.h.b16 %v1150
        %v3788 = vunpack.c.l.b16 %v1151
        %v3789 = vunpack.c.h.b16 %v1151
        %v3790 = vunpack.c.l.b16 %v1152
        %v3791 = vunpack.c.h.b16 %v1152
        %v3792 = vunpack.c.l.b16 %v1153
        %v3793 = vunpack.c.h.b16 %v1153
        %v3794 = vunpack.c.l.b16 %v1154
        %v3795 = vunpack.c.h.b16 %v1154
        %v3796 = vunpack.c.l.b16 %v1155
        %v3797 = vunpack.c.h.b16 %v1155
        %v3798 = vunpack.c.l.b16 %v1156
        %v3799 = vunpack.c.h.b16 %v1156
        %v3800 = vunpack.c.l.b16 %v1157
        %v3801 = vunpack.c.h.b16 %v1157
        %v3802 = vunpack.c.l.b16 %v1158
        %v3803 = vunpack.c.h.b16 %v1158
        %v3804 = vunpack.c.l.b16 %v1159
        %v3805 = vunpack.c.h.b16 %v1159
        %v3806 = vunpack.c.l.b16 %v1160
        %v3807 = vunpack.c.h.b16 %v1160
        %v3808 = vunpack.c.l.b16 %v1161
        %v3809 = vunpack.c.h.b16 %v1161
        %v3810 = vunpack.c.l.b16 %v1162
        %v3811 = vunpack.c.h.b16 %v1162
        %v3812 = vunpack.c.l.b16 %v1163
        %v3813 = vunpack.c.h.b16 %v1163
        %v3814 = vunpack.c.l.b16 %v1164
        %v3815 = vunpack.c.h.b16 %v1164
        %v3816 = vunpack.c.l.b16 %v1165
        %v3817 = vunpack.c.h.b16 %v1165
        %v3818 = vunpack.c.l.b16 %v1166
        %v3819 = vunpack.c.h.b16 %v1166
        %v3820 = vunpack.c.l.b16 %v1167
        %v3821 = vunpack.c.h.b16 %v1167
        %v3822 = vunpack.c.l.b16 %v1168
        %v3823 = vunpack.c.h.b16 %v1168
        %v3824 = vunpack.c.l.b16 %v1169
        %v3825 = vunpack.c.h.b16 %v1169
        %v3826 = vunpack.c.l.b16 %v1170
        %v3827 = vunpack.c.h.b16 %v1170
        %v3828 = vunpack.c.l.b16 %v1171
        %v3829 = vunpack.c.h.b16 %v1171
        %v3830 = vunpack.c.l.b16 %v1172
        %v3831 = vunpack.c.h.b16 %v1172
        %v3832 = vunpack.c.l.b16 %v1173
        %v3833 = vunpack.c.h.b16 %v1173
        %v3834 = vunpack.c.l.b16 %v1174
        %v3835 = vunpack.c.h.b16 %v1174
        %v3836 = vunpack.c.l.b16 %v1175
        %v3837 = vunpack.c.h.b16 %v1175
        %v3838 = vunpack.c.l.b16 %v1176
        %v3839 = vunpack.c.h.b16 %v1176
        %v3840 = vunpack.c.l.b16 %v1177
        %v3841 = vunpack.c.h.b16 %v1177
        %v3842 = vunpack.c.l.b16 %v1178
        %v3843 = vunpack.c.h.b16 %v1178
        %v3844 = vunpack.c.l.b16 %v1179
        %v3845 = vunpack.c.h.b16 %v1179
        %v3846 = vunpack.c.l.b16 %v1180
        %v3847 = vunpack.c.h.b16 %v1180
        %v3848 = vunpack.c.l.b16 %v1181
        %v3849 = vunpack.c.h.b16 %v1181
        %v3850 = vunpack.c.l.b16 %v1182
        %v3851 = vunpack.c.h.b16 %v1182
        %v3852 = vunpack.c.l.b16 %v1183
        %v3853 = vunpack.c.h.b16 %v1183
        %v3854 = vunpack.c.l.b16 %v1184
        %v3855 = vunpack.c.h.b16 %v1184
        %v3856 = vunpack.c.l.b16 %v1185
        %v3857 = vunpack.c.h.b16 %v1185
        %v3858 = vunpack.c.l.b16 %v1186
        %v3859 = vunpack.c.h.b16 %v1186
        %v3860 = vunpack.c.l.b16 %v1187
        %v3861 = vunpack.c.h.b16 %v1187
        %v3862 = vunpack.c.l.b16 %v1188
        %v3863 = vunpack.c.h.b16 %v1188
        %v3864 = vunpack.c.l.b16 %v1189
        %v3865 = vunpack.c.h.b16 %v1189
        %v3866 = vunpack.c.l.b16 %v1190
        %v3867 = vunpack.c.h.b16 %v1190
        %v3868 = vunpack.c.l.b16 %v1191
        %v3869 = vunpack.c.h.b16 %v1191
        %v3870 = vunpack.c.l.b16 %v1192
        %v3871 = vunpack.c.h.b16 %v1192
        %v3872 = vunpack.c.l.b16 %v1193
        %v3873 = vunpack.c.h.b16 %v1193
        %v3874 = vunpack.c.l.b16 %v1194
        %v3875 = vunpack.c.h.b16 %v1194
        %v3876 = vunpack.c.l.b16 %v1195
        %v3877 = vunpack.c.h.b16 %v1195
        %v3878 = vunpack.c.l.b16 %v1196
        %v3879 = vunpack.c.h.b16 %v1196
        %v3880 = vunpack.c.l.b16 %v1197
        %v3881 = vunpack.c.h.b16 %v1197
        %v3882 = vunpack.c.l.b16 %v1198
        %v3883 = vunpack.c.h.b16 %v1198
        %v3884 = vunpack.c.l.b16 %v1199
        %v3885 = vunpack.c.h.b16 %v1199
        %v3886 = vunpack.c.l.b16 %v1200
        %v3887 = vunpack.c.h.b16 %v1200
        %v3888 = vunpack.c.l.b16 %v1201
        %v3889 = vunpack.c.h.b16 %v1201
        %v3890 = vunpack.c.l.b16 %v1202
        %v3891 = vunpack.c.h.b16 %v1202
        %v3892 = vunpack.c.l.b16 %v1203
        %v3893 = vunpack.c.h.b16 %v1203
        %v3894 = vunpack.c.l.b16 %v1204
        %v3895 = vunpack.c.h.b16 %v1204
        %v3896 = vunpack.c.l.b16 %v1205
        %v3897 = vunpack.c.h.b16 %v1205
        %v3898 = vunpack.c.l.b16 %v1206
        %v3899 = vunpack.c.h.b16 %v1206
        %v3900 = vunpack.c.l.b16 %v1207
        %v3901 = vunpack.c.h.b16 %v1207
        %v3902 = vunpack.c.l.b16 %v1208
        %v3903 = vunpack.c.h.b16 %v1208
        %v3904 = vunpack.c.l.b16 %v1209
        %v3905 = vunpack.c.h.b16 %v1209
        %v3906 = vunpack.c.l.b16 %v1210
        %v3907 = vunpack.c.h.b16 %v1210
        %v3908 = vunpack.c.l.b16 %v1211
        %v3909 = vunpack.c.h.b16 %v1211
        %v3910 = vunpack.c.l.b16 %v1212
        %v3911 = vunpack.c.h.b16 %v1212
        %v3912 = vunpack.c.l.b16 %v1213
        %v3913 = vunpack.c.h.b16 %v1213
        %v3914 = vunpack.c.l.b16 %v1214
        %v3915 = vunpack.c.h.b16 %v1214
        %v3916 = vunpack.c.l.b16 %v1215
        %v3917 = vunpack.c.h.b16 %v1215
        %v3918 = vunpack.c.l.b16 %v1216
        %v3919 = vunpack.c.h.b16 %v1216
        %v3920 = vunpack.c.l.b16 %v1217
        %v3921 = vunpack.c.h.b16 %v1217
        %v3922 = vunpack.c.l.b16 %v1218
        %v3923 = vunpack.c.h.b16 %v1218
        %v3924 = vunpack.c.l.b16 %v1219
        %v3925 = vunpack.c.h.b16 %v1219
        %v3926 = vunpack.c.l.b16 %v1220
        %v3927 = vunpack.c.h.b16 %v1220
        %v3928 = vunpack.c.l.b16 %v1221
        %v3929 = vunpack.c.h.b16 %v1221
        %v3930 = vunpack.c.l.b16 %v1222
        %v3931 = vunpack.c.h.b16 %v1222
        %v3932 = vunpack.c.l.b16 %v1223
        %v3933 = vunpack.c.h.b16 %v1223
        %v3934 = vunpack.c.l.b16 %v1224
        %v3935 = vunpack.c.h.b16 %v1224
        %v3936 = vunpack.c.l.b16 %v1225
        %v3937 = vunpack.c.h.b16 %v1225
        %v3938 = vunpack.c.l.b16 %v1226
        %v3939 = vunpack.c.h.b16 %v1226
        %v3940 = vunpack.c.l.b16 %v1227
        %v3941 = vunpack.c.h.b16 %v1227
        %v3942 = vunpack.c.l.b16 %v1228
        %v3943 = vunpack.c.h.b16 %v1228
        %v3944 = vunpack.c.l.b16 %v1229
        %v3945 = vunpack.c.h.b16 %v1229
        %v3946 = vunpack.c.l.b16 %v1230
        %v3947 = vunpack.c.h.b16 %v1230
        %v3948 = vunpack.c.l.b16 %v1231
        %v3949 = vunpack.c.h.b16 %v1231
        %v3950 = vunpack.c.l.b16 %v1232
        %v3951 = vunpack.c.h.b16 %v1232
        %v3952 = vunpack.c.l.b16 %v1233
        %v3953 = vunpack.c.h.b16 %v1233
        %v3954 = vunpack.c.l.b16 %v1234
        %v3955 = vunpack.c.h.b16 %v1234
        %v3956 = vunpack.c.l.b16 %v1235
        %v3957 = vunpack.c.h.b16 %v1235
        %v3958 = vunpack.c.l.b16 %v1236
        %v3959 = vunpack.c.h.b16 %v1236
        %v3960 = vunpack.c.l.b16 %v1237
        %v3961 = vunpack.c.h.b16 %v1237
        %v3962 = vunpack.c.l.b16 %v1238
        %v3963 = vunpack.c.h.b16 %v1238
        %v3964 = vunpack.c.l.b16 %v1239
        %v3965 = vunpack.c.h.b16 %v1239
        %v3966 = vunpack.c.l.b16 %v1240
        %v3967 = vunpack.c.h.b16 %v1240
        %v3968 = vunpack.c.l.b16 %v1241
        %v3969 = vunpack.c.h.b16 %v1241
        %v3970 = vunpack.c.l.b16 %v1242
        %v3971 = vunpack.c.h.b16 %v1242
        %v3972 = vunpack.c.l.b16 %v1243
        %v3973 = vunpack.c.h.b16 %v1243
        %v3974 = vunpack.c.l.b16 %v1244
        %v3975 = vunpack.c.h.b16 %v1244
        %v3976 = vunpack.c.l.b16 %v1245
        %v3977 = vunpack.c.h.b16 %v1245
        %v3978 = vunpack.c.l.b16 %v1246
        %v3979 = vunpack.c.h.b16 %v1246
        %v3980 = vunpack.c.l.b16 %v1247
        %v3981 = vunpack.c.h.b16 %v1247
        %v3982 = vunpack.c.l.b16 %v1248
        %v3983 = vunpack.c.h.b16 %v1248
        %v3984 = vunpack.c.l.b16 %v1249
        %v3985 = vunpack.c.h.b16 %v1249
        %v3986 = vunpack.c.l.b16 %v1250
        %v3987 = vunpack.c.h.b16 %v1250
        %v3988 = vunpack.c.l.b16 %v1251
        %v3989 = vunpack.c.h.b16 %v1251
        %v3990 = vunpack.c.l.b16 %v1252
        %v3991 = vunpack.c.h.b16 %v1252
        %v3992 = vunpack.c.l.b16 %v1253
        %v3993 = vunpack.c.h.b16 %v1253
        %v3994 = vunpack.c.l.b16 %v1254
        %v3995 = vunpack.c.h.b16 %v1254
        %v3996 = vunpack.c.l.b16 %v1255
        %v3997 = vunpack.c.h.b16 %v1255
        %v3998 = vunpack.c.l.b16 %v1256
        %v3999 = vunpack.c.h.b16 %v1256
        %v4000 = vunpack.c.l.b16 %v1257
        %v4001 = vunpack.c.h.b16 %v1257
        %v4002 = vunpack.c.l.b16 %v1258
        %v4003 = vunpack.c.h.b16 %v1258
        %v4004 = vunpack.c.l.b16 %v1259
        %v4005 = vunpack.c.h.b16 %v1259
        %v4006 = vunpack.c.l.b16 %v1260
        %v4007 = vunpack.c.h.b16 %v1260
        %v4008 = vunpack.c.l.b16 %v1261
        %v4009 = vunpack.c.h.b16 %v1261
        %v4010 = vunpack.c.l.b16 %v1262
        %v4011 = vunpack.c.h.b16 %v1262
        %v4012 = vunpack.c.l.b16 %v1263
        %v4013 = vunpack.c.h.b16 %v1263
        %v4014 = vunpack.c.l.b16 %v1264
        %v4015 = vunpack.c.h.b16 %v1264
        %v4016 = vunpack.c.l.b16 %v1265
        %v4017 = vunpack.c.h.b16 %v1265
        %v4018 = vunpack.c.l.b16 %v1266
        %v4019 = vunpack.c.h.b16 %v1266
        %v4020 = vunpack.c.l.b16 %v1267
        %v4021 = vunpack.c.h.b16 %v1267
        %v4022 = vunpack.c.l.b16 %v1268
        %v4023 = vunpack.c.h.b16 %v1268
        %v4024 = vunpack.c.l.b16 %v1269
        %v4025 = vunpack.c.h.b16 %v1269
        %v4026 = vunpack.c.l.b16 %v1270
        %v4027 = vunpack.c.h.b16 %v1270
        %v4028 = vunpack.c.l.b16 %v1271
        %v4029 = vunpack.c.h.b16 %v1271
        %v4030 = vunpack.c.l.b16 %v1272
        %v4031 = vunpack.c.h.b16 %v1272
        %v4032 = vunpack.c.l.b16 %v1273
        %v4033 = vunpack.c.h.b16 %v1273
        %v4034 = vunpack.c.l.b16 %v1274
        %v4035 = vunpack.c.h.b16 %v1274
        %v4036 = vunpack.c.l.b16 %v1275
        %v4037 = vunpack.c.h.b16 %v1275
        %v4038 = vunpack.c.l.b16 %v1276
        %v4039 = vunpack.c.h.b16 %v1276
        %v4040 = vunpack.c.l.b16 %v1277
        %v4041 = vunpack.c.h.b16 %v1277
        %v4042 = vunpack.c.l.b16 %v1278
        %v4043 = vunpack.c.h.b16 %v1278
        %v4044 = vunpack.c.l.b16 %v1279
        %v4045 = vunpack.c.h.b16 %v1279
        %v4046 = vunpack.c.l.b16 %v1280
        %v4047 = vunpack.c.h.b16 %v1280
        %v4048 = vunpack.c.l.b16 %v1281
        %v4049 = vunpack.c.h.b16 %v1281
        %v4050 = vunpack.c.l.b16 %v1282
        %v4051 = vunpack.c.h.b16 %v1282
        %v4052 = vunpack.c.l.b16 %v1283
        %v4053 = vunpack.c.h.b16 %v1283
        %v4054 = vunpack.c.l.b16 %v1284
        %v4055 = vunpack.c.h.b16 %v1284
        %v4056 = vunpack.c.l.b16 %v1285
        %v4057 = vunpack.c.h.b16 %v1285
        %v4058 = vunpack.c.l.b16 %v1286
        %v4059 = vunpack.c.h.b16 %v1286
        %v4060 = vunpack.c.l.b16 %v1287
        %v4061 = vunpack.c.h.b16 %v1287
        %v4062 = vunpack.c.l.b16 %v1288
        %v4063 = vunpack.c.h.b16 %v1288
        %v4064 = vunpack.c.l.b16 %v1289
        %v4065 = vunpack.c.h.b16 %v1289
        %v4066 = vunpack.c.l.b16 %v1290
        %v4067 = vunpack.c.h.b16 %v1290
        %v4068 = vunpack.c.l.b16 %v1291
        %v4069 = vunpack.c.h.b16 %v1291
        %v4070 = vunpack.c.l.b16 %v1292
        %v4071 = vunpack.c.h.b16 %v1292
        %v4072 = vunpack.c.l.b16 %v1293
        %v4073 = vunpack.c.h.b16 %v1293
        %v4074 = vunpack.c.l.b16 %v1294
        %v4075 = vunpack.c.h.b16 %v1294
        %v4076 = vunpack.c.l.b16 %v1295
        %v4077 = vunpack.c.h.b16 %v1295
        %v4078 = vunpack.c.l.b16 %v1296
        %v4079 = vunpack.c.h.b16 %v1296
        %v4080 = vunpack.c.l.b16 %v1297
        %v4081 = vunpack.c.h.b16 %v1297
        %v4082 = vunpack.c.l.b16 %v1298
        %v4083 = vunpack.c.h.b16 %v1298
        %v4084 = vunpack.c.l.b16 %v1299
        %v4085 = vunpack.c.h.b16 %v1299
        %v4086 = vunpack.c.l.b16 %v1300
        %v4087 = vunpack.c.h.b16 %v1300
        %v4088 = vunpack.c.l.b16 %v1301
        %v4089 = vunpack.c.h.b16 %v1301
        %v4090 = vunpack.c.l.b16 %v1302
        %v4091 = vunpack.c.h.b16 %v1302
        %v4092 = vunpack.c.l.b16 %v1303
        %v4093 = vunpack.c.h.b16 %v1303
        %v4094 = vunpack.c.l.b16 %v1304
        %v4095 = vunpack.c.h.b16 %v1304
        %v4096 = vunpack.c.l.b16 %v1305
        %v4097 = vunpack.c.h.b16 %v1305
        %v4098 = vunpack.c.l.b16 %v1306
        %v4099 = vunpack.c.h.b16 %v1306
        %v4100 = vunpack.c.l.b16 %v1307
        %v4101 = vunpack.c.h.b16 %v1307
        %v4102 = vunpack.c.l.b16 %v1308
        %v4103 = vunpack.c.h.b16 %v1308
        %v4104 = vunpack.c.l.b16 %v1309
        %v4105 = vunpack.c.h.b16 %v1309
        %v4106 = vunpack.c.l.b16 %v1310
        %v4107 = vunpack.c.h.b16 %v1310
        %v4108 = vunpack.c.l.b16 %v1311
        %v4109 = vunpack.c.h.b16 %v1311
        %v4110 = vunpack.c.l.b16 %v1312
        %v4111 = vunpack.c.h.b16 %v1312
        %v4112 = vunpack.c.l.b16 %v1313
        %v4113 = vunpack.c.h.b16 %v1313
        %v4114 = vunpack.c.l.b16 %v1314
        %v4115 = vunpack.c.h.b16 %v1314
        %v4116 = vunpack.c.l.b16 %v1315
        %v4117 = vunpack.c.h.b16 %v1315
        %v4118 = vunpack.c.l.b16 %v1316
        %v4119 = vunpack.c.h.b16 %v1316
        %v4120 = vunpack.c.l.b16 %v1317
        %v4121 = vunpack.c.h.b16 %v1317
        %v4122 = vunpack.c.l.b16 %v1318
        %v4123 = vunpack.c.h.b16 %v1318
        %v4124 = vunpack.c.l.b16 %v1319
        %v4125 = vunpack.c.h.b16 %v1319
        %v4126 = vunpack.c.l.b16 %v1320
        %v4127 = vunpack.c.h.b16 %v1320
        %v4128 = vunpack.c.l.b16 %v1321
        %v4129 = vunpack.c.h.b16 %v1321
        %v4130 = vunpack.c.l.b16 %v1322
        %v4131 = vunpack.c.h.b16 %v1322
        %v4132 = vunpack.c.l.b16 %v1323
        %v4133 = vunpack.c.h.b16 %v1323
        %v4134 = vunpack.c.l.b16 %v1324
        %v4135 = vunpack.c.h.b16 %v1324
        %v4136 = vunpack.c.l.b16 %v1325
        %v4137 = vunpack.c.h.b16 %v1325
        %v4138 = vunpack.c.l.b16 %v1326
        %v4139 = vunpack.c.h.b16 %v1326
        %v4140 = vunpack.c.l.b16 %v1327
        %v4141 = vunpack.c.h.b16 %v1327
        %v4142 = vunpack.c.l.b16 %v1328
        %v4143 = vunpack.c.h.b16 %v1328
        %v4144 = vunpack.c.l.b16 %v1329
        %v4145 = vunpack.c.h.b16 %v1329
        %v4146 = vunpack.c.l.b16 %v1330
        %v4147 = vunpack.c.h.b16 %v1330
        %v4148 = vunpack.c.l.b16 %v1331
        %v4149 = vunpack.c.h.b16 %v1331
        %v4150 = vunpack.c.l.b16 %v1332
        %v4151 = vunpack.c.h.b16 %v1332
        %v4152 = vunpack.c.l.b16 %v1333
        %v4153 = vunpack.c.h.b16 %v1333
        %v4154 = vunpack.c.l.b16 %v1334
        %v4155 = vunpack.c.h.b16 %v1334
        %v4156 = vunpack.c.l.b16 %v1335
        %v4157 = vunpack.c.h.b16 %v1335
        %v4158 = vunpack.c.l.b16 %v1336
        %v4159 = vunpack.c.h.b16 %v1336
        %v4160 = vunpack.c.l.b16 %v1337
        %v4161 = vunpack.c.h.b16 %v1337
        %v4162 = vunpack.c.l.b16 %v1338
        %v4163 = vunpack.c.h.b16 %v1338
        %v4164 = vunpack.c.l.b16 %v1339
        %v4165 = vunpack.c.h.b16 %v1339
        %v4166 = vunpack.c.l.b16 %v1340
        %v4167 = vunpack.c.h.b16 %v1340
        %v4168 = vunpack.c.l.b16 %v1341
        %v4169 = vunpack.c.h.b16 %v1341
        %v4170 = vunpack.c.l.b16 %v1342
        %v4171 = vunpack.c.h.b16 %v1342
        %v4172 = vunpack.c.l.b16 %v1343
        %v4173 = vunpack.c.h.b16 %v1343
        %v4174 = vunpack.c.l.b16 %v1344
        %v4175 = vunpack.c.h.b16 %v1344
        %v4176 = vunpack.c.l.b16 %v1345
        %v4177 = vunpack.c.h.b16 %v1345
        %v4178 = vunpack.c.l.b16 %v1346
        %v4179 = vunpack.c.h.b16 %v1346
        %v4180 = vunpack.c.l.b16 %v1347
        %v4181 = vunpack.c.h.b16 %v1347
        %v4182 = vunpack.c.l.b16 %v1348
        %v4183 = vunpack.c.h.b16 %v1348
        %v4184 = vunpack.c.l.b16 %v1349
        %v4185 = vunpack.c.h.b16 %v1349
        %v4186 = vunpack.c.l.b16 %v1350
        %v4187 = vunpack.c.h.b16 %v1350
        %v4188 = vunpack.c.l.b16 %v1351
        %v4189 = vunpack.c.h.b16 %v1351
        %v4190 = vunpack.c.l.b16 %v1352
        %v4191 = vunpack.c.h.b16 %v1352
        %v4192 = vunpack.c.l.b16 %v1353
        %v4193 = vunpack.c.h.b16 %v1353
        %v4194 = vunpack.c.l.b16 %v1354
        %v4195 = vunpack.c.h.b16 %v1354
        %v4196 = vunpack.c.l.b16 %v1355
        %v4197 = vunpack.c.h.b16 %v1355
        %v4198 = vunpack.c.l.b16 %v1356
        %v4199 = vunpack.c.h.b16 %v1356
        %v4200 = vunpack.c.l.b16 %v1357
        %v4201 = vunpack.c.h.b16 %v1357
        %v4202 = vunpack.c.l.b16 %v1358
        %v4203 = vunpack.c.h.b16 %v1358
        %v4204 = vunpack.c.l.b16 %v1359
        %v4205 = vunpack.c.h.b16 %v1359
        %v4206 = vunpack.c.l.b16 %v1360
        %v4207 = vunpack.c.h.b16 %v1360
        %v4208 = vunpack.c.l.b16 %v1361
        %v4209 = vunpack.c.h.b16 %v1361
        %v4210 = vunpack.c.l.b16 %v1362
        %v4211 = vunpack.c.h.b16 %v1362
        %v4212 = vunpack.c.l.b16 %v1363
        %v4213 = vunpack.c.h.b16 %v1363
        %v4214 = vunpack.c.l.b16 %v1364
        %v4215 = vunpack.c.h.b16 %v1364
        %v4216 = vunpack.c.l.b16 %v1365
        %v4217 = vunpack.c.h.b16 %v1365
        %v4218 = vunpack.c.l.b16 %v1366
        %v4219 = vunpack.c.h.b16 %v1366
        %v4220 = vunpack.c.l.b16 %v1367
        %v4221 = vunpack.c.h.b16 %v1367
        %v4222 = vunpack.c.l.b16 %v1368
        %v4223 = vunpack.c.h.b16 %v1368
        %v4224 = vunpack.c.l.b16 %v1369
        %v4225 = vunpack.c.h.b16 %v1369
        %v4226 = vunpack.c.l.b16 %v1370
        %v4227 = vunpack.c.h.b16 %v1370
        %v4228 = vunpack.c.l.b16 %v1371
        %v4229 = vunpack.c.h.b16 %v1371
        %v4230 = vunpack.c.l.b16 %v1372
        %v4231 = vunpack.c.h.b16 %v1372
        %v4232 = vunpack.c.l.b16 %v1373
        %v4233 = vunpack.c.h.b16 %v1373
        %v4234 = vunpack.c.l.b16 %v1374
        %v4235 = vunpack.c.h.b16 %v1374
        %v4236 = vunpack.c.l.b16 %v1375
        %v4237 = vunpack.c.h.b16 %v1375
        %v4238 = vunpack.c.l.b16 %v1376
        %v4239 = vunpack.c.h.b16 %v1376
        %v4240 = vunpack.c.l.b16 %v1377
        %v4241 = vunpack.c.h.b16 %v1377
        %v4242 = vunpack.c.l.b16 %v1378
        %v4243 = vunpack.c.h.b16 %v1378
        %v4244 = vunpack.c.l.b16 %v1379
        %v4245 = vunpack.c.h.b16 %v1379
        %v4246 = vunpack.c.l.b16 %v1380
        %v4247 = vunpack.c.h.b16 %v1380
        %v4248 = vunpack.c.l.b16 %v1381
        %v4249 = vunpack.c.h.b16 %v1381
        %v4250 = vunpack.c.l.b16 %v1382
        %v4251 = vunpack.c.h.b16 %v1382
        %v4252 = vunpack.c.l.b16 %v1383
        %v4253 = vunpack.c.h.b16 %v1383
        %v4254 = vunpack.c.l.b16 %v1384
        %v4255 = vunpack.c.h.b16 %v1384
        %v4256 = vunpack.c.l.b16 %v1385
        %v4257 = vunpack.c.h.b16 %v1385
        %v4258 = vunpack.c.l.b16 %v1386
        %v4259 = vunpack.c.h.b16 %v1386
        %v4260 = vunpack.c.l.b16 %v1387
        %v4261 = vunpack.c.h.b16 %v1387
        %v4262 = vunpack.c.l.b16 %v1388
        %v4263 = vunpack.c.h.b16 %v1388
        %v4264 = vunpack.c.l.b16 %v1389
        %v4265 = vunpack.c.h.b16 %v1389
        %v4266 = vunpack.c.l.b16 %v1390
        %v4267 = vunpack.c.h.b16 %v1390
        %v4268 = vunpack.c.l.b16 %v1391
        %v4269 = vunpack.c.h.b16 %v1391
        %v4270 = vunpack.c.l.b16 %v1392
        %v4271 = vunpack.c.h.b16 %v1392
        %v4272 = vunpack.c.l.b16 %v1393
        %v4273 = vunpack.c.h.b16 %v1393
        %v4274 = vunpack.c.l.b16 %v1394
        %v4275 = vunpack.c.h.b16 %v1394
        %v4276 = vunpack.c.l.b16 %v1395
        %v4277 = vunpack.c.h.b16 %v1395
        %v4278 = vunpack.c.l.b16 %v1396
        %v4279 = vunpack.c.h.b16 %v1396
        %v4280 = vunpack.c.l.b16 %v1397
        %v4281 = vunpack.c.h.b16 %v1397
        %v4282 = vunpack.c.l.b16 %v1398
        %v4283 = vunpack.c.h.b16 %v1398
        %v4284 = vunpack.c.l.b16 %v1399
        %v4285 = vunpack.c.h.b16 %v1399
        %v4286 = vunpack.c.l.b16 %v1400
        %v4287 = vunpack.c.h.b16 %v1400
        %v4288 = vunpack.c.l.b16 %v1401
        %v4289 = vunpack.c.h.b16 %v1401
        %v4290 = vunpack.c.l.b16 %v1402
        %v4291 = vunpack.c.h.b16 %v1402
        %v4292 = vunpack.c.l.b16 %v1403
        %v4293 = vunpack.c.h.b16 %v1403
        %v4294 = vunpack.c.l.b16 %v1404
        %v4295 = vunpack.c.h.b16 %v1404
        %v4296 = vunpack.c.l.b16 %v1405
        %v4297 = vunpack.c.h.b16 %v1405
        %v4298 = vunpack.c.l.b16 %v1406
        %v4299 = vunpack.c.h.b16 %v1406
        %v4300 = vunpack.c.l.b16 %v1407
        %v4301 = vunpack.c.h.b16 %v1407
        %v4302 = vunpack.c.l.b16 %v1408
        %v4303 = vunpack.c.h.b16 %v1408
        %v4304 = vunpack.c.l.b16 %v1409
        %v4305 = vunpack.c.h.b16 %v1409
        %v4306 = vunpack.c.l.b16 %v1410
        %v4307 = vunpack.c.h.b16 %v1410
        %v4308 = vunpack.c.l.b16 %v1411
        %v4309 = vunpack.c.h.b16 %v1411
        %v4310 = vunpack.c.l.b16 %v1412
        %v4311 = vunpack.c.h.b16 %v1412
        %v4312 = vunpack.c.l.b16 %v1413
        %v4313 = vunpack.c.h.b16 %v1413
        %v4314 = vunpack.c.l.b16 %v1414
        %v4315 = vunpack.c.h.b16 %v1414
        %v4316 = vunpack.c.l.b16 %v1415
        %v4317 = vunpack.c.h.b16 %v1415
        %v4318 = vunpack.c.l.b16 %v1416
        %v4319 = vunpack.c.h.b16 %v1416
        %v4320 = vunpack.c.l.b16 %v1417
        %v4321 = vunpack.c.h.b16 %v1417
        %v4322 = vunpack.c.l.b16 %v1418
        %v4323 = vunpack.c.h.b16 %v1418
        %v4324 = vunpack.c.l.b16 %v1419
        %v4325 = vunpack.c.h.b16 %v1419
        %v4326 = vunpack.c.l.b16 %v1420
        %v4327 = vunpack.c.h.b16 %v1420
        %v4328 = vunpack.c.l.b16 %v1421
        %v4329 = vunpack.c.h.b16 %v1421
        %v4330 = vunpack.c.l.b16 %v1422
        %v4331 = vunpack.c.h.b16 %v1422
        %v4332 = vunpack.c.l.b16 %v1423
        %v4333 = vunpack.c.h.b16 %v1423
        %v4334 = vunpack.c.l.b16 %v1424
        %v4335 = vunpack.c.h.b16 %v1424
        %v4336 = vunpack.c.l.b16 %v1425
        %v4337 = vunpack.c.h.b16 %v1425
        %v4338 = vunpack.c.l.b16 %v1426
        %v4339 = vunpack.c.h.b16 %v1426
        %v4340 = vunpack.c.l.b16 %v1427
        %v4341 = vunpack.c.h.b16 %v1427
        %v4342 = vunpack.c.l.b16 %v1428
        %v4343 = vunpack.c.h.b16 %v1428
        %v4344 = vunpack.c.l.b16 %v1429
        %v4345 = vunpack.c.h.b16 %v1429
        %v4346 = vunpack.c.l.b16 %v1430
        %v4347 = vunpack.c.h.b16 %v1430
        %v4348 = vunpack.c.l.b16 %v1431
        %v4349 = vunpack.c.h.b16 %v1431
        %v4350 = vunpack.c.l.b16 %v1432
        %v4351 = vunpack.c.h.b16 %v1432
        %v4352 = vunpack.c.l.b16 %v1433
        %v4353 = vunpack.c.h.b16 %v1433
        %v4354 = vunpack.c.l.b16 %v1434
        %v4355 = vunpack.c.h.b16 %v1434
        %v4356 = vunpack.c.l.b16 %v1435
        %v4357 = vunpack.c.h.b16 %v1435
        %v4358 = vunpack.c.l.b16 %v1436
        %v4359 = vunpack.c.h.b16 %v1436
        %v4360 = vunpack.c.l.b16 %v1437
        %v4361 = vunpack.c.h.b16 %v1437
        %v4362 = vunpack.c.l.b16 %v1438
        %v4363 = vunpack.c.h.b16 %v1438
        %v4364 = vunpack.c.l.b16 %v1439
        %v4365 = vunpack.c.h.b16 %v1439
        %v4366 = vunpack.c.l.b16 %v1440
        %v4367 = vunpack.c.h.b16 %v1440
        %v4368 = vunpack.c.l.b16 %v1441
        %v4369 = vunpack.c.h.b16 %v1441
        %v4370 = vunpack.c.l.b16 %v1442
        %v4371 = vunpack.c.h.b16 %v1442
        %v4372 = vunpack.c.l.b16 %v1443
        %v4373 = vunpack.c.h.b16 %v1443
        %v4374 = vunpack.c.l.b16 %v1444
        %v4375 = vunpack.c.h.b16 %v1444
        %v4376 = vunpack.c.l.b16 %v1445
        %v4377 = vunpack.c.h.b16 %v1445
        %v4378 = vunpack.c.l.b16 %v1446
        %v4379 = vunpack.c.h.b16 %v1446
        %v4380 = vunpack.c.l.b16 %v1447
        %v4381 = vunpack.c.h.b16 %v1447
        %v4382 = vunpack.c.l.b16 %v1448
        %v4383 = vunpack.c.h.b16 %v1448
        %v4384 = vunpack.c.l.b16 %v1449
        %v4385 = vunpack.c.h.b16 %v1449
        %v4386 = vunpack.c.l.b16 %v1450
        %v4387 = vunpack.c.h.b16 %v1450
        %v4388 = vunpack.c.l.b16 %v1451
        %v4389 = vunpack.c.h.b16 %v1451
        %v4390 = vunpack.c.l.b16 %v1452
        %v4391 = vunpack.c.h.b16 %v1452
        %v4392 = vunpack.c.l.b16 %v1453
        %v4393 = vunpack.c.h.b16 %v1453
        %v4394 = vunpack.c.l.b16 %v1454
        %v4395 = vunpack.c.h.b16 %v1454
        %v4396 = vunpack.c.l.b16 %v1455
        %v4397 = vunpack.c.h.b16 %v1455
        %v4398 = vunpack.c.l.b16 %v1456
        %v4399 = vunpack.c.h.b16 %v1456
        %v4400 = vunpack.c.l.b16 %v1457
        %v4401 = vunpack.c.h.b16 %v1457
        %v4402 = vunpack.c.l.b16 %v1458
        %v4403 = vunpack.c.h.b16 %v1458
        %v4404 = vunpack.c.l.b16 %v1459
        %v4405 = vunpack.c.h.b16 %v1459
        %v4406 = vunpack.c.l.b16 %v1460
        %v4407 = vunpack.c.h.b16 %v1460
        %v4408 = vunpack.c.l.b16 %v1461
        %v4409 = vunpack.c.h.b16 %v1461
        %v4410 = vunpack.c.l.b16 %v1462
        %v4411 = vunpack.c.h.b16 %v1462
        %v4412 = vunpack.c.l.b16 %v1463
        %v4413 = vunpack.c.h.b16 %v1463
        %v4414 = vunpack.c.l.b16 %v1464
        %v4415 = vunpack.c.h.b16 %v1464
        %v4416 = vunpack.c.l.b16 %v1465
        %v4417 = vunpack.c.h.b16 %v1465
        %v4418 = vunpack.c.l.b16 %v1466
        %v4419 = vunpack.c.h.b16 %v1466
        %v4420 = vunpack.c.l.b16 %v1467
        %v4421 = vunpack.c.h.b16 %v1467
        %v4422 = vunpack.c.l.b16 %v1468
        %v4423 = vunpack.c.h.b16 %v1468
        %v4424 = vunpack.c.l.b16 %v1469
        %v4425 = vunpack.c.h.b16 %v1469
        %v4426 = vunpack.c.l.b16 %v1470
        %v4427 = vunpack.c.h.b16 %v1470
        %v4428 = vunpack.c.l.b16 %v1471
        %v4429 = vunpack.c.h.b16 %v1471
        %v4430 = vunpack.c.l.b16 %v1472
        %v4431 = vunpack.c.h.b16 %v1472
        %v4432 = vunpack.c.l.b16 %v1473
        %v4433 = vunpack.c.h.b16 %v1473
        %v4434 = vunpack.c.l.b16 %v1474
        %v4435 = vunpack.c.h.b16 %v1474
        %v4436 = vunpack.c.l.b16 %v1475
        %v4437 = vunpack.c.h.b16 %v1475
        %v4438 = vunpack.c.l.b16 %v1476
        %v4439 = vunpack.c.h.b16 %v1476
        %v4440 = vunpack.c.l.b16 %v1477
        %v4441 = vunpack.c.h.b16 %v1477
        %v4442 = vunpack.c.l.b16 %v1478
        %v4443 = vunpack.c.h.b16 %v1478
        %v4444 = vunpack.c.l.b16 %v1479
        %v4445 = vunpack.c.h.b16 %v1479
        %v4446 = vunpack.c.l.b16 %v1480
        %v4447 = vunpack.c.h.b16 %v1480
        %v4448 = vunpack.c.l.b16 %v1481
        %v4449 = vunpack.c.h.b16 %v1481
        %v4450 = vunpack.c.l.b16 %v1482
        %v4451 = vunpack.c.h.b16 %v1482
        %v4452 = vunpack.c.l.b16 %v1483
        %v4453 = vunpack.c.h.b16 %v1483
        %v4454 = vunpack.c.l.b16 %v1484
        %v4455 = vunpack.c.h.b16 %v1484
        %v4456 = vunpack.c.l.b16 %v1485
        %v4457 = vunpack.c.h.b16 %v1485
        %v4458 = vunpack.c.l.b16 %v1486
        %v4459 = vunpack.c.h.b16 %v1486
        %v4460 = vunpack.c.l.b16 %v1487
        %v4461 = vunpack.c.h.b16 %v1487
        %v4462 = vunpack.c.l.b16 %v1488
        %v4463 = vunpack.c.h.b16 %v1488
        %v4464 = vunpack.c.l.b16 %v1489
        %v4465 = vunpack.c.h.b16 %v1489
        %v4466 = vunpack.c.l.b16 %v1490
        %v4467 = vunpack.c.h.b16 %v1490
        %v4468 = vunpack.c.l.b16 %v1491
        %v4469 = vunpack.c.h.b16 %v1491
        %v4470 = vunpack.c.l.b16 %v1492
        %v4471 = vunpack.c.h.b16 %v1492
        %v4472 = vunpack.c.l.b16 %v1493
        %v4473 = vunpack.c.h.b16 %v1493
        %v4474 = vunpack.c.l.b16 %v1494
        %v4475 = vunpack.c.h.b16 %v1494
        %v4476 = vunpack.c.l.b16 %v1495
        %v4477 = vunpack.c.h.b16 %v1495
        %v4478 = vunpack.c.l.b16 %v1496
        %v4479 = vunpack.c.h.b16 %v1496
        %v4480 = vunpack.c.l.b16 %v1497
        %v4481 = vunpack.c.h.b16 %v1497
        %v4482 = vunpack.c.l.b16 %v1498
        %v4483 = vunpack.c.h.b16 %v1498
        %v4484 = vunpack.c.l.b16 %v1499
        %v4485 = vunpack.c.h.b16 %v1499
        %v4486 = vunpack.c.l.b16 %v1500
        %v4487 = vunpack.c.h.b16 %v1500
        %v4488 = vunpack.c.l.b16 %v1501
        %v4489 = vunpack.c.h.b16 %v1501
        %v4490 = vunpack.c.l.b16 %v1502
        %v4491 = vunpack.c.h.b16 %v1502
        %v4492 = vunpack.c.l.b16 %v1503
        %v4493 = vunpack.c.h.b16 %v1503
        %v4494 = vunpack.c.l.b16 %v1504
        %v4495 = vunpack.c.h.b16 %v1504
        %v4496 = vunpack.c.l.b16 %v1505
        %v4497 = vunpack.c.h.b16 %v1505
        %v4498 = vunpack.c.l.b16 %v1506
        %v4499 = vunpack.c.h.b16 %v1506
        %v4500 = vunpack.c.l.b16 %v1507
        %v4501 = vunpack.c.h.b16 %v1507
        %v4502 = vunpack.c.l.b16 %v1508
        %v4503 = vunpack.c.h.b16 %v1508
        %v4504 = vunpack.c.l.b16 %v1509
        %v4505 = vunpack.c.h.b16 %v1509
        %v4506 = vunpack.c.l.b16 %v1510
        %v4507 = vunpack.c.h.b16 %v1510
        %v4508 = vunpack.c.l.b16 %v1511
        %v4509 = vunpack.c.h.b16 %v1511
        %v4510 = vunpack.c.l.b16 %v1512
        %v4511 = vunpack.c.h.b16 %v1512
        %v4512 = vunpack.c.l.b16 %v1513
        %v4513 = vunpack.c.h.b16 %v1513
        %v4514 = vunpack.c.l.b16 %v1514
        %v4515 = vunpack.c.h.b16 %v1514
        %v4516 = vunpack.c.l.b16 %v1515
        %v4517 = vunpack.c.h.b16 %v1515
        %v4518 = vunpack.c.l.b16 %v1516
        %v4519 = vunpack.c.h.b16 %v1516
        %v4520 = vunpack.c.l.b16 %v1517
        %v4521 = vunpack.c.h.b16 %v1517
        %v4522 = vunpack.c.l.b16 %v1518
        %v4523 = vunpack.c.h.b16 %v1518
        %v4524 = vunpack.c.l.b16 %v1519
        %v4525 = vunpack.c.h.b16 %v1519
        %v4526 = vunpack.c.l.b16 %v1520
        %v4527 = vunpack.c.h.b16 %v1520
        %v4528 = vunpack.c.l.b16 %v1521
        %v4529 = vunpack.c.h.b16 %v1521
        %v4530 = vunpack.c.l.b16 %v1522
        %v4531 = vunpack.c.h.b16 %v1522
        %v4532 = vunpack.c.l.b16 %v1523
        %v4533 = vunpack.c.h.b16 %v1523
        %v4534 = vunpack.c.l.b16 %v1524
        %v4535 = vunpack.c.h.b16 %v1524
        %v4536 = vunpack.c.l.b16 %v1525
        %v4537 = vunpack.c.h.b16 %v1525
        %v4538 = vunpack.c.l.b16 %v1526
        %v4539 = vunpack.c.h.b16 %v1526
        %v4540 = vunpack.c.l.b16 %v1527
        %v4541 = vunpack.c.h.b16 %v1527
        %v4542 = vunpack.c.l.b16 %v1528
        %v4543 = vunpack.c.h.b16 %v1528
        %v4544 = vunpack.c.l.b16 %v1529
        %v4545 = vunpack.c.h.b16 %v1529
        %v4546 = vunpack.c.l.b16 %v1530
        %v4547 = vunpack.c.h.b16 %v1530
        %v4548 = vunpack.c.l.b16 %v1531
        %v4549 = vunpack.c.h.b16 %v1531
        %v4550 = vunpack.c.l.b16 %v1532
        %v4551 = vunpack.c.h.b16 %v1532
        %v4552 = vunpack.c.l.b16 %v1533
        %v4553 = vunpack.c.h.b16 %v1533
        %v4554 = vunpack.c.l.b16 %v1534
        %v4555 = vunpack.c.h.b16 %v1534
        %v4556 = vunpack.c.l.b16 %v1535
        %v4557 = vunpack.c.h.b16 %v1535
        %v4558 = vunpack.c.l.b16 %v1536
        %v4559 = vunpack.c.h.b16 %v1536
        %v4560 = vunpack.c.l.b16 %v1537
        %v4561 = vunpack.c.h.b16 %v1537
        %v4562 = vunpack.c.l.b16 %v1538
        %v4563 = vunpack.c.h.b16 %v1538
        %v4564 = vunpack.c.l.b16 %v1539
        %v4565 = vunpack.c.h.b16 %v1539
        %v4566 = vunpack.c.l.b16 %v1540
        %v4567 = vunpack.c.h.b16 %v1540
        %v4568 = vunpack.c.l.b16 %v1541
        %v4569 = vunpack.c.h.b16 %v1541
        %v4570 = vunpack.c.l.b16 %v1542
        %v4571 = vunpack.c.h.b16 %v1542
        %v4572 = vunpack.c.l.b16 %v1543
        %v4573 = vunpack.c.h.b16 %v1543
        %v4574 = vunpack.c.l.b16 %v1544
        %v4575 = vunpack.c.h.b16 %v1544
        %v4576 = vunpack.c.l.b16 %v1545
        %v4577 = vunpack.c.h.b16 %v1545
        %v4578 = vunpack.c.l.b16 %v1546
        %v4579 = vunpack.c.h.b16 %v1546
        %v4580 = vunpack.c.l.b16 %v1547
        %v4581 = vunpack.c.h.b16 %v1547
        %v4582 = vunpack.c.l.b16 %v1548
        %v4583 = vunpack.c.h.b16 %v1548
        %v4584 = vunpack.c.l.b16 %v1549
        %v4585 = vunpack.c.h.b16 %v1549
        %v4586 = vunpack.c.l.b16 %v1550
        %v4587 = vunpack.c.h.b16 %v1550
        %v4588 = vunpack.c.l.b16 %v1551
        %v4589 = vunpack.c.h.b16 %v1551
        %v4590 = vunpack.c.l.b16 %v1552
        %v4591 = vunpack.c.h.b16 %v1552
        %v4592 = vunpack.c.l.b16 %v1553
        %v4593 = vunpack.c.h.b16 %v1553
        %v4594 = vunpack.c.l.b16 %v1554
        %v4595 = vunpack.c.h.b16 %v1554
        %v4596 = vunpack.c.l.b16 %v1555
        %v4597 = vunpack.c.h.b16 %v1555
        %v4598 = vunpack.c.l.b16 %v1556
        %v4599 = vunpack.c.h.b16 %v1556
        %v4600 = vunpack.c.l.b16 %v1557
        %v4601 = vunpack.c.h.b16 %v1557
        %v4602 = vunpack.c.l.b16 %v1558
        %v4603 = vunpack.c.h.b16 %v1558
        %v4604 = vunpack.c.l.b16 %v1559
        %v4605 = vunpack.c.h.b16 %v1559
        %v4606 = vunpack.c.l.b16 %v1560
        %v4607 = vunpack.c.h.b16 %v1560
        %v4608 = vunpack.c.l.b16 %v1561
        %v4609 = vunpack.c.h.b16 %v1561
        %v4610 = vunpack.c.l.b16 %v1562
        %v4611 = vunpack.c.h.b16 %v1562
        %v4612 = vunpack.c.l.b16 %v1563
        %v4613 = vunpack.c.h.b16 %v1563
        %v4614 = vunpack.c.l.b16 %v1564
        %v4615 = vunpack.c.h.b16 %v1564
        %v4616 = vunpack.c.l.b16 %v1565
        %v4617 = vunpack.c.h.b16 %v1565
        %v4618 = vunpack.c.l.b16 %v1566
        %v4619 = vunpack.c.h.b16 %v1566
        %v4620 = vunpack.c.l.b16 %v1567
        %v4621 = vunpack.c.h.b16 %v1567
        %v4622 = vunpack.c.l.b16 %v1568
        %v4623 = vunpack.c.h.b16 %v1568
        %v4624 = vunpack.c.l.b16 %v1569
        %v4625 = vunpack.c.h.b16 %v1569
        %v4626 = vunpack.c.l.b16 %v1570
        %v4627 = vunpack.c.h.b16 %v1570
        %v4628 = vunpack.c.l.b16 %v1571
        %v4629 = vunpack.c.h.b16 %v1571
        %v4630 = vunpack.c.l.b16 %v1572
        %v4631 = vunpack.c.h.b16 %v1572
        %v4632 = vunpack.c.l.b16 %v1573
        %v4633 = vunpack.c.h.b16 %v1573
        %v4634 = vunpack.c.l.b16 %v1574
        %v4635 = vunpack.c.h.b16 %v1574
        %v4636 = vunpack.c.l.b16 %v1575
        %v4637 = vunpack.c.h.b16 %v1575
        %v4638 = vunpack.c.l.b16 %v1576
        %v4639 = vunpack.c.h.b16 %v1576
        %v4640 = vunpack.c.l.b16 %v1577
        %v4641 = vunpack.c.h.b16 %v1577
        %v4642 = vunpack.c.l.b16 %v1578
        %v4643 = vunpack.c.h.b16 %v1578
        %v4644 = vunpack.c.l.b16 %v1579
        %v4645 = vunpack.c.h.b16 %v1579
        %v4646 = vunpack.c.l.b16 %v1580
        %v4647 = vunpack.c.h.b16 %v1580
        %v4648 = vunpack.c.l.b16 %v1581
        %v4649 = vunpack.c.h.b16 %v1581
        %v4650 = vunpack.c.l.b16 %v1582
        %v4651 = vunpack.c.h.b16 %v1582
        %v4652 = vunpack.c.l.b16 %v1583
        %v4653 = vunpack.c.h.b16 %v1583
        %v4654 = vunpack.c.l.b16 %v1584
        %v4655 = vunpack.c.h.b16 %v1584
        %v4656 = vunpack.c.l.b16 %v1585
        %v4657 = vunpack.c.h.b16 %v1585
        %v4658 = vpack.c.b16 %v2626, %v2610
        %v4659 = vpack.c.b16 %v2627, %v2611
        %v4660 = vpack.c.b16 %v2628, %v2612
        %v4661 = vpack.c.b16 %v2629, %v2613
        %v4662 = vpack.c.b16 %v2630, %v2614
        %v4663 = vpack.c.b16 %v2631, %v2615
        %v4664 = vpack.c.b16 %v2632, %v2616
        %v4665 = vpack.c.b16 %v2633, %v2617
        %v4666 = vpack.c.b16 %v2634, %v2618
        %v4667 = vpack.c.b16 %v2635, %v2619
        %v4668 = vpack.c.b16 %v2636, %v2620
        %v4669 = vpack.c.b16 %v2637, %v2621
        %v4670 = vpack.c.b16 %v2638, %v2622
        %v4671 = vpack.c.b16 %v2639, %v2623
        %v4672 = vpack.c.b16 %v2640, %v2624
        %v4673 = vpack.c.b16 %v2641, %v2625
        %v4674 = vpack.c.b16 %v2658, %v2642
        %v4675 = vpack.c.b16 %v2659, %v2643
        %v4676 = vpack.c.b16 %v2660, %v2644
        %v4677 = vpack.c.b16 %v2661, %v2645
        %v4678 = vpack.c.b16 %v2662, %v2646
        %v4679 = vpack.c.b16 %v2663, %v2647
        %v4680 = vpack.c.b16 %v2664, %v2648
        %v4681 = vpack.c.b16 %v2665, %v2649
        %v4682 = vpack.c.b16 %v2666, %v2650
        %v4683 = vpack.c.b16 %v2667, %v2651
        %v4684 = vpack.c.b16 %v2668, %v2652
        %v4685 = vpack.c.b16 %v2669, %v2653
        %v4686 = vpack.c.b16 %v2670, %v2654
        %v4687 = vpack.c.b16 %v2671, %v2655
        %v4688 = vpack.c.b16 %v2672, %v2656
        %v4689 = vpack.c.b16 %v2673, %v2657
        %v4690 = vpack.c.b16 %v2690, %v2674
        %v4691 = vpack.c.b16 %v2691, %v2675
        %v4692 = vpack.c.b16 %v2692, %v2676
        %v4693 = vpack.c.b16 %v2693, %v2677
        %v4694 = vpack.c.b16 %v2694, %v2678
        %v4695 = vpack.c.b16 %v2695, %v2679
        %v4696 = vpack.c.b16 %v2696, %v2680
        %v4697 = vpack.c.b16 %v2697, %v2681
        %v4698 = vpack.c.b16 %v2698, %v2682
        %v4699 = vpack.c.b16 %v2699, %v2683
        %v4700 = vpack.c.b16 %v2700, %v2684
        %v4701 = vpack.c.b16 %v2701, %v2685
        %v4702 = vpack.c.b16 %v2702, %v2686
        %v4703 = vpack.c.b16 %v2703, %v2687
        %v4704 = vpack.c.b16 %v2704, %v2688
        %v4705 = vpack.c.b16 %v2705, %v2689
        %v4706 = vpack.c.b16 %v2722, %v2706
        %v4707 = vpack.c.b16 %v2723, %v2707
        %v4708 = vpack.c.b16 %v2724, %v2708
        %v4709 = vpack.c.b16 %v2725, %v2709
        %v4710 = vpack.c.b16 %v2726, %v2710
        %v4711 = vpack.c.b16 %v2727, %v2711
        %v4712 = vpack.c.b16 %v2728, %v2712
        %v4713 = vpack.c.b16 %v2729, %v2713
        %v4714 = vpack.c.b16 %v2730, %v2714
        %v4715 = vpack.c.b16 %v2731, %v2715
        %v4716 = vpack.c.b16 %v2732, %v2716
        %v4717 = vpack.c.b16 %v2733, %v2717
        %v4718 = vpack.c.b16 %v2734, %v2718
        %v4719 = vpack.c.b16 %v2735, %v2719
        %v4720 = vpack.c.b16 %v2736, %v2720
        %v4721 = vpack.c.b16 %v2737, %v2721
        %v4722 = vpack.c.b16 %v2754, %v2738
        %v4723 = vpack.c.b16 %v2755, %v2739
        %v4724 = vpack.c.b16 %v2756, %v2740
        %v4725 = vpack.c.b16 %v2757, %v2741
        %v4726 = vpack.c.b16 %v2758, %v2742
        %v4727 = vpack.c.b16 %v2759, %v2743
        %v4728 = vpack.c.b16 %v2760, %v2744
        %v4729 = vpack.c.b16 %v2761, %v2745
        %v4730 = vpack.c.b16 %v2762, %v2746
        %v4731 = vpack.c.b16 %v2763, %v2747
        %v4732 = vpack.c.b16 %v2764, %v2748
        %v4733 = vpack.c.b16 %v2765, %v2749
        %v4734 = vpack.c.b16 %v2766, %v2750
        %v4735 = vpack.c.b16 %v2767, %v2751
        %v4736 = vpack.c.b16 %v2768, %v2752
        %v4737 = vpack.c.b16 %v2769, %v2753
        %v4738 = vpack.c.b16 %v2786, %v2770
        %v4739 = vpack.c.b16 %v2787, %v2771
        %v4740 = vpack.c.b16 %v2788, %v2772
        %v4741 = vpack.c.b16 %v2789, %v2773
        %v4742 = vpack.c.b16 %v2790, %v2774
        %v4743 = vpack.c.b16 %v2791, %v2775
        %v4744 = vpack.c.b16 %v2792, %v2776
        %v4745 = vpack.c.b16 %v2793, %v2777
        %v4746 = vpack.c.b16 %v2794, %v2778
        %v4747 = vpack.c.b16 %v2795, %v2779
        %v4748 = vpack.c.b16 %v2796, %v2780
        %v4749 = vpack.c.b16 %v2797, %v2781
        %v4750 = vpack.c.b16 %v2798, %v2782
        %v4751 = vpack.c.b16 %v2799, %v2783
        %v4752 = vpack.c.b16 %v2800, %v2784
        %v4753 = vpack.c.b16 %v2801, %v2785
        %v4754 = vpack.c.b16 %v2818, %v2802
        %v4755 = vpack.c.b16 %v2819, %v2803
        %v4756 = vpack.c.b16 %v2820, %v2804
        %v4757 = vpack.c.b16 %v2821, %v2805
        %v4758 = vpack.c.b16 %v2822, %v2806
        %v4759 = vpack.c.b16 %v2823, %v2807
        %v4760 = vpack.c.b16 %v2824, %v2808
        %v4761 = vpack.c.b16 %v2825, %v2809
        %v4762 = vpack.c.b16 %v2826, %v2810
        %v4763 = vpack.c.b16 %v2827, %v2811
        %v4764 = vpack.c.b16 %v2828, %v2812
        %v4765 = vpack.c.b16 %v2829, %v2813
        %v4766 = vpack.c.b16 %v2830, %v2814
        %v4767 = vpack.c.b16 %v2831, %v2815
        %v4768 = vpack.c.b16 %v2832, %v2816
        %v4769 = vpack.c.b16 %v2833, %v2817
        %v4770 = vpack.c.b16 %v2850, %v2834
        %v4771 = vpack.c.b16 %v2851, %v2835
        %v4772 = vpack.c.b16 %v2852, %v2836
        %v4773 = vpack.c.b16 %v2853, %v2837
        %v4774 = vpack.c.b16 %v2854, %v2838
        %v4775 = vpack.c.b16 %v2855, %v2839
        %v4776 = vpack.c.b16 %v2856, %v2840
        %v4777 = vpack.c.b16 %v2857, %v2841
        %v4778 = vpack.c.b16 %v2858, %v2842
        %v4779 = vpack.c.b16 %v2859, %v2843
        %v4780 = vpack.c.b16 %v2860, %v2844
        %v4781 = vpack.c.b16 %v2861, %v2845
        %v4782 = vpack.c.b16 %v2862, %v2846
        %v4783 = vpack.c.b16 %v2863, %v2847
        %v4784 = vpack.c.b16 %v2864, %v2848
        %v4785 = vpack.c.b16 %v2865, %v2849
        %v4786 = vpack.c.b16 %v2882, %v2866
        %v4787 = vpack.c.b16 %v2883, %v2867
        %v4788 = vpack.c.b16 %v2884, %v2868
        %v4789 = vpack.c.b16 %v2885, %v2869
        %v4790 = vpack.c.b16 %v2886, %v2870
        %v4791 = vpack.c.b16 %v2887, %v2871
        %v4792 = vpack.c.b16 %v2888, %v2872
        %v4793 = vpack.c.b16 %v2889, %v2873
        %v4794 = vpack.c.b16 %v2890, %v2874
        %v4795 = vpack.c.b16 %v2891, %v2875
        %v4796 = vpack.c.b16 %v2892, %v2876
        %v4797 = vpack.c.b16 %v2893, %v2877
        %v4798 = vpack.c.b16 %v2894, %v2878
        %v4799 = vpack.c.b16 %v2895, %v2879
        %v4800 = vpack.c.b16 %v2896, %v2880
        %v4801 = vpack.c.b16 %v2897, %v2881
        %v4802 = vpack.c.b16 %v2914, %v2898
        %v4803 = vpack.c.b16 %v2915, %v2899
        %v4804 = vpack.c.b16 %v2916, %v2900
        %v4805 = vpack.c.b16 %v2917, %v2901
        %v4806 = vpack.c.b16 %v2918, %v2902
        %v4807 = vpack.c.b16 %v2919, %v2903
        %v4808 = vpack.c.b16 %v2920, %v2904
        %v4809 = vpack.c.b16 %v2921, %v2905
        %v4810 = vpack.c.b16 %v2922, %v2906
        %v4811 = vpack.c.b16 %v2923, %v2907
        %v4812 = vpack.c.b16 %v2924, %v2908
        %v4813 = vpack.c.b16 %v2925, %v2909
        %v4814 = vpack.c.b16 %v2926, %v2910
        %v4815 = vpack.c.b16 %v2927, %v2911
        %v4816 = vpack.c.b16 %v2928, %v2912
        %v4817 = vpack.c.b16 %v2929, %v2913
        %v4818 = vpack.c.b16 %v2946, %v2930
        %v4819 = vpack.c.b16 %v2947, %v2931
        %v4820 = vpack.c.b16 %v2948, %v2932
        %v4821 = vpack.c.b16 %v2949, %v2933
        %v4822 = vpack.c.b16 %v2950, %v2934
        %v4823 = vpack.c.b16 %v2951, %v2935
        %v4824 = vpack.c.b16 %v2952, %v2936
        %v4825 = vpack.c.b16 %v2953, %v2937
        %v4826 = vpack.c.b16 %v2954, %v2938
        %v4827 = vpack.c.b16 %v2955, %v2939
        %v4828 = vpack.c.b16 %v2956, %v2940
        %v4829 = vpack.c.b16 %v2957, %v2941
        %v4830 = vpack.c.b16 %v2958, %v2942
        %v4831 = vpack.c.b16 %v2959, %v2943
        %v4832 = vpack.c.b16 %v2960, %v2944
        %v4833 = vpack.c.b16 %v2961, %v2945
        %v4834 = vpack.c.b16 %v2978, %v2962
        %v4835 = vpack.c.b16 %v2979, %v2963
        %v4836 = vpack.c.b16 %v2980, %v2964
        %v4837 = vpack.c.b16 %v2981, %v2965
        %v4838 = vpack.c.b16 %v2982, %v2966
        %v4839 = vpack.c.b16 %v2983, %v2967
        %v4840 = vpack.c.b16 %v2984, %v2968
        %v4841 = vpack.c.b16 %v2985, %v2969
        %v4842 = vpack.c.b16 %v2986, %v2970
        %v4843 = vpack.c.b16 %v2987, %v2971
        %v4844 = vpack.c.b16 %v2988, %v2972
        %v4845 = vpack.c.b16 %v2989, %v2973
        %v4846 = vpack.c.b16 %v2990, %v2974
        %v4847 = vpack.c.b16 %v2991, %v2975
        %v4848 = vpack.c.b16 %v2992, %v2976
        %v4849 = vpack.c.b16 %v2993, %v2977
        %v4850 = vpack.c.b16 %v3010, %v2994
        %v4851 = vpack.c.b16 %v3011, %v2995
        %v4852 = vpack.c.b16 %v3012, %v2996
        %v4853 = vpack.c.b16 %v3013, %v2997
        %v4854 = vpack.c.b16 %v3014, %v2998
        %v4855 = vpack.c.b16 %v3015, %v2999
        %v4856 = vpack.c.b16 %v3016, %v3000
        %v4857 = vpack.c.b16 %v3017, %v3001
        %v4858 = vpack.c.b16 %v3018, %v3002
        %v4859 = vpack.c.b16 %v3019, %v3003
        %v4860 = vpack.c.b16 %v3020, %v3004
        %v4861 = vpack.c.b16 %v3021, %v3005
        %v4862 = vpack.c.b16 %v3022, %v3006
        %v4863 = vpack.c.b16 %v3023, %v3007
        %v4864 = vpack.c.b16 %v3024, %v3008
        %v4865 = vpack.c.b16 %v3025, %v3009
        %v4866 = vpack.c.b16 %v3042, %v3026
        %v4867 = vpack.c.b16 %v3043, %v3027
        %v4868 = vpack.c.b16 %v3044, %v3028
        %v4869 = vpack.c.b16 %v3045, %v3029
        %v4870 = vpack.c.b16 %v3046, %v3030
        %v4871 = vpack.c.b16 %v3047, %v3031
        %v4872 = vpack.c.b16 %v3048, %v3032
        %v4873 = vpack.c.b16 %v3049, %v3033
        %v4874 = vpack.c.b16 %v3050, %v3034
        %v4875 = vpack.c.b16 %v3051, %v3035
        %v4876 = vpack.c.b16 %v3052, %v3036
        %v4877 = vpack.c.b16 %v3053, %v3037
        %v4878 = vpack.c.b16 %v3054, %v3038
        %v4879 = vpack.c.b16 %v3055, %v3039
        %v4880 = vpack.c.b16 %v3056, %v3040
        %v4881 = vpack.c.b16 %v3057, %v3041
        %v4882 = vpack.c.b16 %v3074, %v3058
        %v4883 = vpack.c.b16 %v3075, %v3059
        %v4884 = vpack.c.b16 %v3076, %v3060
        %v4885 = vpack.c.b16 %v3077, %v3061
        %v4886 = vpack.c.b16 %v3078, %v3062
        %v4887 = vpack.c.b16 %v3079, %v3063
        %v4888 = vpack.c.b16 %v3080, %v3064
        %v4889 = vpack.c.b16 %v3081, %v3065
        %v4890 = vpack.c.b16 %v3082, %v3066
        %v4891 = vpack.c.b16 %v3083, %v3067
        %v4892 = vpack.c.b16 %v3084, %v3068
        %v4893 = vpack.c.b16 %v3085, %v3069
        %v4894 = vpack.c.b16 %v3086, %v3070
        %v4895 = vpack.c.b16 %v3087, %v3071
        %v4896 = vpack.c.b16 %v3088, %v3072
        %v4897 = vpack.c.b16 %v3089, %v3073
        %v4898 = vpack.c.b16 %v3106, %v3090
        %v4899 = vpack.c.b16 %v3107, %v3091
        %v4900 = vpack.c.b16 %v3108, %v3092
        %v4901 = vpack.c.b16 %v3109, %v3093
        %v4902 = vpack.c.b16 %v3110, %v3094
        %v4903 = vpack.c.b16 %v3111, %v3095
        %v4904 = vpack.c.b16 %v3112, %v3096
        %v4905 = vpack.c.b16 %v3113, %v3097
        %v4906 = vpack.c.b16 %v3114, %v3098
        %v4907 = vpack.c.b16 %v3115, %v3099
        %v4908 = vpack.c.b16 %v3116, %v3100
        %v4909 = vpack.c.b16 %v3117, %v3101
        %v4910 = vpack.c.b16 %v3118, %v3102
        %v4911 = vpack.c.b16 %v3119, %v3103
        %v4912 = vpack.c.b16 %v3120, %v3104
        %v4913 = vpack.c.b16 %v3121, %v3105
        %v4914 = vpack.c.b16 %v3138, %v3122
        %v4915 = vpack.c.b16 %v3139, %v3123
        %v4916 = vpack.c.b16 %v3140, %v3124
        %v4917 = vpack.c.b16 %v3141, %v3125
        %v4918 = vpack.c.b16 %v3142, %v3126
        %v4919 = vpack.c.b16 %v3143, %v3127
        %v4920 = vpack.c.b16 %v3144, %v3128
        %v4921 = vpack.c.b16 %v3145, %v3129
        %v4922 = vpack.c.b16 %v3146, %v3130
        %v4923 = vpack.c.b16 %v3147, %v3131
        %v4924 = vpack.c.b16 %v3148, %v3132
        %v4925 = vpack.c.b16 %v3149, %v3133
        %v4926 = vpack.c.b16 %v3150, %v3134
        %v4927 = vpack.c.b16 %v3151, %v3135
        %v4928 = vpack.c.b16 %v3152, %v3136
        %v4929 = vpack.c.b16 %v3153, %v3137
        %v4930 = vpack.c.b16 %v3170, %v3154
        %v4931 = vpack.c.b16 %v3171, %v3155
        %v4932 = vpack.c.b16 %v3172, %v3156
        %v4933 = vpack.c.b16 %v3173, %v3157
        %v4934 = vpack.c.b16 %v3174, %v3158
        %v4935 = vpack.c.b16 %v3175, %v3159
        %v4936 = vpack.c.b16 %v3176, %v3160
        %v4937 = vpack.c.b16 %v3177, %v3161
        %v4938 = vpack.c.b16 %v3178, %v3162
        %v4939 = vpack.c.b16 %v3179, %v3163
        %v4940 = vpack.c.b16 %v3180, %v3164
        %v4941 = vpack.c.b16 %v3181, %v3165
        %v4942 = vpack.c.b16 %v3182, %v3166
        %v4943 = vpack.c.b16 %v3183, %v3167
        %v4944 = vpack.c.b16 %v3184, %v3168
        %v4945 = vpack.c.b16 %v3185, %v3169
        %v4946 = vpack.c.b16 %v3202, %v3186
        %v4947 = vpack.c.b16 %v3203, %v3187
        %v4948 = vpack.c.b16 %v3204, %v3188
        %v4949 = vpack.c.b16 %v3205, %v3189
        %v4950 = vpack.c.b16 %v3206, %v3190
        %v4951 = vpack.c.b16 %v3207, %v3191
        %v4952 = vpack.c.b16 %v3208, %v3192
        %v4953 = vpack.c.b16 %v3209, %v3193
        %v4954 = vpack.c.b16 %v3210, %v3194
        %v4955 = vpack.c.b16 %v3211, %v3195
        %v4956 = vpack.c.b16 %v3212, %v3196
        %v4957 = vpack.c.b16 %v3213, %v3197
        %v4958 = vpack.c.b16 %v3214, %v3198
        %v4959 = vpack.c.b16 %v3215, %v3199
        %v4960 = vpack.c.b16 %v3216, %v3200
        %v4961 = vpack.c.b16 %v3217, %v3201
        %v4962 = vpack.c.b16 %v3234, %v3218
        %v4963 = vpack.c.b16 %v3235, %v3219
        %v4964 = vpack.c.b16 %v3236, %v3220
        %v4965 = vpack.c.b16 %v3237, %v3221
        %v4966 = vpack.c.b16 %v3238, %v3222
        %v4967 = vpack.c.b16 %v3239, %v3223
        %v4968 = vpack.c.b16 %v3240, %v3224
        %v4969 = vpack.c.b16 %v3241, %v3225
        %v4970 = vpack.c.b16 %v3242, %v3226
        %v4971 = vpack.c.b16 %v3243, %v3227
        %v4972 = vpack.c.b16 %v3244, %v3228
        %v4973 = vpack.c.b16 %v3245, %v3229
        %v4974 = vpack.c.b16 %v3246, %v3230
        %v4975 = vpack.c.b16 %v3247, %v3231
        %v4976 = vpack.c.b16 %v3248, %v3232
        %v4977 = vpack.c.b16 %v3249, %v3233
        %v4978 = vpack.c.b16 %v3266, %v3250
        %v4979 = vpack.c.b16 %v3267, %v3251
        %v4980 = vpack.c.b16 %v3268, %v3252
        %v4981 = vpack.c.b16 %v3269, %v3253
        %v4982 = vpack.c.b16 %v3270, %v3254
        %v4983 = vpack.c.b16 %v3271, %v3255
        %v4984 = vpack.c.b16 %v3272, %v3256
        %v4985 = vpack.c.b16 %v3273, %v3257
        %v4986 = vpack.c.b16 %v3274, %v3258
        %v4987 = vpack.c.b16 %v3275, %v3259
        %v4988 = vpack.c.b16 %v3276, %v3260
        %v4989 = vpack.c.b16 %v3277, %v3261
        %v4990 = vpack.c.b16 %v3278, %v3262
        %v4991 = vpack.c.b16 %v3279, %v3263
        %v4992 = vpack.c.b16 %v3280, %v3264
        %v4993 = vpack.c.b16 %v3281, %v3265
        %v4994 = vpack.c.b16 %v3298, %v3282
        %v4995 = vpack.c.b16 %v3299, %v3283
        %v4996 = vpack.c.b16 %v3300, %v3284
        %v4997 = vpack.c.b16 %v3301, %v3285
        %v4998 = vpack.c.b16 %v3302, %v3286
        %v4999 = vpack.c.b16 %v3303, %v3287
        %v5000 = vpack.c.b16 %v3304, %v3288
        %v5001 = vpack.c.b16 %v3305, %v3289
        %v5002 = vpack.c.b16 %v3306, %v3290
        %v5003 = vpack.c.b16 %v3307, %v3291
        %v5004 = vpack.c.b16 %v3308, %v3292
        %v5005 = vpack.c.b16 %v3309, %v3293
        %v5006 = vpack.c.b16 %v3310, %v3294
        %v5007 = vpack.c.b16 %v3311, %v3295
        %v5008 = vpack.c.b16 %v3312, %v3296
        %v5009 = vpack.c.b16 %v3313, %v3297
        %v5010 = vpack.c.b16 %v3330, %v3314
        %v5011 = vpack.c.b16 %v3331, %v3315
        %v5012 = vpack.c.b16 %v3332, %v3316
        %v5013 = vpack.c.b16 %v3333, %v3317
        %v5014 = vpack.c.b16 %v3334, %v3318
        %v5015 = vpack.c.b16 %v3335, %v3319
        %v5016 = vpack.c.b16 %v3336, %v3320
        %v5017 = vpack.c.b16 %v3337, %v3321
        %v5018 = vpack.c.b16 %v3338, %v3322
        %v5019 = vpack.c.b16 %v3339, %v3323
        %v5020 = vpack.c.b16 %v3340, %v3324
        %v5021 = vpack.c.b16 %v3341, %v3325
        %v5022 = vpack.c.b16 %v3342, %v3326
        %v5023 = vpack.c.b16 %v3343, %v3327
        %v5024 = vpack.c.b16 %v3344, %v3328
        %v5025 = vpack.c.b16 %v3345, %v3329
        %v5026 = vpack.c.b16 %v3362, %v3346
        %v5027 = vpack.c.b16 %v3363, %v3347
        %v5028 = vpack.c.b16 %v3364, %v3348
        %v5029 = vpack.c.b16 %v3365, %v3349
        %v5030 = vpack.c.b16 %v3366, %v3350
        %v5031 = vpack.c.b16 %v3367, %v3351
        %v5032 = vpack.c.b16 %v3368, %v3352
        %v5033 = vpack.c.b16 %v3369, %v3353
        %v5034 = vpack.c.b16 %v3370, %v3354
        %v5035 = vpack.c.b16 %v3371, %v3355
        %v5036 = vpack.c.b16 %v3372, %v3356
        %v5037 = vpack.c.b16 %v3373, %v3357
        %v5038 = vpack.c.b16 %v3374, %v3358
        %v5039 = vpack.c.b16 %v3375, %v3359
        %v5040 = vpack.c.b16 %v3376, %v3360
        %v5041 = vpack.c.b16 %v3377, %v3361
        %v5042 = vpack.c.b16 %v3394, %v3378
        %v5043 = vpack.c.b16 %v3395, %v3379
        %v5044 = vpack.c.b16 %v3396, %v3380
        %v5045 = vpack.c.b16 %v3397, %v3381
        %v5046 = vpack.c.b16 %v3398, %v3382
        %v5047 = vpack.c.b16 %v3399, %v3383
        %v5048 = vpack.c.b16 %v3400, %v3384
        %v5049 = vpack.c.b16 %v3401, %v3385
        %v5050 = vpack.c.b16 %v3402, %v3386
        %v5051 = vpack.c.b16 %v3403, %v3387
        %v5052 = vpack.c.b16 %v3404, %v3388
        %v5053 = vpack.c.b16 %v3405, %v3389
        %v5054 = vpack.c.b16 %v3406, %v3390
        %v5055 = vpack.c.b16 %v3407, %v3391
        %v5056 = vpack.c.b16 %v3408, %v3392
        %v5057 = vpack.c.b16 %v3409, %v3393
        %v5058 = vpack.c.b16 %v3426, %v3410
        %v5059 = vpack.c.b16 %v3427, %v3411
        %v5060 = vpack.c.b16 %v3428, %v3412
        %v5061 = vpack.c.b16 %v3429, %v3413
        %v5062 = vpack.c.b16 %v3430, %v3414
        %v5063 = vpack.c.b16 %v3431, %v3415
        %v5064 = vpack.c.b16 %v3432, %v3416
        %v5065 = vpack.c.b16 %v3433, %v3417
        %v5066 = vpack.c.b16 %v3434, %v3418
        %v5067 = vpack.c.b16 %v3435, %v3419
        %v5068 = vpack.c.b16 %v3436, %v3420
        %v5069 = vpack.c.b16 %v3437, %v3421
        %v5070 = vpack.c.b16 %v3438, %v3422
        %v5071 = vpack.c.b16 %v3439, %v3423
        %v5072 = vpack.c.b16 %v3440, %v3424
        %v5073 = vpack.c.b16 %v3441, %v3425
        %v5074 = vpack.c.b16 %v3458, %v3442
        %v5075 = vpack.c.b16 %v3459, %v3443
        %v5076 = vpack.c.b16 %v3460, %v3444
        %v5077 = vpack.c.b16 %v3461, %v3445
        %v5078 = vpack.c.b16 %v3462, %v3446
        %v5079 = vpack.c.b16 %v3463, %v3447
        %v5080 = vpack.c.b16 %v3464, %v3448
        %v5081 = vpack.c.b16 %v3465, %v3449
        %v5082 = vpack.c.b16 %v3466, %v3450
        %v5083 = vpack.c.b16 %v3467, %v3451
        %v5084 = vpack.c.b16 %v3468, %v3452
        %v5085 = vpack.c.b16 %v3469, %v3453
        %v5086 = vpack.c.b16 %v3470, %v3454
        %v5087 = vpack.c.b16 %v3471, %v3455
        %v5088 = vpack.c.b16 %v3472, %v3456
        %v5089 = vpack.c.b16 %v3473, %v3457
        %v5090 = vpack.c.b16 %v3490, %v3474
        %v5091 = vpack.c.b16 %v3491, %v3475
        %v5092 = vpack.c.b16 %v3492, %v3476
        %v5093 = vpack.c.b16 %v3493, %v3477
        %v5094 = vpack.c.b16 %v3494, %v3478
        %v5095 = vpack.c.b16 %v3495, %v3479
        %v5096 = vpack.c.b16 %v3496, %v3480
        %v5097 = vpack.c.b16 %v3497, %v3481
        %v5098 = vpack.c.b16 %v3498, %v3482
        %v5099 = vpack.c.b16 %v3499, %v3483
        %v5100 = vpack.c.b16 %v3500, %v3484
        %v5101 = vpack.c.b16 %v3501, %v3485
        %v5102 = vpack.c.b16 %v3502, %v3486
        %v5103 = vpack.c.b16 %v3503, %v3487
        %v5104 = vpack.c.b16 %v3504, %v3488
        %v5105 = vpack.c.b16 %v3505, %v3489
        %v5106 = vpack.c.b16 %v3522, %v3506
        %v5107 = vpack.c.b16 %v3523, %v3507
        %v5108 = vpack.c.b16 %v3524, %v3508
        %v5109 = vpack.c.b16 %v3525, %v3509
        %v5110 = vpack.c.b16 %v3526, %v3510
        %v5111 = vpack.c.b16 %v3527, %v3511
        %v5112 = vpack.c.b16 %v3528, %v3512
        %v5113 = vpack.c.b16 %v3529, %v3513
        %v5114 = vpack.c.b16 %v3530, %v3514
        %v5115 = vpack.c.b16 %v3531, %v3515
        %v5116 = vpack.c.b16 %v3532, %v3516
        %v5117 = vpack.c.b16 %v3533, %v3517
        %v5118 = vpack.c.b16 %v3534, %v3518
        %v5119 = vpack.c.b16 %v3535, %v3519
        %v5120 = vpack.c.b16 %v3536, %v3520
        %v5121 = vpack.c.b16 %v3537, %v3521
        %v5122 = vpack.c.b16 %v3554, %v3538
        %v5123 = vpack.c.b16 %v3555, %v3539
        %v5124 = vpack.c.b16 %v3556, %v3540
        %v5125 = vpack.c.b16 %v3557, %v3541
        %v5126 = vpack.c.b16 %v3558, %v3542
        %v5127 = vpack.c.b16 %v3559, %v3543
        %v5128 = vpack.c.b16 %v3560, %v3544
        %v5129 = vpack.c.b16 %v3561, %v3545
        %v5130 = vpack.c.b16 %v3562, %v3546
        %v5131 = vpack.c.b16 %v3563, %v3547
        %v5132 = vpack.c.b16 %v3564, %v3548
        %v5133 = vpack.c.b16 %v3565, %v3549
        %v5134 = vpack.c.b16 %v3566, %v3550
        %v5135 = vpack.c.b16 %v3567, %v3551
        %v5136 = vpack.c.b16 %v3568, %v3552
        %v5137 = vpack.c.b16 %v3569, %v3553
        %v5138 = vpack.c.b16 %v3586, %v3570
        %v5139 = vpack.c.b16 %v3587, %v3571
        %v5140 = vpack.c.b16 %v3588, %v3572
        %v5141 = vpack.c.b16 %v3589, %v3573
        %v5142 = vpack.c.b16 %v3590, %v3574
        %v5143 = vpack.c.b16 %v3591, %v3575
        %v5144 = vpack.c.b16 %v3592, %v3576
        %v5145 = vpack.c.b16 %v3593, %v3577
        %v5146 = vpack.c.b16 %v3594, %v3578
        %v5147 = vpack.c.b16 %v3595, %v3579
        %v5148 = vpack.c.b16 %v3596, %v3580
        %v5149 = vpack.c.b16 %v3597, %v3581
        %v5150 = vpack.c.b16 %v3598, %v3582
        %v5151 = vpack.c.b16 %v3599, %v3583
        %v5152 = vpack.c.b16 %v3600, %v3584
        %v5153 = vpack.c.b16 %v3601, %v3585
        %v5154 = vpack.c.b16 %v3618, %v3602
        %v5155 = vpack.c.b16 %v3619, %v3603
        %v5156 = vpack.c.b16 %v3620, %v3604
        %v5157 = vpack.c.b16 %v3621, %v3605
        %v5158 = vpack.c.b16 %v3622, %v3606
        %v5159 = vpack.c.b16 %v3623, %v3607
        %v5160 = vpack.c.b16 %v3624, %v3608
        %v5161 = vpack.c.b16 %v3625, %v3609
        %v5162 = vpack.c.b16 %v3626, %v3610
        %v5163 = vpack.c.b16 %v3627, %v3611
        %v5164 = vpack.c.b16 %v3628, %v3612
        %v5165 = vpack.c.b16 %v3629, %v3613
        %v5166 = vpack.c.b16 %v3630, %v3614
        %v5167 = vpack.c.b16 %v3631, %v3615
        %v5168 = vpack.c.b16 %v3632, %v3616
        %v5169 = vpack.c.b16 %v3633, %v3617
        %v5170 = vpack.c.b16 %v3650, %v3634
        %v5171 = vpack.c.b16 %v3651, %v3635
        %v5172 = vpack.c.b16 %v3652, %v3636
        %v5173 = vpack.c.b16 %v3653, %v3637
        %v5174 = vpack.c.b16 %v3654, %v3638
        %v5175 = vpack.c.b16 %v3655, %v3639
        %v5176 = vpack.c.b16 %v3656, %v3640
        %v5177 = vpack.c.b16 %v3657, %v3641
        %v5178 = vpack.c.b16 %v3658, %v3642
        %v5179 = vpack.c.b16 %v3659, %v3643
        %v5180 = vpack.c.b16 %v3660, %v3644
        %v5181 = vpack.c.b16 %v3661, %v3645
        %v5182 = vpack.c.b16 %v3662, %v3646
        %v5183 = vpack.c.b16 %v3663, %v3647
        %v5184 = vpack.c.b16 %v3664, %v3648
        %v5185 = vpack.c.b16 %v3665, %v3649
        %v5186 = vpack.c.b16 %v3682, %v3666
        %v5187 = vpack.c.b16 %v3683, %v3667
        %v5188 = vpack.c.b16 %v3684, %v3668
        %v5189 = vpack.c.b16 %v3685, %v3669
        %v5190 = vpack.c.b16 %v3686, %v3670
        %v5191 = vpack.c.b16 %v3687, %v3671
        %v5192 = vpack.c.b16 %v3688, %v3672
        %v5193 = vpack.c.b16 %v3689, %v3673
        %v5194 = vpack.c.b16 %v3690, %v3674
        %v5195 = vpack.c.b16 %v3691, %v3675
        %v5196 = vpack.c.b16 %v3692, %v3676
        %v5197 = vpack.c.b16 %v3693, %v3677
        %v5198 = vpack.c.b16 %v3694, %v3678
        %v5199 = vpack.c.b16 %v3695, %v3679
        %v5200 = vpack.c.b16 %v3696, %v3680
        %v5201 = vpack.c.b16 %v3697, %v3681
        %v5202 = vpack.c.b16 %v3714, %v3698
        %v5203 = vpack.c.b16 %v3715, %v3699
        %v5204 = vpack.c.b16 %v3716, %v3700
        %v5205 = vpack.c.b16 %v3717, %v3701
        %v5206 = vpack.c.b16 %v3718, %v3702
        %v5207 = vpack.c.b16 %v3719, %v3703
        %v5208 = vpack.c.b16 %v3720, %v3704
        %v5209 = vpack.c.b16 %v3721, %v3705
        %v5210 = vpack.c.b16 %v3722, %v3706
        %v5211 = vpack.c.b16 %v3723, %v3707
        %v5212 = vpack.c.b16 %v3724, %v3708
        %v5213 = vpack.c.b16 %v3725, %v3709
        %v5214 = vpack.c.b16 %v3726, %v3710
        %v5215 = vpack.c.b16 %v3727, %v3711
        %v5216 = vpack.c.b16 %v3728, %v3712
        %v5217 = vpack.c.b16 %v3729, %v3713
        %v5218 = vpack.c.b16 %v3746, %v3730
        %v5219 = vpack.c.b16 %v3747, %v3731
        %v5220 = vpack.c.b16 %v3748, %v3732
        %v5221 = vpack.c.b16 %v3749, %v3733
        %v5222 = vpack.c.b16 %v3750, %v3734
        %v5223 = vpack.c.b16 %v3751, %v3735
        %v5224 = vpack.c.b16 %v3752, %v3736
        %v5225 = vpack.c.b16 %v3753, %v3737
        %v5226 = vpack.c.b16 %v3754, %v3738
        %v5227 = vpack.c.b16 %v3755, %v3739
        %v5228 = vpack.c.b16 %v3756, %v3740
        %v5229 = vpack.c.b16 %v3757, %v3741
        %v5230 = vpack.c.b16 %v3758, %v3742
        %v5231 = vpack.c.b16 %v3759, %v3743
        %v5232 = vpack.c.b16 %v3760, %v3744
        %v5233 = vpack.c.b16 %v3761, %v3745
        %v5234 = vpack.c.b16 %v3778, %v3762
        %v5235 = vpack.c.b16 %v3779, %v3763
        %v5236 = vpack.c.b16 %v3780, %v3764
        %v5237 = vpack.c.b16 %v3781, %v3765
        %v5238 = vpack.c.b16 %v3782, %v3766
        %v5239 = vpack.c.b16 %v3783, %v3767
        %v5240 = vpack.c.b16 %v3784, %v3768
        %v5241 = vpack.c.b16 %v3785, %v3769
        %v5242 = vpack.c.b16 %v3786, %v3770
        %v5243 = vpack.c.b16 %v3787, %v3771
        %v5244 = vpack.c.b16 %v3788, %v3772
        %v5245 = vpack.c.b16 %v3789, %v3773
        %v5246 = vpack.c.b16 %v3790, %v3774
        %v5247 = vpack.c.b16 %v3791, %v3775
        %v5248 = vpack.c.b16 %v3792, %v3776
        %v5249 = vpack.c.b16 %v3793, %v3777
        %v5250 = vpack.c.b16 %v3810, %v3794
        %v5251 = vpack.c.b16 %v3811, %v3795
        %v5252 = vpack.c.b16 %v3812, %v3796
        %v5253 = vpack.c.b16 %v3813, %v3797
        %v5254 = vpack.c.b16 %v3814, %v3798
        %v5255 = vpack.c.b16 %v3815, %v3799
        %v5256 = vpack.c.b16 %v3816, %v3800
        %v5257 = vpack.c.b16 %v3817, %v3801
        %v5258 = vpack.c.b16 %v3818, %v3802
        %v5259 = vpack.c.b16 %v3819, %v3803
        %v5260 = vpack.c.b16 %v3820, %v3804
        %v5261 = vpack.c.b16 %v3821, %v3805
        %v5262 = vpack.c.b16 %v3822, %v3806
        %v5263 = vpack.c.b16 %v3823, %v3807
        %v5264 = vpack.c.b16 %v3824, %v3808
        %v5265 = vpack.c.b16 %v3825, %v3809
        %v5266 = vpack.c.b16 %v3842, %v3826
        %v5267 = vpack.c.b16 %v3843, %v3827
        %v5268 = vpack.c.b16 %v3844, %v3828
        %v5269 = vpack.c.b16 %v3845, %v3829
        %v5270 = vpack.c.b16 %v3846, %v3830
        %v5271 = vpack.c.b16 %v3847, %v3831
        %v5272 = vpack.c.b16 %v3848, %v3832
        %v5273 = vpack.c.b16 %v3849, %v3833
        %v5274 = vpack.c.b16 %v3850, %v3834
        %v5275 = vpack.c.b16 %v3851, %v3835
        %v5276 = vpack.c.b16 %v3852, %v3836
        %v5277 = vpack.c.b16 %v3853, %v3837
        %v5278 = vpack.c.b16 %v3854, %v3838
        %v5279 = vpack.c.b16 %v3855, %v3839
        %v5280 = vpack.c.b16 %v3856, %v3840
        %v5281 = vpack.c.b16 %v3857, %v3841
        %v5282 = vpack.c.b16 %v3874, %v3858
        %v5283 = vpack.c.b16 %v3875, %v3859
        %v5284 = vpack.c.b16 %v3876, %v3860
        %v5285 = vpack.c.b16 %v3877, %v3861
        %v5286 = vpack.c.b16 %v3878, %v3862
        %v5287 = vpack.c.b16 %v3879, %v3863
        %v5288 = vpack.c.b16 %v3880, %v3864
        %v5289 = vpack.c.b16 %v3881, %v3865
        %v5290 = vpack.c.b16 %v3882, %v3866
        %v5291 = vpack.c.b16 %v3883, %v3867
        %v5292 = vpack.c.b16 %v3884, %v3868
        %v5293 = vpack.c.b16 %v3885, %v3869
        %v5294 = vpack.c.b16 %v3886, %v3870
        %v5295 = vpack.c.b16 %v3887, %v3871
        %v5296 = vpack.c.b16 %v3888, %v3872
        %v5297 = vpack.c.b16 %v3889, %v3873
        %v5298 = vpack.c.b16 %v3906, %v3890
        %v5299 = vpack.c.b16 %v3907, %v3891
        %v5300 = vpack.c.b16 %v3908, %v3892
        %v5301 = vpack.c.b16 %v3909, %v3893
        %v5302 = vpack.c.b16 %v3910, %v3894
        %v5303 = vpack.c.b16 %v3911, %v3895
        %v5304 = vpack.c.b16 %v3912, %v3896
        %v5305 = vpack.c.b16 %v3913, %v3897
        %v5306 = vpack.c.b16 %v3914, %v3898
        %v5307 = vpack.c.b16 %v3915, %v3899
        %v5308 = vpack.c.b16 %v3916, %v3900
        %v5309 = vpack.c.b16 %v3917, %v3901
        %v5310 = vpack.c.b16 %v3918, %v3902
        %v5311 = vpack.c.b16 %v3919, %v3903
        %v5312 = vpack.c.b16 %v3920, %v3904
        %v5313 = vpack.c.b16 %v3921, %v3905
        %v5314 = vpack.c.b16 %v3938, %v3922
        %v5315 = vpack.c.b16 %v3939, %v3923
        %v5316 = vpack.c.b16 %v3940, %v3924
        %v5317 = vpack.c.b16 %v3941, %v3925
        %v5318 = vpack.c.b16 %v3942, %v3926
        %v5319 = vpack.c.b16 %v3943, %v3927
        %v5320 = vpack.c.b16 %v3944, %v3928
        %v5321 = vpack.c.b16 %v3945, %v3929
        %v5322 = vpack.c.b16 %v3946, %v3930
        %v5323 = vpack.c.b16 %v3947, %v3931
        %v5324 = vpack.c.b16 %v3948, %v3932
        %v5325 = vpack.c.b16 %v3949, %v3933
        %v5326 = vpack.c.b16 %v3950, %v3934
        %v5327 = vpack.c.b16 %v3951, %v3935
        %v5328 = vpack.c.b16 %v3952, %v3936
        %v5329 = vpack.c.b16 %v3953, %v3937
        %v5330 = vpack.c.b16 %v3970, %v3954
        %v5331 = vpack.c.b16 %v3971, %v3955
        %v5332 = vpack.c.b16 %v3972, %v3956
        %v5333 = vpack.c.b16 %v3973, %v3957
        %v5334 = vpack.c.b16 %v3974, %v3958
        %v5335 = vpack.c.b16 %v3975, %v3959
        %v5336 = vpack.c.b16 %v3976, %v3960
        %v5337 = vpack.c.b16 %v3977, %v3961
        %v5338 = vpack.c.b16 %v3978, %v3962
        %v5339 = vpack.c.b16 %v3979, %v3963
        %v5340 = vpack.c.b16 %v3980, %v3964
        %v5341 = vpack.c.b16 %v3981, %v3965
        %v5342 = vpack.c.b16 %v3982, %v3966
        %v5343 = vpack.c.b16 %v3983, %v3967
        %v5344 = vpack.c.b16 %v3984, %v3968
        %v5345 = vpack.c.b16 %v3985, %v3969
        %v5346 = vpack.c.b16 %v4002, %v3986
        %v5347 = vpack.c.b16 %v4003, %v3987
        %v5348 = vpack.c.b16 %v4004, %v3988
        %v5349 = vpack.c.b16 %v4005, %v3989
        %v5350 = vpack.c.b16 %v4006, %v3990
        %v5351 = vpack.c.b16 %v4007, %v3991
        %v5352 = vpack.c.b16 %v4008, %v3992
        %v5353 = vpack.c.b16 %v4009, %v3993
        %v5354 = vpack.c.b16 %v4010, %v3994
        %v5355 = vpack.c.b16 %v4011, %v3995
        %v5356 = vpack.c.b16 %v4012, %v3996
        %v5357 = vpack.c.b16 %v4013, %v3997
        %v5358 = vpack.c.b16 %v4014, %v3998
        %v5359 = vpack.c.b16 %v4015, %v3999
        %v5360 = vpack.c.b16 %v4016, %v4000
        %v5361 = vpack.c.b16 %v4017, %v4001
        %v5362 = vpack.c.b16 %v4034, %v4018
        %v5363 = vpack.c.b16 %v4035, %v4019
        %v5364 = vpack.c.b16 %v4036, %v4020
        %v5365 = vpack.c.b16 %v4037, %v4021
        %v5366 = vpack.c.b16 %v4038, %v4022
        %v5367 = vpack.c.b16 %v4039, %v4023
        %v5368 = vpack.c.b16 %v4040, %v4024
        %v5369 = vpack.c.b16 %v4041, %v4025
        %v5370 = vpack.c.b16 %v4042, %v4026
        %v5371 = vpack.c.b16 %v4043, %v4027
        %v5372 = vpack.c.b16 %v4044, %v4028
        %v5373 = vpack.c.b16 %v4045, %v4029
        %v5374 = vpack.c.b16 %v4046, %v4030
        %v5375 = vpack.c.b16 %v4047, %v4031
        %v5376 = vpack.c.b16 %v4048, %v4032
        %v5377 = vpack.c.b16 %v4049, %v4033
        %v5378 = vpack.c.b16 %v4066, %v4050
        %v5379 = vpack.c.b16 %v4067, %v4051
        %v5380 = vpack.c.b16 %v4068, %v4052
        %v5381 = vpack.c.b16 %v4069, %v4053
        %v5382 = vpack.c.b16 %v4070, %v4054
        %v5383 = vpack.c.b16 %v4071, %v4055
        %v5384 = vpack.c.b16 %v4072, %v4056
        %v5385 = vpack.c.b16 %v4073, %v4057
        %v5386 = vpack.c.b16 %v4074, %v4058
        %v5387 = vpack.c.b16 %v4075, %v4059
        %v5388 = vpack.c.b16 %v4076, %v4060
        %v5389 = vpack.c.b16 %v4077, %v4061
        %v5390 = vpack.c.b16 %v4078, %v4062
        %v5391 = vpack.c.b16 %v4079, %v4063
        %v5392 = vpack.c.b16 %v4080, %v4064
        %v5393 = vpack.c.b16 %v4081, %v4065
        %v5394 = vpack.c.b16 %v4098, %v4082
        %v5395 = vpack.c.b16 %v4099, %v4083
        %v5396 = vpack.c.b16 %v4100, %v4084
        %v5397 = vpack.c.b16 %v4101, %v4085
        %v5398 = vpack.c.b16 %v4102, %v4086
        %v5399 = vpack.c.b16 %v4103, %v4087
        %v5400 = vpack.c.b16 %v4104, %v4088
        %v5401 = vpack.c.b16 %v4105, %v4089
        %v5402 = vpack.c.b16 %v4106, %v4090
        %v5403 = vpack.c.b16 %v4107, %v4091
        %v5404 = vpack.c.b16 %v4108, %v4092
        %v5405 = vpack.c.b16 %v4109, %v4093
        %v5406 = vpack.c.b16 %v4110, %v4094
        %v5407 = vpack.c.b16 %v4111, %v4095
        %v5408 = vpack.c.b16 %v4112, %v4096
        %v5409 = vpack.c.b16 %v4113, %v4097
        %v5410 = vpack.c.b16 %v4130, %v4114
        %v5411 = vpack.c.b16 %v4131, %v4115
        %v5412 = vpack.c.b16 %v4132, %v4116
        %v5413 = vpack.c.b16 %v4133, %v4117
        %v5414 = vpack.c.b16 %v4134, %v4118
        %v5415 = vpack.c.b16 %v4135, %v4119
        %v5416 = vpack.c.b16 %v4136, %v4120
        %v5417 = vpack.c.b16 %v4137, %v4121
        %v5418 = vpack.c.b16 %v4138, %v4122
        %v5419 = vpack.c.b16 %v4139, %v4123
        %v5420 = vpack.c.b16 %v4140, %v4124
        %v5421 = vpack.c.b16 %v4141, %v4125
        %v5422 = vpack.c.b16 %v4142, %v4126
        %v5423 = vpack.c.b16 %v4143, %v4127
        %v5424 = vpack.c.b16 %v4144, %v4128
        %v5425 = vpack.c.b16 %v4145, %v4129
        %v5426 = vpack.c.b16 %v4162, %v4146
        %v5427 = vpack.c.b16 %v4163, %v4147
        %v5428 = vpack.c.b16 %v4164, %v4148
        %v5429 = vpack.c.b16 %v4165, %v4149
        %v5430 = vpack.c.b16 %v4166, %v4150
        %v5431 = vpack.c.b16 %v4167, %v4151
        %v5432 = vpack.c.b16 %v4168, %v4152
        %v5433 = vpack.c.b16 %v4169, %v4153
        %v5434 = vpack.c.b16 %v4170, %v4154
        %v5435 = vpack.c.b16 %v4171, %v4155
        %v5436 = vpack.c.b16 %v4172, %v4156
        %v5437 = vpack.c.b16 %v4173, %v4157
        %v5438 = vpack.c.b16 %v4174, %v4158
        %v5439 = vpack.c.b16 %v4175, %v4159
        %v5440 = vpack.c.b16 %v4176, %v4160
        %v5441 = vpack.c.b16 %v4177, %v4161
        %v5442 = vpack.c.b16 %v4194, %v4178
        %v5443 = vpack.c.b16 %v4195, %v4179
        %v5444 = vpack.c.b16 %v4196, %v4180
        %v5445 = vpack.c.b16 %v4197, %v4181
        %v5446 = vpack.c.b16 %v4198, %v4182
        %v5447 = vpack.c.b16 %v4199, %v4183
        %v5448 = vpack.c.b16 %v4200, %v4184
        %v5449 = vpack.c.b16 %v4201, %v4185
        %v5450 = vpack.c.b16 %v4202, %v4186
        %v5451 = vpack.c.b16 %v4203, %v4187
        %v5452 = vpack.c.b16 %v4204, %v4188
        %v5453 = vpack.c.b16 %v4205, %v4189
        %v5454 = vpack.c.b16 %v4206, %v4190
        %v5455 = vpack.c.b16 %v4207, %v4191
        %v5456 = vpack.c.b16 %v4208, %v4192
        %v5457 = vpack.c.b16 %v4209, %v4193
        %v5458 = vpack.c.b16 %v4226, %v4210
        %v5459 = vpack.c.b16 %v4227, %v4211
        %v5460 = vpack.c.b16 %v4228, %v4212
        %v5461 = vpack.c.b16 %v4229, %v4213
        %v5462 = vpack.c.b16 %v4230, %v4214
        %v5463 = vpack.c.b16 %v4231, %v4215
        %v5464 = vpack.c.b16 %v4232, %v4216
        %v5465 = vpack.c.b16 %v4233, %v4217
        %v5466 = vpack.c.b16 %v4234, %v4218
        %v5467 = vpack.c.b16 %v4235, %v4219
        %v5468 = vpack.c.b16 %v4236, %v4220
        %v5469 = vpack.c.b16 %v4237, %v4221
        %v5470 = vpack.c.b16 %v4238, %v4222
        %v5471 = vpack.c.b16 %v4239, %v4223
        %v5472 = vpack.c.b16 %v4240, %v4224
        %v5473 = vpack.c.b16 %v4241, %v4225
        %v5474 = vpack.c.b16 %v4258, %v4242
        %v5475 = vpack.c.b16 %v4259, %v4243
        %v5476 = vpack.c.b16 %v4260, %v4244
        %v5477 = vpack.c.b16 %v4261, %v4245
        %v5478 = vpack.c.b16 %v4262, %v4246
        %v5479 = vpack.c.b16 %v4263, %v4247
        %v5480 = vpack.c.b16 %v4264, %v4248
        %v5481 = vpack.c.b16 %v4265, %v4249
        %v5482 = vpack.c.b16 %v4266, %v4250
        %v5483 = vpack.c.b16 %v4267, %v4251
        %v5484 = vpack.c.b16 %v4268, %v4252
        %v5485 = vpack.c.b16 %v4269, %v4253
        %v5486 = vpack.c.b16 %v4270, %v4254
        %v5487 = vpack.c.b16 %v4271, %v4255
        %v5488 = vpack.c.b16 %v4272, %v4256
        %v5489 = vpack.c.b16 %v4273, %v4257
        %v5490 = vpack.c.b16 %v4290, %v4274
        %v5491 = vpack.c.b16 %v4291, %v4275
        %v5492 = vpack.c.b16 %v4292, %v4276
        %v5493 = vpack.c.b16 %v4293, %v4277
        %v5494 = vpack.c.b16 %v4294, %v4278
        %v5495 = vpack.c.b16 %v4295, %v4279
        %v5496 = vpack.c.b16 %v4296, %v4280
        %v5497 = vpack.c.b16 %v4297, %v4281
        %v5498 = vpack.c.b16 %v4298, %v4282
        %v5499 = vpack.c.b16 %v4299, %v4283
        %v5500 = vpack.c.b16 %v4300, %v4284
        %v5501 = vpack.c.b16 %v4301, %v4285
        %v5502 = vpack.c.b16 %v4302, %v4286
        %v5503 = vpack.c.b16 %v4303, %v4287
        %v5504 = vpack.c.b16 %v4304, %v4288
        %v5505 = vpack.c.b16 %v4305, %v4289
        %v5506 = vpack.c.b16 %v4322, %v4306
        %v5507 = vpack.c.b16 %v4323, %v4307
        %v5508 = vpack.c.b16 %v4324, %v4308
        %v5509 = vpack.c.b16 %v4325, %v4309
        %v5510 = vpack.c.b16 %v4326, %v4310
        %v5511 = vpack.c.b16 %v4327, %v4311
        %v5512 = vpack.c.b16 %v4328, %v4312
        %v5513 = vpack.c.b16 %v4329, %v4313
        %v5514 = vpack.c.b16 %v4330, %v4314
        %v5515 = vpack.c.b16 %v4331, %v4315
        %v5516 = vpack.c.b16 %v4332, %v4316
        %v5517 = vpack.c.b16 %v4333, %v4317
        %v5518 = vpack.c.b16 %v4334, %v4318
        %v5519 = vpack.c.b16 %v4335, %v4319
        %v5520 = vpack.c.b16 %v4336, %v4320
        %v5521 = vpack.c.b16 %v4337, %v4321
        %v5522 = vpack.c.b16 %v4354, %v4338
        %v5523 = vpack.c.b16 %v4355, %v4339
        %v5524 = vpack.c.b16 %v4356, %v4340
        %v5525 = vpack.c.b16 %v4357, %v4341
        %v5526 = vpack.c.b16 %v4358, %v4342
        %v5527 = vpack.c.b16 %v4359, %v4343
        %v5528 = vpack.c.b16 %v4360, %v4344
        %v5529 = vpack.c.b16 %v4361, %v4345
        %v5530 = vpack.c.b16 %v4362, %v4346
        %v5531 = vpack.c.b16 %v4363, %v4347
        %v5532 = vpack.c.b16 %v4364, %v4348
        %v5533 = vpack.c.b16 %v4365, %v4349
        %v5534 = vpack.c.b16 %v4366, %v4350
        %v5535 = vpack.c.b16 %v4367, %v4351
        %v5536 = vpack.c.b16 %v4368, %v4352
        %v5537 = vpack.c.b16 %v4369, %v4353
        %v5538 = vpack.c.b16 %v4386, %v4370
        %v5539 = vpack.c.b16 %v4387, %v4371
        %v5540 = vpack.c.b16 %v4388, %v4372
        %v5541 = vpack.c.b16 %v4389, %v4373
        %v5542 = vpack.c.b16 %v4390, %v4374
        %v5543 = vpack.c.b16 %v4391, %v4375
        %v5544 = vpack.c.b16 %v4392, %v4376
        %v5545 = vpack.c.b16 %v4393, %v4377
        %v5546 = vpack.c.b16 %v4394, %v4378
        %v5547 = vpack.c.b16 %v4395, %v4379
        %v5548 = vpack.c.b16 %v4396, %v4380
        %v5549 = vpack.c.b16 %v4397, %v4381
        %v5550 = vpack.c.b16 %v4398, %v4382
        %v5551 = vpack.c.b16 %v4399, %v4383
        %v5552 = vpack.c.b16 %v4400, %v4384
        %v5553 = vpack.c.b16 %v4401, %v4385
        %v5554 = vpack.c.b16 %v4418, %v4402
        %v5555 = vpack.c.b16 %v4419, %v4403
        %v5556 = vpack.c.b16 %v4420, %v4404
        %v5557 = vpack.c.b16 %v4421, %v4405
        %v5558 = vpack.c.b16 %v4422, %v4406
        %v5559 = vpack.c.b16 %v4423, %v4407
        %v5560 = vpack.c.b16 %v4424, %v4408
        %v5561 = vpack.c.b16 %v4425, %v4409
        %v5562 = vpack.c.b16 %v4426, %v4410
        %v5563 = vpack.c.b16 %v4427, %v4411
        %v5564 = vpack.c.b16 %v4428, %v4412
        %v5565 = vpack.c.b16 %v4429, %v4413
        %v5566 = vpack.c.b16 %v4430, %v4414
        %v5567 = vpack.c.b16 %v4431, %v4415
        %v5568 = vpack.c.b16 %v4432, %v4416
        %v5569 = vpack.c.b16 %v4433, %v4417
        %v5570 = vpack.c.b16 %v4450, %v4434
        %v5571 = vpack.c.b16 %v4451, %v4435
        %v5572 = vpack.c.b16 %v4452, %v4436
        %v5573 = vpack.c.b16 %v4453, %v4437
        %v5574 = vpack.c.b16 %v4454, %v4438
        %v5575 = vpack.c.b16 %v4455, %v4439
        %v5576 = vpack.c.b16 %v4456, %v4440
        %v5577 = vpack.c.b16 %v4457, %v4441
        %v5578 = vpack.c.b16 %v4458, %v4442
        %v5579 = vpack.c.b16 %v4459, %v4443
        %v5580 = vpack.c.b16 %v4460, %v4444
        %v5581 = vpack.c.b16 %v4461, %v4445
        %v5582 = vpack.c.b16 %v4462, %v4446
        %v5583 = vpack.c.b16 %v4463, %v4447
        %v5584 = vpack.c.b16 %v4464, %v4448
        %v5585 = vpack.c.b16 %v4465, %v4449
        %v5586 = vpack.c.b16 %v4482, %v4466
        %v5587 = vpack.c.b16 %v4483, %v4467
        %v5588 = vpack.c.b16 %v4484, %v4468
        %v5589 = vpack.c.b16 %v4485, %v4469
        %v5590 = vpack.c.b16 %v4486, %v4470
        %v5591 = vpack.c.b16 %v4487, %v4471
        %v5592 = vpack.c.b16 %v4488, %v4472
        %v5593 = vpack.c.b16 %v4489, %v4473
        %v5594 = vpack.c.b16 %v4490, %v4474
        %v5595 = vpack.c.b16 %v4491, %v4475
        %v5596 = vpack.c.b16 %v4492, %v4476
        %v5597 = vpack.c.b16 %v4493, %v4477
        %v5598 = vpack.c.b16 %v4494, %v4478
        %v5599 = vpack.c.b16 %v4495, %v4479
        %v5600 = vpack.c.b16 %v4496, %v4480
        %v5601 = vpack.c.b16 %v4497, %v4481
        %v5602 = vpack.c.b16 %v4514, %v4498
        %v5603 = vpack.c.b16 %v4515, %v4499
        %v5604 = vpack.c.b16 %v4516, %v4500
        %v5605 = vpack.c.b16 %v4517, %v4501
        %v5606 = vpack.c.b16 %v4518, %v4502
        %v5607 = vpack.c.b16 %v4519, %v4503
        %v5608 = vpack.c.b16 %v4520, %v4504
        %v5609 = vpack.c.b16 %v4521, %v4505
        %v5610 = vpack.c.b16 %v4522, %v4506
        %v5611 = vpack.c.b16 %v4523, %v4507
        %v5612 = vpack.c.b16 %v4524, %v4508
        %v5613 = vpack.c.b16 %v4525, %v4509
        %v5614 = vpack.c.b16 %v4526, %v4510
        %v5615 = vpack.c.b16 %v4527, %v4511
        %v5616 = vpack.c.b16 %v4528, %v4512
        %v5617 = vpack.c.b16 %v4529, %v4513
        %v5618 = vpack.c.b16 %v4546, %v4530
        %v5619 = vpack.c.b16 %v4547, %v4531
        %v5620 = vpack.c.b16 %v4548, %v4532
        %v5621 = vpack.c.b16 %v4549, %v4533
        %v5622 = vpack.c.b16 %v4550, %v4534
        %v5623 = vpack.c.b16 %v4551, %v4535
        %v5624 = vpack.c.b16 %v4552, %v4536
        %v5625 = vpack.c.b16 %v4553, %v4537
        %v5626 = vpack.c.b16 %v4554, %v4538
        %v5627 = vpack.c.b16 %v4555, %v4539
        %v5628 = vpack.c.b16 %v4556, %v4540
        %v5629 = vpack.c.b16 %v4557, %v4541
        %v5630 = vpack.c.b16 %v4558, %v4542
        %v5631 = vpack.c.b16 %v4559, %v4543
        %v5632 = vpack.c.b16 %v4560, %v4544
        %v5633 = vpack.c.b16 %v4561, %v4545
        %v5634 = vpack.c.b16 %v4578, %v4562
        %v5635 = vpack.c.b16 %v4579, %v4563
        %v5636 = vpack.c.b16 %v4580, %v4564
        %v5637 = vpack.c.b16 %v4581, %v4565
        %v5638 = vpack.c.b16 %v4582, %v4566
        %v5639 = vpack.c.b16 %v4583, %v4567
        %v5640 = vpack.c.b16 %v4584, %v4568
        %v5641 = vpack.c.b16 %v4585, %v4569
        %v5642 = vpack.c.b16 %v4586, %v4570
        %v5643 = vpack.c.b16 %v4587, %v4571
        %v5644 = vpack.c.b16 %v4588, %v4572
        %v5645 = vpack.c.b16 %v4589, %v4573
        %v5646 = vpack.c.b16 %v4590, %v4574
        %v5647 = vpack.c.b16 %v4591, %v4575
        %v5648 = vpack.c.b16 %v4592, %v4576
        %v5649 = vpack.c.b16 %v4593, %v4577
        %v5650 = vpack.c.b16 %v4610, %v4594
        %v5651 = vpack.c.b16 %v4611, %v4595
        %v5652 = vpack.c.b16 %v4612, %v4596
        %v5653 = vpack.c.b16 %v4613, %v4597
        %v5654 = vpack.c.b16 %v4614, %v4598
        %v5655 = vpack.c.b16 %v4615, %v4599
        %v5656 = vpack.c.b16 %v4616, %v4600
        %v5657 = vpack.c.b16 %v4617, %v4601
        %v5658 = vpack.c.b16 %v4618, %v4602
        %v5659 = vpack.c.b16 %v4619, %v4603
        %v5660 = vpack.c.b16 %v4620, %v4604
        %v5661 = vpack.c.b16 %v4621, %v4605
        %v5662 = vpack.c.b16 %v4622, %v4606
        %v5663 = vpack.c.b16 %v4623, %v4607
        %v5664 = vpack.c.b16 %v4624, %v4608
        %v5665 = vpack.c.b16 %v4625, %v4609
        %v5666 = vpack.c.b16 %v4642, %v4626
        %v5667 = vpack.c.b16 %v4643, %v4627
        %v5668 = vpack.c.b16 %v4644, %v4628
        %v5669 = vpack.c.b16 %v4645, %v4629
        %v5670 = vpack.c.b16 %v4646, %v4630
        %v5671 = vpack.c.b16 %v4647, %v4631
        %v5672 = vpack.c.b16 %v4648, %v4632
        %v5673 = vpack.c.b16 %v4649, %v4633
        %v5674 = vpack.c.b16 %v4650, %v4634
        %v5675 = vpack.c.b16 %v4651, %v4635
        %v5676 = vpack.c.b16 %v4652, %v4636
        %v5677 = vpack.c.b16 %v4653, %v4637
        %v5678 = vpack.c.b16 %v4654, %v4638
        %v5679 = vpack.c.b16 %v4655, %v4639
        %v5680 = vpack.c.b16 %v4656, %v4640
        %v5681 = vpack.c.b16 %v4657, %v4641
        %6706 = vmatprep.subr.bf16.mxu0 %v4659
        %6707 = vmatpush1.bf16.msra.mxu0 %v4658
        %6708 = vmatprep.subr.bf16.mxu0 %v4675
        %6709 = vmatpush1.bf16.msra.mxu0 %v4674
        %6710 = vmatprep.subr.bf16.mxu0 %v4691
        %6711 = vmatpush1.bf16.msra.mxu0 %v4690
        %6712 = vmatprep.subr.bf16.mxu0 %v4707
        %6713 = vmatpush1.bf16.msra.mxu0 %v4706
        %6714 = vmatprep.subr.bf16.mxu0 %v4723
        %6715 = vmatpush1.bf16.msra.mxu0 %v4722
        %6716 = vmatprep.subr.bf16.mxu0 %v4739
        %6717 = vmatpush1.bf16.msra.mxu0 %v4738
        %6718 = vmatprep.subr.bf16.mxu0 %v4755
        %6719 = vmatpush1.bf16.msra.mxu0 %v4754
        %6720 = vmatprep.subr.bf16.mxu0 %v4771
        %6721 = vmatpush1.bf16.msra.mxu0 %v4770
        %6722 = vmatprep.subr.bf16.mxu0 %v4787
        %6723 = vmatpush1.bf16.msra.mxu0 %v4786
        %6724 = vmatprep.subr.bf16.mxu0 %v4803
        %6725 = vmatpush1.bf16.msra.mxu0 %v4802
        %6726 = vmatprep.subr.bf16.mxu0 %v4819
        %6727 = vmatpush1.bf16.msra.mxu0 %v4818
        %6728 = vmatprep.subr.bf16.mxu0 %v4835
        %6729 = vmatpush1.bf16.msra.mxu0 %v4834
        %6730 = vmatprep.subr.bf16.mxu0 %v4851
        %6731 = vmatpush1.bf16.msra.mxu0 %v4850
        %6732 = vmatprep.subr.bf16.mxu0 %v4867
        %6733 = vmatpush1.bf16.msra.mxu0 %v4866
        %6734 = vmatprep.subr.bf16.mxu0 %v4883
        %6735 = vmatpush1.bf16.msra.mxu0 %v4882
        %6736 = vmatprep.subr.bf16.mxu0 %v4899
        %6737 = vmatpush1.bf16.msra.mxu0 %v4898
        %6738 = vmatprep.mubr.bf16.mxu0 %v555
        %6739 = vmatmul.mubr.bf16.gmra.mrb[0].mxu0 %v554
        %v6740 = vpop.f32.mrb[0].mxu0
        %v6741 = vadd.f32 0.0, %v6740
        %v6742 = vpop.f32.mrb[0].mxu0
        %v6743 = vadd.f32 0.0, %v6742
        %v6744 = vpop.f32.mrb[0].mxu0
        %v6745 = vpop.f32.mrb[0].mxu0
        %6746 = vdwg.mxu0
        %6747 = vmatprep.subr.bf16.mxu0 %v4915
        %6748 = vmatpush1.bf16.msra.mxu0 %v4914
        %6749 = vmatprep.subr.bf16.mxu0 %v4931
        %6750 = vmatpush1.bf16.msra.mxu0 %v4930
        %6751 = vmatprep.subr.bf16.mxu0 %v4947
        %6752 = vmatpush1.bf16.msra.mxu0 %v4946
        %6753 = vmatprep.subr.bf16.mxu0 %v4963
        %6754 = vmatpush1.bf16.msra.mxu0 %v4962
        %6755 = vmatprep.subr.bf16.mxu0 %v4979
        %6756 = vmatpush1.bf16.msra.mxu0 %v4978
        %6757 = vmatprep.subr.bf16.mxu0 %v4995
        %6758 = vmatpush1.bf16.msra.mxu0 %v4994
        %6759 = vmatprep.subr.bf16.mxu0 %v5011
        %6760 = vmatpush1.bf16.msra.mxu0 %v5010
        %6761 = vmatprep.subr.bf16.mxu0 %v5027
        %6762 = vmatpush1.bf16.msra.mxu0 %v5026
        %6763 = vmatprep.subr.bf16.mxu0 %v5043
        %6764 = vmatpush1.bf16.msra.mxu0 %v5042
        %6765 = vmatprep.subr.bf16.mxu0 %v5059
        %6766 = vmatpush1.bf16.msra.mxu0 %v5058
        %6767 = vmatprep.subr.bf16.mxu0 %v5075
        %6768 = vmatpush1.bf16.msra.mxu0 %v5074
        %6769 = vmatprep.subr.bf16.mxu0 %v5091
        %6770 = vmatpush1.bf16.msra.mxu0 %v5090
        %6771 = vmatprep.subr.bf16.mxu0 %v5107
        %6772 = vmatpush1.bf16.msra.mxu0 %v5106
        %6773 = vmatprep.subr.bf16.mxu0 %v5123
        %6774 = vmatpush1.bf16.msra.mxu0 %v5122
        %6775 = vmatprep.subr.bf16.mxu0 %v5139
        %6776 = vmatpush1.bf16.msra.mxu0 %v5138
        %6777 = vmatprep.subr.bf16.mxu0 %v5155
        %6778 = vmatpush1.bf16.msra.mxu0 %v5154
        %6779 = vmatprep.mubr.bf16.mxu0 %v557
        %6780 = vmatmul.mubr.bf16.gmra.mrb[0].mxu0 %v556
        %v6781 = vpop.f32.mrb[0].mxu0
        %v6782 = vadd.f32 %v6741, %v6781
        %v6783 = vpop.f32.mrb[0].mxu0
        %v6784 = vadd.f32 %v6743, %v6783
        %v6785 = vpop.f32.mrb[0].mxu0
        %v6786 = vpop.f32.mrb[0].mxu0
        %6787 = vdwg.mxu0
        %6788 = vmatprep.subr.bf16.mxu0 %v5171
        %6789 = vmatpush1.bf16.msra.mxu0 %v5170
        %6790 = vmatprep.subr.bf16.mxu0 %v5187
        %6791 = vmatpush1.bf16.msra.mxu0 %v5186
        %6792 = vmatprep.subr.bf16.mxu0 %v5203
        %6793 = vmatpush1.bf16.msra.mxu0 %v5202
        %6794 = vmatprep.subr.bf16.mxu0 %v5219
        %6795 = vmatpush1.bf16.msra.mxu0 %v5218
        %6796 = vmatprep.subr.bf16.mxu0 %v5235
        %6797 = vmatpush1.bf16.msra.mxu0 %v5234
        %6798 = vmatprep.subr.bf16.mxu0 %v5251
        %6799 = vmatpush1.bf16.msra.mxu0 %v5250
        %6800 = vmatprep.subr.bf16.mxu0 %v5267
        %6801 = vmatpush1.bf16.msra.mxu0 %v5266
        %6802 = vmatprep.subr.bf16.mxu0 %v5283
        %6803 = vmatpush1.bf16.msra.mxu0 %v5282
        %6804 = vmatprep.subr.bf16.mxu0 %v5299
        %6805 = vmatpush1.bf16.msra.mxu0 %v5298
        %6806 = vmatprep.subr.bf16.mxu0 %v5315
        %6807 = vmatpush1.bf16.msra.mxu0 %v5314
        %6808 = vmatprep.subr.bf16.mxu0 %v5331
        %6809 = vmatpush1.bf16.msra.mxu0 %v5330
        %6810 = vmatprep.subr.bf16.mxu0 %v5347
        %6811 = vmatpush1.bf16.msra.mxu0 %v5346
        %6812 = vmatprep.subr.bf16.mxu0 %v5363
        %6813 = vmatpush1.bf16.msra.mxu0 %v5362
        %6814 = vmatprep.subr.bf16.mxu0 %v5379
        %6815 = vmatpush1.bf16.msra.mxu0 %v5378
        %6816 = vmatprep.subr.bf16.mxu0 %v5395
        %6817 = vmatpush1.bf16.msra.mxu0 %v5394
        %6818 = vmatprep.subr.bf16.mxu0 %v5411
        %6819 = vmatpush1.bf16.msra.mxu0 %v5410
        %6820 = vmatprep.mubr.bf16.mxu0 %v559
        %6821 = vmatmul.mubr.bf16.gmra.mrb[0].mxu0 %v558
        %v6822 = vpop.f32.mrb[0].mxu0
        %v6823 = vadd.f32 %v6782, %v6822
        %v6824 = vpop.f32.mrb[0].mxu0
        %v6825 = vadd.f32 %v6784, %v6824
        %v6826 = vpop.f32.mrb[0].mxu0
        %v6827 = vpop.f32.mrb[0].mxu0
        %6828 = vdwg.mxu0
        %6829 = vmatprep.subr.bf16.mxu0 %v5427
        %6830 = vmatpush1.bf16.msra.mxu0 %v5426
        %6831 = vmatprep.subr.bf16.mxu0 %v5443
        %6832 = vmatpush1.bf16.msra.mxu0 %v5442
        %6833 = vmatprep.subr.bf16.mxu0 %v5459
        %6834 = vmatpush1.bf16.msra.mxu0 %v5458
        %6835 = vmatprep.subr.bf16.mxu0 %v5475
        %6836 = vmatpush1.bf16.msra.mxu0 %v5474
        %6837 = vmatprep.subr.bf16.mxu0 %v5491
        %6838 = vmatpush1.bf16.msra.mxu0 %v5490
        %6839 = vmatprep.subr.bf16.mxu0 %v5507
        %6840 = vmatpush1.bf16.msra.mxu0 %v5506
        %6841 = vmatprep.subr.bf16.mxu0 %v5523
        %6842 = vmatpush1.bf16.msra.mxu0 %v5522
        %6843 = vmatprep.subr.bf16.mxu0 %v5539
        %6844 = vmatpush1.bf16.msra.mxu0 %v5538
        %6845 = vmatprep.subr.bf16.mxu0 %v5555
        %6846 = vmatpush1.bf16.msra.mxu0 %v5554
        %6847 = vmatprep.subr.bf16.mxu0 %v5571
        %6848 = vmatpush1.bf16.msra.mxu0 %v5570
        %6849 = vmatprep.subr.bf16.mxu0 %v5587
        %6850 = vmatpush1.bf16.msra.mxu0 %v5586
        %6851 = vmatprep.subr.bf16.mxu0 %v5603
        %6852 = vmatpush1.bf16.msra.mxu0 %v5602
        %6853 = vmatprep.subr.bf16.mxu0 %v5619
        %6854 = vmatpush1.bf16.msra.mxu0 %v5618
        %6855 = vmatprep.subr.bf16.mxu0 %v5635
        %6856 = vmatpush1.bf16.msra.mxu0 %v5634
        %6857 = vmatprep.subr.bf16.mxu0 %v5651
        %6858 = vmatpush1.bf16.msra.mxu0 %v5650
        %6859 = vmatprep.subr.bf16.mxu0 %v5667
        %6860 = vmatpush1.bf16.msra.mxu0 %v5666
        %6861 = vmatprep.mubr.bf16.mxu0 %v561
        %6862 = vmatmul.mubr.bf16.gmra.mrb[0].mxu0 %v560
        %v6863 = vpop.f32.mrb[0].mxu0
        %v6864 = vadd.f32 %v6823, %v6863
        %v6865 = vpop.f32.mrb[0].mxu0
        %v6866 = vadd.f32 %v6825, %v6865
        %v6867 = vpop.f32.mrb[0].mxu0
        %v6868 = vpop.f32.mrb[0].mxu0
        %6869 = vdwg.mxu0
        %6870 = vmatprep.subr.bf16.mxu0 %v4661
        %6871 = vmatpush1.bf16.msra.mxu0 %v4660
        %6872 = vmatprep.subr.bf16.mxu0 %v4677
        %6873 = vmatpush1.bf16.msra.mxu0 %v4676
        %6874 = vmatprep.subr.bf16.mxu0 %v4693
        %6875 = vmatpush1.bf16.msra.mxu0 %v4692
        %6876 = vmatprep.subr.bf16.mxu0 %v4709
        %6877 = vmatpush1.bf16.msra.mxu0 %v4708
        %6878 = vmatprep.subr.bf16.mxu0 %v4725
        %6879 = vmatpush1.bf16.msra.mxu0 %v4724
        %6880 = vmatprep.subr.bf16.mxu0 %v4741
        %6881 = vmatpush1.bf16.msra.mxu0 %v4740
        %6882 = vmatprep.subr.bf16.mxu0 %v4757
        %6883 = vmatpush1.bf16.msra.mxu0 %v4756
        %6884 = vmatprep.subr.bf16.mxu0 %v4773
        %6885 = vmatpush1.bf16.msra.mxu0 %v4772
        %6886 = vmatprep.subr.bf16.mxu0 %v4789
        %6887 = vmatpush1.bf16.msra.mxu0 %v4788
        %6888 = vmatprep.subr.bf16.mxu0 %v4805
        %6889 = vmatpush1.bf16.msra.mxu0 %v4804
        %6890 = vmatprep.subr.bf16.mxu0 %v4821
        %6891 = vmatpush1.bf16.msra.mxu0 %v4820
        %6892 = vmatprep.subr.bf16.mxu0 %v4837
        %6893 = vmatpush1.bf16.msra.mxu0 %v4836
        %6894 = vmatprep.subr.bf16.mxu0 %v4853
        %6895 = vmatpush1.bf16.msra.mxu0 %v4852
        %6896 = vmatprep.subr.bf16.mxu0 %v4869
        %6897 = vmatpush1.bf16.msra.mxu0 %v4868
        %6898 = vmatprep.subr.bf16.mxu0 %v4885
        %6899 = vmatpush1.bf16.msra.mxu0 %v4884
        %6900 = vmatprep.subr.bf16.mxu0 %v4901
        %6901 = vmatpush1.bf16.msra.mxu0 %v4900
        %6902 = vmatprep.mubr.bf16.mxu0 %v555
        %6903 = vmatmul.mubr.bf16.gmra.mrb[0].mxu0 %v554
        %v6904 = vpop.f32.mrb[0].mxu0
        %v6905 = vadd.f32 0.0, %v6904
        %v6906 = vpop.f32.mrb[0].mxu0
        %v6907 = vadd.f32 0.0, %v6906
        %v6908 = vpop.f32.mrb[0].mxu0
        %v6909 = vpop.f32.mrb[0].mxu0
        %6910 = vdwg.mxu0
        %6911 = vmatprep.subr.bf16.mxu0 %v4917
        %6912 = vmatpush1.bf16.msra.mxu0 %v4916
        %6913 = vmatprep.subr.bf16.mxu0 %v4933
        %6914 = vmatpush1.bf16.msra.mxu0 %v4932
        %6915 = vmatprep.subr.bf16.mxu0 %v4949
        %6916 = vmatpush1.bf16.msra.mxu0 %v4948
        %6917 = vmatprep.subr.bf16.mxu0 %v4965
        %6918 = vmatpush1.bf16.msra.mxu0 %v4964
        %6919 = vmatprep.subr.bf16.mxu0 %v4981
        %6920 = vmatpush1.bf16.msra.mxu0 %v4980
        %6921 = vmatprep.subr.bf16.mxu0 %v4997
        %6922 = vmatpush1.bf16.msra.mxu0 %v4996
        %6923 = vmatprep.subr.bf16.mxu0 %v5013
        %6924 = vmatpush1.bf16.msra.mxu0 %v5012
        %6925 = vmatprep.subr.bf16.mxu0 %v5029
        %6926 = vmatpush1.bf16.msra.mxu0 %v5028
        %6927 = vmatprep.subr.bf16.mxu0 %v5045
        %6928 = vmatpush1.bf16.msra.mxu0 %v5044
        %6929 = vmatprep.subr.bf16.mxu0 %v5061
        %6930 = vmatpush1.bf16.msra.mxu0 %v5060
        %6931 = vmatprep.subr.bf16.mxu0 %v5077
        %6932 = vmatpush1.bf16.msra.mxu0 %v5076
        %6933 = vmatprep.subr.bf16.mxu0 %v5093
        %6934 = vmatpush1.bf16.msra.mxu0 %v5092
        %6935 = vmatprep.subr.bf16.mxu0 %v5109
        %6936 = vmatpush1.bf16.msra.mxu0 %v5108
        %6937 = vmatprep.subr.bf16.mxu0 %v5125
        %6938 = vmatpush1.bf16.msra.mxu0 %v5124
        %6939 = vmatprep.subr.bf16.mxu0 %v5141
        %6940 = vmatpush1.bf16.msra.mxu0 %v5140
        %6941 = vmatprep.subr.bf16.mxu0 %v5157
        %6942 = vmatpush1.bf16.msra.mxu0 %v5156
        %6943 = vmatprep.mubr.bf16.mxu0 %v557
        %6944 = vmatmul.mubr.bf16.gmra.mrb[0].mxu0 %v556
        %v6945 = vpop.f32.mrb[0].mxu0
        %v6946 = vadd.f32 %v6905, %v6945
        %v6947 = vpop.f32.mrb[0].mxu0
        %v6948 = vadd.f32 %v6907, %v6947
        %v6949 = vpop.f32.mrb[0].mxu0
        %v6950 = vpop.f32.mrb[0].mxu0
        %6951 = vdwg.mxu0
        %6952 = vmatprep.subr.bf16.mxu0 %v5173
        %6953 = vmatpush1.bf16.msra.mxu0 %v5172
        %6954 = vmatprep.subr.bf16.mxu0 %v5189
        %6955 = vmatpush1.bf16.msra.mxu0 %v5188
        %6956 = vmatprep.subr.bf16.mxu0 %v5205
        %6957 = vmatpush1.bf16.msra.mxu0 %v5204
        %6958 = vmatprep.subr.bf16.mxu0 %v5221
        %6959 = vmatpush1.bf16.msra.mxu0 %v5220
        %6960 = vmatprep.subr.bf16.mxu0 %v5237
        %6961 = vmatpush1.bf16.msra.mxu0 %v5236
        %6962 = vmatprep.subr.bf16.mxu0 %v5253
        %6963 = vmatpush1.bf16.msra.mxu0 %v5252
        %6964 = vmatprep.subr.bf16.mxu0 %v5269
        %6965 = vmatpush1.bf16.msra.mxu0 %v5268
        %6966 = vmatprep.subr.bf16.mxu0 %v5285
        %6967 = vmatpush1.bf16.msra.mxu0 %v5284
        %6968 = vmatprep.subr.bf16.mxu0 %v5301
        %6969 = vmatpush1.bf16.msra.mxu0 %v5300
        %6970 = vmatprep.subr.bf16.mxu0 %v5317
        %6971 = vmatpush1.bf16.msra.mxu0 %v5316
        %6972 = vmatprep.subr.bf16.mxu0 %v5333
        %6973 = vmatpush1.bf16.msra.mxu0 %v5332
        %6974 = vmatprep.subr.bf16.mxu0 %v5349
        %6975 = vmatpush1.bf16.msra.mxu0 %v5348
        %6976 = vmatprep.subr.bf16.mxu0 %v5365
        %6977 = vmatpush1.bf16.msra.mxu0 %v5364
        %6978 = vmatprep.subr.bf16.mxu0 %v5381
        %6979 = vmatpush1.bf16.msra.mxu0 %v5380
        %6980 = vmatprep.subr.bf16.mxu0 %v5397
        %6981 = vmatpush1.bf16.msra.mxu0 %v5396
        %6982 = vmatprep.subr.bf16.mxu0 %v5413
        %6983 = vmatpush1.bf16.msra.mxu0 %v5412
        %6984 = vmatprep.mubr.bf16.mxu0 %v559
        %6985 = vmatmul.mubr.bf16.gmra.mrb[0].mxu0 %v558
        %v6986 = vpop.f32.mrb[0].mxu0
        %v6987 = vadd.f32 %v6946, %v6986
        %v6988 = vpop.f32.mrb[0].mxu0
        %v6989 = vadd.f32 %v6948, %v6988
        %v6990 = vpop.f32.mrb[0].mxu0
        %v6991 = vpop.f32.mrb[0].mxu0
        %6992 = vdwg.mxu0
        %6993 = vmatprep.subr.bf16.mxu0 %v5429
        %6994 = vmatpush1.bf16.msra.mxu0 %v5428
        %6995 = vmatprep.subr.bf16.mxu0 %v5445
        %6996 = vmatpush1.bf16.msra.mxu0 %v5444
        %6997 = vmatprep.subr.bf16.mxu0 %v5461
        %6998 = vmatpush1.bf16.msra.mxu0 %v5460
        %6999 = vmatprep.subr.bf16.mxu0 %v5477
        %7000 = vmatpush1.bf16.msra.mxu0 %v5476
        %7001 = vmatprep.subr.bf16.mxu0 %v5493
        %7002 = vmatpush1.bf16.msra.mxu0 %v5492
        %7003 = vmatprep.subr.bf16.mxu0 %v5509
        %7004 = vmatpush1.bf16.msra.mxu0 %v5508
        %7005 = vmatprep.subr.bf16.mxu0 %v5525
        %7006 = vmatpush1.bf16.msra.mxu0 %v5524
        %7007 = vmatprep.subr.bf16.mxu0 %v5541
        %7008 = vmatpush1.bf16.msra.mxu0 %v5540
        %7009 = vmatprep.subr.bf16.mxu0 %v5557
        %7010 = vmatpush1.bf16.msra.mxu0 %v5556
        %7011 = vmatprep.subr.bf16.mxu0 %v5573
        %7012 = vmatpush1.bf16.msra.mxu0 %v5572
        %7013 = vmatprep.subr.bf16.mxu0 %v5589
        %7014 = vmatpush1.bf16.msra.mxu0 %v5588
        %7015 = vmatprep.subr.bf16.mxu0 %v5605
        %7016 = vmatpush1.bf16.msra.mxu0 %v5604
        %7017 = vmatprep.subr.bf16.mxu0 %v5621
        %7018 = vmatpush1.bf16.msra.mxu0 %v5620
        %7019 = vmatprep.subr.bf16.mxu0 %v5637
        %7020 = vmatpush1.bf16.msra.mxu0 %v5636
        %7021 = vmatprep.subr.bf16.mxu0 %v5653
        %7022 = vmatpush1.bf16.msra.mxu0 %v5652
        %7023 = vmatprep.subr.bf16.mxu0 %v5669
        %7024 = vmatpush1.bf16.msra.mxu0 %v5668
        %7025 = vmatprep.mubr.bf16.mxu0 %v561
        %7026 = vmatmul.mubr.bf16.gmra.mrb[0].mxu0 %v560
        %v7027 = vpop.f32.mrb[0].mxu0
        %v7028 = vadd.f32 %v6987, %v7027
        %v7029 = vpop.f32.mrb[0].mxu0
        %v7030 = vadd.f32 %v6989, %v7029
        %v7031 = vpop.f32.mrb[0].mxu0
        %v7032 = vpop.f32.mrb[0].mxu0
        %7033 = vdwg.mxu0
        %7034 = vmatprep.subr.bf16.mxu0 %v4663
        %7035 = vmatpush1.bf16.msra.mxu0 %v4662
        %7036 = vmatprep.subr.bf16.mxu0 %v4679
        %7037 = vmatpush1.bf16.msra.mxu0 %v4678
        %7038 = vmatprep.subr.bf16.mxu0 %v4695
        %7039 = vmatpush1.bf16.msra.mxu0 %v4694
        %7040 = vmatprep.subr.bf16.mxu0 %v4711
        %7041 = vmatpush1.bf16.msra.mxu0 %v4710
        %7042 = vmatprep.subr.bf16.mxu0 %v4727
        %7043 = vmatpush1.bf16.msra.mxu0 %v4726
        %7044 = vmatprep.subr.bf16.mxu0 %v4743
        %7045 = vmatpush1.bf16.msra.mxu0 %v4742
        %7046 = vmatprep.subr.bf16.mxu0 %v4759
        %7047 = vmatpush1.bf16.msra.mxu0 %v4758
        %7048 = vmatprep.subr.bf16.mxu0 %v4775
        %7049 = vmatpush1.bf16.msra.mxu0 %v4774
        %7050 = vmatprep.subr.bf16.mxu0 %v4791
        %7051 = vmatpush1.bf16.msra.mxu0 %v4790
        %7052 = vmatprep.subr.bf16.mxu0 %v4807
        %7053 = vmatpush1.bf16.msra.mxu0 %v4806
        %7054 = vmatprep.subr.bf16.mxu0 %v4823
        %7055 = vmatpush1.bf16.msra.mxu0 %v4822
        %7056 = vmatprep.subr.bf16.mxu0 %v4839
        %7057 = vmatpush1.bf16.msra.mxu0 %v4838
        %7058 = vmatprep.subr.bf16.mxu0 %v4855
        %7059 = vmatpush1.bf16.msra.mxu0 %v4854
        %7060 = vmatprep.subr.bf16.mxu0 %v4871
        %7061 = vmatpush1.bf16.msra.mxu0 %v4870
        %7062 = vmatprep.subr.bf16.mxu0 %v4887
        %7063 = vmatpush1.bf16.msra.mxu0 %v4886
        %7064 = vmatprep.subr.bf16.mxu0 %v4903
        %7065 = vmatpush1.bf16.msra.mxu0 %v4902
        %7066 = vmatprep.mubr.bf16.mxu0 %v555
        %7067 = vmatmul.mubr.bf16.gmra.mrb[0].mxu0 %v554
        %v7068 = vpop.f32.mrb[0].mxu0
        %v7069 = vadd.f32 0.0, %v7068
        %v7070 = vpop.f32.mrb[0].mxu0
        %v7071 = vadd.f32 0.0, %v7070
        %v7072 = vpop.f32.mrb[0].mxu0
        %v7073 = vpop.f32.mrb[0].mxu0
        %7074 = vdwg.mxu0
        %7075 = vmatprep.subr.bf16.mxu0 %v4919
        %7076 = vmatpush1.bf16.msra.mxu0 %v4918
        %7077 = vmatprep.subr.bf16.mxu0 %v4935
        %7078 = vmatpush1.bf16.msra.mxu0 %v4934
        %7079 = vmatprep.subr.bf16.mxu0 %v4951
        %7080 = vmatpush1.bf16.msra.mxu0 %v4950
        %7081 = vmatprep.subr.bf16.mxu0 %v4967
        %7082 = vmatpush1.bf16.msra.mxu0 %v4966
        %7083 = vmatprep.subr.bf16.mxu0 %v4983
        %7084 = vmatpush1.bf16.msra.mxu0 %v4982
        %7085 = vmatprep.subr.bf16.mxu0 %v4999
        %7086 = vmatpush1.bf16.msra.mxu0 %v4998
        %7087 = vmatprep.subr.bf16.mxu0 %v5015
        %7088 = vmatpush1.bf16.msra.mxu0 %v5014
        %7089 = vmatprep.subr.bf16.mxu0 %v5031
        %7090 = vmatpush1.bf16.msra.mxu0 %v5030
        %7091 = vmatprep.subr.bf16.mxu0 %v5047
        %7092 = vmatpush1.bf16.msra.mxu0 %v5046
        %7093 = vmatprep.subr.bf16.mxu0 %v5063
        %7094 = vmatpush1.bf16.msra.mxu0 %v5062
        %7095 = vmatprep.subr.bf16.mxu0 %v5079
        %7096 = vmatpush1.bf16.msra.mxu0 %v5078
        %7097 = vmatprep.subr.bf16.mxu0 %v5095
        %7098 = vmatpush1.bf16.msra.mxu0 %v5094
        %7099 = vmatprep.subr.bf16.mxu0 %v5111
        %7100 = vmatpush1.bf16.msra.mxu0 %v5110
        %7101 = vmatprep.subr.bf16.mxu0 %v5127
        %7102 = vmatpush1.bf16.msra.mxu0 %v5126
        %7103 = vmatprep.subr.bf16.mxu0 %v5143
        %7104 = vmatpush1.bf16.msra.mxu0 %v5142
        %7105 = vmatprep.subr.bf16.mxu0 %v5159
        %7106 = vmatpush1.bf16.msra.mxu0 %v5158
        %7107 = vmatprep.mubr.bf16.mxu0 %v557
        %7108 = vmatmul.mubr.bf16.gmra.mrb[0].mxu0 %v556
        %v7109 = vpop.f32.mrb[0].mxu0
        %v7110 = vadd.f32 %v7069, %v7109
        %v7111 = vpop.f32.mrb[0].mxu0
        %v7112 = vadd.f32 %v7071, %v7111
        %v7113 = vpop.f32.mrb[0].mxu0
        %v7114 = vpop.f32.mrb[0].mxu0
        %7115 = vdwg.mxu0
        %7116 = vmatprep.subr.bf16.mxu0 %v5175
        %7117 = vmatpush1.bf16.msra.mxu0 %v5174
        %7118 = vmatprep.subr.bf16.mxu0 %v5191
        %7119 = vmatpush1.bf16.msra.mxu0 %v5190
        %7120 = vmatprep.subr.bf16.mxu0 %v5207
        %7121 = vmatpush1.bf16.msra.mxu0 %v5206
        %7122 = vmatprep.subr.bf16.mxu0 %v5223
        %7123 = vmatpush1.bf16.msra.mxu0 %v5222
        %7124 = vmatprep.subr.bf16.mxu0 %v5239
        %7125 = vmatpush1.bf16.msra.mxu0 %v5238
        %7126 = vmatprep.subr.bf16.mxu0 %v5255
        %7127 = vmatpush1.bf16.msra.mxu0 %v5254
        %7128 = vmatprep.subr.bf16.mxu0 %v5271
        %7129 = vmatpush1.bf16.msra.mxu0 %v5270
        %7130 = vmatprep.subr.bf16.mxu0 %v5287
        %7131 = vmatpush1.bf16.msra.mxu0 %v5286
        %7132 = vmatprep.subr.bf16.mxu0 %v5303
        %7133 = vmatpush1.bf16.msra.mxu0 %v5302
        %7134 = vmatprep.subr.bf16.mxu0 %v5319
        %7135 = vmatpush1.bf16.msra.mxu0 %v5318
        %7136 = vmatprep.subr.bf16.mxu0 %v5335
        %7137 = vmatpush1.bf16.msra.mxu0 %v5334
        %7138 = vmatprep.subr.bf16.mxu0 %v5351
        %7139 = vmatpush1.bf16.msra.mxu0 %v5350
        %7140 = vmatprep.subr.bf16.mxu0 %v5367
        %7141 = vmatpush1.bf16.msra.mxu0 %v5366
        %7142 = vmatprep.subr.bf16.mxu0 %v5383
        %7143 = vmatpush1.bf16.msra.mxu0 %v5382
        %7144 = vmatprep.subr.bf16.mxu0 %v5399
        %7145 = vmatpush1.bf16.msra.mxu0 %v5398
        %7146 = vmatprep.subr.bf16.mxu0 %v5415
        %7147 = vmatpush1.bf16.msra.mxu0 %v5414
        %7148 = vmatprep.mubr.bf16.mxu0 %v559
        %7149 = vmatmul.mubr.bf16.gmra.mrb[0].mxu0 %v558
        %v7150 = vpop.f32.mrb[0].mxu0
        %v7151 = vadd.f32 %v7110, %v7150
        %v7152 = vpop.f32.mrb[0].mxu0
        %v7153 = vadd.f32 %v7112, %v7152
        %v7154 = vpop.f32.mrb[0].mxu0
        %v7155 = vpop.f32.mrb[0].mxu0
        %7156 = vdwg.mxu0
        %7157 = vmatprep.subr.bf16.mxu0 %v5431
        %7158 = vmatpush1.bf16.msra.mxu0 %v5430
        %7159 = vmatprep.subr.bf16.mxu0 %v5447
        %7160 = vmatpush1.bf16.msra.mxu0 %v5446
        %7161 = vmatprep.subr.bf16.mxu0 %v5463
        %7162 = vmatpush1.bf16.msra.mxu0 %v5462
        %7163 = vmatprep.subr.bf16.mxu0 %v5479
        %7164 = vmatpush1.bf16.msra.mxu0 %v5478
        %7165 = vmatprep.subr.bf16.mxu0 %v5495
        %7166 = vmatpush1.bf16.msra.mxu0 %v5494
        %7167 = vmatprep.subr.bf16.mxu0 %v5511
        %7168 = vmatpush1.bf16.msra.mxu0 %v5510
        %7169 = vmatprep.subr.bf16.mxu0 %v5527
        %7170 = vmatpush1.bf16.msra.mxu0 %v5526
        %7171 = vmatprep.subr.bf16.mxu0 %v5543
        %7172 = vmatpush1.bf16.msra.mxu0 %v5542
        %7173 = vmatprep.subr.bf16.mxu0 %v5559
        %7174 = vmatpush1.bf16.msra.mxu0 %v5558
        %7175 = vmatprep.subr.bf16.mxu0 %v5575
        %7176 = vmatpush1.bf16.msra.mxu0 %v5574
        %7177 = vmatprep.subr.bf16.mxu0 %v5591
        %7178 = vmatpush1.bf16.msra.mxu0 %v5590
        %7179 = vmatprep.subr.bf16.mxu0 %v5607
        %7180 = vmatpush1.bf16.msra.mxu0 %v5606
        %7181 = vmatprep.subr.bf16.mxu0 %v5623
        %7182 = vmatpush1.bf16.msra.mxu0 %v5622
        %7183 = vmatprep.subr.bf16.mxu0 %v5639
        %7184 = vmatpush1.bf16.msra.mxu0 %v5638
        %7185 = vmatprep.subr.bf16.mxu0 %v5655
        %7186 = vmatpush1.bf16.msra.mxu0 %v5654
        %7187 = vmatprep.subr.bf16.mxu0 %v5671
        %7188 = vmatpush1.bf16.msra.mxu0 %v5670
        %7189 = vmatprep.mubr.bf16.mxu0 %v561
        %7190 = vmatmul.mubr.bf16.gmra.mrb[0].mxu0 %v560
        %v7191 = vpop.f32.mrb[0].mxu0
        %v7192 = vadd.f32 %v7151, %v7191
        %v7193 = vpop.f32.mrb[0].mxu0
        %v7194 = vadd.f32 %v7153, %v7193
        %v7195 = vpop.f32.mrb[0].mxu0
        %v7196 = vpop.f32.mrb[0].mxu0
        %7197 = vdwg.mxu0
        %7198 = vmatprep.subr.bf16.mxu0 %v4665
        %7199 = vmatpush1.bf16.msra.mxu0 %v4664
        %7200 = vmatprep.subr.bf16.mxu0 %v4681
        %7201 = vmatpush1.bf16.msra.mxu0 %v4680
        %7202 = vmatprep.subr.bf16.mxu0 %v4697
        %7203 = vmatpush1.bf16.msra.mxu0 %v4696
        %7204 = vmatprep.subr.bf16.mxu0 %v4713
        %7205 = vmatpush1.bf16.msra.mxu0 %v4712
        %7206 = vmatprep.subr.bf16.mxu0 %v4729
        %7207 = vmatpush1.bf16.msra.mxu0 %v4728
        %7208 = vmatprep.subr.bf16.mxu0 %v4745
        %7209 = vmatpush1.bf16.msra.mxu0 %v4744
        %7210 = vmatprep.subr.bf16.mxu0 %v4761
        %7211 = vmatpush1.bf16.msra.mxu0 %v4760
        %7212 = vmatprep.subr.bf16.mxu0 %v4777
        %7213 = vmatpush1.bf16.msra.mxu0 %v4776
        %7214 = vmatprep.subr.bf16.mxu0 %v4793
        %7215 = vmatpush1.bf16.msra.mxu0 %v4792
        %7216 = vmatprep.subr.bf16.mxu0 %v4809
        %7217 = vmatpush1.bf16.msra.mxu0 %v4808
        %7218 = vmatprep.subr.bf16.mxu0 %v4825
        %7219 = vmatpush1.bf16.msra.mxu0 %v4824
        %7220 = vmatprep.subr.bf16.mxu0 %v4841
        %7221 = vmatpush1.bf16.msra.mxu0 %v4840
        %7222 = vmatprep.subr.bf16.mxu0 %v4857
        %7223 = vmatpush1.bf16.msra.mxu0 %v4856
        %7224 = vmatprep.subr.bf16.mxu0 %v4873
        %7225 = vmatpush1.bf16.msra.mxu0 %v4872
        %7226 = vmatprep.subr.bf16.mxu0 %v4889
        %7227 = vmatpush1.bf16.msra.mxu0 %v4888
        %7228 = vmatprep.subr.bf16.mxu0 %v4905
        %7229 = vmatpush1.bf16.msra.mxu0 %v4904
        %7230 = vmatprep.mubr.bf16.mxu0 %v555
        %7231 = vmatmul.mubr.bf16.gmra.mrb[0].mxu0 %v554
        %v7232 = vpop.f32.mrb[0].mxu0
        %v7233 = vadd.f32 0.0, %v7232
        %v7234 = vpop.f32.mrb[0].mxu0
        %v7235 = vadd.f32 0.0, %v7234
        %v7236 = vpop.f32.mrb[0].mxu0
        %v7237 = vpop.f32.mrb[0].mxu0
        %7238 = vdwg.mxu0
        %7239 = vmatprep.subr.bf16.mxu0 %v4921
        %7240 = vmatpush1.bf16.msra.mxu0 %v4920
        %7241 = vmatprep.subr.bf16.mxu0 %v4937
        %7242 = vmatpush1.bf16.msra.mxu0 %v4936
        %7243 = vmatprep.subr.bf16.mxu0 %v4953
        %7244 = vmatpush1.bf16.msra.mxu0 %v4952
        %7245 = vmatprep.subr.bf16.mxu0 %v4969
        %7246 = vmatpush1.bf16.msra.mxu0 %v4968
        %7247 = vmatprep.subr.bf16.mxu0 %v4985
        %7248 = vmatpush1.bf16.msra.mxu0 %v4984
        %7249 = vmatprep.subr.bf16.mxu0 %v5001
        %7250 = vmatpush1.bf16.msra.mxu0 %v5000
        %7251 = vmatprep.subr.bf16.mxu0 %v5017
        %7252 = vmatpush1.bf16.msra.mxu0 %v5016
        %7253 = vmatprep.subr.bf16.mxu0 %v5033
        %7254 = vmatpush1.bf16.msra.mxu0 %v5032
        %7255 = vmatprep.subr.bf16.mxu0 %v5049
        %7256 = vmatpush1.bf16.msra.mxu0 %v5048
        %7257 = vmatprep.subr.bf16.mxu0 %v5065
        %7258 = vmatpush1.bf16.msra.mxu0 %v5064
        %7259 = vmatprep.subr.bf16.mxu0 %v5081
        %7260 = vmatpush1.bf16.msra.mxu0 %v5080
        %7261 = vmatprep.subr.bf16.mxu0 %v5097
        %7262 = vmatpush1.bf16.msra.mxu0 %v5096
        %7263 = vmatprep.subr.bf16.mxu0 %v5113
        %7264 = vmatpush1.bf16.msra.mxu0 %v5112
        %7265 = vmatprep.subr.bf16.mxu0 %v5129
        %7266 = vmatpush1.bf16.msra.mxu0 %v5128
        %7267 = vmatprep.subr.bf16.mxu0 %v5145
        %7268 = vmatpush1.bf16.msra.mxu0 %v5144
        %7269 = vmatprep.subr.bf16.mxu0 %v5161
        %7270 = vmatpush1.bf16.msra.mxu0 %v5160
        %7271 = vmatprep.mubr.bf16.mxu0 %v557
        %7272 = vmatmul.mubr.bf16.gmra.mrb[0].mxu0 %v556
        %v7273 = vpop.f32.mrb[0].mxu0
        %v7274 = vadd.f32 %v7233, %v7273
        %v7275 = vpop.f32.mrb[0].mxu0
        %v7276 = vadd.f32 %v7235, %v7275
        %v7277 = vpop.f32.mrb[0].mxu0
        %v7278 = vpop.f32.mrb[0].mxu0
        %7279 = vdwg.mxu0
        %7280 = vmatprep.subr.bf16.mxu0 %v5177
        %7281 = vmatpush1.bf16.msra.mxu0 %v5176
        %7282 = vmatprep.subr.bf16.mxu0 %v5193
        %7283 = vmatpush1.bf16.msra.mxu0 %v5192
        %7284 = vmatprep.subr.bf16.mxu0 %v5209
        %7285 = vmatpush1.bf16.msra.mxu0 %v5208
        %7286 = vmatprep.subr.bf16.mxu0 %v5225
        %7287 = vmatpush1.bf16.msra.mxu0 %v5224
        %7288 = vmatprep.subr.bf16.mxu0 %v5241
        %7289 = vmatpush1.bf16.msra.mxu0 %v5240
        %7290 = vmatprep.subr.bf16.mxu0 %v5257
        %7291 = vmatpush1.bf16.msra.mxu0 %v5256
        %7292 = vmatprep.subr.bf16.mxu0 %v5273
        %7293 = vmatpush1.bf16.msra.mxu0 %v5272
        %7294 = vmatprep.subr.bf16.mxu0 %v5289
        %7295 = vmatpush1.bf16.msra.mxu0 %v5288
        %7296 = vmatprep.subr.bf16.mxu0 %v5305
        %7297 = vmatpush1.bf16.msra.mxu0 %v5304
        %7298 = vmatprep.subr.bf16.mxu0 %v5321
        %7299 = vmatpush1.bf16.msra.mxu0 %v5320
        %7300 = vmatprep.subr.bf16.mxu0 %v5337
        %7301 = vmatpush1.bf16.msra.mxu0 %v5336
        %7302 = vmatprep.subr.bf16.mxu0 %v5353
        %7303 = vmatpush1.bf16.msra.mxu0 %v5352
        %7304 = vmatprep.subr.bf16.mxu0 %v5369
        %7305 = vmatpush1.bf16.msra.mxu0 %v5368
        %7306 = vmatprep.subr.bf16.mxu0 %v5385
        %7307 = vmatpush1.bf16.msra.mxu0 %v5384
        %7308 = vmatprep.subr.bf16.mxu0 %v5401
        %7309 = vmatpush1.bf16.msra.mxu0 %v5400
        %7310 = vmatprep.subr.bf16.mxu0 %v5417
        %7311 = vmatpush1.bf16.msra.mxu0 %v5416
        %7312 = vmatprep.mubr.bf16.mxu0 %v559
        %7313 = vmatmul.mubr.bf16.gmra.mrb[0].mxu0 %v558
        %v7314 = vpop.f32.mrb[0].mxu0
        %v7315 = vadd.f32 %v7274, %v7314
        %v7316 = vpop.f32.mrb[0].mxu0
        %v7317 = vadd.f32 %v7276, %v7316
        %v7318 = vpop.f32.mrb[0].mxu0
        %v7319 = vpop.f32.mrb[0].mxu0
        %7320 = vdwg.mxu0
        %7321 = vmatprep.subr.bf16.mxu0 %v5433
        %7322 = vmatpush1.bf16.msra.mxu0 %v5432
        %7323 = vmatprep.subr.bf16.mxu0 %v5449
        %7324 = vmatpush1.bf16.msra.mxu0 %v5448
        %7325 = vmatprep.subr.bf16.mxu0 %v5465
        %7326 = vmatpush1.bf16.msra.mxu0 %v5464
        %7327 = vmatprep.subr.bf16.mxu0 %v5481
        %7328 = vmatpush1.bf16.msra.mxu0 %v5480
        %7329 = vmatprep.subr.bf16.mxu0 %v5497
        %7330 = vmatpush1.bf16.msra.mxu0 %v5496
        %7331 = vmatprep.subr.bf16.mxu0 %v5513
        %7332 = vmatpush1.bf16.msra.mxu0 %v5512
        %7333 = vmatprep.subr.bf16.mxu0 %v5529
        %7334 = vmatpush1.bf16.msra.mxu0 %v5528
        %7335 = vmatprep.subr.bf16.mxu0 %v5545
        %7336 = vmatpush1.bf16.msra.mxu0 %v5544
        %7337 = vmatprep.subr.bf16.mxu0 %v5561
        %7338 = vmatpush1.bf16.msra.mxu0 %v5560
        %7339 = vmatprep.subr.bf16.mxu0 %v5577
        %7340 = vmatpush1.bf16.msra.mxu0 %v5576
        %7341 = vmatprep.subr.bf16.mxu0 %v5593
        %7342 = vmatpush1.bf16.msra.mxu0 %v5592
        %7343 = vmatprep.subr.bf16.mxu0 %v5609
        %7344 = vmatpush1.bf16.msra.mxu0 %v5608
        %7345 = vmatprep.subr.bf16.mxu0 %v5625
        %7346 = vmatpush1.bf16.msra.mxu0 %v5624
        %7347 = vmatprep.subr.bf16.mxu0 %v5641
        %7348 = vmatpush1.bf16.msra.mxu0 %v5640
        %7349 = vmatprep.subr.bf16.mxu0 %v5657
        %7350 = vmatpush1.bf16.msra.mxu0 %v5656
        %7351 = vmatprep.subr.bf16.mxu0 %v5673
        %7352 = vmatpush1.bf16.msra.mxu0 %v5672
        %7353 = vmatprep.mubr.bf16.mxu0 %v561
        %7354 = vmatmul.mubr.bf16.gmra.mrb[0].mxu0 %v560
        %v7355 = vpop.f32.mrb[0].mxu0
        %v7356 = vadd.f32 %v7315, %v7355
        %v7357 = vpop.f32.mrb[0].mxu0
        %v7358 = vadd.f32 %v7317, %v7357
        %v7359 = vpop.f32.mrb[0].mxu0
        %v7360 = vpop.f32.mrb[0].mxu0
        %7361 = vdwg.mxu0
        %7362 = vmatprep.subr.bf16.mxu0 %v4667
        %7363 = vmatpush1.bf16.msra.mxu0 %v4666
        %7364 = vmatprep.subr.bf16.mxu0 %v4683
        %7365 = vmatpush1.bf16.msra.mxu0 %v4682
        %7366 = vmatprep.subr.bf16.mxu0 %v4699
        %7367 = vmatpush1.bf16.msra.mxu0 %v4698
        %7368 = vmatprep.subr.bf16.mxu0 %v4715
        %7369 = vmatpush1.bf16.msra.mxu0 %v4714
        %7370 = vmatprep.subr.bf16.mxu0 %v4731
        %7371 = vmatpush1.bf16.msra.mxu0 %v4730
        %7372 = vmatprep.subr.bf16.mxu0 %v4747
        %7373 = vmatpush1.bf16.msra.mxu0 %v4746
        %7374 = vmatprep.subr.bf16.mxu0 %v4763
        %7375 = vmatpush1.bf16.msra.mxu0 %v4762
        %7376 = vmatprep.subr.bf16.mxu0 %v4779
        %7377 = vmatpush1.bf16.msra.mxu0 %v4778
        %7378 = vmatprep.subr.bf16.mxu0 %v4795
        %7379 = vmatpush1.bf16.msra.mxu0 %v4794
        %7380 = vmatprep.subr.bf16.mxu0 %v4811
        %7381 = vmatpush1.bf16.msra.mxu0 %v4810
        %7382 = vmatprep.subr.bf16.mxu0 %v4827
        %7383 = vmatpush1.bf16.msra.mxu0 %v4826
        %7384 = vmatprep.subr.bf16.mxu0 %v4843
        %7385 = vmatpush1.bf16.msra.mxu0 %v4842
        %7386 = vmatprep.subr.bf16.mxu0 %v4859
        %7387 = vmatpush1.bf16.msra.mxu0 %v4858
        %7388 = vmatprep.subr.bf16.mxu0 %v4875
        %7389 = vmatpush1.bf16.msra.mxu0 %v4874
        %7390 = vmatprep.subr.bf16.mxu0 %v4891
        %7391 = vmatpush1.bf16.msra.mxu0 %v4890
        %7392 = vmatprep.subr.bf16.mxu0 %v4907
        %7393 = vmatpush1.bf16.msra.mxu0 %v4906
        %7394 = vmatprep.mubr.bf16.mxu0 %v555
        %7395 = vmatmul.mubr.bf16.gmra.mrb[0].mxu0 %v554
        %v7396 = vpop.f32.mrb[0].mxu0
        %v7397 = vadd.f32 0.0, %v7396
        %v7398 = vpop.f32.mrb[0].mxu0
        %v7399 = vadd.f32 0.0, %v7398
        %v7400 = vpop.f32.mrb[0].mxu0
        %v7401 = vpop.f32.mrb[0].mxu0
        %7402 = vdwg.mxu0
        %7403 = vmatprep.subr.bf16.mxu0 %v4923
        %7404 = vmatpush1.bf16.msra.mxu0 %v4922
        %7405 = vmatprep.subr.bf16.mxu0 %v4939
        %7406 = vmatpush1.bf16.msra.mxu0 %v4938
        %7407 = vmatprep.subr.bf16.mxu0 %v4955
        %7408 = vmatpush1.bf16.msra.mxu0 %v4954
        %7409 = vmatprep.subr.bf16.mxu0 %v4971
        %7410 = vmatpush1.bf16.msra.mxu0 %v4970
        %7411 = vmatprep.subr.bf16.mxu0 %v4987
        %7412 = vmatpush1.bf16.msra.mxu0 %v4986
        %7413 = vmatprep.subr.bf16.mxu0 %v5003
        %7414 = vmatpush1.bf16.msra.mxu0 %v5002
        %7415 = vmatprep.subr.bf16.mxu0 %v5019
        %7416 = vmatpush1.bf16.msra.mxu0 %v5018
        %7417 = vmatprep.subr.bf16.mxu0 %v5035
        %7418 = vmatpush1.bf16.msra.mxu0 %v5034
        %7419 = vmatprep.subr.bf16.mxu0 %v5051
        %7420 = vmatpush1.bf16.msra.mxu0 %v5050
        %7421 = vmatprep.subr.bf16.mxu0 %v5067
        %7422 = vmatpush1.bf16.msra.mxu0 %v5066
        %7423 = vmatprep.subr.bf16.mxu0 %v5083
        %7424 = vmatpush1.bf16.msra.mxu0 %v5082
        %7425 = vmatprep.subr.bf16.mxu0 %v5099
        %7426 = vmatpush1.bf16.msra.mxu0 %v5098
        %7427 = vmatprep.subr.bf16.mxu0 %v5115
        %7428 = vmatpush1.bf16.msra.mxu0 %v5114
        %7429 = vmatprep.subr.bf16.mxu0 %v5131
        %7430 = vmatpush1.bf16.msra.mxu0 %v5130
        %7431 = vmatprep.subr.bf16.mxu0 %v5147
        %7432 = vmatpush1.bf16.msra.mxu0 %v5146
        %7433 = vmatprep.subr.bf16.mxu0 %v5163
        %7434 = vmatpush1.bf16.msra.mxu0 %v5162
        %7435 = vmatprep.mubr.bf16.mxu0 %v557
        %7436 = vmatmul.mubr.bf16.gmra.mrb[0].mxu0 %v556
        %v7437 = vpop.f32.mrb[0].mxu0
        %v7438 = vadd.f32 %v7397, %v7437
        %v7439 = vpop.f32.mrb[0].mxu0
        %v7440 = vadd.f32 %v7399, %v7439
        %v7441 = vpop.f32.mrb[0].mxu0
        %v7442 = vpop.f32.mrb[0].mxu0
        %7443 = vdwg.mxu0
        %7444 = vmatprep.subr.bf16.mxu0 %v5179
        %7445 = vmatpush1.bf16.msra.mxu0 %v5178
        %7446 = vmatprep.subr.bf16.mxu0 %v5195
        %7447 = vmatpush1.bf16.msra.mxu0 %v5194
        %7448 = vmatprep.subr.bf16.mxu0 %v5211
        %7449 = vmatpush1.bf16.msra.mxu0 %v5210
        %7450 = vmatprep.subr.bf16.mxu0 %v5227
        %7451 = vmatpush1.bf16.msra.mxu0 %v5226
        %7452 = vmatprep.subr.bf16.mxu0 %v5243
        %7453 = vmatpush1.bf16.msra.mxu0 %v5242
        %7454 = vmatprep.subr.bf16.mxu0 %v5259
        %7455 = vmatpush1.bf16.msra.mxu0 %v5258
        %7456 = vmatprep.subr.bf16.mxu0 %v5275
        %7457 = vmatpush1.bf16.msra.mxu0 %v5274
        %7458 = vmatprep.subr.bf16.mxu0 %v5291
        %7459 = vmatpush1.bf16.msra.mxu0 %v5290
        %7460 = vmatprep.subr.bf16.mxu0 %v5307
        %7461 = vmatpush1.bf16.msra.mxu0 %v5306
        %7462 = vmatprep.subr.bf16.mxu0 %v5323
        %7463 = vmatpush1.bf16.msra.mxu0 %v5322
        %7464 = vmatprep.subr.bf16.mxu0 %v5339
        %7465 = vmatpush1.bf16.msra.mxu0 %v5338
        %7466 = vmatprep.subr.bf16.mxu0 %v5355
        %7467 = vmatpush1.bf16.msra.mxu0 %v5354
        %7468 = vmatprep.subr.bf16.mxu0 %v5371
        %7469 = vmatpush1.bf16.msra.mxu0 %v5370
        %7470 = vmatprep.subr.bf16.mxu0 %v5387
        %7471 = vmatpush1.bf16.msra.mxu0 %v5386
        %7472 = vmatprep.subr.bf16.mxu0 %v5403
        %7473 = vmatpush1.bf16.msra.mxu0 %v5402
        %7474 = vmatprep.subr.bf16.mxu0 %v5419
        %7475 = vmatpush1.bf16.msra.mxu0 %v5418
        %7476 = vmatprep.mubr.bf16.mxu0 %v559
        %7477 = vmatmul.mubr.bf16.gmra.mrb[0].mxu0 %v558
        %v7478 = vpop.f32.mrb[0].mxu0
        %v7479 = vadd.f32 %v7438, %v7478
        %v7480 = vpop.f32.mrb[0].mxu0
        %v7481 = vadd.f32 %v7440, %v7480
        %v7482 = vpop.f32.mrb[0].mxu0
        %v7483 = vpop.f32.mrb[0].mxu0
        %7484 = vdwg.mxu0
        %7485 = vmatprep.subr.bf16.mxu0 %v5435
        %7486 = vmatpush1.bf16.msra.mxu0 %v5434
        %7487 = vmatprep.subr.bf16.mxu0 %v5451
        %7488 = vmatpush1.bf16.msra.mxu0 %v5450
        %7489 = vmatprep.subr.bf16.mxu0 %v5467
        %7490 = vmatpush1.bf16.msra.mxu0 %v5466
        %7491 = vmatprep.subr.bf16.mxu0 %v5483
        %7492 = vmatpush1.bf16.msra.mxu0 %v5482
        %7493 = vmatprep.subr.bf16.mxu0 %v5499
        %7494 = vmatpush1.bf16.msra.mxu0 %v5498
        %7495 = vmatprep.subr.bf16.mxu0 %v5515
        %7496 = vmatpush1.bf16.msra.mxu0 %v5514
        %7497 = vmatprep.subr.bf16.mxu0 %v5531
        %7498 = vmatpush1.bf16.msra.mxu0 %v5530
        %7499 = vmatprep.subr.bf16.mxu0 %v5547
        %7500 = vmatpush1.bf16.msra.mxu0 %v5546
        %7501 = vmatprep.subr.bf16.mxu0 %v5563
        %7502 = vmatpush1.bf16.msra.mxu0 %v5562
        %7503 = vmatprep.subr.bf16.mxu0 %v5579
        %7504 = vmatpush1.bf16.msra.mxu0 %v5578
        %7505 = vmatprep.subr.bf16.mxu0 %v5595
        %7506 = vmatpush1.bf16.msra.mxu0 %v5594
        %7507 = vmatprep.subr.bf16.mxu0 %v5611
        %7508 = vmatpush1.bf16.msra.mxu0 %v5610
        %7509 = vmatprep.subr.bf16.mxu0 %v5627
        %7510 = vmatpush1.bf16.msra.mxu0 %v5626
        %7511 = vmatprep.subr.bf16.mxu0 %v5643
        %7512 = vmatpush1.bf16.msra.mxu0 %v5642
        %7513 = vmatprep.subr.bf16.mxu0 %v5659
        %7514 = vmatpush1.bf16.msra.mxu0 %v5658
        %7515 = vmatprep.subr.bf16.mxu0 %v5675
        %7516 = vmatpush1.bf16.msra.mxu0 %v5674
        %7517 = vmatprep.mubr.bf16.mxu0 %v561
        %7518 = vmatmul.mubr.bf16.gmra.mrb[0].mxu0 %v560
        %v7519 = vpop.f32.mrb[0].mxu0
        %v7520 = vadd.f32 %v7479, %v7519
        %v7521 = vpop.f32.mrb[0].mxu0
        %v7522 = vadd.f32 %v7481, %v7521
        %v7523 = vpop.f32.mrb[0].mxu0
        %v7524 = vpop.f32.mrb[0].mxu0
        %7525 = vdwg.mxu0
        %7526 = vmatprep.subr.bf16.mxu0 %v4669
        %7527 = vmatpush1.bf16.msra.mxu0 %v4668
        %7528 = vmatprep.subr.bf16.mxu0 %v4685
        %7529 = vmatpush1.bf16.msra.mxu0 %v4684
        %7530 = vmatprep.subr.bf16.mxu0 %v4701
        %7531 = vmatpush1.bf16.msra.mxu0 %v4700
        %7532 = vmatprep.subr.bf16.mxu0 %v4717
        %7533 = vmatpush1.bf16.msra.mxu0 %v4716
        %7534 = vmatprep.subr.bf16.mxu0 %v4733
        %7535 = vmatpush1.bf16.msra.mxu0 %v4732
        %7536 = vmatprep.subr.bf16.mxu0 %v4749
        %7537 = vmatpush1.bf16.msra.mxu0 %v4748
        %7538 = vmatprep.subr.bf16.mxu0 %v4765
        %7539 = vmatpush1.bf16.msra.mxu0 %v4764
        %7540 = vmatprep.subr.bf16.mxu0 %v4781
        %7541 = vmatpush1.bf16.msra.mxu0 %v4780
        %7542 = vmatprep.subr.bf16.mxu0 %v4797
        %7543 = vmatpush1.bf16.msra.mxu0 %v4796
        %7544 = vmatprep.subr.bf16.mxu0 %v4813
        %7545 = vmatpush1.bf16.msra.mxu0 %v4812
        %7546 = vmatprep.subr.bf16.mxu0 %v4829
        %7547 = vmatpush1.bf16.msra.mxu0 %v4828
        %7548 = vmatprep.subr.bf16.mxu0 %v4845
        %7549 = vmatpush1.bf16.msra.mxu0 %v4844
        %7550 = vmatprep.subr.bf16.mxu0 %v4861
        %7551 = vmatpush1.bf16.msra.mxu0 %v4860
        %7552 = vmatprep.subr.bf16.mxu0 %v4877
        %7553 = vmatpush1.bf16.msra.mxu0 %v4876
        %7554 = vmatprep.subr.bf16.mxu0 %v4893
        %7555 = vmatpush1.bf16.msra.mxu0 %v4892
        %7556 = vmatprep.subr.bf16.mxu0 %v4909
        %7557 = vmatpush1.bf16.msra.mxu0 %v4908
        %7558 = vmatprep.mubr.bf16.mxu0 %v555
        %7559 = vmatmul.mubr.bf16.gmra.mrb[0].mxu0 %v554
        %v7560 = vpop.f32.mrb[0].mxu0
        %v7561 = vadd.f32 0.0, %v7560
        %v7562 = vpop.f32.mrb[0].mxu0
        %v7563 = vadd.f32 0.0, %v7562
        %v7564 = vpop.f32.mrb[0].mxu0
        %v7565 = vpop.f32.mrb[0].mxu0
        %7566 = vdwg.mxu0
        %7567 = vmatprep.subr.bf16.mxu0 %v4925
        %7568 = vmatpush1.bf16.msra.mxu0 %v4924
        %7569 = vmatprep.subr.bf16.mxu0 %v4941
        %7570 = vmatpush1.bf16.msra.mxu0 %v4940
        %7571 = vmatprep.subr.bf16.mxu0 %v4957
        %7572 = vmatpush1.bf16.msra.mxu0 %v4956
        %7573 = vmatprep.subr.bf16.mxu0 %v4973
        %7574 = vmatpush1.bf16.msra.mxu0 %v4972
        %7575 = vmatprep.subr.bf16.mxu0 %v4989
        %7576 = vmatpush1.bf16.msra.mxu0 %v4988
        %7577 = vmatprep.subr.bf16.mxu0 %v5005
        %7578 = vmatpush1.bf16.msra.mxu0 %v5004
        %7579 = vmatprep.subr.bf16.mxu0 %v5021
        %7580 = vmatpush1.bf16.msra.mxu0 %v5020
        %7581 = vmatprep.subr.bf16.mxu0 %v5037
        %7582 = vmatpush1.bf16.msra.mxu0 %v5036
        %7583 = vmatprep.subr.bf16.mxu0 %v5053
        %7584 = vmatpush1.bf16.msra.mxu0 %v5052
        %7585 = vmatprep.subr.bf16.mxu0 %v5069
        %7586 = vmatpush1.bf16.msra.mxu0 %v5068
        %7587 = vmatprep.subr.bf16.mxu0 %v5085
        %7588 = vmatpush1.bf16.msra.mxu0 %v5084
        %7589 = vmatprep.subr.bf16.mxu0 %v5101
        %7590 = vmatpush1.bf16.msra.mxu0 %v5100
        %7591 = vmatprep.subr.bf16.mxu0 %v5117
        %7592 = vmatpush1.bf16.msra.mxu0 %v5116
        %7593 = vmatprep.subr.bf16.mxu0 %v5133
        %7594 = vmatpush1.bf16.msra.mxu0 %v5132
        %7595 = vmatprep.subr.bf16.mxu0 %v5149
        %7596 = vmatpush1.bf16.msra.mxu0 %v5148
        %7597 = vmatprep.subr.bf16.mxu0 %v5165
        %7598 = vmatpush1.bf16.msra.mxu0 %v5164
        %7599 = vmatprep.mubr.bf16.mxu0 %v557
        %7600 = vmatmul.mubr.bf16.gmra.mrb[0].mxu0 %v556
        %v7601 = vpop.f32.mrb[0].mxu0
        %v7602 = vadd.f32 %v7561, %v7601
        %v7603 = vpop.f32.mrb[0].mxu0
        %v7604 = vadd.f32 %v7563, %v7603
        %v7605 = vpop.f32.mrb[0].mxu0
        %v7606 = vpop.f32.mrb[0].mxu0
        %7607 = vdwg.mxu0
        %7608 = vmatprep.subr.bf16.mxu0 %v5181
        %7609 = vmatpush1.bf16.msra.mxu0 %v5180
        %7610 = vmatprep.subr.bf16.mxu0 %v5197
        %7611 = vmatpush1.bf16.msra.mxu0 %v5196
        %7612 = vmatprep.subr.bf16.mxu0 %v5213
        %7613 = vmatpush1.bf16.msra.mxu0 %v5212
        %7614 = vmatprep.subr.bf16.mxu0 %v5229
        %7615 = vmatpush1.bf16.msra.mxu0 %v5228
        %7616 = vmatprep.subr.bf16.mxu0 %v5245
        %7617 = vmatpush1.bf16.msra.mxu0 %v5244
        %7618 = vmatprep.subr.bf16.mxu0 %v5261
        %7619 = vmatpush1.bf16.msra.mxu0 %v5260
        %7620 = vmatprep.subr.bf16.mxu0 %v5277
        %7621 = vmatpush1.bf16.msra.mxu0 %v5276
        %7622 = vmatprep.subr.bf16.mxu0 %v5293
        %7623 = vmatpush1.bf16.msra.mxu0 %v5292
        %7624 = vmatprep.subr.bf16.mxu0 %v5309
        %7625 = vmatpush1.bf16.msra.mxu0 %v5308
        %7626 = vmatprep.subr.bf16.mxu0 %v5325
        %7627 = vmatpush1.bf16.msra.mxu0 %v5324
        %7628 = vmatprep.subr.bf16.mxu0 %v5341
        %7629 = vmatpush1.bf16.msra.mxu0 %v5340
        %7630 = vmatprep.subr.bf16.mxu0 %v5357
        %7631 = vmatpush1.bf16.msra.mxu0 %v5356
        %7632 = vmatprep.subr.bf16.mxu0 %v5373
        %7633 = vmatpush1.bf16.msra.mxu0 %v5372
        %7634 = vmatprep.subr.bf16.mxu0 %v5389
        %7635 = vmatpush1.bf16.msra.mxu0 %v5388
        %7636 = vmatprep.subr.bf16.mxu0 %v5405
        %7637 = vmatpush1.bf16.msra.mxu0 %v5404
        %7638 = vmatprep.subr.bf16.mxu0 %v5421
        %7639 = vmatpush1.bf16.msra.mxu0 %v5420
        %7640 = vmatprep.mubr.bf16.mxu0 %v559
        %7641 = vmatmul.mubr.bf16.gmra.mrb[0].mxu0 %v558
        %v7642 = vpop.f32.mrb[0].mxu0
        %v7643 = vadd.f32 %v7602, %v7642
        %v7644 = vpop.f32.mrb[0].mxu0
        %v7645 = vadd.f32 %v7604, %v7644
        %v7646 = vpop.f32.mrb[0].mxu0
        %v7647 = vpop.f32.mrb[0].mxu0
        %7648 = vdwg.mxu0
        %7649 = vmatprep.subr.bf16.mxu0 %v5437
        %7650 = vmatpush1.bf16.msra.mxu0 %v5436
        %7651 = vmatprep.subr.bf16.mxu0 %v5453
        %7652 = vmatpush1.bf16.msra.mxu0 %v5452
        %7653 = vmatprep.subr.bf16.mxu0 %v5469
        %7654 = vmatpush1.bf16.msra.mxu0 %v5468
        %7655 = vmatprep.subr.bf16.mxu0 %v5485
        %7656 = vmatpush1.bf16.msra.mxu0 %v5484
        %7657 = vmatprep.subr.bf16.mxu0 %v5501
        %7658 = vmatpush1.bf16.msra.mxu0 %v5500
        %7659 = vmatprep.subr.bf16.mxu0 %v5517
        %7660 = vmatpush1.bf16.msra.mxu0 %v5516
        %7661 = vmatprep.subr.bf16.mxu0 %v5533
        %7662 = vmatpush1.bf16.msra.mxu0 %v5532
        %7663 = vmatprep.subr.bf16.mxu0 %v5549
        %7664 = vmatpush1.bf16.msra.mxu0 %v5548
        %7665 = vmatprep.subr.bf16.mxu0 %v5565
        %7666 = vmatpush1.bf16.msra.mxu0 %v5564
        %7667 = vmatprep.subr.bf16.mxu0 %v5581
        %7668 = vmatpush1.bf16.msra.mxu0 %v5580
        %7669 = vmatprep.subr.bf16.mxu0 %v5597
        %7670 = vmatpush1.bf16.msra.mxu0 %v5596
        %7671 = vmatprep.subr.bf16.mxu0 %v5613
        %7672 = vmatpush1.bf16.msra.mxu0 %v5612
        %7673 = vmatprep.subr.bf16.mxu0 %v5629
        %7674 = vmatpush1.bf16.msra.mxu0 %v5628
        %7675 = vmatprep.subr.bf16.mxu0 %v5645
        %7676 = vmatpush1.bf16.msra.mxu0 %v5644
        %7677 = vmatprep.subr.bf16.mxu0 %v5661
        %7678 = vmatpush1.bf16.msra.mxu0 %v5660
        %7679 = vmatprep.subr.bf16.mxu0 %v5677
        %7680 = vmatpush1.bf16.msra.mxu0 %v5676
        %7681 = vmatprep.mubr.bf16.mxu0 %v561
        %7682 = vmatmul.mubr.bf16.gmra.mrb[0].mxu0 %v560
        %v7683 = vpop.f32.mrb[0].mxu0
        %v7684 = vadd.f32 %v7643, %v7683
        %v7685 = vpop.f32.mrb[0].mxu0
        %v7686 = vadd.f32 %v7645, %v7685
        %v7687 = vpop.f32.mrb[0].mxu0
        %v7688 = vpop.f32.mrb[0].mxu0
        %7689 = vdwg.mxu0
        %7690 = vmatprep.subr.bf16.mxu0 %v4671
        %7691 = vmatpush1.bf16.msra.mxu0 %v4670
        %7692 = vmatprep.subr.bf16.mxu0 %v4687
        %7693 = vmatpush1.bf16.msra.mxu0 %v4686
        %7694 = vmatprep.subr.bf16.mxu0 %v4703
        %7695 = vmatpush1.bf16.msra.mxu0 %v4702
        %7696 = vmatprep.subr.bf16.mxu0 %v4719
        %7697 = vmatpush1.bf16.msra.mxu0 %v4718
        %7698 = vmatprep.subr.bf16.mxu0 %v4735
        %7699 = vmatpush1.bf16.msra.mxu0 %v4734
        %7700 = vmatprep.subr.bf16.mxu0 %v4751
        %7701 = vmatpush1.bf16.msra.mxu0 %v4750
        %7702 = vmatprep.subr.bf16.mxu0 %v4767
        %7703 = vmatpush1.bf16.msra.mxu0 %v4766
        %7704 = vmatprep.subr.bf16.mxu0 %v4783
        %7705 = vmatpush1.bf16.msra.mxu0 %v4782
        %7706 = vmatprep.subr.bf16.mxu0 %v4799
        %7707 = vmatpush1.bf16.msra.mxu0 %v4798
        %7708 = vmatprep.subr.bf16.mxu0 %v4815
        %7709 = vmatpush1.bf16.msra.mxu0 %v4814
        %7710 = vmatprep.subr.bf16.mxu0 %v4831
        %7711 = vmatpush1.bf16.msra.mxu0 %v4830
        %7712 = vmatprep.subr.bf16.mxu0 %v4847
        %7713 = vmatpush1.bf16.msra.mxu0 %v4846
        %7714 = vmatprep.subr.bf16.mxu0 %v4863
        %7715 = vmatpush1.bf16.msra.mxu0 %v4862
        %7716 = vmatprep.subr.bf16.mxu0 %v4879
        %7717 = vmatpush1.bf16.msra.mxu0 %v4878
        %7718 = vmatprep.subr.bf16.mxu0 %v4895
        %7719 = vmatpush1.bf16.msra.mxu0 %v4894
        %7720 = vmatprep.subr.bf16.mxu0 %v4911
        %7721 = vmatpush1.bf16.msra.mxu0 %v4910
        %7722 = vmatprep.mubr.bf16.mxu0 %v555
        %7723 = vmatmul.mubr.bf16.gmra.mrb[0].mxu0 %v554
        %v7724 = vpop.f32.mrb[0].mxu0
        %v7725 = vadd.f32 0.0, %v7724
        %v7726 = vpop.f32.mrb[0].mxu0
        %v7727 = vadd.f32 0.0, %v7726
        %v7728 = vpop.f32.mrb[0].mxu0
        %v7729 = vpop.f32.mrb[0].mxu0
        %7730 = vdwg.mxu0
        %7731 = vmatprep.subr.bf16.mxu0 %v4927
        %7732 = vmatpush1.bf16.msra.mxu0 %v4926
        %7733 = vmatprep.subr.bf16.mxu0 %v4943
        %7734 = vmatpush1.bf16.msra.mxu0 %v4942
        %7735 = vmatprep.subr.bf16.mxu0 %v4959
        %7736 = vmatpush1.bf16.msra.mxu0 %v4958
        %7737 = vmatprep.subr.bf16.mxu0 %v4975
        %7738 = vmatpush1.bf16.msra.mxu0 %v4974
        %7739 = vmatprep.subr.bf16.mxu0 %v4991
        %7740 = vmatpush1.bf16.msra.mxu0 %v4990
        %7741 = vmatprep.subr.bf16.mxu0 %v5007
        %7742 = vmatpush1.bf16.msra.mxu0 %v5006
        %7743 = vmatprep.subr.bf16.mxu0 %v5023
        %7744 = vmatpush1.bf16.msra.mxu0 %v5022
        %7745 = vmatprep.subr.bf16.mxu0 %v5039
        %7746 = vmatpush1.bf16.msra.mxu0 %v5038
        %7747 = vmatprep.subr.bf16.mxu0 %v5055
        %7748 = vmatpush1.bf16.msra.mxu0 %v5054
        %7749 = vmatprep.subr.bf16.mxu0 %v5071
        %7750 = vmatpush1.bf16.msra.mxu0 %v5070
        %7751 = vmatprep.subr.bf16.mxu0 %v5087
        %7752 = vmatpush1.bf16.msra.mxu0 %v5086
        %7753 = vmatprep.subr.bf16.mxu0 %v5103
        %7754 = vmatpush1.bf16.msra.mxu0 %v5102
        %7755 = vmatprep.subr.bf16.mxu0 %v5119
        %7756 = vmatpush1.bf16.msra.mxu0 %v5118
        %7757 = vmatprep.subr.bf16.mxu0 %v5135
        %7758 = vmatpush1.bf16.msra.mxu0 %v5134
        %7759 = vmatprep.subr.bf16.mxu0 %v5151
        %7760 = vmatpush1.bf16.msra.mxu0 %v5150
        %7761 = vmatprep.subr.bf16.mxu0 %v5167
        %7762 = vmatpush1.bf16.msra.mxu0 %v5166
        %7763 = vmatprep.mubr.bf16.mxu0 %v557
        %7764 = vmatmul.mubr.bf16.gmra.mrb[0].mxu0 %v556
        %v7765 = vpop.f32.mrb[0].mxu0
        %v7766 = vadd.f32 %v7725, %v7765
        %v7767 = vpop.f32.mrb[0].mxu0
        %v7768 = vadd.f32 %v7727, %v7767
        %v7769 = vpop.f32.mrb[0].mxu0
        %v7770 = vpop.f32.mrb[0].mxu0
        %7771 = vdwg.mxu0
        %7772 = vmatprep.subr.bf16.mxu0 %v5183
        %7773 = vmatpush1.bf16.msra.mxu0 %v5182
        %7774 = vmatprep.subr.bf16.mxu0 %v5199
        %7775 = vmatpush1.bf16.msra.mxu0 %v5198
        %7776 = vmatprep.subr.bf16.mxu0 %v5215
        %7777 = vmatpush1.bf16.msra.mxu0 %v5214
        %7778 = vmatprep.subr.bf16.mxu0 %v5231
        %7779 = vmatpush1.bf16.msra.mxu0 %v5230
        %7780 = vmatprep.subr.bf16.mxu0 %v5247
        %7781 = vmatpush1.bf16.msra.mxu0 %v5246
        %7782 = vmatprep.subr.bf16.mxu0 %v5263
        %7783 = vmatpush1.bf16.msra.mxu0 %v5262
        %7784 = vmatprep.subr.bf16.mxu0 %v5279
        %7785 = vmatpush1.bf16.msra.mxu0 %v5278
        %7786 = vmatprep.subr.bf16.mxu0 %v5295
        %7787 = vmatpush1.bf16.msra.mxu0 %v5294
        %7788 = vmatprep.subr.bf16.mxu0 %v5311
        %7789 = vmatpush1.bf16.msra.mxu0 %v5310
        %7790 = vmatprep.subr.bf16.mxu0 %v5327
        %7791 = vmatpush1.bf16.msra.mxu0 %v5326
        %7792 = vmatprep.subr.bf16.mxu0 %v5343
        %7793 = vmatpush1.bf16.msra.mxu0 %v5342
        %7794 = vmatprep.subr.bf16.mxu0 %v5359
        %7795 = vmatpush1.bf16.msra.mxu0 %v5358
        %7796 = vmatprep.subr.bf16.mxu0 %v5375
        %7797 = vmatpush1.bf16.msra.mxu0 %v5374
        %7798 = vmatprep.subr.bf16.mxu0 %v5391
        %7799 = vmatpush1.bf16.msra.mxu0 %v5390
        %7800 = vmatprep.subr.bf16.mxu0 %v5407
        %7801 = vmatpush1.bf16.msra.mxu0 %v5406
        %7802 = vmatprep.subr.bf16.mxu0 %v5423
        %7803 = vmatpush1.bf16.msra.mxu0 %v5422
        %7804 = vmatprep.mubr.bf16.mxu0 %v559
        %7805 = vmatmul.mubr.bf16.gmra.mrb[0].mxu0 %v558
        %v7806 = vpop.f32.mrb[0].mxu0
        %v7807 = vadd.f32 %v7766, %v7806
        %v7808 = vpop.f32.mrb[0].mxu0
        %v7809 = vadd.f32 %v7768, %v7808
        %v7810 = vpop.f32.mrb[0].mxu0
        %v7811 = vpop.f32.mrb[0].mxu0
        %7812 = vdwg.mxu0
        %7813 = vmatprep.subr.bf16.mxu0 %v5439
        %7814 = vmatpush1.bf16.msra.mxu0 %v5438
        %7815 = vmatprep.subr.bf16.mxu0 %v5455
        %7816 = vmatpush1.bf16.msra.mxu0 %v5454
        %7817 = vmatprep.subr.bf16.mxu0 %v5471
        %7818 = vmatpush1.bf16.msra.mxu0 %v5470
        %7819 = vmatprep.subr.bf16.mxu0 %v5487
        %7820 = vmatpush1.bf16.msra.mxu0 %v5486
        %7821 = vmatprep.subr.bf16.mxu0 %v5503
        %7822 = vmatpush1.bf16.msra.mxu0 %v5502
        %7823 = vmatprep.subr.bf16.mxu0 %v5519
        %7824 = vmatpush1.bf16.msra.mxu0 %v5518
        %7825 = vmatprep.subr.bf16.mxu0 %v5535
        %7826 = vmatpush1.bf16.msra.mxu0 %v5534
        %7827 = vmatprep.subr.bf16.mxu0 %v5551
        %7828 = vmatpush1.bf16.msra.mxu0 %v5550
        %7829 = vmatprep.subr.bf16.mxu0 %v5567
        %7830 = vmatpush1.bf16.msra.mxu0 %v5566
        %7831 = vmatprep.subr.bf16.mxu0 %v5583
        %7832 = vmatpush1.bf16.msra.mxu0 %v5582
        %7833 = vmatprep.subr.bf16.mxu0 %v5599
        %7834 = vmatpush1.bf16.msra.mxu0 %v5598
        %7835 = vmatprep.subr.bf16.mxu0 %v5615
        %7836 = vmatpush1.bf16.msra.mxu0 %v5614
        %7837 = vmatprep.subr.bf16.mxu0 %v5631
        %7838 = vmatpush1.bf16.msra.mxu0 %v5630
        %7839 = vmatprep.subr.bf16.mxu0 %v5647
        %7840 = vmatpush1.bf16.msra.mxu0 %v5646
        %7841 = vmatprep.subr.bf16.mxu0 %v5663
        %7842 = vmatpush1.bf16.msra.mxu0 %v5662
        %7843 = vmatprep.subr.bf16.mxu0 %v5679
        %7844 = vmatpush1.bf16.msra.mxu0 %v5678
        %7845 = vmatprep.mubr.bf16.mxu0 %v561
        %7846 = vmatmul.mubr.bf16.gmra.mrb[0].mxu0 %v560
        %v7847 = vpop.f32.mrb[0].mxu0
        %v7848 = vadd.f32 %v7807, %v7847
        %v7849 = vpop.f32.mrb[0].mxu0
        %v7850 = vadd.f32 %v7809, %v7849
        %v7851 = vpop.f32.mrb[0].mxu0
        %v7852 = vpop.f32.mrb[0].mxu0
        %7853 = vdwg.mxu0
        %7854 = vmatprep.subr.bf16.mxu0 %v4673
        %7855 = vmatpush1.bf16.msra.mxu0 %v4672
        %7856 = vmatprep.subr.bf16.mxu0 %v4689
        %7857 = vmatpush1.bf16.msra.mxu0 %v4688
        %7858 = vmatprep.subr.bf16.mxu0 %v4705
        %7859 = vmatpush1.bf16.msra.mxu0 %v4704
        %7860 = vmatprep.subr.bf16.mxu0 %v4721
        %7861 = vmatpush1.bf16.msra.mxu0 %v4720
        %7862 = vmatprep.subr.bf16.mxu0 %v4737
        %7863 = vmatpush1.bf16.msra.mxu0 %v4736
        %7864 = vmatprep.subr.bf16.mxu0 %v4753
        %7865 = vmatpush1.bf16.msra.mxu0 %v4752
        %7866 = vmatprep.subr.bf16.mxu0 %v4769
        %7867 = vmatpush1.bf16.msra.mxu0 %v4768
        %7868 = vmatprep.subr.bf16.mxu0 %v4785
        %7869 = vmatpush1.bf16.msra.mxu0 %v4784
        %7870 = vmatprep.subr.bf16.mxu0 %v4801
        %7871 = vmatpush1.bf16.msra.mxu0 %v4800
        %7872 = vmatprep.subr.bf16.mxu0 %v4817
        %7873 = vmatpush1.bf16.msra.mxu0 %v4816
        %7874 = vmatprep.subr.bf16.mxu0 %v4833
        %7875 = vmatpush1.bf16.msra.mxu0 %v4832
        %7876 = vmatprep.subr.bf16.mxu0 %v4849
        %7877 = vmatpush1.bf16.msra.mxu0 %v4848
        %7878 = vmatprep.subr.bf16.mxu0 %v4865
        %7879 = vmatpush1.bf16.msra.mxu0 %v4864
        %7880 = vmatprep.subr.bf16.mxu0 %v4881
        %7881 = vmatpush1.bf16.msra.mxu0 %v4880
        %7882 = vmatprep.subr.bf16.mxu0 %v4897
        %7883 = vmatpush1.bf16.msra.mxu0 %v4896
        %7884 = vmatprep.subr.bf16.mxu0 %v4913
        %7885 = vmatpush1.bf16.msra.mxu0 %v4912
        %7886 = vmatprep.mubr.bf16.mxu0 %v555
        %7887 = vmatmul.mubr.bf16.gmra.mrb[0].mxu0 %v554
        %v7888 = vpop.f32.mrb[0].mxu0
        %v7889 = vadd.f32 0.0, %v7888
        %v7890 = vpop.f32.mrb[0].mxu0
        %v7891 = vadd.f32 0.0, %v7890
        %v7892 = vpop.f32.mrb[0].mxu0
        %v7893 = vpop.f32.mrb[0].mxu0
        %7894 = vdwg.mxu0
        %7895 = vmatprep.subr.bf16.mxu0 %v4929
        %7896 = vmatpush1.bf16.msra.mxu0 %v4928
        %7897 = vmatprep.subr.bf16.mxu0 %v4945
        %7898 = vmatpush1.bf16.msra.mxu0 %v4944
        %7899 = vmatprep.subr.bf16.mxu0 %v4961
        %7900 = vmatpush1.bf16.msra.mxu0 %v4960
        %7901 = vmatprep.subr.bf16.mxu0 %v4977
        %7902 = vmatpush1.bf16.msra.mxu0 %v4976
        %7903 = vmatprep.subr.bf16.mxu0 %v4993
        %7904 = vmatpush1.bf16.msra.mxu0 %v4992
        %7905 = vmatprep.subr.bf16.mxu0 %v5009
        %7906 = vmatpush1.bf16.msra.mxu0 %v5008
        %7907 = vmatprep.subr.bf16.mxu0 %v5025
        %7908 = vmatpush1.bf16.msra.mxu0 %v5024
        %7909 = vmatprep.subr.bf16.mxu0 %v5041
        %7910 = vmatpush1.bf16.msra.mxu0 %v5040
        %7911 = vmatprep.subr.bf16.mxu0 %v5057
        %7912 = vmatpush1.bf16.msra.mxu0 %v5056
        %7913 = vmatprep.subr.bf16.mxu0 %v5073
        %7914 = vmatpush1.bf16.msra.mxu0 %v5072
        %7915 = vmatprep.subr.bf16.mxu0 %v5089
        %7916 = vmatpush1.bf16.msra.mxu0 %v5088
        %7917 = vmatprep.subr.bf16.mxu0 %v5105
        %7918 = vmatpush1.bf16.msra.mxu0 %v5104
        %7919 = vmatprep.subr.bf16.mxu0 %v5121
        %7920 = vmatpush1.bf16.msra.mxu0 %v5120
        %7921 = vmatprep.subr.bf16.mxu0 %v5137
        %7922 = vmatpush1.bf16.msra.mxu0 %v5136
        %7923 = vmatprep.subr.bf16.mxu0 %v5153
        %7924 = vmatpush1.bf16.msra.mxu0 %v5152
        %7925 = vmatprep.subr.bf16.mxu0 %v5169
        %7926 = vmatpush1.bf16.msra.mxu0 %v5168
        %7927 = vmatprep.mubr.bf16.mxu0 %v557
        %7928 = vmatmul.mubr.bf16.gmra.mrb[0].mxu0 %v556
        %v7929 = vpop.f32.mrb[0].mxu0
        %v7930 = vadd.f32 %v7889, %v7929
        %v7931 = vpop.f32.mrb[0].mxu0
        %v7932 = vadd.f32 %v7891, %v7931
        %v7933 = vpop.f32.mrb[0].mxu0
        %v7934 = vpop.f32.mrb[0].mxu0
        %7935 = vdwg.mxu0
        %7936 = vmatprep.subr.bf16.mxu0 %v5185
        %7937 = vmatpush1.bf16.msra.mxu0 %v5184
        %7938 = vmatprep.subr.bf16.mxu0 %v5201
        %7939 = vmatpush1.bf16.msra.mxu0 %v5200
        %7940 = vmatprep.subr.bf16.mxu0 %v5217
        %7941 = vmatpush1.bf16.msra.mxu0 %v5216
        %7942 = vmatprep.subr.bf16.mxu0 %v5233
        %7943 = vmatpush1.bf16.msra.mxu0 %v5232
        %7944 = vmatprep.subr.bf16.mxu0 %v5249
        %7945 = vmatpush1.bf16.msra.mxu0 %v5248
        %7946 = vmatprep.subr.bf16.mxu0 %v5265
        %7947 = vmatpush1.bf16.msra.mxu0 %v5264
        %7948 = vmatprep.subr.bf16.mxu0 %v5281
        %7949 = vmatpush1.bf16.msra.mxu0 %v5280
        %7950 = vmatprep.subr.bf16.mxu0 %v5297
        %7951 = vmatpush1.bf16.msra.mxu0 %v5296
        %7952 = vmatprep.subr.bf16.mxu0 %v5313
        %7953 = vmatpush1.bf16.msra.mxu0 %v5312
        %7954 = vmatprep.subr.bf16.mxu0 %v5329
        %7955 = vmatpush1.bf16.msra.mxu0 %v5328
        %7956 = vmatprep.subr.bf16.mxu0 %v5345
        %7957 = vmatpush1.bf16.msra.mxu0 %v5344
        %7958 = vmatprep.subr.bf16.mxu0 %v5361
        %7959 = vmatpush1.bf16.msra.mxu0 %v5360
        %7960 = vmatprep.subr.bf16.mxu0 %v5377
        %7961 = vmatpush1.bf16.msra.mxu0 %v5376
        %7962 = vmatprep.subr.bf16.mxu0 %v5393
        %7963 = vmatpush1.bf16.msra.mxu0 %v5392
        %7964 = vmatprep.subr.bf16.mxu0 %v5409
        %7965 = vmatpush1.bf16.msra.mxu0 %v5408
        %7966 = vmatprep.subr.bf16.mxu0 %v5425
        %7967 = vmatpush1.bf16.msra.mxu0 %v5424
        %7968 = vmatprep.mubr.bf16.mxu0 %v559
        %7969 = vmatmul.mubr.bf16.gmra.mrb[0].mxu0 %v558
        %v7970 = vpop.f32.mrb[0].mxu0
        %v7971 = vadd.f32 %v7930, %v7970
        %v7972 = vpop.f32.mrb[0].mxu0
        %v7973 = vadd.f32 %v7932, %v7972
        %v7974 = vpop.f32.mrb[0].mxu0
        %v7975 = vpop.f32.mrb[0].mxu0
        %7976 = vdwg.mxu0
        %7977 = vmatprep.subr.bf16.mxu0 %v5441
        %7978 = vmatpush1.bf16.msra.mxu0 %v5440
        %7979 = vmatprep.subr.bf16.mxu0 %v5457
        %7980 = vmatpush1.bf16.msra.mxu0 %v5456
        %7981 = vmatprep.subr.bf16.mxu0 %v5473
        %7982 = vmatpush1.bf16.msra.mxu0 %v5472
        %7983 = vmatprep.subr.bf16.mxu0 %v5489
        %7984 = vmatpush1.bf16.msra.mxu0 %v5488
        %7985 = vmatprep.subr.bf16.mxu0 %v5505
        %7986 = vmatpush1.bf16.msra.mxu0 %v5504
        %7987 = vmatprep.subr.bf16.mxu0 %v5521
        %7988 = vmatpush1.bf16.msra.mxu0 %v5520
        %7989 = vmatprep.subr.bf16.mxu0 %v5537
        %7990 = vmatpush1.bf16.msra.mxu0 %v5536
        %7991 = vmatprep.subr.bf16.mxu0 %v5553
        %7992 = vmatpush1.bf16.msra.mxu0 %v5552
        %7993 = vmatprep.subr.bf16.mxu0 %v5569
        %7994 = vmatpush1.bf16.msra.mxu0 %v5568
        %7995 = vmatprep.subr.bf16.mxu0 %v5585
        %7996 = vmatpush1.bf16.msra.mxu0 %v5584
        %7997 = vmatprep.subr.bf16.mxu0 %v5601
        %7998 = vmatpush1.bf16.msra.mxu0 %v5600
        %7999 = vmatprep.subr.bf16.mxu0 %v5617
        %8000 = vmatpush1.bf16.msra.mxu0 %v5616
        %8001 = vmatprep.subr.bf16.mxu0 %v5633
        %8002 = vmatpush1.bf16.msra.mxu0 %v5632
        %8003 = vmatprep.subr.bf16.mxu0 %v5649
        %8004 = vmatpush1.bf16.msra.mxu0 %v5648
        %8005 = vmatprep.subr.bf16.mxu0 %v5665
        %8006 = vmatpush1.bf16.msra.mxu0 %v5664
        %8007 = vmatprep.subr.bf16.mxu0 %v5681
        %8008 = vmatpush1.bf16.msra.mxu0 %v5680
        %8009 = vmatprep.mubr.bf16.mxu0 %v561
        %8010 = vmatmul.mubr.bf16.gmra.mrb[0].mxu0 %v560
        %v8011 = vpop.f32.mrb[0].mxu0
        %v8012 = vadd.f32 %v7971, %v8011
        %v8013 = vpop.f32.mrb[0].mxu0
        %v8014 = vadd.f32 %v7973, %v8013
        %v8015 = vpop.f32.mrb[0].mxu0
        %v8016 = vpop.f32.mrb[0].mxu0
        %8017 = vdwg.mxu0
        %v8018 = vadd.f32 %v530, %v6864
        %v8019 = vadd.f32 %v531, %v6866
        %v8020 = vadd.f32 %v532, %v7028
        %v8021 = vadd.f32 %v533, %v7030
        %v8022 = vadd.f32 %v534, %v7192
        %v8023 = vadd.f32 %v535, %v7194
        %v8024 = vadd.f32 %v536, %v7356
        %v8025 = vadd.f32 %v537, %v7358
        %v8026 = vadd.f32 %v538, %v7520
        %v8027 = vadd.f32 %v539, %v7522
        %v8028 = vadd.f32 %v540, %v7684
        %v8029 = vadd.f32 %v541, %v7686
        %v8030 = vadd.f32 %v542, %v7848
        %v8031 = vadd.f32 %v543, %v7850
        %v8032 = vadd.f32 %v544, %v8012
        %v8033 = vadd.f32 %v545, %v8014
        %8034 = vst [vmem:[#allocation2] sm:$0xff] %v8018
        %8035 = vst [vmem:[#allocation2 + $0x8] sm:$0xff] %v8019
        %8036 = vst [vmem:[#allocation2 + $0x10] sm:$0xff] %v8020
        %8037 = vst [vmem:[#allocation2 + $0x18] sm:$0xff] %v8021
        %8038 = vst [vmem:[#allocation2 + $0x20] sm:$0xff] %v8022
        %8039 = vst [vmem:[#allocation2 + $0x28] sm:$0xff] %v8023
        %8040 = vst [vmem:[#allocation2 + $0x30] sm:$0xff] %v8024
        %8041 = vst [vmem:[#allocation2 + $0x38] sm:$0xff] %v8025
        %8042 = vst [vmem:[#allocation2 + $0x40] sm:$0xff] %v8026
        %8043 = vst [vmem:[#allocation2 + $0x48] sm:$0xff] %v8027
        %8044 = vst [vmem:[#allocation2 + $0x50] sm:$0xff] %v8028
        %8045 = vst [vmem:[#allocation2 + $0x58] sm:$0xff] %v8029
        %8046 = vst [vmem:[#allocation2 + $0x60] sm:$0xff] %v8030
        %8047 = vst [vmem:[#allocation2 + $0x68] sm:$0xff] %v8031
        %8048 = vst [vmem:[#allocation2 + $0x70] sm:$0xff] %v8032
        %8049 = vst [vmem:[#allocation2 + $0x78] sm:$0xff] %v8033
        %p8050 = scmp.eq.s32.totalorder %s30, 3
        // Predicated region
        $region81: #{discriminator_forward.1} parent=51 // pred_check
          %p8051 = pneg %p8050
        $region82: #{discriminator_forward.1} parent=51 // pred_check_branch
          %8053 = sbr.rel (%p8051) target = $region84
        $region83: #{discriminator_forward.1} parent=51 // pred_region
          %s8054 = smul.u32 4, 256
          %s8055 = smul.u32 %s8054, 8
          %s8056 = sshll.u32 %s8055, 4
          %8057 = dma.done [#allocation6], %s8056
          %s8058 = scalar_lea.sflag [#allocation6], 1
          %s8059 = smul.u32 4, 128
          %s8060 = smul.u32 %s8059, 4
          %s8061 = sshll.u32 %s8060, 4
          %8062 = dma.done %s8058, %s8061
          %s8063 = scalar_lea.sflag [#allocation6], 2
          %s8064 = smul.u32 4, 64
          %s8065 = smul.u32 %s8064, 2
          %s8066 = sshll.u32 %s8065, 4
          %8067 = dma.done %s8063, %s8066
          %v8068 = vld [vmem:[#allocation2] sm:$0xff]
          %v8069 = vld [vmem:[#allocation2 + $0x8] sm:$0xff]
          %v8070 = vld [vmem:[#allocation2 + $0x10] sm:$0xff]
          %v8071 = vld [vmem:[#allocation2 + $0x18] sm:$0xff]
          %v8072 = vld [vmem:[#allocation2 + $0x20] sm:$0xff]
          %v8073 = vld [vmem:[#allocation2 + $0x28] sm:$0xff]
          %v8074 = vld [vmem:[#allocation2 + $0x30] sm:$0xff]
          %v8075 = vld [vmem:[#allocation2 + $0x38] sm:$0xff]
          %v8076 = vld [vmem:[#allocation2 + $0x40] sm:$0xff]
          %v8077 = vld [vmem:[#allocation2 + $0x48] sm:$0xff]
          %v8078 = vld [vmem:[#allocation2 + $0x50] sm:$0xff]
          %v8079 = vld [vmem:[#allocation2 + $0x58] sm:$0xff]
          %v8080 = vld [vmem:[#allocation2 + $0x60] sm:$0xff]
          %v8081 = vld [vmem:[#allocation2 + $0x68] sm:$0xff]
          %v8082 = vld [vmem:[#allocation2 + $0x70] sm:$0xff]
          %v8083 = vld [vmem:[#allocation2 + $0x78] sm:$0xff]
          %v8084 = vld [vmem:[#allocation10] sm:$0xff]
          %v8085 = vld [vmem:[#allocation10 + $0x8] sm:$0xff]
          %v8088 = vlaneseq
          %v8089 = vshrl.u32 %v8088, 7
          %v8090 = vsub.s32 0, %v8089
          %v8091 = vrot.slane %v8084, %v8090
          %v8092 = vlaneseq
          %v8093 = vshrl.u32 %v8092, 7
          %v8094 = vsub.s32 1, %v8093
          %v8095 = vrot.slane %v8084, %v8094
          %v8096 = vlaneseq
          %v8097 = vshrl.u32 %v8096, 7
          %v8098 = vsub.s32 2, %v8097
          %v8099 = vrot.slane %v8084, %v8098
          %v8100 = vlaneseq
          %v8101 = vshrl.u32 %v8100, 7
          %v8102 = vsub.s32 3, %v8101
          %v8103 = vrot.slane %v8084, %v8102
          %v8104 = vlaneseq
          %v8105 = vshrl.u32 %v8104, 7
          %v8106 = vsub.s32 4, %v8105
          %v8107 = vrot.slane %v8084, %v8106
          %v8108 = vlaneseq
          %v8109 = vshrl.u32 %v8108, 7
          %v8110 = vsub.s32 5, %v8109
          %v8111 = vrot.slane %v8084, %v8110
          %v8112 = vlaneseq
          %v8113 = vshrl.u32 %v8112, 7
          %v8114 = vsub.s32 6, %v8113
          %v8115 = vrot.slane %v8084, %v8114
          %v8116 = vlaneseq
          %v8117 = vshrl.u32 %v8116, 7
          %v8118 = vsub.s32 7, %v8117
          %v8119 = vrot.slane %v8084, %v8118
          %v8120 = vlaneseq
          %v8121 = vshrl.u32 %v8120, 7
          %v8122 = vsub.s32 0, %v8121
          %v8123 = vrot.slane %v8085, %v8122
          %v8124 = vlaneseq
          %v8125 = vshrl.u32 %v8124, 7
          %v8126 = vsub.s32 1, %v8125
          %v8127 = vrot.slane %v8085, %v8126
          %v8128 = vlaneseq
          %v8129 = vshrl.u32 %v8128, 7
          %v8130 = vsub.s32 2, %v8129
          %v8131 = vrot.slane %v8085, %v8130
          %v8132 = vlaneseq
          %v8133 = vshrl.u32 %v8132, 7
          %v8134 = vsub.s32 3, %v8133
          %v8135 = vrot.slane %v8085, %v8134
          %v8136 = vlaneseq
          %v8137 = vshrl.u32 %v8136, 7
          %v8138 = vsub.s32 4, %v8137
          %v8139 = vrot.slane %v8085, %v8138
          %v8140 = vlaneseq
          %v8141 = vshrl.u32 %v8140, 7
          %v8142 = vsub.s32 5, %v8141
          %v8143 = vrot.slane %v8085, %v8142
          %v8144 = vlaneseq
          %v8145 = vshrl.u32 %v8144, 7
          %v8146 = vsub.s32 6, %v8145
          %v8147 = vrot.slane %v8085, %v8146
          %v8148 = vlaneseq
          %v8149 = vshrl.u32 %v8148, 7
          %v8150 = vsub.s32 7, %v8149
          %v8151 = vrot.slane %v8085, %v8150
          %v8168 = vadd.f32 %v8068, %v8091
          %v8169 = vadd.f32 %v8069, %v8095
          %v8170 = vadd.f32 %v8070, %v8099
          %v8171 = vadd.f32 %v8071, %v8103
          %v8172 = vadd.f32 %v8072, %v8107
          %v8173 = vadd.f32 %v8073, %v8111
          %v8174 = vadd.f32 %v8074, %v8115
          %v8175 = vadd.f32 %v8075, %v8119
          %v8176 = vadd.f32 %v8076, %v8123
          %v8177 = vadd.f32 %v8077, %v8127
          %v8178 = vadd.f32 %v8078, %v8131
          %v8179 = vadd.f32 %v8079, %v8135
          %v8180 = vadd.f32 %v8080, %v8139
          %v8181 = vadd.f32 %v8081, %v8143
          %v8182 = vadd.f32 %v8082, %v8147
          %v8183 = vadd.f32 %v8083, %v8151
          %vm8184 = vcmp.gt.f32.partialorder %v8168, 0.0
          %vm8185 = vcmp.gt.f32.partialorder %v8169, 0.0
          %vm8186 = vcmp.gt.f32.partialorder %v8170, 0.0
          %vm8187 = vcmp.gt.f32.partialorder %v8171, 0.0
          %vm8188 = vcmp.gt.f32.partialorder %v8172, 0.0
          %vm8189 = vcmp.gt.f32.partialorder %v8173, 0.0
          %vm8190 = vcmp.gt.f32.partialorder %v8174, 0.0
          %vm8191 = vcmp.gt.f32.partialorder %v8175, 0.0
          %vm8192 = vcmp.gt.f32.partialorder %v8176, 0.0
          %vm8193 = vcmp.gt.f32.partialorder %v8177, 0.0
          %vm8194 = vcmp.gt.f32.partialorder %v8178, 0.0
          %vm8195 = vcmp.gt.f32.partialorder %v8179, 0.0
          %vm8196 = vcmp.gt.f32.partialorder %v8180, 0.0
          %vm8197 = vcmp.gt.f32.partialorder %v8181, 0.0
          %vm8198 = vcmp.gt.f32.partialorder %v8182, 0.0
          %vm8199 = vcmp.gt.f32.partialorder %v8183, 0.0
          %v8200 = vmul.f32 %v8168, 0.2
          %v8201 = vmul.f32 %v8169, 0.2
          %v8202 = vmul.f32 %v8170, 0.2
          %v8203 = vmul.f32 %v8171, 0.2
          %v8204 = vmul.f32 %v8172, 0.2
          %v8205 = vmul.f32 %v8173, 0.2
          %v8206 = vmul.f32 %v8174, 0.2
          %v8207 = vmul.f32 %v8175, 0.2
          %v8208 = vmul.f32 %v8176, 0.2
          %v8209 = vmul.f32 %v8177, 0.2
          %v8210 = vmul.f32 %v8178, 0.2
          %v8211 = vmul.f32 %v8179, 0.2
          %v8212 = vmul.f32 %v8180, 0.2
          %v8213 = vmul.f32 %v8181, 0.2
          %v8214 = vmul.f32 %v8182, 0.2
          %v8215 = vmul.f32 %v8183, 0.2
          %v8216 = vsel %vm8184, %v8168, %v8200
          %v8217 = vsel %vm8185, %v8169, %v8201
          %v8218 = vsel %vm8186, %v8170, %v8202
          %v8219 = vsel %vm8187, %v8171, %v8203
          %v8220 = vsel %vm8188, %v8172, %v8204
          %v8221 = vsel %vm8189, %v8173, %v8205
          %v8222 = vsel %vm8190, %v8174, %v8206
          %v8223 = vsel %vm8191, %v8175, %v8207
          %v8224 = vsel %vm8192, %v8176, %v8208
          %v8225 = vsel %vm8193, %v8177, %v8209
          %v8226 = vsel %vm8194, %v8178, %v8210
          %v8227 = vsel %vm8195, %v8179, %v8211
          %v8228 = vsel %vm8196, %v8180, %v8212
          %v8229 = vsel %vm8197, %v8181, %v8213
          %v8230 = vsel %vm8198, %v8182, %v8214
          %v8231 = vsel %vm8199, %v8183, %v8215
          %v8232 = vpack.c.bf16 %v8216, %v8216
          %v8233 = vpack.c.bf16 %v8217, %v8217
          %v8234 = vpack.c.bf16 %v8218, %v8218
          %v8235 = vpack.c.bf16 %v8219, %v8219
          %v8236 = vpack.c.bf16 %v8220, %v8220
          %v8237 = vpack.c.bf16 %v8221, %v8221
          %v8238 = vpack.c.bf16 %v8222, %v8222
          %v8239 = vpack.c.bf16 %v8223, %v8223
          %v8240 = vpack.c.bf16 %v8224, %v8224
          %v8241 = vpack.c.bf16 %v8225, %v8225
          %v8242 = vpack.c.bf16 %v8226, %v8226
          %v8243 = vpack.c.bf16 %v8227, %v8227
          %v8244 = vpack.c.bf16 %v8228, %v8228
          %v8245 = vpack.c.bf16 %v8229, %v8229
          %v8246 = vpack.c.bf16 %v8230, %v8230
          %v8247 = vpack.c.bf16 %v8231, %v8231
          %v8248 = vld [vmem:[#allocation3] sm:$0xff]
          %v8249 = vld [vmem:[#allocation3 + $0x8] sm:$0xff]
          %v8250 = vld [vmem:[#allocation3 + $0x10] sm:$0xff]
          %v8251 = vld [vmem:[#allocation3 + $0x18] sm:$0xff]
          %v8252 = vld [vmem:[#allocation3 + $0x20] sm:$0xff]
          %v8253 = vld [vmem:[#allocation3 + $0x28] sm:$0xff]
          %v8254 = vld [vmem:[#allocation3 + $0x30] sm:$0xff]
          %v8255 = vld [vmem:[#allocation3 + $0x38] sm:$0xff]
          %v8256 = vld [vmem:[#allocation3 + $0x40] sm:$0xff]
          %v8257 = vld [vmem:[#allocation3 + $0x48] sm:$0xff]
          %v8258 = vld [vmem:[#allocation3 + $0x50] sm:$0xff]
          %v8259 = vld [vmem:[#allocation3 + $0x58] sm:$0xff]
          %v8260 = vld [vmem:[#allocation3 + $0x60] sm:$0xff]
          %v8261 = vld [vmem:[#allocation3 + $0x68] sm:$0xff]
          %v8262 = vld [vmem:[#allocation3 + $0x70] sm:$0xff]
          %v8263 = vld [vmem:[#allocation3 + $0x78] sm:$0xff]
          %v8264 = vld [vmem:[#allocation3 + $0x80] sm:$0xff]
          %v8265 = vld [vmem:[#allocation3 + $0x88] sm:$0xff]
          %v8266 = vld [vmem:[#allocation3 + $0x90] sm:$0xff]
          %v8267 = vld [vmem:[#allocation3 + $0x98] sm:$0xff]
          %v8268 = vld [vmem:[#allocation3 + $0xa0] sm:$0xff]
          %v8269 = vld [vmem:[#allocation3 + $0xa8] sm:$0xff]
          %v8270 = vld [vmem:[#allocation3 + $0xb0] sm:$0xff]
          %v8271 = vld [vmem:[#allocation3 + $0xb8] sm:$0xff]
          %v8272 = vld [vmem:[#allocation3 + $0xc0] sm:$0xff]
          %v8273 = vld [vmem:[#allocation3 + $0xc8] sm:$0xff]
          %v8274 = vld [vmem:[#allocation3 + $0xd0] sm:$0xff]
          %v8275 = vld [vmem:[#allocation3 + $0xd8] sm:$0xff]
          %v8276 = vld [vmem:[#allocation3 + $0xe0] sm:$0xff]
          %v8277 = vld [vmem:[#allocation3 + $0xe8] sm:$0xff]
          %v8278 = vld [vmem:[#allocation3 + $0xf0] sm:$0xff]
          %v8279 = vld [vmem:[#allocation3 + $0xf8] sm:$0xff]
          %v8280 = vld [vmem:[#allocation3 + $0x100] sm:$0xff]
          %v8281 = vld [vmem:[#allocation3 + $0x108] sm:$0xff]
          %v8282 = vld [vmem:[#allocation3 + $0x110] sm:$0xff]
          %v8283 = vld [vmem:[#allocation3 + $0x118] sm:$0xff]
          %v8284 = vld [vmem:[#allocation3 + $0x120] sm:$0xff]
          %v8285 = vld [vmem:[#allocation3 + $0x128] sm:$0xff]
          %v8286 = vld [vmem:[#allocation3 + $0x130] sm:$0xff]
          %v8287 = vld [vmem:[#allocation3 + $0x138] sm:$0xff]
          %v8288 = vld [vmem:[#allocation3 + $0x140] sm:$0xff]
          %v8289 = vld [vmem:[#allocation3 + $0x148] sm:$0xff]
          %v8290 = vld [vmem:[#allocation3 + $0x150] sm:$0xff]
          %v8291 = vld [vmem:[#allocation3 + $0x158] sm:$0xff]
          %v8292 = vld [vmem:[#allocation3 + $0x160] sm:$0xff]
          %v8293 = vld [vmem:[#allocation3 + $0x168] sm:$0xff]
          %v8294 = vld [vmem:[#allocation3 + $0x170] sm:$0xff]
          %v8295 = vld [vmem:[#allocation3 + $0x178] sm:$0xff]
          %v8296 = vld [vmem:[#allocation3 + $0x180] sm:$0xff]
          %v8297 = vld [vmem:[#allocation3 + $0x188] sm:$0xff]
          %v8298 = vld [vmem:[#allocation3 + $0x190] sm:$0xff]
          %v8299 = vld [vmem:[#allocation3 + $0x198] sm:$0xff]
          %v8300 = vld [vmem:[#allocation3 + $0x1a0] sm:$0xff]
          %v8301 = vld [vmem:[#allocation3 + $0x1a8] sm:$0xff]
          %v8302 = vld [vmem:[#allocation3 + $0x1b0] sm:$0xff]
          %v8303 = vld [vmem:[#allocation3 + $0x1b8] sm:$0xff]
          %v8304 = vld [vmem:[#allocation3 + $0x1c0] sm:$0xff]
          %v8305 = vld [vmem:[#allocation3 + $0x1c8] sm:$0xff]
          %v8306 = vld [vmem:[#allocation3 + $0x1d0] sm:$0xff]
          %v8307 = vld [vmem:[#allocation3 + $0x1d8] sm:$0xff]
          %v8308 = vld [vmem:[#allocation3 + $0x1e0] sm:$0xff]
          %v8309 = vld [vmem:[#allocation3 + $0x1e8] sm:$0xff]
          %v8310 = vld [vmem:[#allocation3 + $0x1f0] sm:$0xff]
          %v8311 = vld [vmem:[#allocation3 + $0x1f8] sm:$0xff]
          %v8312 = vld [vmem:[#allocation3 + $0x200] sm:$0xff]
          %v8313 = vld [vmem:[#allocation3 + $0x208] sm:$0xff]
          %v8314 = vld [vmem:[#allocation3 + $0x210] sm:$0xff]
          %v8315 = vld [vmem:[#allocation3 + $0x218] sm:$0xff]
          %v8316 = vld [vmem:[#allocation3 + $0x220] sm:$0xff]
          %v8317 = vld [vmem:[#allocation3 + $0x228] sm:$0xff]
          %v8318 = vld [vmem:[#allocation3 + $0x230] sm:$0xff]
          %v8319 = vld [vmem:[#allocation3 + $0x238] sm:$0xff]
          %v8320 = vld [vmem:[#allocation3 + $0x240] sm:$0xff]
          %v8321 = vld [vmem:[#allocation3 + $0x248] sm:$0xff]
          %v8322 = vld [vmem:[#allocation3 + $0x250] sm:$0xff]
          %v8323 = vld [vmem:[#allocation3 + $0x258] sm:$0xff]
          %v8324 = vld [vmem:[#allocation3 + $0x260] sm:$0xff]
          %v8325 = vld [vmem:[#allocation3 + $0x268] sm:$0xff]
          %v8326 = vld [vmem:[#allocation3 + $0x270] sm:$0xff]
          %v8327 = vld [vmem:[#allocation3 + $0x278] sm:$0xff]
          %v8328 = vld [vmem:[#allocation3 + $0x280] sm:$0xff]
          %v8329 = vld [vmem:[#allocation3 + $0x288] sm:$0xff]
          %v8330 = vld [vmem:[#allocation3 + $0x290] sm:$0xff]
          %v8331 = vld [vmem:[#allocation3 + $0x298] sm:$0xff]
          %v8332 = vld [vmem:[#allocation3 + $0x2a0] sm:$0xff]
          %v8333 = vld [vmem:[#allocation3 + $0x2a8] sm:$0xff]
          %v8334 = vld [vmem:[#allocation3 + $0x2b0] sm:$0xff]
          %v8335 = vld [vmem:[#allocation3 + $0x2b8] sm:$0xff]
          %v8336 = vld [vmem:[#allocation3 + $0x2c0] sm:$0xff]
          %v8337 = vld [vmem:[#allocation3 + $0x2c8] sm:$0xff]
          %v8338 = vld [vmem:[#allocation3 + $0x2d0] sm:$0xff]
          %v8339 = vld [vmem:[#allocation3 + $0x2d8] sm:$0xff]
          %v8340 = vld [vmem:[#allocation3 + $0x2e0] sm:$0xff]
          %v8341 = vld [vmem:[#allocation3 + $0x2e8] sm:$0xff]
          %v8342 = vld [vmem:[#allocation3 + $0x2f0] sm:$0xff]
          %v8343 = vld [vmem:[#allocation3 + $0x2f8] sm:$0xff]
          %v8344 = vld [vmem:[#allocation3 + $0x300] sm:$0xff]
          %v8345 = vld [vmem:[#allocation3 + $0x308] sm:$0xff]
          %v8346 = vld [vmem:[#allocation3 + $0x310] sm:$0xff]
          %v8347 = vld [vmem:[#allocation3 + $0x318] sm:$0xff]
          %v8348 = vld [vmem:[#allocation3 + $0x320] sm:$0xff]
          %v8349 = vld [vmem:[#allocation3 + $0x328] sm:$0xff]
          %v8350 = vld [vmem:[#allocation3 + $0x330] sm:$0xff]
          %v8351 = vld [vmem:[#allocation3 + $0x338] sm:$0xff]
          %v8352 = vld [vmem:[#allocation3 + $0x340] sm:$0xff]
          %v8353 = vld [vmem:[#allocation3 + $0x348] sm:$0xff]
          %v8354 = vld [vmem:[#allocation3 + $0x350] sm:$0xff]
          %v8355 = vld [vmem:[#allocation3 + $0x358] sm:$0xff]
          %v8356 = vld [vmem:[#allocation3 + $0x360] sm:$0xff]
          %v8357 = vld [vmem:[#allocation3 + $0x368] sm:$0xff]
          %v8358 = vld [vmem:[#allocation3 + $0x370] sm:$0xff]
          %v8359 = vld [vmem:[#allocation3 + $0x378] sm:$0xff]
          %v8360 = vld [vmem:[#allocation3 + $0x380] sm:$0xff]
          %v8361 = vld [vmem:[#allocation3 + $0x388] sm:$0xff]
          %v8362 = vld [vmem:[#allocation3 + $0x390] sm:$0xff]
          %v8363 = vld [vmem:[#allocation3 + $0x398] sm:$0xff]
          %v8364 = vld [vmem:[#allocation3 + $0x3a0] sm:$0xff]
          %v8365 = vld [vmem:[#allocation3 + $0x3a8] sm:$0xff]
          %v8366 = vld [vmem:[#allocation3 + $0x3b0] sm:$0xff]
          %v8367 = vld [vmem:[#allocation3 + $0x3b8] sm:$0xff]
          %v8368 = vld [vmem:[#allocation3 + $0x3c0] sm:$0xff]
          %v8369 = vld [vmem:[#allocation3 + $0x3c8] sm:$0xff]
          %v8370 = vld [vmem:[#allocation3 + $0x3d0] sm:$0xff]
          %v8371 = vld [vmem:[#allocation3 + $0x3d8] sm:$0xff]
          %v8372 = vld [vmem:[#allocation3 + $0x3e0] sm:$0xff]
          %v8373 = vld [vmem:[#allocation3 + $0x3e8] sm:$0xff]
          %v8374 = vld [vmem:[#allocation3 + $0x3f0] sm:$0xff]
          %v8375 = vld [vmem:[#allocation3 + $0x3f8] sm:$0xff]
          %v8376 = vld [vmem:[#allocation3 + $0x400] sm:$0xff]
          %v8377 = vld [vmem:[#allocation3 + $0x408] sm:$0xff]
          %v8378 = vld [vmem:[#allocation3 + $0x410] sm:$0xff]
          %v8379 = vld [vmem:[#allocation3 + $0x418] sm:$0xff]
          %v8380 = vld [vmem:[#allocation3 + $0x420] sm:$0xff]
          %v8381 = vld [vmem:[#allocation3 + $0x428] sm:$0xff]
          %v8382 = vld [vmem:[#allocation3 + $0x430] sm:$0xff]
          %v8383 = vld [vmem:[#allocation3 + $0x438] sm:$0xff]
          %v8384 = vld [vmem:[#allocation3 + $0x440] sm:$0xff]
          %v8385 = vld [vmem:[#allocation3 + $0x448] sm:$0xff]
          %v8386 = vld [vmem:[#allocation3 + $0x450] sm:$0xff]
          %v8387 = vld [vmem:[#allocation3 + $0x458] sm:$0xff]
          %v8388 = vld [vmem:[#allocation3 + $0x460] sm:$0xff]
          %v8389 = vld [vmem:[#allocation3 + $0x468] sm:$0xff]
          %v8390 = vld [vmem:[#allocation3 + $0x470] sm:$0xff]
          %v8391 = vld [vmem:[#allocation3 + $0x478] sm:$0xff]
          %v8392 = vld [vmem:[#allocation3 + $0x480] sm:$0xff]
          %v8393 = vld [vmem:[#allocation3 + $0x488] sm:$0xff]
          %v8394 = vld [vmem:[#allocation3 + $0x490] sm:$0xff]
          %v8395 = vld [vmem:[#allocation3 + $0x498] sm:$0xff]
          %v8396 = vld [vmem:[#allocation3 + $0x4a0] sm:$0xff]
          %v8397 = vld [vmem:[#allocation3 + $0x4a8] sm:$0xff]
          %v8398 = vld [vmem:[#allocation3 + $0x4b0] sm:$0xff]
          %v8399 = vld [vmem:[#allocation3 + $0x4b8] sm:$0xff]
          %v8400 = vld [vmem:[#allocation3 + $0x4c0] sm:$0xff]
          %v8401 = vld [vmem:[#allocation3 + $0x4c8] sm:$0xff]
          %v8402 = vld [vmem:[#allocation3 + $0x4d0] sm:$0xff]
          %v8403 = vld [vmem:[#allocation3 + $0x4d8] sm:$0xff]
          %v8404 = vld [vmem:[#allocation3 + $0x4e0] sm:$0xff]
          %v8405 = vld [vmem:[#allocation3 + $0x4e8] sm:$0xff]
          %v8406 = vld [vmem:[#allocation3 + $0x4f0] sm:$0xff]
          %v8407 = vld [vmem:[#allocation3 + $0x4f8] sm:$0xff]
          %v8408 = vld [vmem:[#allocation3 + $0x500] sm:$0xff]
          %v8409 = vld [vmem:[#allocation3 + $0x508] sm:$0xff]
          %v8410 = vld [vmem:[#allocation3 + $0x510] sm:$0xff]
          %v8411 = vld [vmem:[#allocation3 + $0x518] sm:$0xff]
          %v8412 = vld [vmem:[#allocation3 + $0x520] sm:$0xff]
          %v8413 = vld [vmem:[#allocation3 + $0x528] sm:$0xff]
          %v8414 = vld [vmem:[#allocation3 + $0x530] sm:$0xff]
          %v8415 = vld [vmem:[#allocation3 + $0x538] sm:$0xff]
          %v8416 = vld [vmem:[#allocation3 + $0x540] sm:$0xff]
          %v8417 = vld [vmem:[#allocation3 + $0x548] sm:$0xff]
          %v8418 = vld [vmem:[#allocation3 + $0x550] sm:$0xff]
          %v8419 = vld [vmem:[#allocation3 + $0x558] sm:$0xff]
          %v8420 = vld [vmem:[#allocation3 + $0x560] sm:$0xff]
          %v8421 = vld [vmem:[#allocation3 + $0x568] sm:$0xff]
          %v8422 = vld [vmem:[#allocation3 + $0x570] sm:$0xff]
          %v8423 = vld [vmem:[#allocation3 + $0x578] sm:$0xff]
          %v8424 = vld [vmem:[#allocation3 + $0x580] sm:$0xff]
          %v8425 = vld [vmem:[#allocation3 + $0x588] sm:$0xff]
          %v8426 = vld [vmem:[#allocation3 + $0x590] sm:$0xff]
          %v8427 = vld [vmem:[#allocation3 + $0x598] sm:$0xff]
          %v8428 = vld [vmem:[#allocation3 + $0x5a0] sm:$0xff]
          %v8429 = vld [vmem:[#allocation3 + $0x5a8] sm:$0xff]
          %v8430 = vld [vmem:[#allocation3 + $0x5b0] sm:$0xff]
          %v8431 = vld [vmem:[#allocation3 + $0x5b8] sm:$0xff]
          %v8432 = vld [vmem:[#allocation3 + $0x5c0] sm:$0xff]
          %v8433 = vld [vmem:[#allocation3 + $0x5c8] sm:$0xff]
          %v8434 = vld [vmem:[#allocation3 + $0x5d0] sm:$0xff]
          %v8435 = vld [vmem:[#allocation3 + $0x5d8] sm:$0xff]
          %v8436 = vld [vmem:[#allocation3 + $0x5e0] sm:$0xff]
          %v8437 = vld [vmem:[#allocation3 + $0x5e8] sm:$0xff]
          %v8438 = vld [vmem:[#allocation3 + $0x5f0] sm:$0xff]
          %v8439 = vld [vmem:[#allocation3 + $0x5f8] sm:$0xff]
          %v8440 = vld [vmem:[#allocation3 + $0x600] sm:$0xff]
          %v8441 = vld [vmem:[#allocation3 + $0x608] sm:$0xff]
          %v8442 = vld [vmem:[#allocation3 + $0x610] sm:$0xff]
          %v8443 = vld [vmem:[#allocation3 + $0x618] sm:$0xff]
          %v8444 = vld [vmem:[#allocation3 + $0x620] sm:$0xff]
          %v8445 = vld [vmem:[#allocation3 + $0x628] sm:$0xff]
          %v8446 = vld [vmem:[#allocation3 + $0x630] sm:$0xff]
          %v8447 = vld [vmem:[#allocation3 + $0x638] sm:$0xff]
          %v8448 = vld [vmem:[#allocation3 + $0x640] sm:$0xff]
          %v8449 = vld [vmem:[#allocation3 + $0x648] sm:$0xff]
          %v8450 = vld [vmem:[#allocation3 + $0x650] sm:$0xff]
          %v8451 = vld [vmem:[#allocation3 + $0x658] sm:$0xff]
          %v8452 = vld [vmem:[#allocation3 + $0x660] sm:$0xff]
          %v8453 = vld [vmem:[#allocation3 + $0x668] sm:$0xff]
          %v8454 = vld [vmem:[#allocation3 + $0x670] sm:$0xff]
          %v8455 = vld [vmem:[#allocation3 + $0x678] sm:$0xff]
          %v8456 = vld [vmem:[#allocation3 + $0x680] sm:$0xff]
          %v8457 = vld [vmem:[#allocation3 + $0x688] sm:$0xff]
          %v8458 = vld [vmem:[#allocation3 + $0x690] sm:$0xff]
          %v8459 = vld [vmem:[#allocation3 + $0x698] sm:$0xff]
          %v8460 = vld [vmem:[#allocation3 + $0x6a0] sm:$0xff]
          %v8461 = vld [vmem:[#allocation3 + $0x6a8] sm:$0xff]
          %v8462 = vld [vmem:[#allocation3 + $0x6b0] sm:$0xff]
          %v8463 = vld [vmem:[#allocation3 + $0x6b8] sm:$0xff]
          %v8464 = vld [vmem:[#allocation3 + $0x6c0] sm:$0xff]
          %v8465 = vld [vmem:[#allocation3 + $0x6c8] sm:$0xff]
          %v8466 = vld [vmem:[#allocation3 + $0x6d0] sm:$0xff]
          %v8467 = vld [vmem:[#allocation3 + $0x6d8] sm:$0xff]
          %v8468 = vld [vmem:[#allocation3 + $0x6e0] sm:$0xff]
          %v8469 = vld [vmem:[#allocation3 + $0x6e8] sm:$0xff]
          %v8470 = vld [vmem:[#allocation3 + $0x6f0] sm:$0xff]
          %v8471 = vld [vmem:[#allocation3 + $0x6f8] sm:$0xff]
          %v8472 = vld [vmem:[#allocation3 + $0x700] sm:$0xff]
          %v8473 = vld [vmem:[#allocation3 + $0x708] sm:$0xff]
          %v8474 = vld [vmem:[#allocation3 + $0x710] sm:$0xff]
          %v8475 = vld [vmem:[#allocation3 + $0x718] sm:$0xff]
          %v8476 = vld [vmem:[#allocation3 + $0x720] sm:$0xff]
          %v8477 = vld [vmem:[#allocation3 + $0x728] sm:$0xff]
          %v8478 = vld [vmem:[#allocation3 + $0x730] sm:$0xff]
          %v8479 = vld [vmem:[#allocation3 + $0x738] sm:$0xff]
          %v8480 = vld [vmem:[#allocation3 + $0x740] sm:$0xff]
          %v8481 = vld [vmem:[#allocation3 + $0x748] sm:$0xff]
          %v8482 = vld [vmem:[#allocation3 + $0x750] sm:$0xff]
          %v8483 = vld [vmem:[#allocation3 + $0x758] sm:$0xff]
          %v8484 = vld [vmem:[#allocation3 + $0x760] sm:$0xff]
          %v8485 = vld [vmem:[#allocation3 + $0x768] sm:$0xff]
          %v8486 = vld [vmem:[#allocation3 + $0x770] sm:$0xff]
          %v8487 = vld [vmem:[#allocation3 + $0x778] sm:$0xff]
          %v8488 = vld [vmem:[#allocation3 + $0x780] sm:$0xff]
          %v8489 = vld [vmem:[#allocation3 + $0x788] sm:$0xff]
          %v8490 = vld [vmem:[#allocation3 + $0x790] sm:$0xff]
          %v8491 = vld [vmem:[#allocation3 + $0x798] sm:$0xff]
          %v8492 = vld [vmem:[#allocation3 + $0x7a0] sm:$0xff]
          %v8493 = vld [vmem:[#allocation3 + $0x7a8] sm:$0xff]
          %v8494 = vld [vmem:[#allocation3 + $0x7b0] sm:$0xff]
          %v8495 = vld [vmem:[#allocation3 + $0x7b8] sm:$0xff]
          %v8496 = vld [vmem:[#allocation3 + $0x7c0] sm:$0xff]
          %v8497 = vld [vmem:[#allocation3 + $0x7c8] sm:$0xff]
          %v8498 = vld [vmem:[#allocation3 + $0x7d0] sm:$0xff]
          %v8499 = vld [vmem:[#allocation3 + $0x7d8] sm:$0xff]
          %v8500 = vld [vmem:[#allocation3 + $0x7e0] sm:$0xff]
          %v8501 = vld [vmem:[#allocation3 + $0x7e8] sm:$0xff]
          %v8502 = vld [vmem:[#allocation3 + $0x7f0] sm:$0xff]
          %v8503 = vld [vmem:[#allocation3 + $0x7f8] sm:$0xff]
          %v8504 = vld [vmem:[#allocation3 + $0x800] sm:$0xff]
          %v8505 = vld [vmem:[#allocation3 + $0x808] sm:$0xff]
          %v8506 = vld [vmem:[#allocation3 + $0x810] sm:$0xff]
          %v8507 = vld [vmem:[#allocation3 + $0x818] sm:$0xff]
          %v8508 = vld [vmem:[#allocation3 + $0x820] sm:$0xff]
          %v8509 = vld [vmem:[#allocation3 + $0x828] sm:$0xff]
          %v8510 = vld [vmem:[#allocation3 + $0x830] sm:$0xff]
          %v8511 = vld [vmem:[#allocation3 + $0x838] sm:$0xff]
          %v8512 = vld [vmem:[#allocation3 + $0x840] sm:$0xff]
          %v8513 = vld [vmem:[#allocation3 + $0x848] sm:$0xff]
          %v8514 = vld [vmem:[#allocation3 + $0x850] sm:$0xff]
          %v8515 = vld [vmem:[#allocation3 + $0x858] sm:$0xff]
          %v8516 = vld [vmem:[#allocation3 + $0x860] sm:$0xff]
          %v8517 = vld [vmem:[#allocation3 + $0x868] sm:$0xff]
          %v8518 = vld [vmem:[#allocation3 + $0x870] sm:$0xff]
          %v8519 = vld [vmem:[#allocation3 + $0x878] sm:$0xff]
          %v8520 = vld [vmem:[#allocation3 + $0x880] sm:$0xff]
          %v8521 = vld [vmem:[#allocation3 + $0x888] sm:$0xff]
          %v8522 = vld [vmem:[#allocation3 + $0x890] sm:$0xff]
          %v8523 = vld [vmem:[#allocation3 + $0x898] sm:$0xff]
          %v8524 = vld [vmem:[#allocation3 + $0x8a0] sm:$0xff]
          %v8525 = vld [vmem:[#allocation3 + $0x8a8] sm:$0xff]
          %v8526 = vld [vmem:[#allocation3 + $0x8b0] sm:$0xff]
          %v8527 = vld [vmem:[#allocation3 + $0x8b8] sm:$0xff]
          %v8528 = vld [vmem:[#allocation3 + $0x8c0] sm:$0xff]
          %v8529 = vld [vmem:[#allocation3 + $0x8c8] sm:$0xff]
          %v8530 = vld [vmem:[#allocation3 + $0x8d0] sm:$0xff]
          %v8531 = vld [vmem:[#allocation3 + $0x8d8] sm:$0xff]
          %v8532 = vld [vmem:[#allocation3 + $0x8e0] sm:$0xff]
          %v8533 = vld [vmem:[#allocation3 + $0x8e8] sm:$0xff]
          %v8534 = vld [vmem:[#allocation3 + $0x8f0] sm:$0xff]
          %v8535 = vld [vmem:[#allocation3 + $0x8f8] sm:$0xff]
          %v8536 = vld [vmem:[#allocation3 + $0x900] sm:$0xff]
          %v8537 = vld [vmem:[#allocation3 + $0x908] sm:$0xff]
          %v8538 = vld [vmem:[#allocation3 + $0x910] sm:$0xff]
          %v8539 = vld [vmem:[#allocation3 + $0x918] sm:$0xff]
          %v8540 = vld [vmem:[#allocation3 + $0x920] sm:$0xff]
          %v8541 = vld [vmem:[#allocation3 + $0x928] sm:$0xff]
          %v8542 = vld [vmem:[#allocation3 + $0x930] sm:$0xff]
          %v8543 = vld [vmem:[#allocation3 + $0x938] sm:$0xff]
          %v8544 = vld [vmem:[#allocation3 + $0x940] sm:$0xff]
          %v8545 = vld [vmem:[#allocation3 + $0x948] sm:$0xff]
          %v8546 = vld [vmem:[#allocation3 + $0x950] sm:$0xff]
          %v8547 = vld [vmem:[#allocation3 + $0x958] sm:$0xff]
          %v8548 = vld [vmem:[#allocation3 + $0x960] sm:$0xff]
          %v8549 = vld [vmem:[#allocation3 + $0x968] sm:$0xff]
          %v8550 = vld [vmem:[#allocation3 + $0x970] sm:$0xff]
          %v8551 = vld [vmem:[#allocation3 + $0x978] sm:$0xff]
          %v8552 = vld [vmem:[#allocation3 + $0x980] sm:$0xff]
          %v8553 = vld [vmem:[#allocation3 + $0x988] sm:$0xff]
          %v8554 = vld [vmem:[#allocation3 + $0x990] sm:$0xff]
          %v8555 = vld [vmem:[#allocation3 + $0x998] sm:$0xff]
          %v8556 = vld [vmem:[#allocation3 + $0x9a0] sm:$0xff]
          %v8557 = vld [vmem:[#allocation3 + $0x9a8] sm:$0xff]
          %v8558 = vld [vmem:[#allocation3 + $0x9b0] sm:$0xff]
          %v8559 = vld [vmem:[#allocation3 + $0x9b8] sm:$0xff]
          %v8560 = vld [vmem:[#allocation3 + $0x9c0] sm:$0xff]
          %v8561 = vld [vmem:[#allocation3 + $0x9c8] sm:$0xff]
          %v8562 = vld [vmem:[#allocation3 + $0x9d0] sm:$0xff]
          %v8563 = vld [vmem:[#allocation3 + $0x9d8] sm:$0xff]
          %v8564 = vld [vmem:[#allocation3 + $0x9e0] sm:$0xff]
          %v8565 = vld [vmem:[#allocation3 + $0x9e8] sm:$0xff]
          %v8566 = vld [vmem:[#allocation3 + $0x9f0] sm:$0xff]
          %v8567 = vld [vmem:[#allocation3 + $0x9f8] sm:$0xff]
          %v8568 = vld [vmem:[#allocation3 + $0xa00] sm:$0xff]
          %v8569 = vld [vmem:[#allocation3 + $0xa08] sm:$0xff]
          %v8570 = vld [vmem:[#allocation3 + $0xa10] sm:$0xff]
          %v8571 = vld [vmem:[#allocation3 + $0xa18] sm:$0xff]
          %v8572 = vld [vmem:[#allocation3 + $0xa20] sm:$0xff]
          %v8573 = vld [vmem:[#allocation3 + $0xa28] sm:$0xff]
          %v8574 = vld [vmem:[#allocation3 + $0xa30] sm:$0xff]
          %v8575 = vld [vmem:[#allocation3 + $0xa38] sm:$0xff]
          %v8576 = vld [vmem:[#allocation3 + $0xa40] sm:$0xff]
          %v8577 = vld [vmem:[#allocation3 + $0xa48] sm:$0xff]
          %v8578 = vld [vmem:[#allocation3 + $0xa50] sm:$0xff]
          %v8579 = vld [vmem:[#allocation3 + $0xa58] sm:$0xff]
          %v8580 = vld [vmem:[#allocation3 + $0xa60] sm:$0xff]
          %v8581 = vld [vmem:[#allocation3 + $0xa68] sm:$0xff]
          %v8582 = vld [vmem:[#allocation3 + $0xa70] sm:$0xff]
          %v8583 = vld [vmem:[#allocation3 + $0xa78] sm:$0xff]
          %v8584 = vld [vmem:[#allocation3 + $0xa80] sm:$0xff]
          %v8585 = vld [vmem:[#allocation3 + $0xa88] sm:$0xff]
          %v8586 = vld [vmem:[#allocation3 + $0xa90] sm:$0xff]
          %v8587 = vld [vmem:[#allocation3 + $0xa98] sm:$0xff]
          %v8588 = vld [vmem:[#allocation3 + $0xaa0] sm:$0xff]
          %v8589 = vld [vmem:[#allocation3 + $0xaa8] sm:$0xff]
          %v8590 = vld [vmem:[#allocation3 + $0xab0] sm:$0xff]
          %v8591 = vld [vmem:[#allocation3 + $0xab8] sm:$0xff]
          %v8592 = vld [vmem:[#allocation3 + $0xac0] sm:$0xff]
          %v8593 = vld [vmem:[#allocation3 + $0xac8] sm:$0xff]
          %v8594 = vld [vmem:[#allocation3 + $0xad0] sm:$0xff]
          %v8595 = vld [vmem:[#allocation3 + $0xad8] sm:$0xff]
          %v8596 = vld [vmem:[#allocation3 + $0xae0] sm:$0xff]
          %v8597 = vld [vmem:[#allocation3 + $0xae8] sm:$0xff]
          %v8598 = vld [vmem:[#allocation3 + $0xaf0] sm:$0xff]
          %v8599 = vld [vmem:[#allocation3 + $0xaf8] sm:$0xff]
          %v8600 = vld [vmem:[#allocation3 + $0xb00] sm:$0xff]
          %v8601 = vld [vmem:[#allocation3 + $0xb08] sm:$0xff]
          %v8602 = vld [vmem:[#allocation3 + $0xb10] sm:$0xff]
          %v8603 = vld [vmem:[#allocation3 + $0xb18] sm:$0xff]
          %v8604 = vld [vmem:[#allocation3 + $0xb20] sm:$0xff]
          %v8605 = vld [vmem:[#allocation3 + $0xb28] sm:$0xff]
          %v8606 = vld [vmem:[#allocation3 + $0xb30] sm:$0xff]
          %v8607 = vld [vmem:[#allocation3 + $0xb38] sm:$0xff]
          %v8608 = vld [vmem:[#allocation3 + $0xb40] sm:$0xff]
          %v8609 = vld [vmem:[#allocation3 + $0xb48] sm:$0xff]
          %v8610 = vld [vmem:[#allocation3 + $0xb50] sm:$0xff]
          %v8611 = vld [vmem:[#allocation3 + $0xb58] sm:$0xff]
          %v8612 = vld [vmem:[#allocation3 + $0xb60] sm:$0xff]
          %v8613 = vld [vmem:[#allocation3 + $0xb68] sm:$0xff]
          %v8614 = vld [vmem:[#allocation3 + $0xb70] sm:$0xff]
          %v8615 = vld [vmem:[#allocation3 + $0xb78] sm:$0xff]
          %v8616 = vld [vmem:[#allocation3 + $0xb80] sm:$0xff]
          %v8617 = vld [vmem:[#allocation3 + $0xb88] sm:$0xff]
          %v8618 = vld [vmem:[#allocation3 + $0xb90] sm:$0xff]
          %v8619 = vld [vmem:[#allocation3 + $0xb98] sm:$0xff]
          %v8620 = vld [vmem:[#allocation3 + $0xba0] sm:$0xff]
          %v8621 = vld [vmem:[#allocation3 + $0xba8] sm:$0xff]
          %v8622 = vld [vmem:[#allocation3 + $0xbb0] sm:$0xff]
          %v8623 = vld [vmem:[#allocation3 + $0xbb8] sm:$0xff]
          %v8624 = vld [vmem:[#allocation3 + $0xbc0] sm:$0xff]
          %v8625 = vld [vmem:[#allocation3 + $0xbc8] sm:$0xff]
          %v8626 = vld [vmem:[#allocation3 + $0xbd0] sm:$0xff]
          %v8627 = vld [vmem:[#allocation3 + $0xbd8] sm:$0xff]
          %v8628 = vld [vmem:[#allocation3 + $0xbe0] sm:$0xff]
          %v8629 = vld [vmem:[#allocation3 + $0xbe8] sm:$0xff]
          %v8630 = vld [vmem:[#allocation3 + $0xbf0] sm:$0xff]
          %v8631 = vld [vmem:[#allocation3 + $0xbf8] sm:$0xff]
          %v8632 = vld [vmem:[#allocation3 + $0xc00] sm:$0xff]
          %v8633 = vld [vmem:[#allocation3 + $0xc08] sm:$0xff]
          %v8634 = vld [vmem:[#allocation3 + $0xc10] sm:$0xff]
          %v8635 = vld [vmem:[#allocation3 + $0xc18] sm:$0xff]
          %v8636 = vld [vmem:[#allocation3 + $0xc20] sm:$0xff]
          %v8637 = vld [vmem:[#allocation3 + $0xc28] sm:$0xff]
          %v8638 = vld [vmem:[#allocation3 + $0xc30] sm:$0xff]
          %v8639 = vld [vmem:[#allocation3 + $0xc38] sm:$0xff]
          %v8640 = vld [vmem:[#allocation3 + $0xc40] sm:$0xff]
          %v8641 = vld [vmem:[#allocation3 + $0xc48] sm:$0xff]
          %v8642 = vld [vmem:[#allocation3 + $0xc50] sm:$0xff]
          %v8643 = vld [vmem:[#allocation3 + $0xc58] sm:$0xff]
          %v8644 = vld [vmem:[#allocation3 + $0xc60] sm:$0xff]
          %v8645 = vld [vmem:[#allocation3 + $0xc68] sm:$0xff]
          %v8646 = vld [vmem:[#allocation3 + $0xc70] sm:$0xff]
          %v8647 = vld [vmem:[#allocation3 + $0xc78] sm:$0xff]
          %v8648 = vld [vmem:[#allocation3 + $0xc80] sm:$0xff]
          %v8649 = vld [vmem:[#allocation3 + $0xc88] sm:$0xff]
          %v8650 = vld [vmem:[#allocation3 + $0xc90] sm:$0xff]
          %v8651 = vld [vmem:[#allocation3 + $0xc98] sm:$0xff]
          %v8652 = vld [vmem:[#allocation3 + $0xca0] sm:$0xff]
          %v8653 = vld [vmem:[#allocation3 + $0xca8] sm:$0xff]
          %v8654 = vld [vmem:[#allocation3 + $0xcb0] sm:$0xff]
          %v8655 = vld [vmem:[#allocation3 + $0xcb8] sm:$0xff]
          %v8656 = vld [vmem:[#allocation3 + $0xcc0] sm:$0xff]
          %v8657 = vld [vmem:[#allocation3 + $0xcc8] sm:$0xff]
          %v8658 = vld [vmem:[#allocation3 + $0xcd0] sm:$0xff]
          %v8659 = vld [vmem:[#allocation3 + $0xcd8] sm:$0xff]
          %v8660 = vld [vmem:[#allocation3 + $0xce0] sm:$0xff]
          %v8661 = vld [vmem:[#allocation3 + $0xce8] sm:$0xff]
          %v8662 = vld [vmem:[#allocation3 + $0xcf0] sm:$0xff]
          %v8663 = vld [vmem:[#allocation3 + $0xcf8] sm:$0xff]
          %v8664 = vld [vmem:[#allocation3 + $0xd00] sm:$0xff]
          %v8665 = vld [vmem:[#allocation3 + $0xd08] sm:$0xff]
          %v8666 = vld [vmem:[#allocation3 + $0xd10] sm:$0xff]
          %v8667 = vld [vmem:[#allocation3 + $0xd18] sm:$0xff]
          %v8668 = vld [vmem:[#allocation3 + $0xd20] sm:$0xff]
          %v8669 = vld [vmem:[#allocation3 + $0xd28] sm:$0xff]
          %v8670 = vld [vmem:[#allocation3 + $0xd30] sm:$0xff]
          %v8671 = vld [vmem:[#allocation3 + $0xd38] sm:$0xff]
          %v8672 = vld [vmem:[#allocation3 + $0xd40] sm:$0xff]
          %v8673 = vld [vmem:[#allocation3 + $0xd48] sm:$0xff]
          %v8674 = vld [vmem:[#allocation3 + $0xd50] sm:$0xff]
          %v8675 = vld [vmem:[#allocation3 + $0xd58] sm:$0xff]
          %v8676 = vld [vmem:[#allocation3 + $0xd60] sm:$0xff]
          %v8677 = vld [vmem:[#allocation3 + $0xd68] sm:$0xff]
          %v8678 = vld [vmem:[#allocation3 + $0xd70] sm:$0xff]
          %v8679 = vld [vmem:[#allocation3 + $0xd78] sm:$0xff]
          %v8680 = vld [vmem:[#allocation3 + $0xd80] sm:$0xff]
          %v8681 = vld [vmem:[#allocation3 + $0xd88] sm:$0xff]
          %v8682 = vld [vmem:[#allocation3 + $0xd90] sm:$0xff]
          %v8683 = vld [vmem:[#allocation3 + $0xd98] sm:$0xff]
          %v8684 = vld [vmem:[#allocation3 + $0xda0] sm:$0xff]
          %v8685 = vld [vmem:[#allocation3 + $0xda8] sm:$0xff]
          %v8686 = vld [vmem:[#allocation3 + $0xdb0] sm:$0xff]
          %v8687 = vld [vmem:[#allocation3 + $0xdb8] sm:$0xff]
          %v8688 = vld [vmem:[#allocation3 + $0xdc0] sm:$0xff]
          %v8689 = vld [vmem:[#allocation3 + $0xdc8] sm:$0xff]
          %v8690 = vld [vmem:[#allocation3 + $0xdd0] sm:$0xff]
          %v8691 = vld [vmem:[#allocation3 + $0xdd8] sm:$0xff]
          %v8692 = vld [vmem:[#allocation3 + $0xde0] sm:$0xff]
          %v8693 = vld [vmem:[#allocation3 + $0xde8] sm:$0xff]
          %v8694 = vld [vmem:[#allocation3 + $0xdf0] sm:$0xff]
          %v8695 = vld [vmem:[#allocation3 + $0xdf8] sm:$0xff]
          %v8696 = vld [vmem:[#allocation3 + $0xe00] sm:$0xff]
          %v8697 = vld [vmem:[#allocation3 + $0xe08] sm:$0xff]
          %v8698 = vld [vmem:[#allocation3 + $0xe10] sm:$0xff]
          %v8699 = vld [vmem:[#allocation3 + $0xe18] sm:$0xff]
          %v8700 = vld [vmem:[#allocation3 + $0xe20] sm:$0xff]
          %v8701 = vld [vmem:[#allocation3 + $0xe28] sm:$0xff]
          %v8702 = vld [vmem:[#allocation3 + $0xe30] sm:$0xff]
          %v8703 = vld [vmem:[#allocation3 + $0xe38] sm:$0xff]
          %v8704 = vld [vmem:[#allocation3 + $0xe40] sm:$0xff]
          %v8705 = vld [vmem:[#allocation3 + $0xe48] sm:$0xff]
          %v8706 = vld [vmem:[#allocation3 + $0xe50] sm:$0xff]
          %v8707 = vld [vmem:[#allocation3 + $0xe58] sm:$0xff]
          %v8708 = vld [vmem:[#allocation3 + $0xe60] sm:$0xff]
          %v8709 = vld [vmem:[#allocation3 + $0xe68] sm:$0xff]
          %v8710 = vld [vmem:[#allocation3 + $0xe70] sm:$0xff]
          %v8711 = vld [vmem:[#allocation3 + $0xe78] sm:$0xff]
          %v8712 = vld [vmem:[#allocation3 + $0xe80] sm:$0xff]
          %v8713 = vld [vmem:[#allocation3 + $0xe88] sm:$0xff]
          %v8714 = vld [vmem:[#allocation3 + $0xe90] sm:$0xff]
          %v8715 = vld [vmem:[#allocation3 + $0xe98] sm:$0xff]
          %v8716 = vld [vmem:[#allocation3 + $0xea0] sm:$0xff]
          %v8717 = vld [vmem:[#allocation3 + $0xea8] sm:$0xff]
          %v8718 = vld [vmem:[#allocation3 + $0xeb0] sm:$0xff]
          %v8719 = vld [vmem:[#allocation3 + $0xeb8] sm:$0xff]
          %v8720 = vld [vmem:[#allocation3 + $0xec0] sm:$0xff]
          %v8721 = vld [vmem:[#allocation3 + $0xec8] sm:$0xff]
          %v8722 = vld [vmem:[#allocation3 + $0xed0] sm:$0xff]
          %v8723 = vld [vmem:[#allocation3 + $0xed8] sm:$0xff]
          %v8724 = vld [vmem:[#allocation3 + $0xee0] sm:$0xff]
          %v8725 = vld [vmem:[#allocation3 + $0xee8] sm:$0xff]
          %v8726 = vld [vmem:[#allocation3 + $0xef0] sm:$0xff]
          %v8727 = vld [vmem:[#allocation3 + $0xef8] sm:$0xff]
          %v8728 = vld [vmem:[#allocation3 + $0xf00] sm:$0xff]
          %v8729 = vld [vmem:[#allocation3 + $0xf08] sm:$0xff]
          %v8730 = vld [vmem:[#allocation3 + $0xf10] sm:$0xff]
          %v8731 = vld [vmem:[#allocation3 + $0xf18] sm:$0xff]
          %v8732 = vld [vmem:[#allocation3 + $0xf20] sm:$0xff]
          %v8733 = vld [vmem:[#allocation3 + $0xf28] sm:$0xff]
          %v8734 = vld [vmem:[#allocation3 + $0xf30] sm:$0xff]
          %v8735 = vld [vmem:[#allocation3 + $0xf38] sm:$0xff]
          %v8736 = vld [vmem:[#allocation3 + $0xf40] sm:$0xff]
          %v8737 = vld [vmem:[#allocation3 + $0xf48] sm:$0xff]
          %v8738 = vld [vmem:[#allocation3 + $0xf50] sm:$0xff]
          %v8739 = vld [vmem:[#allocation3 + $0xf58] sm:$0xff]
          %v8740 = vld [vmem:[#allocation3 + $0xf60] sm:$0xff]
          %v8741 = vld [vmem:[#allocation3 + $0xf68] sm:$0xff]
          %v8742 = vld [vmem:[#allocation3 + $0xf70] sm:$0xff]
          %v8743 = vld [vmem:[#allocation3 + $0xf78] sm:$0xff]
          %v8744 = vld [vmem:[#allocation3 + $0xf80] sm:$0xff]
          %v8745 = vld [vmem:[#allocation3 + $0xf88] sm:$0xff]
          %v8746 = vld [vmem:[#allocation3 + $0xf90] sm:$0xff]
          %v8747 = vld [vmem:[#allocation3 + $0xf98] sm:$0xff]
          %v8748 = vld [vmem:[#allocation3 + $0xfa0] sm:$0xff]
          %v8749 = vld [vmem:[#allocation3 + $0xfa8] sm:$0xff]
          %v8750 = vld [vmem:[#allocation3 + $0xfb0] sm:$0xff]
          %v8751 = vld [vmem:[#allocation3 + $0xfb8] sm:$0xff]
          %v8752 = vld [vmem:[#allocation3 + $0xfc0] sm:$0xff]
          %v8753 = vld [vmem:[#allocation3 + $0xfc8] sm:$0xff]
          %v8754 = vld [vmem:[#allocation3 + $0xfd0] sm:$0xff]
          %v8755 = vld [vmem:[#allocation3 + $0xfd8] sm:$0xff]
          %v8756 = vld [vmem:[#allocation3 + $0xfe0] sm:$0xff]
          %v8757 = vld [vmem:[#allocation3 + $0xfe8] sm:$0xff]
          %v8758 = vld [vmem:[#allocation3 + $0xff0] sm:$0xff]
          %v8759 = vld [vmem:[#allocation3 + $0xff8] sm:$0xff]
          %v8760 = vld [vmem:[#allocation3 + $0x1000] sm:$0xff]
          %v8761 = vld [vmem:[#allocation3 + $0x1008] sm:$0xff]
          %v8762 = vld [vmem:[#allocation3 + $0x1010] sm:$0xff]
          %v8763 = vld [vmem:[#allocation3 + $0x1018] sm:$0xff]
          %v8764 = vld [vmem:[#allocation3 + $0x1020] sm:$0xff]
          %v8765 = vld [vmem:[#allocation3 + $0x1028] sm:$0xff]
          %v8766 = vld [vmem:[#allocation3 + $0x1030] sm:$0xff]
          %v8767 = vld [vmem:[#allocation3 + $0x1038] sm:$0xff]
          %v8768 = vld [vmem:[#allocation3 + $0x1040] sm:$0xff]
          %v8769 = vld [vmem:[#allocation3 + $0x1048] sm:$0xff]
          %v8770 = vld [vmem:[#allocation3 + $0x1050] sm:$0xff]
          %v8771 = vld [vmem:[#allocation3 + $0x1058] sm:$0xff]
          %v8772 = vld [vmem:[#allocation3 + $0x1060] sm:$0xff]
          %v8773 = vld [vmem:[#allocation3 + $0x1068] sm:$0xff]
          %v8774 = vld [vmem:[#allocation3 + $0x1070] sm:$0xff]
          %v8775 = vld [vmem:[#allocation3 + $0x1078] sm:$0xff]
          %v8776 = vld [vmem:[#allocation3 + $0x1080] sm:$0xff]
          %v8777 = vld [vmem:[#allocation3 + $0x1088] sm:$0xff]
          %v8778 = vld [vmem:[#allocation3 + $0x1090] sm:$0xff]
          %v8779 = vld [vmem:[#allocation3 + $0x1098] sm:$0xff]
          %v8780 = vld [vmem:[#allocation3 + $0x10a0] sm:$0xff]
          %v8781 = vld [vmem:[#allocation3 + $0x10a8] sm:$0xff]
          %v8782 = vld [vmem:[#allocation3 + $0x10b0] sm:$0xff]
          %v8783 = vld [vmem:[#allocation3 + $0x10b8] sm:$0xff]
          %v8784 = vld [vmem:[#allocation3 + $0x10c0] sm:$0xff]
          %v8785 = vld [vmem:[#allocation3 + $0x10c8] sm:$0xff]
          %v8786 = vld [vmem:[#allocation3 + $0x10d0] sm:$0xff]
          %v8787 = vld [vmem:[#allocation3 + $0x10d8] sm:$0xff]
          %v8788 = vld [vmem:[#allocation3 + $0x10e0] sm:$0xff]
          %v8789 = vld [vmem:[#allocation3 + $0x10e8] sm:$0xff]
          %v8790 = vld [vmem:[#allocation3 + $0x10f0] sm:$0xff]
          %v8791 = vld [vmem:[#allocation3 + $0x10f8] sm:$0xff]
          %v8792 = vld [vmem:[#allocation3 + $0x1100] sm:$0xff]
          %v8793 = vld [vmem:[#allocation3 + $0x1108] sm:$0xff]
          %v8794 = vld [vmem:[#allocation3 + $0x1110] sm:$0xff]
          %v8795 = vld [vmem:[#allocation3 + $0x1118] sm:$0xff]
          %v8796 = vld [vmem:[#allocation3 + $0x1120] sm:$0xff]
          %v8797 = vld [vmem:[#allocation3 + $0x1128] sm:$0xff]
          %v8798 = vld [vmem:[#allocation3 + $0x1130] sm:$0xff]
          %v8799 = vld [vmem:[#allocation3 + $0x1138] sm:$0xff]
          %v8800 = vld [vmem:[#allocation3 + $0x1140] sm:$0xff]
          %v8801 = vld [vmem:[#allocation3 + $0x1148] sm:$0xff]
          %v8802 = vld [vmem:[#allocation3 + $0x1150] sm:$0xff]
          %v8803 = vld [vmem:[#allocation3 + $0x1158] sm:$0xff]
          %v8804 = vld [vmem:[#allocation3 + $0x1160] sm:$0xff]
          %v8805 = vld [vmem:[#allocation3 + $0x1168] sm:$0xff]
          %v8806 = vld [vmem:[#allocation3 + $0x1170] sm:$0xff]
          %v8807 = vld [vmem:[#allocation3 + $0x1178] sm:$0xff]
          %v8808 = vld [vmem:[#allocation3 + $0x1180] sm:$0xff]
          %v8809 = vld [vmem:[#allocation3 + $0x1188] sm:$0xff]
          %v8810 = vld [vmem:[#allocation3 + $0x1190] sm:$0xff]
          %v8811 = vld [vmem:[#allocation3 + $0x1198] sm:$0xff]
          %v8812 = vld [vmem:[#allocation3 + $0x11a0] sm:$0xff]
          %v8813 = vld [vmem:[#allocation3 + $0x11a8] sm:$0xff]
          %v8814 = vld [vmem:[#allocation3 + $0x11b0] sm:$0xff]
          %v8815 = vld [vmem:[#allocation3 + $0x11b8] sm:$0xff]
          %v8816 = vld [vmem:[#allocation3 + $0x11c0] sm:$0xff]
          %v8817 = vld [vmem:[#allocation3 + $0x11c8] sm:$0xff]
          %v8818 = vld [vmem:[#allocation3 + $0x11d0] sm:$0xff]
          %v8819 = vld [vmem:[#allocation3 + $0x11d8] sm:$0xff]
          %v8820 = vld [vmem:[#allocation3 + $0x11e0] sm:$0xff]
          %v8821 = vld [vmem:[#allocation3 + $0x11e8] sm:$0xff]
          %v8822 = vld [vmem:[#allocation3 + $0x11f0] sm:$0xff]
          %v8823 = vld [vmem:[#allocation3 + $0x11f8] sm:$0xff]
          %v8824 = vld [vmem:[#allocation3 + $0x1200] sm:$0xff]
          %v8825 = vld [vmem:[#allocation3 + $0x1208] sm:$0xff]
          %v8826 = vld [vmem:[#allocation3 + $0x1210] sm:$0xff]
          %v8827 = vld [vmem:[#allocation3 + $0x1218] sm:$0xff]
          %v8828 = vld [vmem:[#allocation3 + $0x1220] sm:$0xff]
          %v8829 = vld [vmem:[#allocation3 + $0x1228] sm:$0xff]
          %v8830 = vld [vmem:[#allocation3 + $0x1230] sm:$0xff]
          %v8831 = vld [vmem:[#allocation3 + $0x1238] sm:$0xff]
          %v8832 = vld [vmem:[#allocation3 + $0x1240] sm:$0xff]
          %v8833 = vld [vmem:[#allocation3 + $0x1248] sm:$0xff]
          %v8834 = vld [vmem:[#allocation3 + $0x1250] sm:$0xff]
          %v8835 = vld [vmem:[#allocation3 + $0x1258] sm:$0xff]
          %v8836 = vld [vmem:[#allocation3 + $0x1260] sm:$0xff]
          %v8837 = vld [vmem:[#allocation3 + $0x1268] sm:$0xff]
          %v8838 = vld [vmem:[#allocation3 + $0x1270] sm:$0xff]
          %v8839 = vld [vmem:[#allocation3 + $0x1278] sm:$0xff]
          %v8840 = vld [vmem:[#allocation3 + $0x1280] sm:$0xff]
          %v8841 = vld [vmem:[#allocation3 + $0x1288] sm:$0xff]
          %v8842 = vld [vmem:[#allocation3 + $0x1290] sm:$0xff]
          %v8843 = vld [vmem:[#allocation3 + $0x1298] sm:$0xff]
          %v8844 = vld [vmem:[#allocation3 + $0x12a0] sm:$0xff]
          %v8845 = vld [vmem:[#allocation3 + $0x12a8] sm:$0xff]
          %v8846 = vld [vmem:[#allocation3 + $0x12b0] sm:$0xff]
          %v8847 = vld [vmem:[#allocation3 + $0x12b8] sm:$0xff]
          %v8848 = vld [vmem:[#allocation3 + $0x12c0] sm:$0xff]
          %v8849 = vld [vmem:[#allocation3 + $0x12c8] sm:$0xff]
          %v8850 = vld [vmem:[#allocation3 + $0x12d0] sm:$0xff]
          %v8851 = vld [vmem:[#allocation3 + $0x12d8] sm:$0xff]
          %v8852 = vld [vmem:[#allocation3 + $0x12e0] sm:$0xff]
          %v8853 = vld [vmem:[#allocation3 + $0x12e8] sm:$0xff]
          %v8854 = vld [vmem:[#allocation3 + $0x12f0] sm:$0xff]
          %v8855 = vld [vmem:[#allocation3 + $0x12f8] sm:$0xff]
          %v8856 = vld [vmem:[#allocation3 + $0x1300] sm:$0xff]
          %v8857 = vld [vmem:[#allocation3 + $0x1308] sm:$0xff]
          %v8858 = vld [vmem:[#allocation3 + $0x1310] sm:$0xff]
          %v8859 = vld [vmem:[#allocation3 + $0x1318] sm:$0xff]
          %v8860 = vld [vmem:[#allocation3 + $0x1320] sm:$0xff]
          %v8861 = vld [vmem:[#allocation3 + $0x1328] sm:$0xff]
          %v8862 = vld [vmem:[#allocation3 + $0x1330] sm:$0xff]
          %v8863 = vld [vmem:[#allocation3 + $0x1338] sm:$0xff]
          %v8864 = vld [vmem:[#allocation3 + $0x1340] sm:$0xff]
          %v8865 = vld [vmem:[#allocation3 + $0x1348] sm:$0xff]
          %v8866 = vld [vmem:[#allocation3 + $0x1350] sm:$0xff]
          %v8867 = vld [vmem:[#allocation3 + $0x1358] sm:$0xff]
          %v8868 = vld [vmem:[#allocation3 + $0x1360] sm:$0xff]
          %v8869 = vld [vmem:[#allocation3 + $0x1368] sm:$0xff]
          %v8870 = vld [vmem:[#allocation3 + $0x1370] sm:$0xff]
          %v8871 = vld [vmem:[#allocation3 + $0x1378] sm:$0xff]
          %v8872 = vld [vmem:[#allocation3 + $0x1380] sm:$0xff]
          %v8873 = vld [vmem:[#allocation3 + $0x1388] sm:$0xff]
          %v8874 = vld [vmem:[#allocation3 + $0x1390] sm:$0xff]
          %v8875 = vld [vmem:[#allocation3 + $0x1398] sm:$0xff]
          %v8876 = vld [vmem:[#allocation3 + $0x13a0] sm:$0xff]
          %v8877 = vld [vmem:[#allocation3 + $0x13a8] sm:$0xff]
          %v8878 = vld [vmem:[#allocation3 + $0x13b0] sm:$0xff]
          %v8879 = vld [vmem:[#allocation3 + $0x13b8] sm:$0xff]
          %v8880 = vld [vmem:[#allocation3 + $0x13c0] sm:$0xff]
          %v8881 = vld [vmem:[#allocation3 + $0x13c8] sm:$0xff]
          %v8882 = vld [vmem:[#allocation3 + $0x13d0] sm:$0xff]
          %v8883 = vld [vmem:[#allocation3 + $0x13d8] sm:$0xff]
          %v8884 = vld [vmem:[#allocation3 + $0x13e0] sm:$0xff]
          %v8885 = vld [vmem:[#allocation3 + $0x13e8] sm:$0xff]
          %v8886 = vld [vmem:[#allocation3 + $0x13f0] sm:$0xff]
          %v8887 = vld [vmem:[#allocation3 + $0x13f8] sm:$0xff]
          %v8888 = vld [vmem:[#allocation3 + $0x1400] sm:$0xff]
          %v8889 = vld [vmem:[#allocation3 + $0x1408] sm:$0xff]
          %v8890 = vld [vmem:[#allocation3 + $0x1410] sm:$0xff]
          %v8891 = vld [vmem:[#allocation3 + $0x1418] sm:$0xff]
          %v8892 = vld [vmem:[#allocation3 + $0x1420] sm:$0xff]
          %v8893 = vld [vmem:[#allocation3 + $0x1428] sm:$0xff]
          %v8894 = vld [vmem:[#allocation3 + $0x1430] sm:$0xff]
          %v8895 = vld [vmem:[#allocation3 + $0x1438] sm:$0xff]
          %v8896 = vld [vmem:[#allocation3 + $0x1440] sm:$0xff]
          %v8897 = vld [vmem:[#allocation3 + $0x1448] sm:$0xff]
          %v8898 = vld [vmem:[#allocation3 + $0x1450] sm:$0xff]
          %v8899 = vld [vmem:[#allocation3 + $0x1458] sm:$0xff]
          %v8900 = vld [vmem:[#allocation3 + $0x1460] sm:$0xff]
          %v8901 = vld [vmem:[#allocation3 + $0x1468] sm:$0xff]
          %v8902 = vld [vmem:[#allocation3 + $0x1470] sm:$0xff]
          %v8903 = vld [vmem:[#allocation3 + $0x1478] sm:$0xff]
          %v8904 = vld [vmem:[#allocation3 + $0x1480] sm:$0xff]
          %v8905 = vld [vmem:[#allocation3 + $0x1488] sm:$0xff]
          %v8906 = vld [vmem:[#allocation3 + $0x1490] sm:$0xff]
          %v8907 = vld [vmem:[#allocation3 + $0x1498] sm:$0xff]
          %v8908 = vld [vmem:[#allocation3 + $0x14a0] sm:$0xff]
          %v8909 = vld [vmem:[#allocation3 + $0x14a8] sm:$0xff]
          %v8910 = vld [vmem:[#allocation3 + $0x14b0] sm:$0xff]
          %v8911 = vld [vmem:[#allocation3 + $0x14b8] sm:$0xff]
          %v8912 = vld [vmem:[#allocation3 + $0x14c0] sm:$0xff]
          %v8913 = vld [vmem:[#allocation3 + $0x14c8] sm:$0xff]
          %v8914 = vld [vmem:[#allocation3 + $0x14d0] sm:$0xff]
          %v8915 = vld [vmem:[#allocation3 + $0x14d8] sm:$0xff]
          %v8916 = vld [vmem:[#allocation3 + $0x14e0] sm:$0xff]
          %v8917 = vld [vmem:[#allocation3 + $0x14e8] sm:$0xff]
          %v8918 = vld [vmem:[#allocation3 + $0x14f0] sm:$0xff]
          %v8919 = vld [vmem:[#allocation3 + $0x14f8] sm:$0xff]
          %v8920 = vld [vmem:[#allocation3 + $0x1500] sm:$0xff]
          %v8921 = vld [vmem:[#allocation3 + $0x1508] sm:$0xff]
          %v8922 = vld [vmem:[#allocation3 + $0x1510] sm:$0xff]
          %v8923 = vld [vmem:[#allocation3 + $0x1518] sm:$0xff]
          %v8924 = vld [vmem:[#allocation3 + $0x1520] sm:$0xff]
          %v8925 = vld [vmem:[#allocation3 + $0x1528] sm:$0xff]
          %v8926 = vld [vmem:[#allocation3 + $0x1530] sm:$0xff]
          %v8927 = vld [vmem:[#allocation3 + $0x1538] sm:$0xff]
          %v8928 = vld [vmem:[#allocation3 + $0x1540] sm:$0xff]
          %v8929 = vld [vmem:[#allocation3 + $0x1548] sm:$0xff]
          %v8930 = vld [vmem:[#allocation3 + $0x1550] sm:$0xff]
          %v8931 = vld [vmem:[#allocation3 + $0x1558] sm:$0xff]
          %v8932 = vld [vmem:[#allocation3 + $0x1560] sm:$0xff]
          %v8933 = vld [vmem:[#allocation3 + $0x1568] sm:$0xff]
          %v8934 = vld [vmem:[#allocation3 + $0x1570] sm:$0xff]
          %v8935 = vld [vmem:[#allocation3 + $0x1578] sm:$0xff]
          %v8936 = vld [vmem:[#allocation3 + $0x1580] sm:$0xff]
          %v8937 = vld [vmem:[#allocation3 + $0x1588] sm:$0xff]
          %v8938 = vld [vmem:[#allocation3 + $0x1590] sm:$0xff]
          %v8939 = vld [vmem:[#allocation3 + $0x1598] sm:$0xff]
          %v8940 = vld [vmem:[#allocation3 + $0x15a0] sm:$0xff]
          %v8941 = vld [vmem:[#allocation3 + $0x15a8] sm:$0xff]
          %v8942 = vld [vmem:[#allocation3 + $0x15b0] sm:$0xff]
          %v8943 = vld [vmem:[#allocation3 + $0x15b8] sm:$0xff]
          %v8944 = vld [vmem:[#allocation3 + $0x15c0] sm:$0xff]
          %v8945 = vld [vmem:[#allocation3 + $0x15c8] sm:$0xff]
          %v8946 = vld [vmem:[#allocation3 + $0x15d0] sm:$0xff]
          %v8947 = vld [vmem:[#allocation3 + $0x15d8] sm:$0xff]
          %v8948 = vld [vmem:[#allocation3 + $0x15e0] sm:$0xff]
          %v8949 = vld [vmem:[#allocation3 + $0x15e8] sm:$0xff]
          %v8950 = vld [vmem:[#allocation3 + $0x15f0] sm:$0xff]
          %v8951 = vld [vmem:[#allocation3 + $0x15f8] sm:$0xff]
          %v8952 = vld [vmem:[#allocation3 + $0x1600] sm:$0xff]
          %v8953 = vld [vmem:[#allocation3 + $0x1608] sm:$0xff]
          %v8954 = vld [vmem:[#allocation3 + $0x1610] sm:$0xff]
          %v8955 = vld [vmem:[#allocation3 + $0x1618] sm:$0xff]
          %v8956 = vld [vmem:[#allocation3 + $0x1620] sm:$0xff]
          %v8957 = vld [vmem:[#allocation3 + $0x1628] sm:$0xff]
          %v8958 = vld [vmem:[#allocation3 + $0x1630] sm:$0xff]
          %v8959 = vld [vmem:[#allocation3 + $0x1638] sm:$0xff]
          %v8960 = vld [vmem:[#allocation3 + $0x1640] sm:$0xff]
          %v8961 = vld [vmem:[#allocation3 + $0x1648] sm:$0xff]
          %v8962 = vld [vmem:[#allocation3 + $0x1650] sm:$0xff]
          %v8963 = vld [vmem:[#allocation3 + $0x1658] sm:$0xff]
          %v8964 = vld [vmem:[#allocation3 + $0x1660] sm:$0xff]
          %v8965 = vld [vmem:[#allocation3 + $0x1668] sm:$0xff]
          %v8966 = vld [vmem:[#allocation3 + $0x1670] sm:$0xff]
          %v8967 = vld [vmem:[#allocation3 + $0x1678] sm:$0xff]
          %v8968 = vld [vmem:[#allocation3 + $0x1680] sm:$0xff]
          %v8969 = vld [vmem:[#allocation3 + $0x1688] sm:$0xff]
          %v8970 = vld [vmem:[#allocation3 + $0x1690] sm:$0xff]
          %v8971 = vld [vmem:[#allocation3 + $0x1698] sm:$0xff]
          %v8972 = vld [vmem:[#allocation3 + $0x16a0] sm:$0xff]
          %v8973 = vld [vmem:[#allocation3 + $0x16a8] sm:$0xff]
          %v8974 = vld [vmem:[#allocation3 + $0x16b0] sm:$0xff]
          %v8975 = vld [vmem:[#allocation3 + $0x16b8] sm:$0xff]
          %v8976 = vld [vmem:[#allocation3 + $0x16c0] sm:$0xff]
          %v8977 = vld [vmem:[#allocation3 + $0x16c8] sm:$0xff]
          %v8978 = vld [vmem:[#allocation3 + $0x16d0] sm:$0xff]
          %v8979 = vld [vmem:[#allocation3 + $0x16d8] sm:$0xff]
          %v8980 = vld [vmem:[#allocation3 + $0x16e0] sm:$0xff]
          %v8981 = vld [vmem:[#allocation3 + $0x16e8] sm:$0xff]
          %v8982 = vld [vmem:[#allocation3 + $0x16f0] sm:$0xff]
          %v8983 = vld [vmem:[#allocation3 + $0x16f8] sm:$0xff]
          %v8984 = vld [vmem:[#allocation3 + $0x1700] sm:$0xff]
          %v8985 = vld [vmem:[#allocation3 + $0x1708] sm:$0xff]
          %v8986 = vld [vmem:[#allocation3 + $0x1710] sm:$0xff]
          %v8987 = vld [vmem:[#allocation3 + $0x1718] sm:$0xff]
          %v8988 = vld [vmem:[#allocation3 + $0x1720] sm:$0xff]
          %v8989 = vld [vmem:[#allocation3 + $0x1728] sm:$0xff]
          %v8990 = vld [vmem:[#allocation3 + $0x1730] sm:$0xff]
          %v8991 = vld [vmem:[#allocation3 + $0x1738] sm:$0xff]
          %v8992 = vld [vmem:[#allocation3 + $0x1740] sm:$0xff]
          %v8993 = vld [vmem:[#allocation3 + $0x1748] sm:$0xff]
          %v8994 = vld [vmem:[#allocation3 + $0x1750] sm:$0xff]
          %v8995 = vld [vmem:[#allocation3 + $0x1758] sm:$0xff]
          %v8996 = vld [vmem:[#allocation3 + $0x1760] sm:$0xff]
          %v8997 = vld [vmem:[#allocation3 + $0x1768] sm:$0xff]
          %v8998 = vld [vmem:[#allocation3 + $0x1770] sm:$0xff]
          %v8999 = vld [vmem:[#allocation3 + $0x1778] sm:$0xff]
          %v9000 = vld [vmem:[#allocation3 + $0x1780] sm:$0xff]
          %v9001 = vld [vmem:[#allocation3 + $0x1788] sm:$0xff]
          %v9002 = vld [vmem:[#allocation3 + $0x1790] sm:$0xff]
          %v9003 = vld [vmem:[#allocation3 + $0x1798] sm:$0xff]
          %v9004 = vld [vmem:[#allocation3 + $0x17a0] sm:$0xff]
          %v9005 = vld [vmem:[#allocation3 + $0x17a8] sm:$0xff]
          %v9006 = vld [vmem:[#allocation3 + $0x17b0] sm:$0xff]
          %v9007 = vld [vmem:[#allocation3 + $0x17b8] sm:$0xff]
          %v9008 = vld [vmem:[#allocation3 + $0x17c0] sm:$0xff]
          %v9009 = vld [vmem:[#allocation3 + $0x17c8] sm:$0xff]
          %v9010 = vld [vmem:[#allocation3 + $0x17d0] sm:$0xff]
          %v9011 = vld [vmem:[#allocation3 + $0x17d8] sm:$0xff]
          %v9012 = vld [vmem:[#allocation3 + $0x17e0] sm:$0xff]
          %v9013 = vld [vmem:[#allocation3 + $0x17e8] sm:$0xff]
          %v9014 = vld [vmem:[#allocation3 + $0x17f0] sm:$0xff]
          %v9015 = vld [vmem:[#allocation3 + $0x17f8] sm:$0xff]
          %v9016 = vld [vmem:[#allocation3 + $0x1800] sm:$0xff]
          %v9017 = vld [vmem:[#allocation3 + $0x1808] sm:$0xff]
          %v9018 = vld [vmem:[#allocation3 + $0x1810] sm:$0xff]
          %v9019 = vld [vmem:[#allocation3 + $0x1818] sm:$0xff]
          %v9020 = vld [vmem:[#allocation3 + $0x1820] sm:$0xff]
          %v9021 = vld [vmem:[#allocation3 + $0x1828] sm:$0xff]
          %v9022 = vld [vmem:[#allocation3 + $0x1830] sm:$0xff]
          %v9023 = vld [vmem:[#allocation3 + $0x1838] sm:$0xff]
          %v9024 = vld [vmem:[#allocation3 + $0x1840] sm:$0xff]
          %v9025 = vld [vmem:[#allocation3 + $0x1848] sm:$0xff]
          %v9026 = vld [vmem:[#allocation3 + $0x1850] sm:$0xff]
          %v9027 = vld [vmem:[#allocation3 + $0x1858] sm:$0xff]
          %v9028 = vld [vmem:[#allocation3 + $0x1860] sm:$0xff]
          %v9029 = vld [vmem:[#allocation3 + $0x1868] sm:$0xff]
          %v9030 = vld [vmem:[#allocation3 + $0x1870] sm:$0xff]
          %v9031 = vld [vmem:[#allocation3 + $0x1878] sm:$0xff]
          %v9032 = vld [vmem:[#allocation3 + $0x1880] sm:$0xff]
          %v9033 = vld [vmem:[#allocation3 + $0x1888] sm:$0xff]
          %v9034 = vld [vmem:[#allocation3 + $0x1890] sm:$0xff]
          %v9035 = vld [vmem:[#allocation3 + $0x1898] sm:$0xff]
          %v9036 = vld [vmem:[#allocation3 + $0x18a0] sm:$0xff]
          %v9037 = vld [vmem:[#allocation3 + $0x18a8] sm:$0xff]
          %v9038 = vld [vmem:[#allocation3 + $0x18b0] sm:$0xff]
          %v9039 = vld [vmem:[#allocation3 + $0x18b8] sm:$0xff]
          %v9040 = vld [vmem:[#allocation3 + $0x18c0] sm:$0xff]
          %v9041 = vld [vmem:[#allocation3 + $0x18c8] sm:$0xff]
          %v9042 = vld [vmem:[#allocation3 + $0x18d0] sm:$0xff]
          %v9043 = vld [vmem:[#allocation3 + $0x18d8] sm:$0xff]
          %v9044 = vld [vmem:[#allocation3 + $0x18e0] sm:$0xff]
          %v9045 = vld [vmem:[#allocation3 + $0x18e8] sm:$0xff]
          %v9046 = vld [vmem:[#allocation3 + $0x18f0] sm:$0xff]
          %v9047 = vld [vmem:[#allocation3 + $0x18f8] sm:$0xff]
          %v9048 = vld [vmem:[#allocation3 + $0x1900] sm:$0xff]
          %v9049 = vld [vmem:[#allocation3 + $0x1908] sm:$0xff]
          %v9050 = vld [vmem:[#allocation3 + $0x1910] sm:$0xff]
          %v9051 = vld [vmem:[#allocation3 + $0x1918] sm:$0xff]
          %v9052 = vld [vmem:[#allocation3 + $0x1920] sm:$0xff]
          %v9053 = vld [vmem:[#allocation3 + $0x1928] sm:$0xff]
          %v9054 = vld [vmem:[#allocation3 + $0x1930] sm:$0xff]
          %v9055 = vld [vmem:[#allocation3 + $0x1938] sm:$0xff]
          %v9056 = vld [vmem:[#allocation3 + $0x1940] sm:$0xff]
          %v9057 = vld [vmem:[#allocation3 + $0x1948] sm:$0xff]
          %v9058 = vld [vmem:[#allocation3 + $0x1950] sm:$0xff]
          %v9059 = vld [vmem:[#allocation3 + $0x1958] sm:$0xff]
          %v9060 = vld [vmem:[#allocation3 + $0x1960] sm:$0xff]
          %v9061 = vld [vmem:[#allocation3 + $0x1968] sm:$0xff]
          %v9062 = vld [vmem:[#allocation3 + $0x1970] sm:$0xff]
          %v9063 = vld [vmem:[#allocation3 + $0x1978] sm:$0xff]
          %v9064 = vld [vmem:[#allocation3 + $0x1980] sm:$0xff]
          %v9065 = vld [vmem:[#allocation3 + $0x1988] sm:$0xff]
          %v9066 = vld [vmem:[#allocation3 + $0x1990] sm:$0xff]
          %v9067 = vld [vmem:[#allocation3 + $0x1998] sm:$0xff]
          %v9068 = vld [vmem:[#allocation3 + $0x19a0] sm:$0xff]
          %v9069 = vld [vmem:[#allocation3 + $0x19a8] sm:$0xff]
          %v9070 = vld [vmem:[#allocation3 + $0x19b0] sm:$0xff]
          %v9071 = vld [vmem:[#allocation3 + $0x19b8] sm:$0xff]
          %v9072 = vld [vmem:[#allocation3 + $0x19c0] sm:$0xff]
          %v9073 = vld [vmem:[#allocation3 + $0x19c8] sm:$0xff]
          %v9074 = vld [vmem:[#allocation3 + $0x19d0] sm:$0xff]
          %v9075 = vld [vmem:[#allocation3 + $0x19d8] sm:$0xff]
          %v9076 = vld [vmem:[#allocation3 + $0x19e0] sm:$0xff]
          %v9077 = vld [vmem:[#allocation3 + $0x19e8] sm:$0xff]
          %v9078 = vld [vmem:[#allocation3 + $0x19f0] sm:$0xff]
          %v9079 = vld [vmem:[#allocation3 + $0x19f8] sm:$0xff]
          %v9080 = vld [vmem:[#allocation3 + $0x1a00] sm:$0xff]
          %v9081 = vld [vmem:[#allocation3 + $0x1a08] sm:$0xff]
          %v9082 = vld [vmem:[#allocation3 + $0x1a10] sm:$0xff]
          %v9083 = vld [vmem:[#allocation3 + $0x1a18] sm:$0xff]
          %v9084 = vld [vmem:[#allocation3 + $0x1a20] sm:$0xff]
          %v9085 = vld [vmem:[#allocation3 + $0x1a28] sm:$0xff]
          %v9086 = vld [vmem:[#allocation3 + $0x1a30] sm:$0xff]
          %v9087 = vld [vmem:[#allocation3 + $0x1a38] sm:$0xff]
          %v9088 = vld [vmem:[#allocation3 + $0x1a40] sm:$0xff]
          %v9089 = vld [vmem:[#allocation3 + $0x1a48] sm:$0xff]
          %v9090 = vld [vmem:[#allocation3 + $0x1a50] sm:$0xff]
          %v9091 = vld [vmem:[#allocation3 + $0x1a58] sm:$0xff]
          %v9092 = vld [vmem:[#allocation3 + $0x1a60] sm:$0xff]
          %v9093 = vld [vmem:[#allocation3 + $0x1a68] sm:$0xff]
          %v9094 = vld [vmem:[#allocation3 + $0x1a70] sm:$0xff]
          %v9095 = vld [vmem:[#allocation3 + $0x1a78] sm:$0xff]
          %v9096 = vld [vmem:[#allocation3 + $0x1a80] sm:$0xff]
          %v9097 = vld [vmem:[#allocation3 + $0x1a88] sm:$0xff]
          %v9098 = vld [vmem:[#allocation3 + $0x1a90] sm:$0xff]
          %v9099 = vld [vmem:[#allocation3 + $0x1a98] sm:$0xff]
          %v9100 = vld [vmem:[#allocation3 + $0x1aa0] sm:$0xff]
          %v9101 = vld [vmem:[#allocation3 + $0x1aa8] sm:$0xff]
          %v9102 = vld [vmem:[#allocation3 + $0x1ab0] sm:$0xff]
          %v9103 = vld [vmem:[#allocation3 + $0x1ab8] sm:$0xff]
          %v9104 = vld [vmem:[#allocation3 + $0x1ac0] sm:$0xff]
          %v9105 = vld [vmem:[#allocation3 + $0x1ac8] sm:$0xff]
          %v9106 = vld [vmem:[#allocation3 + $0x1ad0] sm:$0xff]
          %v9107 = vld [vmem:[#allocation3 + $0x1ad8] sm:$0xff]
          %v9108 = vld [vmem:[#allocation3 + $0x1ae0] sm:$0xff]
          %v9109 = vld [vmem:[#allocation3 + $0x1ae8] sm:$0xff]
          %v9110 = vld [vmem:[#allocation3 + $0x1af0] sm:$0xff]
          %v9111 = vld [vmem:[#allocation3 + $0x1af8] sm:$0xff]
          %v9112 = vld [vmem:[#allocation3 + $0x1b00] sm:$0xff]
          %v9113 = vld [vmem:[#allocation3 + $0x1b08] sm:$0xff]
          %v9114 = vld [vmem:[#allocation3 + $0x1b10] sm:$0xff]
          %v9115 = vld [vmem:[#allocation3 + $0x1b18] sm:$0xff]
          %v9116 = vld [vmem:[#allocation3 + $0x1b20] sm:$0xff]
          %v9117 = vld [vmem:[#allocation3 + $0x1b28] sm:$0xff]
          %v9118 = vld [vmem:[#allocation3 + $0x1b30] sm:$0xff]
          %v9119 = vld [vmem:[#allocation3 + $0x1b38] sm:$0xff]
          %v9120 = vld [vmem:[#allocation3 + $0x1b40] sm:$0xff]
          %v9121 = vld [vmem:[#allocation3 + $0x1b48] sm:$0xff]
          %v9122 = vld [vmem:[#allocation3 + $0x1b50] sm:$0xff]
          %v9123 = vld [vmem:[#allocation3 + $0x1b58] sm:$0xff]
          %v9124 = vld [vmem:[#allocation3 + $0x1b60] sm:$0xff]
          %v9125 = vld [vmem:[#allocation3 + $0x1b68] sm:$0xff]
          %v9126 = vld [vmem:[#allocation3 + $0x1b70] sm:$0xff]
          %v9127 = vld [vmem:[#allocation3 + $0x1b78] sm:$0xff]
          %v9128 = vld [vmem:[#allocation3 + $0x1b80] sm:$0xff]
          %v9129 = vld [vmem:[#allocation3 + $0x1b88] sm:$0xff]
          %v9130 = vld [vmem:[#allocation3 + $0x1b90] sm:$0xff]
          %v9131 = vld [vmem:[#allocation3 + $0x1b98] sm:$0xff]
          %v9132 = vld [vmem:[#allocation3 + $0x1ba0] sm:$0xff]
          %v9133 = vld [vmem:[#allocation3 + $0x1ba8] sm:$0xff]
          %v9134 = vld [vmem:[#allocation3 + $0x1bb0] sm:$0xff]
          %v9135 = vld [vmem:[#allocation3 + $0x1bb8] sm:$0xff]
          %v9136 = vld [vmem:[#allocation3 + $0x1bc0] sm:$0xff]
          %v9137 = vld [vmem:[#allocation3 + $0x1bc8] sm:$0xff]
          %v9138 = vld [vmem:[#allocation3 + $0x1bd0] sm:$0xff]
          %v9139 = vld [vmem:[#allocation3 + $0x1bd8] sm:$0xff]
          %v9140 = vld [vmem:[#allocation3 + $0x1be0] sm:$0xff]
          %v9141 = vld [vmem:[#allocation3 + $0x1be8] sm:$0xff]
          %v9142 = vld [vmem:[#allocation3 + $0x1bf0] sm:$0xff]
          %v9143 = vld [vmem:[#allocation3 + $0x1bf8] sm:$0xff]
          %v9144 = vld [vmem:[#allocation3 + $0x1c00] sm:$0xff]
          %v9145 = vld [vmem:[#allocation3 + $0x1c08] sm:$0xff]
          %v9146 = vld [vmem:[#allocation3 + $0x1c10] sm:$0xff]
          %v9147 = vld [vmem:[#allocation3 + $0x1c18] sm:$0xff]
          %v9148 = vld [vmem:[#allocation3 + $0x1c20] sm:$0xff]
          %v9149 = vld [vmem:[#allocation3 + $0x1c28] sm:$0xff]
          %v9150 = vld [vmem:[#allocation3 + $0x1c30] sm:$0xff]
          %v9151 = vld [vmem:[#allocation3 + $0x1c38] sm:$0xff]
          %v9152 = vld [vmem:[#allocation3 + $0x1c40] sm:$0xff]
          %v9153 = vld [vmem:[#allocation3 + $0x1c48] sm:$0xff]
          %v9154 = vld [vmem:[#allocation3 + $0x1c50] sm:$0xff]
          %v9155 = vld [vmem:[#allocation3 + $0x1c58] sm:$0xff]
          %v9156 = vld [vmem:[#allocation3 + $0x1c60] sm:$0xff]
          %v9157 = vld [vmem:[#allocation3 + $0x1c68] sm:$0xff]
          %v9158 = vld [vmem:[#allocation3 + $0x1c70] sm:$0xff]
          %v9159 = vld [vmem:[#allocation3 + $0x1c78] sm:$0xff]
          %v9160 = vld [vmem:[#allocation3 + $0x1c80] sm:$0xff]
          %v9161 = vld [vmem:[#allocation3 + $0x1c88] sm:$0xff]
          %v9162 = vld [vmem:[#allocation3 + $0x1c90] sm:$0xff]
          %v9163 = vld [vmem:[#allocation3 + $0x1c98] sm:$0xff]
          %v9164 = vld [vmem:[#allocation3 + $0x1ca0] sm:$0xff]
          %v9165 = vld [vmem:[#allocation3 + $0x1ca8] sm:$0xff]
          %v9166 = vld [vmem:[#allocation3 + $0x1cb0] sm:$0xff]
          %v9167 = vld [vmem:[#allocation3 + $0x1cb8] sm:$0xff]
          %v9168 = vld [vmem:[#allocation3 + $0x1cc0] sm:$0xff]
          %v9169 = vld [vmem:[#allocation3 + $0x1cc8] sm:$0xff]
          %v9170 = vld [vmem:[#allocation3 + $0x1cd0] sm:$0xff]
          %v9171 = vld [vmem:[#allocation3 + $0x1cd8] sm:$0xff]
          %v9172 = vld [vmem:[#allocation3 + $0x1ce0] sm:$0xff]
          %v9173 = vld [vmem:[#allocation3 + $0x1ce8] sm:$0xff]
          %v9174 = vld [vmem:[#allocation3 + $0x1cf0] sm:$0xff]
          %v9175 = vld [vmem:[#allocation3 + $0x1cf8] sm:$0xff]
          %v9176 = vld [vmem:[#allocation3 + $0x1d00] sm:$0xff]
          %v9177 = vld [vmem:[#allocation3 + $0x1d08] sm:$0xff]
          %v9178 = vld [vmem:[#allocation3 + $0x1d10] sm:$0xff]
          %v9179 = vld [vmem:[#allocation3 + $0x1d18] sm:$0xff]
          %v9180 = vld [vmem:[#allocation3 + $0x1d20] sm:$0xff]
          %v9181 = vld [vmem:[#allocation3 + $0x1d28] sm:$0xff]
          %v9182 = vld [vmem:[#allocation3 + $0x1d30] sm:$0xff]
          %v9183 = vld [vmem:[#allocation3 + $0x1d38] sm:$0xff]
          %v9184 = vld [vmem:[#allocation3 + $0x1d40] sm:$0xff]
          %v9185 = vld [vmem:[#allocation3 + $0x1d48] sm:$0xff]
          %v9186 = vld [vmem:[#allocation3 + $0x1d50] sm:$0xff]
          %v9187 = vld [vmem:[#allocation3 + $0x1d58] sm:$0xff]
          %v9188 = vld [vmem:[#allocation3 + $0x1d60] sm:$0xff]
          %v9189 = vld [vmem:[#allocation3 + $0x1d68] sm:$0xff]
          %v9190 = vld [vmem:[#allocation3 + $0x1d70] sm:$0xff]
          %v9191 = vld [vmem:[#allocation3 + $0x1d78] sm:$0xff]
          %v9192 = vld [vmem:[#allocation3 + $0x1d80] sm:$0xff]
          %v9193 = vld [vmem:[#allocation3 + $0x1d88] sm:$0xff]
          %v9194 = vld [vmem:[#allocation3 + $0x1d90] sm:$0xff]
          %v9195 = vld [vmem:[#allocation3 + $0x1d98] sm:$0xff]
          %v9196 = vld [vmem:[#allocation3 + $0x1da0] sm:$0xff]
          %v9197 = vld [vmem:[#allocation3 + $0x1da8] sm:$0xff]
          %v9198 = vld [vmem:[#allocation3 + $0x1db0] sm:$0xff]
          %v9199 = vld [vmem:[#allocation3 + $0x1db8] sm:$0xff]
          %v9200 = vld [vmem:[#allocation3 + $0x1dc0] sm:$0xff]
          %v9201 = vld [vmem:[#allocation3 + $0x1dc8] sm:$0xff]
          %v9202 = vld [vmem:[#allocation3 + $0x1dd0] sm:$0xff]
          %v9203 = vld [vmem:[#allocation3 + $0x1dd8] sm:$0xff]
          %v9204 = vld [vmem:[#allocation3 + $0x1de0] sm:$0xff]
          %v9205 = vld [vmem:[#allocation3 + $0x1de8] sm:$0xff]
          %v9206 = vld [vmem:[#allocation3 + $0x1df0] sm:$0xff]
          %v9207 = vld [vmem:[#allocation3 + $0x1df8] sm:$0xff]
          %v9208 = vld [vmem:[#allocation3 + $0x1e00] sm:$0xff]
          %v9209 = vld [vmem:[#allocation3 + $0x1e08] sm:$0xff]
          %v9210 = vld [vmem:[#allocation3 + $0x1e10] sm:$0xff]
          %v9211 = vld [vmem:[#allocation3 + $0x1e18] sm:$0xff]
          %v9212 = vld [vmem:[#allocation3 + $0x1e20] sm:$0xff]
          %v9213 = vld [vmem:[#allocation3 + $0x1e28] sm:$0xff]
          %v9214 = vld [vmem:[#allocation3 + $0x1e30] sm:$0xff]
          %v9215 = vld [vmem:[#allocation3 + $0x1e38] sm:$0xff]
          %v9216 = vld [vmem:[#allocation3 + $0x1e40] sm:$0xff]
          %v9217 = vld [vmem:[#allocation3 + $0x1e48] sm:$0xff]
          %v9218 = vld [vmem:[#allocation3 + $0x1e50] sm:$0xff]
          %v9219 = vld [vmem:[#allocation3 + $0x1e58] sm:$0xff]
          %v9220 = vld [vmem:[#allocation3 + $0x1e60] sm:$0xff]
          %v9221 = vld [vmem:[#allocation3 + $0x1e68] sm:$0xff]
          %v9222 = vld [vmem:[#allocation3 + $0x1e70] sm:$0xff]
          %v9223 = vld [vmem:[#allocation3 + $0x1e78] sm:$0xff]
          %v9224 = vld [vmem:[#allocation3 + $0x1e80] sm:$0xff]
          %v9225 = vld [vmem:[#allocation3 + $0x1e88] sm:$0xff]
          %v9226 = vld [vmem:[#allocation3 + $0x1e90] sm:$0xff]
          %v9227 = vld [vmem:[#allocation3 + $0x1e98] sm:$0xff]
          %v9228 = vld [vmem:[#allocation3 + $0x1ea0] sm:$0xff]
          %v9229 = vld [vmem:[#allocation3 + $0x1ea8] sm:$0xff]
          %v9230 = vld [vmem:[#allocation3 + $0x1eb0] sm:$0xff]
          %v9231 = vld [vmem:[#allocation3 + $0x1eb8] sm:$0xff]
          %v9232 = vld [vmem:[#allocation3 + $0x1ec0] sm:$0xff]
          %v9233 = vld [vmem:[#allocation3 + $0x1ec8] sm:$0xff]
          %v9234 = vld [vmem:[#allocation3 + $0x1ed0] sm:$0xff]
          %v9235 = vld [vmem:[#allocation3 + $0x1ed8] sm:$0xff]
          %v9236 = vld [vmem:[#allocation3 + $0x1ee0] sm:$0xff]
          %v9237 = vld [vmem:[#allocation3 + $0x1ee8] sm:$0xff]
          %v9238 = vld [vmem:[#allocation3 + $0x1ef0] sm:$0xff]
          %v9239 = vld [vmem:[#allocation3 + $0x1ef8] sm:$0xff]
          %v9240 = vld [vmem:[#allocation3 + $0x1f00] sm:$0xff]
          %v9241 = vld [vmem:[#allocation3 + $0x1f08] sm:$0xff]
          %v9242 = vld [vmem:[#allocation3 + $0x1f10] sm:$0xff]
          %v9243 = vld [vmem:[#allocation3 + $0x1f18] sm:$0xff]
          %v9244 = vld [vmem:[#allocation3 + $0x1f20] sm:$0xff]
          %v9245 = vld [vmem:[#allocation3 + $0x1f28] sm:$0xff]
          %v9246 = vld [vmem:[#allocation3 + $0x1f30] sm:$0xff]
          %v9247 = vld [vmem:[#allocation3 + $0x1f38] sm:$0xff]
          %v9248 = vld [vmem:[#allocation3 + $0x1f40] sm:$0xff]
          %v9249 = vld [vmem:[#allocation3 + $0x1f48] sm:$0xff]
          %v9250 = vld [vmem:[#allocation3 + $0x1f50] sm:$0xff]
          %v9251 = vld [vmem:[#allocation3 + $0x1f58] sm:$0xff]
          %v9252 = vld [vmem:[#allocation3 + $0x1f60] sm:$0xff]
          %v9253 = vld [vmem:[#allocation3 + $0x1f68] sm:$0xff]
          %v9254 = vld [vmem:[#allocation3 + $0x1f70] sm:$0xff]
          %v9255 = vld [vmem:[#allocation3 + $0x1f78] sm:$0xff]
          %v9256 = vld [vmem:[#allocation3 + $0x1f80] sm:$0xff]
          %v9257 = vld [vmem:[#allocation3 + $0x1f88] sm:$0xff]
          %v9258 = vld [vmem:[#allocation3 + $0x1f90] sm:$0xff]
          %v9259 = vld [vmem:[#allocation3 + $0x1f98] sm:$0xff]
          %v9260 = vld [vmem:[#allocation3 + $0x1fa0] sm:$0xff]
          %v9261 = vld [vmem:[#allocation3 + $0x1fa8] sm:$0xff]
          %v9262 = vld [vmem:[#allocation3 + $0x1fb0] sm:$0xff]
          %v9263 = vld [vmem:[#allocation3 + $0x1fb8] sm:$0xff]
          %v9264 = vld [vmem:[#allocation3 + $0x1fc0] sm:$0xff]
          %v9265 = vld [vmem:[#allocation3 + $0x1fc8] sm:$0xff]
          %v9266 = vld [vmem:[#allocation3 + $0x1fd0] sm:$0xff]
          %v9267 = vld [vmem:[#allocation3 + $0x1fd8] sm:$0xff]
          %v9268 = vld [vmem:[#allocation3 + $0x1fe0] sm:$0xff]
          %v9269 = vld [vmem:[#allocation3 + $0x1fe8] sm:$0xff]
          %v9270 = vld [vmem:[#allocation3 + $0x1ff0] sm:$0xff]
          %v9271 = vld [vmem:[#allocation3 + $0x1ff8] sm:$0xff]
          %v9272 = vld [vmem:[#allocation12] sm:$0xff]
          %v9274 = vlaneseq
          %v9275 = vshrl.u32 %v9274, 7
          %v9276 = vsub.s32 0, %v9275
          %v9277 = vrot.slane %v9272, %v9276
          %v9278 = vlaneseq
          %v9279 = vshrl.u32 %v9278, 7
          %v9280 = vsub.s32 1, %v9279
          %v9281 = vrot.slane %v9272, %v9280
          %v9282 = vlaneseq
          %v9283 = vshrl.u32 %v9282, 7
          %v9284 = vsub.s32 2, %v9283
          %v9285 = vrot.slane %v9272, %v9284
          %v9286 = vlaneseq
          %v9287 = vshrl.u32 %v9286, 7
          %v9288 = vsub.s32 3, %v9287
          %v9289 = vrot.slane %v9272, %v9288
          %v9290 = vlaneseq
          %v9291 = vshrl.u32 %v9290, 7
          %v9292 = vsub.s32 4, %v9291
          %v9293 = vrot.slane %v9272, %v9292
          %v9294 = vlaneseq
          %v9295 = vshrl.u32 %v9294, 7
          %v9296 = vsub.s32 5, %v9295
          %v9297 = vrot.slane %v9272, %v9296
          %v9298 = vlaneseq
          %v9299 = vshrl.u32 %v9298, 7
          %v9300 = vsub.s32 6, %v9299
          %v9301 = vrot.slane %v9272, %v9300
          %v9302 = vlaneseq
          %v9303 = vshrl.u32 %v9302, 7
          %v9304 = vsub.s32 7, %v9303
          %v9305 = vrot.slane %v9272, %v9304
          %9314 = vmatprep.subr.bf16.mxu0 %v8249
          %9315 = vmatpush1.bf16.msra.mxu0 %v8248
          %9316 = vmatprep.subr.bf16.mxu0 %v8257
          %9317 = vmatpush1.bf16.msra.mxu0 %v8256
          %9318 = vmatprep.subr.bf16.mxu0 %v8265
          %9319 = vmatpush1.bf16.msra.mxu0 %v8264
          %9320 = vmatprep.subr.bf16.mxu0 %v8273
          %9321 = vmatpush1.bf16.msra.mxu0 %v8272
          %9322 = vmatprep.subr.bf16.mxu0 %v8281
          %9323 = vmatpush1.bf16.msra.mxu0 %v8280
          %9324 = vmatprep.subr.bf16.mxu0 %v8289
          %9325 = vmatpush1.bf16.msra.mxu0 %v8288
          %9326 = vmatprep.subr.bf16.mxu0 %v8297
          %9327 = vmatpush1.bf16.msra.mxu0 %v8296
          %9328 = vmatprep.subr.bf16.mxu0 %v8305
          %9329 = vmatpush1.bf16.msra.mxu0 %v8304
          %9330 = vmatprep.subr.bf16.mxu0 %v8313
          %9331 = vmatpush1.bf16.msra.mxu0 %v8312
          %9332 = vmatprep.subr.bf16.mxu0 %v8321
          %9333 = vmatpush1.bf16.msra.mxu0 %v8320
          %9334 = vmatprep.subr.bf16.mxu0 %v8329
          %9335 = vmatpush1.bf16.msra.mxu0 %v8328
          %9336 = vmatprep.subr.bf16.mxu0 %v8337
          %9337 = vmatpush1.bf16.msra.mxu0 %v8336
          %9338 = vmatprep.subr.bf16.mxu0 %v8345
          %9339 = vmatpush1.bf16.msra.mxu0 %v8344
          %9340 = vmatprep.subr.bf16.mxu0 %v8353
          %9341 = vmatpush1.bf16.msra.mxu0 %v8352
          %9342 = vmatprep.subr.bf16.mxu0 %v8361
          %9343 = vmatpush1.bf16.msra.mxu0 %v8360
          %9344 = vmatprep.subr.bf16.mxu0 %v8369
          %9345 = vmatpush1.bf16.msra.mxu0 %v8368
          %9346 = vmatprep.mubr.bf16.mxu0 %v8233
          %9347 = vmatmul.mubr.bf16.gmra.mrb[0].mxu0 %v8232
          %v9348 = vpop.f32.mrb[0].mxu0
          %v9349 = vadd.f32 %v9277, %v9348
          %v9350 = vpop.f32.mrb[0].mxu0
          %v9351 = vadd.f32 %v9281, %v9350
          %v9352 = vpop.f32.mrb[0].mxu0
          %v9353 = vpop.f32.mrb[0].mxu0
          %9354 = vdwg.mxu0
          %9355 = vmatprep.subr.bf16.mxu0 %v8377
          %9356 = vmatpush1.bf16.msra.mxu0 %v8376
          %9357 = vmatprep.subr.bf16.mxu0 %v8385
          %9358 = vmatpush1.bf16.msra.mxu0 %v8384
          %9359 = vmatprep.subr.bf16.mxu0 %v8393
          %9360 = vmatpush1.bf16.msra.mxu0 %v8392
          %9361 = vmatprep.subr.bf16.mxu0 %v8401
          %9362 = vmatpush1.bf16.msra.mxu0 %v8400
          %9363 = vmatprep.subr.bf16.mxu0 %v8409
          %9364 = vmatpush1.bf16.msra.mxu0 %v8408
          %9365 = vmatprep.subr.bf16.mxu0 %v8417
          %9366 = vmatpush1.bf16.msra.mxu0 %v8416
          %9367 = vmatprep.subr.bf16.mxu0 %v8425
          %9368 = vmatpush1.bf16.msra.mxu0 %v8424
          %9369 = vmatprep.subr.bf16.mxu0 %v8433
          %9370 = vmatpush1.bf16.msra.mxu0 %v8432
          %9371 = vmatprep.subr.bf16.mxu0 %v8441
          %9372 = vmatpush1.bf16.msra.mxu0 %v8440
          %9373 = vmatprep.subr.bf16.mxu0 %v8449
          %9374 = vmatpush1.bf16.msra.mxu0 %v8448
          %9375 = vmatprep.subr.bf16.mxu0 %v8457
          %9376 = vmatpush1.bf16.msra.mxu0 %v8456
          %9377 = vmatprep.subr.bf16.mxu0 %v8465
          %9378 = vmatpush1.bf16.msra.mxu0 %v8464
          %9379 = vmatprep.subr.bf16.mxu0 %v8473
          %9380 = vmatpush1.bf16.msra.mxu0 %v8472
          %9381 = vmatprep.subr.bf16.mxu0 %v8481
          %9382 = vmatpush1.bf16.msra.mxu0 %v8480
          %9383 = vmatprep.subr.bf16.mxu0 %v8489
          %9384 = vmatpush1.bf16.msra.mxu0 %v8488
          %9385 = vmatprep.subr.bf16.mxu0 %v8497
          %9386 = vmatpush1.bf16.msra.mxu0 %v8496
          %9387 = vmatprep.mubr.bf16.mxu0 %v8235
          %9388 = vmatmul.mubr.bf16.gmra.mrb[0].mxu0 %v8234
          %v9389 = vpop.f32.mrb[0].mxu0
          %v9390 = vadd.f32 %v9349, %v9389
          %v9391 = vpop.f32.mrb[0].mxu0
          %v9392 = vadd.f32 %v9351, %v9391
          %v9393 = vpop.f32.mrb[0].mxu0
          %v9394 = vpop.f32.mrb[0].mxu0
          %9395 = vdwg.mxu0
          %9396 = vmatprep.subr.bf16.mxu0 %v8505
          %9397 = vmatpush1.bf16.msra.mxu0 %v8504
          %9398 = vmatprep.subr.bf16.mxu0 %v8513
          %9399 = vmatpush1.bf16.msra.mxu0 %v8512
          %9400 = vmatprep.subr.bf16.mxu0 %v8521
          %9401 = vmatpush1.bf16.msra.mxu0 %v8520
          %9402 = vmatprep.subr.bf16.mxu0 %v8529
          %9403 = vmatpush1.bf16.msra.mxu0 %v8528
          %9404 = vmatprep.subr.bf16.mxu0 %v8537
          %9405 = vmatpush1.bf16.msra.mxu0 %v8536
          %9406 = vmatprep.subr.bf16.mxu0 %v8545
          %9407 = vmatpush1.bf16.msra.mxu0 %v8544
          %9408 = vmatprep.subr.bf16.mxu0 %v8553
          %9409 = vmatpush1.bf16.msra.mxu0 %v8552
          %9410 = vmatprep.subr.bf16.mxu0 %v8561
          %9411 = vmatpush1.bf16.msra.mxu0 %v8560
          %9412 = vmatprep.subr.bf16.mxu0 %v8569
          %9413 = vmatpush1.bf16.msra.mxu0 %v8568
          %9414 = vmatprep.subr.bf16.mxu0 %v8577
          %9415 = vmatpush1.bf16.msra.mxu0 %v8576
          %9416 = vmatprep.subr.bf16.mxu0 %v8585
          %9417 = vmatpush1.bf16.msra.mxu0 %v8584
          %9418 = vmatprep.subr.bf16.mxu0 %v8593
          %9419 = vmatpush1.bf16.msra.mxu0 %v8592
          %9420 = vmatprep.subr.bf16.mxu0 %v8601
          %9421 = vmatpush1.bf16.msra.mxu0 %v8600
          %9422 = vmatprep.subr.bf16.mxu0 %v8609
          %9423 = vmatpush1.bf16.msra.mxu0 %v8608
          %9424 = vmatprep.subr.bf16.mxu0 %v8617
          %9425 = vmatpush1.bf16.msra.mxu0 %v8616
          %9426 = vmatprep.subr.bf16.mxu0 %v8625
          %9427 = vmatpush1.bf16.msra.mxu0 %v8624
          %9428 = vmatprep.mubr.bf16.mxu0 %v8237
          %9429 = vmatmul.mubr.bf16.gmra.mrb[0].mxu0 %v8236
          %v9430 = vpop.f32.mrb[0].mxu0
          %v9431 = vadd.f32 %v9390, %v9430
          %v9432 = vpop.f32.mrb[0].mxu0
          %v9433 = vadd.f32 %v9392, %v9432
          %v9434 = vpop.f32.mrb[0].mxu0
          %v9435 = vpop.f32.mrb[0].mxu0
          %9436 = vdwg.mxu0
          %9437 = vmatprep.subr.bf16.mxu0 %v8633
          %9438 = vmatpush1.bf16.msra.mxu0 %v8632
          %9439 = vmatprep.subr.bf16.mxu0 %v8641
          %9440 = vmatpush1.bf16.msra.mxu0 %v8640
          %9441 = vmatprep.subr.bf16.mxu0 %v8649
          %9442 = vmatpush1.bf16.msra.mxu0 %v8648
          %9443 = vmatprep.subr.bf16.mxu0 %v8657
          %9444 = vmatpush1.bf16.msra.mxu0 %v8656
          %9445 = vmatprep.subr.bf16.mxu0 %v8665
          %9446 = vmatpush1.bf16.msra.mxu0 %v8664
          %9447 = vmatprep.subr.bf16.mxu0 %v8673
          %9448 = vmatpush1.bf16.msra.mxu0 %v8672
          %9449 = vmatprep.subr.bf16.mxu0 %v8681
          %9450 = vmatpush1.bf16.msra.mxu0 %v8680
          %9451 = vmatprep.subr.bf16.mxu0 %v8689
          %9452 = vmatpush1.bf16.msra.mxu0 %v8688
          %9453 = vmatprep.subr.bf16.mxu0 %v8697
          %9454 = vmatpush1.bf16.msra.mxu0 %v8696
          %9455 = vmatprep.subr.bf16.mxu0 %v8705
          %9456 = vmatpush1.bf16.msra.mxu0 %v8704
          %9457 = vmatprep.subr.bf16.mxu0 %v8713
          %9458 = vmatpush1.bf16.msra.mxu0 %v8712
          %9459 = vmatprep.subr.bf16.mxu0 %v8721
          %9460 = vmatpush1.bf16.msra.mxu0 %v8720
          %9461 = vmatprep.subr.bf16.mxu0 %v8729
          %9462 = vmatpush1.bf16.msra.mxu0 %v8728
          %9463 = vmatprep.subr.bf16.mxu0 %v8737
          %9464 = vmatpush1.bf16.msra.mxu0 %v8736
          %9465 = vmatprep.subr.bf16.mxu0 %v8745
          %9466 = vmatpush1.bf16.msra.mxu0 %v8744
          %9467 = vmatprep.subr.bf16.mxu0 %v8753
          %9468 = vmatpush1.bf16.msra.mxu0 %v8752
          %9469 = vmatprep.mubr.bf16.mxu0 %v8239
          %9470 = vmatmul.mubr.bf16.gmra.mrb[0].mxu0 %v8238
          %v9471 = vpop.f32.mrb[0].mxu0
          %v9472 = vadd.f32 %v9431, %v9471
          %v9473 = vpop.f32.mrb[0].mxu0
          %v9474 = vadd.f32 %v9433, %v9473
          %v9475 = vpop.f32.mrb[0].mxu0
          %v9476 = vpop.f32.mrb[0].mxu0
          %9477 = vdwg.mxu0
          %9478 = vmatprep.subr.bf16.mxu0 %v8761
          %9479 = vmatpush1.bf16.msra.mxu0 %v8760
          %9480 = vmatprep.subr.bf16.mxu0 %v8769
          %9481 = vmatpush1.bf16.msra.mxu0 %v8768
          %9482 = vmatprep.subr.bf16.mxu0 %v8777
          %9483 = vmatpush1.bf16.msra.mxu0 %v8776
          %9484 = vmatprep.subr.bf16.mxu0 %v8785
          %9485 = vmatpush1.bf16.msra.mxu0 %v8784
          %9486 = vmatprep.subr.bf16.mxu0 %v8793
          %9487 = vmatpush1.bf16.msra.mxu0 %v8792
          %9488 = vmatprep.subr.bf16.mxu0 %v8801
          %9489 = vmatpush1.bf16.msra.mxu0 %v8800
          %9490 = vmatprep.subr.bf16.mxu0 %v8809
          %9491 = vmatpush1.bf16.msra.mxu0 %v8808
          %9492 = vmatprep.subr.bf16.mxu0 %v8817
          %9493 = vmatpush1.bf16.msra.mxu0 %v8816
          %9494 = vmatprep.subr.bf16.mxu0 %v8825
          %9495 = vmatpush1.bf16.msra.mxu0 %v8824
          %9496 = vmatprep.subr.bf16.mxu0 %v8833
          %9497 = vmatpush1.bf16.msra.mxu0 %v8832
          %9498 = vmatprep.subr.bf16.mxu0 %v8841
          %9499 = vmatpush1.bf16.msra.mxu0 %v8840
          %9500 = vmatprep.subr.bf16.mxu0 %v8849
          %9501 = vmatpush1.bf16.msra.mxu0 %v8848
          %9502 = vmatprep.subr.bf16.mxu0 %v8857
          %9503 = vmatpush1.bf16.msra.mxu0 %v8856
          %9504 = vmatprep.subr.bf16.mxu0 %v8865
          %9505 = vmatpush1.bf16.msra.mxu0 %v8864
          %9506 = vmatprep.subr.bf16.mxu0 %v8873
          %9507 = vmatpush1.bf16.msra.mxu0 %v8872
          %9508 = vmatprep.subr.bf16.mxu0 %v8881
          %9509 = vmatpush1.bf16.msra.mxu0 %v8880
          %9510 = vmatprep.mubr.bf16.mxu0 %v8241
          %9511 = vmatmul.mubr.bf16.gmra.mrb[0].mxu0 %v8240
          %v9512 = vpop.f32.mrb[0].mxu0
          %v9513 = vadd.f32 %v9472, %v9512
          %v9514 = vpop.f32.mrb[0].mxu0
          %v9515 = vadd.f32 %v9474, %v9514
          %v9516 = vpop.f32.mrb[0].mxu0
          %v9517 = vpop.f32.mrb[0].mxu0
          %9518 = vdwg.mxu0
          %9519 = vmatprep.subr.bf16.mxu0 %v8889
          %9520 = vmatpush1.bf16.msra.mxu0 %v8888
          %9521 = vmatprep.subr.bf16.mxu0 %v8897
          %9522 = vmatpush1.bf16.msra.mxu0 %v8896
          %9523 = vmatprep.subr.bf16.mxu0 %v8905
          %9524 = vmatpush1.bf16.msra.mxu0 %v8904
          %9525 = vmatprep.subr.bf16.mxu0 %v8913
          %9526 = vmatpush1.bf16.msra.mxu0 %v8912
          %9527 = vmatprep.subr.bf16.mxu0 %v8921
          %9528 = vmatpush1.bf16.msra.mxu0 %v8920
          %9529 = vmatprep.subr.bf16.mxu0 %v8929
          %9530 = vmatpush1.bf16.msra.mxu0 %v8928
          %9531 = vmatprep.subr.bf16.mxu0 %v8937
          %9532 = vmatpush1.bf16.msra.mxu0 %v8936
          %9533 = vmatprep.subr.bf16.mxu0 %v8945
          %9534 = vmatpush1.bf16.msra.mxu0 %v8944
          %9535 = vmatprep.subr.bf16.mxu0 %v8953
          %9536 = vmatpush1.bf16.msra.mxu0 %v8952
          %9537 = vmatprep.subr.bf16.mxu0 %v8961
          %9538 = vmatpush1.bf16.msra.mxu0 %v8960
          %9539 = vmatprep.subr.bf16.mxu0 %v8969
          %9540 = vmatpush1.bf16.msra.mxu0 %v8968
          %9541 = vmatprep.subr.bf16.mxu0 %v8977
          %9542 = vmatpush1.bf16.msra.mxu0 %v8976
          %9543 = vmatprep.subr.bf16.mxu0 %v8985
          %9544 = vmatpush1.bf16.msra.mxu0 %v8984
          %9545 = vmatprep.subr.bf16.mxu0 %v8993
          %9546 = vmatpush1.bf16.msra.mxu0 %v8992
          %9547 = vmatprep.subr.bf16.mxu0 %v9001
          %9548 = vmatpush1.bf16.msra.mxu0 %v9000
          %9549 = vmatprep.subr.bf16.mxu0 %v9009
          %9550 = vmatpush1.bf16.msra.mxu0 %v9008
          %9551 = vmatprep.mubr.bf16.mxu0 %v8243
          %9552 = vmatmul.mubr.bf16.gmra.mrb[0].mxu0 %v8242
          %v9553 = vpop.f32.mrb[0].mxu0
          %v9554 = vadd.f32 %v9513, %v9553
          %v9555 = vpop.f32.mrb[0].mxu0
          %v9556 = vadd.f32 %v9515, %v9555
          %v9557 = vpop.f32.mrb[0].mxu0
          %v9558 = vpop.f32.mrb[0].mxu0
          %9559 = vdwg.mxu0
          %9560 = vmatprep.subr.bf16.mxu0 %v9017
          %9561 = vmatpush1.bf16.msra.mxu0 %v9016
          %9562 = vmatprep.subr.bf16.mxu0 %v9025
          %9563 = vmatpush1.bf16.msra.mxu0 %v9024
          %9564 = vmatprep.subr.bf16.mxu0 %v9033
          %9565 = vmatpush1.bf16.msra.mxu0 %v9032
          %9566 = vmatprep.subr.bf16.mxu0 %v9041
          %9567 = vmatpush1.bf16.msra.mxu0 %v9040
          %9568 = vmatprep.subr.bf16.mxu0 %v9049
          %9569 = vmatpush1.bf16.msra.mxu0 %v9048
          %9570 = vmatprep.subr.bf16.mxu0 %v9057
          %9571 = vmatpush1.bf16.msra.mxu0 %v9056
          %9572 = vmatprep.subr.bf16.mxu0 %v9065
          %9573 = vmatpush1.bf16.msra.mxu0 %v9064
          %9574 = vmatprep.subr.bf16.mxu0 %v9073
          %9575 = vmatpush1.bf16.msra.mxu0 %v9072
          %9576 = vmatprep.subr.bf16.mxu0 %v9081
          %9577 = vmatpush1.bf16.msra.mxu0 %v9080
          %9578 = vmatprep.subr.bf16.mxu0 %v9089
          %9579 = vmatpush1.bf16.msra.mxu0 %v9088
          %9580 = vmatprep.subr.bf16.mxu0 %v9097
          %9581 = vmatpush1.bf16.msra.mxu0 %v9096
          %9582 = vmatprep.subr.bf16.mxu0 %v9105
          %9583 = vmatpush1.bf16.msra.mxu0 %v9104
          %9584 = vmatprep.subr.bf16.mxu0 %v9113
          %9585 = vmatpush1.bf16.msra.mxu0 %v9112
          %9586 = vmatprep.subr.bf16.mxu0 %v9121
          %9587 = vmatpush1.bf16.msra.mxu0 %v9120
          %9588 = vmatprep.subr.bf16.mxu0 %v9129
          %9589 = vmatpush1.bf16.msra.mxu0 %v9128
          %9590 = vmatprep.subr.bf16.mxu0 %v9137
          %9591 = vmatpush1.bf16.msra.mxu0 %v9136
          %9592 = vmatprep.mubr.bf16.mxu0 %v8245
          %9593 = vmatmul.mubr.bf16.gmra.mrb[0].mxu0 %v8244
          %v9594 = vpop.f32.mrb[0].mxu0
          %v9595 = vadd.f32 %v9554, %v9594
          %v9596 = vpop.f32.mrb[0].mxu0
          %v9597 = vadd.f32 %v9556, %v9596
          %v9598 = vpop.f32.mrb[0].mxu0
          %v9599 = vpop.f32.mrb[0].mxu0
          %9600 = vdwg.mxu0
          %9601 = vmatprep.subr.bf16.mxu0 %v9145
          %9602 = vmatpush1.bf16.msra.mxu0 %v9144
          %9603 = vmatprep.subr.bf16.mxu0 %v9153
          %9604 = vmatpush1.bf16.msra.mxu0 %v9152
          %9605 = vmatprep.subr.bf16.mxu0 %v9161
          %9606 = vmatpush1.bf16.msra.mxu0 %v9160
          %9607 = vmatprep.subr.bf16.mxu0 %v9169
          %9608 = vmatpush1.bf16.msra.mxu0 %v9168
          %9609 = vmatprep.subr.bf16.mxu0 %v9177
          %9610 = vmatpush1.bf16.msra.mxu0 %v9176
          %9611 = vmatprep.subr.bf16.mxu0 %v9185
          %9612 = vmatpush1.bf16.msra.mxu0 %v9184
          %9613 = vmatprep.subr.bf16.mxu0 %v9193
          %9614 = vmatpush1.bf16.msra.mxu0 %v9192
          %9615 = vmatprep.subr.bf16.mxu0 %v9201
          %9616 = vmatpush1.bf16.msra.mxu0 %v9200
          %9617 = vmatprep.subr.bf16.mxu0 %v9209
          %9618 = vmatpush1.bf16.msra.mxu0 %v9208
          %9619 = vmatprep.subr.bf16.mxu0 %v9217
          %9620 = vmatpush1.bf16.msra.mxu0 %v9216
          %9621 = vmatprep.subr.bf16.mxu0 %v9225
          %9622 = vmatpush1.bf16.msra.mxu0 %v9224
          %9623 = vmatprep.subr.bf16.mxu0 %v9233
          %9624 = vmatpush1.bf16.msra.mxu0 %v9232
          %9625 = vmatprep.subr.bf16.mxu0 %v9241
          %9626 = vmatpush1.bf16.msra.mxu0 %v9240
          %9627 = vmatprep.subr.bf16.mxu0 %v9249
          %9628 = vmatpush1.bf16.msra.mxu0 %v9248
          %9629 = vmatprep.subr.bf16.mxu0 %v9257
          %9630 = vmatpush1.bf16.msra.mxu0 %v9256
          %9631 = vmatprep.subr.bf16.mxu0 %v9265
          %9632 = vmatpush1.bf16.msra.mxu0 %v9264
          %9633 = vmatprep.mubr.bf16.mxu0 %v8247
          %9634 = vmatmul.mubr.bf16.gmra.mrb[0].mxu0 %v8246
          %v9635 = vpop.f32.mrb[0].mxu0
          %v9636 = vadd.f32 %v9595, %v9635
          %v9637 = vpop.f32.mrb[0].mxu0
          %v9638 = vadd.f32 %v9597, %v9637
          %v9639 = vpop.f32.mrb[0].mxu0
          %v9640 = vpop.f32.mrb[0].mxu0
          %9641 = vdwg.mxu0
          %9642 = vmatprep.subr.bf16.mxu0 %v8251
          %9643 = vmatpush1.bf16.msra.mxu0 %v8250
          %9644 = vmatprep.subr.bf16.mxu0 %v8259
          %9645 = vmatpush1.bf16.msra.mxu0 %v8258
          %9646 = vmatprep.subr.bf16.mxu0 %v8267
          %9647 = vmatpush1.bf16.msra.mxu0 %v8266
          %9648 = vmatprep.subr.bf16.mxu0 %v8275
          %9649 = vmatpush1.bf16.msra.mxu0 %v8274
          %9650 = vmatprep.subr.bf16.mxu0 %v8283
          %9651 = vmatpush1.bf16.msra.mxu0 %v8282
          %9652 = vmatprep.subr.bf16.mxu0 %v8291
          %9653 = vmatpush1.bf16.msra.mxu0 %v8290
          %9654 = vmatprep.subr.bf16.mxu0 %v8299
          %9655 = vmatpush1.bf16.msra.mxu0 %v8298
          %9656 = vmatprep.subr.bf16.mxu0 %v8307
          %9657 = vmatpush1.bf16.msra.mxu0 %v8306
          %9658 = vmatprep.subr.bf16.mxu0 %v8315
          %9659 = vmatpush1.bf16.msra.mxu0 %v8314
          %9660 = vmatprep.subr.bf16.mxu0 %v8323
          %9661 = vmatpush1.bf16.msra.mxu0 %v8322
          %9662 = vmatprep.subr.bf16.mxu0 %v8331
          %9663 = vmatpush1.bf16.msra.mxu0 %v8330
          %9664 = vmatprep.subr.bf16.mxu0 %v8339
          %9665 = vmatpush1.bf16.msra.mxu0 %v8338
          %9666 = vmatprep.subr.bf16.mxu0 %v8347
          %9667 = vmatpush1.bf16.msra.mxu0 %v8346
          %9668 = vmatprep.subr.bf16.mxu0 %v8355
          %9669 = vmatpush1.bf16.msra.mxu0 %v8354
          %9670 = vmatprep.subr.bf16.mxu0 %v8363
          %9671 = vmatpush1.bf16.msra.mxu0 %v8362
          %9672 = vmatprep.subr.bf16.mxu0 %v8371
          %9673 = vmatpush1.bf16.msra.mxu0 %v8370
          %9674 = vmatprep.mubr.bf16.mxu0 %v8233
          %9675 = vmatmul.mubr.bf16.gmra.mrb[0].mxu0 %v8232
          %v9676 = vpop.f32.mrb[0].mxu0
          %v9677 = vadd.f32 %v9285, %v9676
          %v9678 = vpop.f32.mrb[0].mxu0
          %v9679 = vadd.f32 %v9289, %v9678
          %v9680 = vpop.f32.mrb[0].mxu0
          %v9681 = vpop.f32.mrb[0].mxu0
          %9682 = vdwg.mxu0
          %9683 = vmatprep.subr.bf16.mxu0 %v8379
          %9684 = vmatpush1.bf16.msra.mxu0 %v8378
          %9685 = vmatprep.subr.bf16.mxu0 %v8387
          %9686 = vmatpush1.bf16.msra.mxu0 %v8386
          %9687 = vmatprep.subr.bf16.mxu0 %v8395
          %9688 = vmatpush1.bf16.msra.mxu0 %v8394
          %9689 = vmatprep.subr.bf16.mxu0 %v8403
          %9690 = vmatpush1.bf16.msra.mxu0 %v8402
          %9691 = vmatprep.subr.bf16.mxu0 %v8411
          %9692 = vmatpush1.bf16.msra.mxu0 %v8410
          %9693 = vmatprep.subr.bf16.mxu0 %v8419
          %9694 = vmatpush1.bf16.msra.mxu0 %v8418
          %9695 = vmatprep.subr.bf16.mxu0 %v8427
          %9696 = vmatpush1.bf16.msra.mxu0 %v8426
          %9697 = vmatprep.subr.bf16.mxu0 %v8435
          %9698 = vmatpush1.bf16.msra.mxu0 %v8434
          %9699 = vmatprep.subr.bf16.mxu0 %v8443
          %9700 = vmatpush1.bf16.msra.mxu0 %v8442
          %9701 = vmatprep.subr.bf16.mxu0 %v8451
          %9702 = vmatpush1.bf16.msra.mxu0 %v8450
          %9703 = vmatprep.subr.bf16.mxu0 %v8459
          %9704 = vmatpush1.bf16.msra.mxu0 %v8458
          %9705 = vmatprep.subr.bf16.mxu0 %v8467
          %9706 = vmatpush1.bf16.msra.mxu0 %v8466
          %9707 = vmatprep.subr.bf16.mxu0 %v8475
          %9708 = vmatpush1.bf16.msra.mxu0 %v8474
          %9709 = vmatprep.subr.bf16.mxu0 %v8483
          %9710 = vmatpush1.bf16.msra.mxu0 %v8482
          %9711 = vmatprep.subr.bf16.mxu0 %v8491
          %9712 = vmatpush1.bf16.msra.mxu0 %v8490
          %9713 = vmatprep.subr.bf16.mxu0 %v8499
          %9714 = vmatpush1.bf16.msra.mxu0 %v8498
          %9715 = vmatprep.mubr.bf16.mxu0 %v8235
          %9716 = vmatmul.mubr.bf16.gmra.mrb[0].mxu0 %v8234
          %v9717 = vpop.f32.mrb[0].mxu0
          %v9718 = vadd.f32 %v9677, %v9717
          %v9719 = vpop.f32.mrb[0].mxu0
          %v9720 = vadd.f32 %v9679, %v9719
          %v9721 = vpop.f32.mrb[0].mxu0
          %v9722 = vpop.f32.mrb[0].mxu0
          %9723 = vdwg.mxu0
          %9724 = vmatprep.subr.bf16.mxu0 %v8507
          %9725 = vmatpush1.bf16.msra.mxu0 %v8506
          %9726 = vmatprep.subr.bf16.mxu0 %v8515
          %9727 = vmatpush1.bf16.msra.mxu0 %v8514
          %9728 = vmatprep.subr.bf16.mxu0 %v8523
          %9729 = vmatpush1.bf16.msra.mxu0 %v8522
          %9730 = vmatprep.subr.bf16.mxu0 %v8531
          %9731 = vmatpush1.bf16.msra.mxu0 %v8530
          %9732 = vmatprep.subr.bf16.mxu0 %v8539
          %9733 = vmatpush1.bf16.msra.mxu0 %v8538
          %9734 = vmatprep.subr.bf16.mxu0 %v8547
          %9735 = vmatpush1.bf16.msra.mxu0 %v8546
          %9736 = vmatprep.subr.bf16.mxu0 %v8555
          %9737 = vmatpush1.bf16.msra.mxu0 %v8554
          %9738 = vmatprep.subr.bf16.mxu0 %v8563
          %9739 = vmatpush1.bf16.msra.mxu0 %v8562
          %9740 = vmatprep.subr.bf16.mxu0 %v8571
          %9741 = vmatpush1.bf16.msra.mxu0 %v8570
          %9742 = vmatprep.subr.bf16.mxu0 %v8579
          %9743 = vmatpush1.bf16.msra.mxu0 %v8578
          %9744 = vmatprep.subr.bf16.mxu0 %v8587
          %9745 = vmatpush1.bf16.msra.mxu0 %v8586
          %9746 = vmatprep.subr.bf16.mxu0 %v8595
          %9747 = vmatpush1.bf16.msra.mxu0 %v8594
          %9748 = vmatprep.subr.bf16.mxu0 %v8603
          %9749 = vmatpush1.bf16.msra.mxu0 %v8602
          %9750 = vmatprep.subr.bf16.mxu0 %v8611
          %9751 = vmatpush1.bf16.msra.mxu0 %v8610
          %9752 = vmatprep.subr.bf16.mxu0 %v8619
          %9753 = vmatpush1.bf16.msra.mxu0 %v8618
          %9754 = vmatprep.subr.bf16.mxu0 %v8627
          %9755 = vmatpush1.bf16.msra.mxu0 %v8626
          %9756 = vmatprep.mubr.bf16.mxu0 %v8237
          %9757 = vmatmul.mubr.bf16.gmra.mrb[0].mxu0 %v8236
          %v9758 = vpop.f32.mrb[0].mxu0
          %v9759 = vadd.f32 %v9718, %v9758
          %v9760 = vpop.f32.mrb[0].mxu0
          %v9761 = vadd.f32 %v9720, %v9760
          %v9762 = vpop.f32.mrb[0].mxu0
          %v9763 = vpop.f32.mrb[0].mxu0
          %9764 = vdwg.mxu0
          %9765 = vmatprep.subr.bf16.mxu0 %v8635
          %9766 = vmatpush1.bf16.msra.mxu0 %v8634
          %9767 = vmatprep.subr.bf16.mxu0 %v8643
          %9768 = vmatpush1.bf16.msra.mxu0 %v8642
          %9769 = vmatprep.subr.bf16.mxu0 %v8651
          %9770 = vmatpush1.bf16.msra.mxu0 %v8650
          %9771 = vmatprep.subr.bf16.mxu0 %v8659
          %9772 = vmatpush1.bf16.msra.mxu0 %v8658
          %9773 = vmatprep.subr.bf16.mxu0 %v8667
          %9774 = vmatpush1.bf16.msra.mxu0 %v8666
          %9775 = vmatprep.subr.bf16.mxu0 %v8675
          %9776 = vmatpush1.bf16.msra.mxu0 %v8674
          %9777 = vmatprep.subr.bf16.mxu0 %v8683
          %9778 = vmatpush1.bf16.msra.mxu0 %v8682
          %9779 = vmatprep.subr.bf16.mxu0 %v8691
          %9780 = vmatpush1.bf16.msra.mxu0 %v8690
          %9781 = vmatprep.subr.bf16.mxu0 %v8699
          %9782 = vmatpush1.bf16.msra.mxu0 %v8698
          %9783 = vmatprep.subr.bf16.mxu0 %v8707
          %9784 = vmatpush1.bf16.msra.mxu0 %v8706
          %9785 = vmatprep.subr.bf16.mxu0 %v8715
          %9786 = vmatpush1.bf16.msra.mxu0 %v8714
          %9787 = vmatprep.subr.bf16.mxu0 %v8723
          %9788 = vmatpush1.bf16.msra.mxu0 %v8722
          %9789 = vmatprep.subr.bf16.mxu0 %v8731
          %9790 = vmatpush1.bf16.msra.mxu0 %v8730
          %9791 = vmatprep.subr.bf16.mxu0 %v8739
          %9792 = vmatpush1.bf16.msra.mxu0 %v8738
          %9793 = vmatprep.subr.bf16.mxu0 %v8747
          %9794 = vmatpush1.bf16.msra.mxu0 %v8746
          %9795 = vmatprep.subr.bf16.mxu0 %v8755
          %9796 = vmatpush1.bf16.msra.mxu0 %v8754
          %9797 = vmatprep.mubr.bf16.mxu0 %v8239
          %9798 = vmatmul.mubr.bf16.gmra.mrb[0].mxu0 %v8238
          %v9799 = vpop.f32.mrb[0].mxu0
          %v9800 = vadd.f32 %v9759, %v9799
          %v9801 = vpop.f32.mrb[0].mxu0
          %v9802 = vadd.f32 %v9761, %v9801
          %v9803 = vpop.f32.mrb[0].mxu0
          %v9804 = vpop.f32.mrb[0].mxu0
          %9805 = vdwg.mxu0
          %9806 = vmatprep.subr.bf16.mxu0 %v8763
          %9807 = vmatpush1.bf16.msra.mxu0 %v8762
          %9808 = vmatprep.subr.bf16.mxu0 %v8771
          %9809 = vmatpush1.bf16.msra.mxu0 %v8770
          %9810 = vmatprep.subr.bf16.mxu0 %v8779
          %9811 = vmatpush1.bf16.msra.mxu0 %v8778
          %9812 = vmatprep.subr.bf16.mxu0 %v8787
          %9813 = vmatpush1.bf16.msra.mxu0 %v8786
          %9814 = vmatprep.subr.bf16.mxu0 %v8795
          %9815 = vmatpush1.bf16.msra.mxu0 %v8794
          %9816 = vmatprep.subr.bf16.mxu0 %v8803
          %9817 = vmatpush1.bf16.msra.mxu0 %v8802
          %9818 = vmatprep.subr.bf16.mxu0 %v8811
          %9819 = vmatpush1.bf16.msra.mxu0 %v8810
          %9820 = vmatprep.subr.bf16.mxu0 %v8819
          %9821 = vmatpush1.bf16.msra.mxu0 %v8818
          %9822 = vmatprep.subr.bf16.mxu0 %v8827
          %9823 = vmatpush1.bf16.msra.mxu0 %v8826
          %9824 = vmatprep.subr.bf16.mxu0 %v8835
          %9825 = vmatpush1.bf16.msra.mxu0 %v8834
          %9826 = vmatprep.subr.bf16.mxu0 %v8843
          %9827 = vmatpush1.bf16.msra.mxu0 %v8842
          %9828 = vmatprep.subr.bf16.mxu0 %v8851
          %9829 = vmatpush1.bf16.msra.mxu0 %v8850
          %9830 = vmatprep.subr.bf16.mxu0 %v8859
          %9831 = vmatpush1.bf16.msra.mxu0 %v8858
          %9832 = vmatprep.subr.bf16.mxu0 %v8867
          %9833 = vmatpush1.bf16.msra.mxu0 %v8866
          %9834 = vmatprep.subr.bf16.mxu0 %v8875
          %9835 = vmatpush1.bf16.msra.mxu0 %v8874
          %9836 = vmatprep.subr.bf16.mxu0 %v8883
          %9837 = vmatpush1.bf16.msra.mxu0 %v8882
          %9838 = vmatprep.mubr.bf16.mxu0 %v8241
          %9839 = vmatmul.mubr.bf16.gmra.mrb[0].mxu0 %v8240
          %v9840 = vpop.f32.mrb[0].mxu0
          %v9841 = vadd.f32 %v9800, %v9840
          %v9842 = vpop.f32.mrb[0].mxu0
          %v9843 = vadd.f32 %v9802, %v9842
          %v9844 = vpop.f32.mrb[0].mxu0
          %v9845 = vpop.f32.mrb[0].mxu0
          %9846 = vdwg.mxu0
          %9847 = vmatprep.subr.bf16.mxu0 %v8891
          %9848 = vmatpush1.bf16.msra.mxu0 %v8890
          %9849 = vmatprep.subr.bf16.mxu0 %v8899
          %9850 = vmatpush1.bf16.msra.mxu0 %v8898
          %9851 = vmatprep.subr.bf16.mxu0 %v8907
          %9852 = vmatpush1.bf16.msra.mxu0 %v8906
          %9853 = vmatprep.subr.bf16.mxu0 %v8915
          %9854 = vmatpush1.bf16.msra.mxu0 %v8914
          %9855 = vmatprep.subr.bf16.mxu0 %v8923
          %9856 = vmatpush1.bf16.msra.mxu0 %v8922
          %9857 = vmatprep.subr.bf16.mxu0 %v8931
          %9858 = vmatpush1.bf16.msra.mxu0 %v8930
          %9859 = vmatprep.subr.bf16.mxu0 %v8939
          %9860 = vmatpush1.bf16.msra.mxu0 %v8938
          %9861 = vmatprep.subr.bf16.mxu0 %v8947
          %9862 = vmatpush1.bf16.msra.mxu0 %v8946
          %9863 = vmatprep.subr.bf16.mxu0 %v8955
          %9864 = vmatpush1.bf16.msra.mxu0 %v8954
          %9865 = vmatprep.subr.bf16.mxu0 %v8963
          %9866 = vmatpush1.bf16.msra.mxu0 %v8962
          %9867 = vmatprep.subr.bf16.mxu0 %v8971
          %9868 = vmatpush1.bf16.msra.mxu0 %v8970
          %9869 = vmatprep.subr.bf16.mxu0 %v8979
          %9870 = vmatpush1.bf16.msra.mxu0 %v8978
          %9871 = vmatprep.subr.bf16.mxu0 %v8987
          %9872 = vmatpush1.bf16.msra.mxu0 %v8986
          %9873 = vmatprep.subr.bf16.mxu0 %v8995
          %9874 = vmatpush1.bf16.msra.mxu0 %v8994
          %9875 = vmatprep.subr.bf16.mxu0 %v9003
          %9876 = vmatpush1.bf16.msra.mxu0 %v9002
          %9877 = vmatprep.subr.bf16.mxu0 %v9011
          %9878 = vmatpush1.bf16.msra.mxu0 %v9010
          %9879 = vmatprep.mubr.bf16.mxu0 %v8243
          %9880 = vmatmul.mubr.bf16.gmra.mrb[0].mxu0 %v8242
          %v9881 = vpop.f32.mrb[0].mxu0
          %v9882 = vadd.f32 %v9841, %v9881
          %v9883 = vpop.f32.mrb[0].mxu0
          %v9884 = vadd.f32 %v9843, %v9883
          %v9885 = vpop.f32.mrb[0].mxu0
          %v9886 = vpop.f32.mrb[0].mxu0
          %9887 = vdwg.mxu0
          %9888 = vmatprep.subr.bf16.mxu0 %v9019
          %9889 = vmatpush1.bf16.msra.mxu0 %v9018
          %9890 = vmatprep.subr.bf16.mxu0 %v9027
          %9891 = vmatpush1.bf16.msra.mxu0 %v9026
          %9892 = vmatprep.subr.bf16.mxu0 %v9035
          %9893 = vmatpush1.bf16.msra.mxu0 %v9034
          %9894 = vmatprep.subr.bf16.mxu0 %v9043
          %9895 = vmatpush1.bf16.msra.mxu0 %v9042
          %9896 = vmatprep.subr.bf16.mxu0 %v9051
          %9897 = vmatpush1.bf16.msra.mxu0 %v9050
          %9898 = vmatprep.subr.bf16.mxu0 %v9059
          %9899 = vmatpush1.bf16.msra.mxu0 %v9058
          %9900 = vmatprep.subr.bf16.mxu0 %v9067
          %9901 = vmatpush1.bf16.msra.mxu0 %v9066
          %9902 = vmatprep.subr.bf16.mxu0 %v9075
          %9903 = vmatpush1.bf16.msra.mxu0 %v9074
          %9904 = vmatprep.subr.bf16.mxu0 %v9083
          %9905 = vmatpush1.bf16.msra.mxu0 %v9082
          %9906 = vmatprep.subr.bf16.mxu0 %v9091
          %9907 = vmatpush1.bf16.msra.mxu0 %v9090
          %9908 = vmatprep.subr.bf16.mxu0 %v9099
          %9909 = vmatpush1.bf16.msra.mxu0 %v9098
          %9910 = vmatprep.subr.bf16.mxu0 %v9107
          %9911 = vmatpush1.bf16.msra.mxu0 %v9106
          %9912 = vmatprep.subr.bf16.mxu0 %v9115
          %9913 = vmatpush1.bf16.msra.mxu0 %v9114
          %9914 = vmatprep.subr.bf16.mxu0 %v9123
          %9915 = vmatpush1.bf16.msra.mxu0 %v9122
          %9916 = vmatprep.subr.bf16.mxu0 %v9131
          %9917 = vmatpush1.bf16.msra.mxu0 %v9130
          %9918 = vmatprep.subr.bf16.mxu0 %v9139
          %9919 = vmatpush1.bf16.msra.mxu0 %v9138
          %9920 = vmatprep.mubr.bf16.mxu0 %v8245
          %9921 = vmatmul.mubr.bf16.gmra.mrb[0].mxu0 %v8244
          %v9922 = vpop.f32.mrb[0].mxu0
          %v9923 = vadd.f32 %v9882, %v9922
          %v9924 = vpop.f32.mrb[0].mxu0
          %v9925 = vadd.f32 %v9884, %v9924
          %v9926 = vpop.f32.mrb[0].mxu0
          %v9927 = vpop.f32.mrb[0].mxu0
          %9928 = vdwg.mxu0
          %9929 = vmatprep.subr.bf16.mxu0 %v9147
          %9930 = vmatpush1.bf16.msra.mxu0 %v9146
          %9931 = vmatprep.subr.bf16.mxu0 %v9155
          %9932 = vmatpush1.bf16.msra.mxu0 %v9154
          %9933 = vmatprep.subr.bf16.mxu0 %v9163
          %9934 = vmatpush1.bf16.msra.mxu0 %v9162
          %9935 = vmatprep.subr.bf16.mxu0 %v9171
          %9936 = vmatpush1.bf16.msra.mxu0 %v9170
          %9937 = vmatprep.subr.bf16.mxu0 %v9179
          %9938 = vmatpush1.bf16.msra.mxu0 %v9178
          %9939 = vmatprep.subr.bf16.mxu0 %v9187
          %9940 = vmatpush1.bf16.msra.mxu0 %v9186
          %9941 = vmatprep.subr.bf16.mxu0 %v9195
          %9942 = vmatpush1.bf16.msra.mxu0 %v9194
          %9943 = vmatprep.subr.bf16.mxu0 %v9203
          %9944 = vmatpush1.bf16.msra.mxu0 %v9202
          %9945 = vmatprep.subr.bf16.mxu0 %v9211
          %9946 = vmatpush1.bf16.msra.mxu0 %v9210
          %9947 = vmatprep.subr.bf16.mxu0 %v9219
          %9948 = vmatpush1.bf16.msra.mxu0 %v9218
          %9949 = vmatprep.subr.bf16.mxu0 %v9227
          %9950 = vmatpush1.bf16.msra.mxu0 %v9226
          %9951 = vmatprep.subr.bf16.mxu0 %v9235
          %9952 = vmatpush1.bf16.msra.mxu0 %v9234
          %9953 = vmatprep.subr.bf16.mxu0 %v9243
          %9954 = vmatpush1.bf16.msra.mxu0 %v9242
          %9955 = vmatprep.subr.bf16.mxu0 %v9251
          %9956 = vmatpush1.bf16.msra.mxu0 %v9250
          %9957 = vmatprep.subr.bf16.mxu0 %v9259
          %9958 = vmatpush1.bf16.msra.mxu0 %v9258
          %9959 = vmatprep.subr.bf16.mxu0 %v9267
          %9960 = vmatpush1.bf16.msra.mxu0 %v9266
          %9961 = vmatprep.mubr.bf16.mxu0 %v8247
          %9962 = vmatmul.mubr.bf16.gmra.mrb[0].mxu0 %v8246
          %v9963 = vpop.f32.mrb[0].mxu0
          %v9964 = vadd.f32 %v9923, %v9963
          %v9965 = vpop.f32.mrb[0].mxu0
          %v9966 = vadd.f32 %v9925, %v9965
          %v9967 = vpop.f32.mrb[0].mxu0
          %v9968 = vpop.f32.mrb[0].mxu0
          %9969 = vdwg.mxu0
          %9970 = vmatprep.subr.bf16.mxu0 %v8253
          %9971 = vmatpush1.bf16.msra.mxu0 %v8252
          %9972 = vmatprep.subr.bf16.mxu0 %v8261
          %9973 = vmatpush1.bf16.msra.mxu0 %v8260
          %9974 = vmatprep.subr.bf16.mxu0 %v8269
          %9975 = vmatpush1.bf16.msra.mxu0 %v8268
          %9976 = vmatprep.subr.bf16.mxu0 %v8277
          %9977 = vmatpush1.bf16.msra.mxu0 %v8276
          %9978 = vmatprep.subr.bf16.mxu0 %v8285
          %9979 = vmatpush1.bf16.msra.mxu0 %v8284
          %9980 = vmatprep.subr.bf16.mxu0 %v8293
          %9981 = vmatpush1.bf16.msra.mxu0 %v8292
          %9982 = vmatprep.subr.bf16.mxu0 %v8301
          %9983 = vmatpush1.bf16.msra.mxu0 %v8300
          %9984 = vmatprep.subr.bf16.mxu0 %v8309
          %9985 = vmatpush1.bf16.msra.mxu0 %v8308
          %9986 = vmatprep.subr.bf16.mxu0 %v8317
          %9987 = vmatpush1.bf16.msra.mxu0 %v8316
          %9988 = vmatprep.subr.bf16.mxu0 %v8325
          %9989 = vmatpush1.bf16.msra.mxu0 %v8324
          %9990 = vmatprep.subr.bf16.mxu0 %v8333
          %9991 = vmatpush1.bf16.msra.mxu0 %v8332
          %9992 = vmatprep.subr.bf16.mxu0 %v8341
          %9993 = vmatpush1.bf16.msra.mxu0 %v8340
          %9994 = vmatprep.subr.bf16.mxu0 %v8349
          %9995 = vmatpush1.bf16.msra.mxu0 %v8348
          %9996 = vmatprep.subr.bf16.mxu0 %v8357
          %9997 = vmatpush1.bf16.msra.mxu0 %v8356
          %9998 = vmatprep.subr.bf16.mxu0 %v8365
          %9999 = vmatpush1.bf16.msra.mxu0 %v8364
          %10000 = vmatprep.subr.bf16.mxu0 %v8373
          %10001 = vmatpush1.bf16.msra.mxu0 %v8372
          %10002 = vmatprep.mubr.bf16.mxu0 %v8233
          %10003 = vmatmul.mubr.bf16.gmra.mrb[0].mxu0 %v8232
          %v10004 = vpop.f32.mrb[0].mxu0
          %v10005 = vadd.f32 %v9293, %v10004
          %v10006 = vpop.f32.mrb[0].mxu0
          %v10007 = vadd.f32 %v9297, %v10006
          %v10008 = vpop.f32.mrb[0].mxu0
          %v10009 = vpop.f32.mrb[0].mxu0
          %10010 = vdwg.mxu0
          %10011 = vmatprep.subr.bf16.mxu0 %v8381
          %10012 = vmatpush1.bf16.msra.mxu0 %v8380
          %10013 = vmatprep.subr.bf16.mxu0 %v8389
          %10014 = vmatpush1.bf16.msra.mxu0 %v8388
          %10015 = vmatprep.subr.bf16.mxu0 %v8397
          %10016 = vmatpush1.bf16.msra.mxu0 %v8396
          %10017 = vmatprep.subr.bf16.mxu0 %v8405
          %10018 = vmatpush1.bf16.msra.mxu0 %v8404
          %10019 = vmatprep.subr.bf16.mxu0 %v8413
          %10020 = vmatpush1.bf16.msra.mxu0 %v8412
          %10021 = vmatprep.subr.bf16.mxu0 %v8421
          %10022 = vmatpush1.bf16.msra.mxu0 %v8420
          %10023 = vmatprep.subr.bf16.mxu0 %v8429
          %10024 = vmatpush1.bf16.msra.mxu0 %v8428
          %10025 = vmatprep.subr.bf16.mxu0 %v8437
          %10026 = vmatpush1.bf16.msra.mxu0 %v8436
          %10027 = vmatprep.subr.bf16.mxu0 %v8445
          %10028 = vmatpush1.bf16.msra.mxu0 %v8444
          %10029 = vmatprep.subr.bf16.mxu0 %v8453
          %10030 = vmatpush1.bf16.msra.mxu0 %v8452
          %10031 = vmatprep.subr.bf16.mxu0 %v8461
          %10032 = vmatpush1.bf16.msra.mxu0 %v8460
          %10033 = vmatprep.subr.bf16.mxu0 %v8469
          %10034 = vmatpush1.bf16.msra.mxu0 %v8468
          %10035 = vmatprep.subr.bf16.mxu0 %v8477
          %10036 = vmatpush1.bf16.msra.mxu0 %v8476
          %10037 = vmatprep.subr.bf16.mxu0 %v8485
          %10038 = vmatpush1.bf16.msra.mxu0 %v8484
          %10039 = vmatprep.subr.bf16.mxu0 %v8493
          %10040 = vmatpush1.bf16.msra.mxu0 %v8492
          %10041 = vmatprep.subr.bf16.mxu0 %v8501
          %10042 = vmatpush1.bf16.msra.mxu0 %v8500
          %10043 = vmatprep.mubr.bf16.mxu0 %v8235
          %10044 = vmatmul.mubr.bf16.gmra.mrb[0].mxu0 %v8234
          %v10045 = vpop.f32.mrb[0].mxu0
          %v10046 = vadd.f32 %v10005, %v10045
          %v10047 = vpop.f32.mrb[0].mxu0
          %v10048 = vadd.f32 %v10007, %v10047
          %v10049 = vpop.f32.mrb[0].mxu0
          %v10050 = vpop.f32.mrb[0].mxu0
          %10051 = vdwg.mxu0
          %10052 = vmatprep.subr.bf16.mxu0 %v8509
          %10053 = vmatpush1.bf16.msra.mxu0 %v8508
          %10054 = vmatprep.subr.bf16.mxu0 %v8517
          %10055 = vmatpush1.bf16.msra.mxu0 %v8516
          %10056 = vmatprep.subr.bf16.mxu0 %v8525
          %10057 = vmatpush1.bf16.msra.mxu0 %v8524
          %10058 = vmatprep.subr.bf16.mxu0 %v8533
          %10059 = vmatpush1.bf16.msra.mxu0 %v8532
          %10060 = vmatprep.subr.bf16.mxu0 %v8541
          %10061 = vmatpush1.bf16.msra.mxu0 %v8540
          %10062 = vmatprep.subr.bf16.mxu0 %v8549
          %10063 = vmatpush1.bf16.msra.mxu0 %v8548
          %10064 = vmatprep.subr.bf16.mxu0 %v8557
          %10065 = vmatpush1.bf16.msra.mxu0 %v8556
          %10066 = vmatprep.subr.bf16.mxu0 %v8565
          %10067 = vmatpush1.bf16.msra.mxu0 %v8564
          %10068 = vmatprep.subr.bf16.mxu0 %v8573
          %10069 = vmatpush1.bf16.msra.mxu0 %v8572
          %10070 = vmatprep.subr.bf16.mxu0 %v8581
          %10071 = vmatpush1.bf16.msra.mxu0 %v8580
          %10072 = vmatprep.subr.bf16.mxu0 %v8589
          %10073 = vmatpush1.bf16.msra.mxu0 %v8588
          %10074 = vmatprep.subr.bf16.mxu0 %v8597
          %10075 = vmatpush1.bf16.msra.mxu0 %v8596
          %10076 = vmatprep.subr.bf16.mxu0 %v8605
          %10077 = vmatpush1.bf16.msra.mxu0 %v8604
          %10078 = vmatprep.subr.bf16.mxu0 %v8613
          %10079 = vmatpush1.bf16.msra.mxu0 %v8612
          %10080 = vmatprep.subr.bf16.mxu0 %v8621
          %10081 = vmatpush1.bf16.msra.mxu0 %v8620
          %10082 = vmatprep.subr.bf16.mxu0 %v8629
          %10083 = vmatpush1.bf16.msra.mxu0 %v8628
          %10084 = vmatprep.mubr.bf16.mxu0 %v8237
          %10085 = vmatmul.mubr.bf16.gmra.mrb[0].mxu0 %v8236
          %v10086 = vpop.f32.mrb[0].mxu0
          %v10087 = vadd.f32 %v10046, %v10086
          %v10088 = vpop.f32.mrb[0].mxu0
          %v10089 = vadd.f32 %v10048, %v10088
          %v10090 = vpop.f32.mrb[0].mxu0
          %v10091 = vpop.f32.mrb[0].mxu0
          %10092 = vdwg.mxu0
          %10093 = vmatprep.subr.bf16.mxu0 %v8637
          %10094 = vmatpush1.bf16.msra.mxu0 %v8636
          %10095 = vmatprep.subr.bf16.mxu0 %v8645
          %10096 = vmatpush1.bf16.msra.mxu0 %v8644
          %10097 = vmatprep.subr.bf16.mxu0 %v8653
          %10098 = vmatpush1.bf16.msra.mxu0 %v8652
          %10099 = vmatprep.subr.bf16.mxu0 %v8661
          %10100 = vmatpush1.bf16.msra.mxu0 %v8660
          %10101 = vmatprep.subr.bf16.mxu0 %v8669
          %10102 = vmatpush1.bf16.msra.mxu0 %v8668
          %10103 = vmatprep.subr.bf16.mxu0 %v8677
          %10104 = vmatpush1.bf16.msra.mxu0 %v8676
          %10105 = vmatprep.subr.bf16.mxu0 %v8685
          %10106 = vmatpush1.bf16.msra.mxu0 %v8684
          %10107 = vmatprep.subr.bf16.mxu0 %v8693
          %10108 = vmatpush1.bf16.msra.mxu0 %v8692
          %10109 = vmatprep.subr.bf16.mxu0 %v8701
          %10110 = vmatpush1.bf16.msra.mxu0 %v8700
          %10111 = vmatprep.subr.bf16.mxu0 %v8709
          %10112 = vmatpush1.bf16.msra.mxu0 %v8708
          %10113 = vmatprep.subr.bf16.mxu0 %v8717
          %10114 = vmatpush1.bf16.msra.mxu0 %v8716
          %10115 = vmatprep.subr.bf16.mxu0 %v8725
          %10116 = vmatpush1.bf16.msra.mxu0 %v8724
          %10117 = vmatprep.subr.bf16.mxu0 %v8733
          %10118 = vmatpush1.bf16.msra.mxu0 %v8732
          %10119 = vmatprep.subr.bf16.mxu0 %v8741
          %10120 = vmatpush1.bf16.msra.mxu0 %v8740
          %10121 = vmatprep.subr.bf16.mxu0 %v8749
          %10122 = vmatpush1.bf16.msra.mxu0 %v8748
          %10123 = vmatprep.subr.bf16.mxu0 %v8757
          %10124 = vmatpush1.bf16.msra.mxu0 %v8756
          %10125 = vmatprep.mubr.bf16.mxu0 %v8239
          %10126 = vmatmul.mubr.bf16.gmra.mrb[0].mxu0 %v8238
          %v10127 = vpop.f32.mrb[0].mxu0
          %v10128 = vadd.f32 %v10087, %v10127
          %v10129 = vpop.f32.mrb[0].mxu0
          %v10130 = vadd.f32 %v10089, %v10129
          %v10131 = vpop.f32.mrb[0].mxu0
          %v10132 = vpop.f32.mrb[0].mxu0
          %10133 = vdwg.mxu0
          %10134 = vmatprep.subr.bf16.mxu0 %v8765
          %10135 = vmatpush1.bf16.msra.mxu0 %v8764
          %10136 = vmatprep.subr.bf16.mxu0 %v8773
          %10137 = vmatpush1.bf16.msra.mxu0 %v8772
          %10138 = vmatprep.subr.bf16.mxu0 %v8781
          %10139 = vmatpush1.bf16.msra.mxu0 %v8780
          %10140 = vmatprep.subr.bf16.mxu0 %v8789
          %10141 = vmatpush1.bf16.msra.mxu0 %v8788
          %10142 = vmatprep.subr.bf16.mxu0 %v8797
          %10143 = vmatpush1.bf16.msra.mxu0 %v8796
          %10144 = vmatprep.subr.bf16.mxu0 %v8805
          %10145 = vmatpush1.bf16.msra.mxu0 %v8804
          %10146 = vmatprep.subr.bf16.mxu0 %v8813
          %10147 = vmatpush1.bf16.msra.mxu0 %v8812
          %10148 = vmatprep.subr.bf16.mxu0 %v8821
          %10149 = vmatpush1.bf16.msra.mxu0 %v8820
          %10150 = vmatprep.subr.bf16.mxu0 %v8829
          %10151 = vmatpush1.bf16.msra.mxu0 %v8828
          %10152 = vmatprep.subr.bf16.mxu0 %v8837
          %10153 = vmatpush1.bf16.msra.mxu0 %v8836
          %10154 = vmatprep.subr.bf16.mxu0 %v8845
          %10155 = vmatpush1.bf16.msra.mxu0 %v8844
          %10156 = vmatprep.subr.bf16.mxu0 %v8853
          %10157 = vmatpush1.bf16.msra.mxu0 %v8852
          %10158 = vmatprep.subr.bf16.mxu0 %v8861
          %10159 = vmatpush1.bf16.msra.mxu0 %v8860
          %10160 = vmatprep.subr.bf16.mxu0 %v8869
          %10161 = vmatpush1.bf16.msra.mxu0 %v8868
          %10162 = vmatprep.subr.bf16.mxu0 %v8877
          %10163 = vmatpush1.bf16.msra.mxu0 %v8876
          %10164 = vmatprep.subr.bf16.mxu0 %v8885
          %10165 = vmatpush1.bf16.msra.mxu0 %v8884
          %10166 = vmatprep.mubr.bf16.mxu0 %v8241
          %10167 = vmatmul.mubr.bf16.gmra.mrb[0].mxu0 %v8240
          %v10168 = vpop.f32.mrb[0].mxu0
          %v10169 = vadd.f32 %v10128, %v10168
          %v10170 = vpop.f32.mrb[0].mxu0
          %v10171 = vadd.f32 %v10130, %v10170
          %v10172 = vpop.f32.mrb[0].mxu0
          %v10173 = vpop.f32.mrb[0].mxu0
          %10174 = vdwg.mxu0
          %10175 = vmatprep.subr.bf16.mxu0 %v8893
          %10176 = vmatpush1.bf16.msra.mxu0 %v8892
          %10177 = vmatprep.subr.bf16.mxu0 %v8901
          %10178 = vmatpush1.bf16.msra.mxu0 %v8900
          %10179 = vmatprep.subr.bf16.mxu0 %v8909
          %10180 = vmatpush1.bf16.msra.mxu0 %v8908
          %10181 = vmatprep.subr.bf16.mxu0 %v8917
          %10182 = vmatpush1.bf16.msra.mxu0 %v8916
          %10183 = vmatprep.subr.bf16.mxu0 %v8925
          %10184 = vmatpush1.bf16.msra.mxu0 %v8924
          %10185 = vmatprep.subr.bf16.mxu0 %v8933
          %10186 = vmatpush1.bf16.msra.mxu0 %v8932
          %10187 = vmatprep.subr.bf16.mxu0 %v8941
          %10188 = vmatpush1.bf16.msra.mxu0 %v8940
          %10189 = vmatprep.subr.bf16.mxu0 %v8949
          %10190 = vmatpush1.bf16.msra.mxu0 %v8948
          %10191 = vmatprep.subr.bf16.mxu0 %v8957
          %10192 = vmatpush1.bf16.msra.mxu0 %v8956
          %10193 = vmatprep.subr.bf16.mxu0 %v8965
          %10194 = vmatpush1.bf16.msra.mxu0 %v8964
          %10195 = vmatprep.subr.bf16.mxu0 %v8973
          %10196 = vmatpush1.bf16.msra.mxu0 %v8972
          %10197 = vmatprep.subr.bf16.mxu0 %v8981
          %10198 = vmatpush1.bf16.msra.mxu0 %v8980
          %10199 = vmatprep.subr.bf16.mxu0 %v8989
          %10200 = vmatpush1.bf16.msra.mxu0 %v8988
          %10201 = vmatprep.subr.bf16.mxu0 %v8997
          %10202 = vmatpush1.bf16.msra.mxu0 %v8996
          %10203 = vmatprep.subr.bf16.mxu0 %v9005
          %10204 = vmatpush1.bf16.msra.mxu0 %v9004
          %10205 = vmatprep.subr.bf16.mxu0 %v9013
          %10206 = vmatpush1.bf16.msra.mxu0 %v9012
          %10207 = vmatprep.mubr.bf16.mxu0 %v8243
          %10208 = vmatmul.mubr.bf16.gmra.mrb[0].mxu0 %v8242
          %v10209 = vpop.f32.mrb[0].mxu0
          %v10210 = vadd.f32 %v10169, %v10209
          %v10211 = vpop.f32.mrb[0].mxu0
          %v10212 = vadd.f32 %v10171, %v10211
          %v10213 = vpop.f32.mrb[0].mxu0
          %v10214 = vpop.f32.mrb[0].mxu0
          %10215 = vdwg.mxu0
          %10216 = vmatprep.subr.bf16.mxu0 %v9021
          %10217 = vmatpush1.bf16.msra.mxu0 %v9020
          %10218 = vmatprep.subr.bf16.mxu0 %v9029
          %10219 = vmatpush1.bf16.msra.mxu0 %v9028
          %10220 = vmatprep.subr.bf16.mxu0 %v9037
          %10221 = vmatpush1.bf16.msra.mxu0 %v9036
          %10222 = vmatprep.subr.bf16.mxu0 %v9045
          %10223 = vmatpush1.bf16.msra.mxu0 %v9044
          %10224 = vmatprep.subr.bf16.mxu0 %v9053
          %10225 = vmatpush1.bf16.msra.mxu0 %v9052
          %10226 = vmatprep.subr.bf16.mxu0 %v9061
          %10227 = vmatpush1.bf16.msra.mxu0 %v9060
          %10228 = vmatprep.subr.bf16.mxu0 %v9069
          %10229 = vmatpush1.bf16.msra.mxu0 %v9068
          %10230 = vmatprep.subr.bf16.mxu0 %v9077
          %10231 = vmatpush1.bf16.msra.mxu0 %v9076
          %10232 = vmatprep.subr.bf16.mxu0 %v9085
          %10233 = vmatpush1.bf16.msra.mxu0 %v9084
          %10234 = vmatprep.subr.bf16.mxu0 %v9093
          %10235 = vmatpush1.bf16.msra.mxu0 %v9092
          %10236 = vmatprep.subr.bf16.mxu0 %v9101
          %10237 = vmatpush1.bf16.msra.mxu0 %v9100
          %10238 = vmatprep.subr.bf16.mxu0 %v9109
          %10239 = vmatpush1.bf16.msra.mxu0 %v9108
          %10240 = vmatprep.subr.bf16.mxu0 %v9117
          %10241 = vmatpush1.bf16.msra.mxu0 %v9116
          %10242 = vmatprep.subr.bf16.mxu0 %v9125
          %10243 = vmatpush1.bf16.msra.mxu0 %v9124
          %10244 = vmatprep.subr.bf16.mxu0 %v9133
          %10245 = vmatpush1.bf16.msra.mxu0 %v9132
          %10246 = vmatprep.subr.bf16.mxu0 %v9141
          %10247 = vmatpush1.bf16.msra.mxu0 %v9140
          %10248 = vmatprep.mubr.bf16.mxu0 %v8245
          %10249 = vmatmul.mubr.bf16.gmra.mrb[0].mxu0 %v8244
          %v10250 = vpop.f32.mrb[0].mxu0
          %v10251 = vadd.f32 %v10210, %v10250
          %v10252 = vpop.f32.mrb[0].mxu0
          %v10253 = vadd.f32 %v10212, %v10252
          %v10254 = vpop.f32.mrb[0].mxu0
          %v10255 = vpop.f32.mrb[0].mxu0
          %10256 = vdwg.mxu0
          %10257 = vmatprep.subr.bf16.mxu0 %v9149
          %10258 = vmatpush1.bf16.msra.mxu0 %v9148
          %10259 = vmatprep.subr.bf16.mxu0 %v9157
          %10260 = vmatpush1.bf16.msra.mxu0 %v9156
          %10261 = vmatprep.subr.bf16.mxu0 %v9165
          %10262 = vmatpush1.bf16.msra.mxu0 %v9164
          %10263 = vmatprep.subr.bf16.mxu0 %v9173
          %10264 = vmatpush1.bf16.msra.mxu0 %v9172
          %10265 = vmatprep.subr.bf16.mxu0 %v9181
          %10266 = vmatpush1.bf16.msra.mxu0 %v9180
          %10267 = vmatprep.subr.bf16.mxu0 %v9189
          %10268 = vmatpush1.bf16.msra.mxu0 %v9188
          %10269 = vmatprep.subr.bf16.mxu0 %v9197
          %10270 = vmatpush1.bf16.msra.mxu0 %v9196
          %10271 = vmatprep.subr.bf16.mxu0 %v9205
          %10272 = vmatpush1.bf16.msra.mxu0 %v9204
          %10273 = vmatprep.subr.bf16.mxu0 %v9213
          %10274 = vmatpush1.bf16.msra.mxu0 %v9212
          %10275 = vmatprep.subr.bf16.mxu0 %v9221
          %10276 = vmatpush1.bf16.msra.mxu0 %v9220
          %10277 = vmatprep.subr.bf16.mxu0 %v9229
          %10278 = vmatpush1.bf16.msra.mxu0 %v9228
          %10279 = vmatprep.subr.bf16.mxu0 %v9237
          %10280 = vmatpush1.bf16.msra.mxu0 %v9236
          %10281 = vmatprep.subr.bf16.mxu0 %v9245
          %10282 = vmatpush1.bf16.msra.mxu0 %v9244
          %10283 = vmatprep.subr.bf16.mxu0 %v9253
          %10284 = vmatpush1.bf16.msra.mxu0 %v9252
          %10285 = vmatprep.subr.bf16.mxu0 %v9261
          %10286 = vmatpush1.bf16.msra.mxu0 %v9260
          %10287 = vmatprep.subr.bf16.mxu0 %v9269
          %10288 = vmatpush1.bf16.msra.mxu0 %v9268
          %10289 = vmatprep.mubr.bf16.mxu0 %v8247
          %10290 = vmatmul.mubr.bf16.gmra.mrb[0].mxu0 %v8246
          %v10291 = vpop.f32.mrb[0].mxu0
          %v10292 = vadd.f32 %v10251, %v10291
          %v10293 = vpop.f32.mrb[0].mxu0
          %v10294 = vadd.f32 %v10253, %v10293
          %v10295 = vpop.f32.mrb[0].mxu0
          %v10296 = vpop.f32.mrb[0].mxu0
          %10297 = vdwg.mxu0
          %10298 = vmatprep.subr.bf16.mxu0 %v8255
          %10299 = vmatpush1.bf16.msra.mxu0 %v8254
          %10300 = vmatprep.subr.bf16.mxu0 %v8263
          %10301 = vmatpush1.bf16.msra.mxu0 %v8262
          %10302 = vmatprep.subr.bf16.mxu0 %v8271
          %10303 = vmatpush1.bf16.msra.mxu0 %v8270
          %10304 = vmatprep.subr.bf16.mxu0 %v8279
          %10305 = vmatpush1.bf16.msra.mxu0 %v8278
          %10306 = vmatprep.subr.bf16.mxu0 %v8287
          %10307 = vmatpush1.bf16.msra.mxu0 %v8286
          %10308 = vmatprep.subr.bf16.mxu0 %v8295
          %10309 = vmatpush1.bf16.msra.mxu0 %v8294
          %10310 = vmatprep.subr.bf16.mxu0 %v8303
          %10311 = vmatpush1.bf16.msra.mxu0 %v8302
          %10312 = vmatprep.subr.bf16.mxu0 %v8311
          %10313 = vmatpush1.bf16.msra.mxu0 %v8310
          %10314 = vmatprep.subr.bf16.mxu0 %v8319
          %10315 = vmatpush1.bf16.msra.mxu0 %v8318
          %10316 = vmatprep.subr.bf16.mxu0 %v8327
          %10317 = vmatpush1.bf16.msra.mxu0 %v8326
          %10318 = vmatprep.subr.bf16.mxu0 %v8335
          %10319 = vmatpush1.bf16.msra.mxu0 %v8334
          %10320 = vmatprep.subr.bf16.mxu0 %v8343
          %10321 = vmatpush1.bf16.msra.mxu0 %v8342
          %10322 = vmatprep.subr.bf16.mxu0 %v8351
          %10323 = vmatpush1.bf16.msra.mxu0 %v8350
          %10324 = vmatprep.subr.bf16.mxu0 %v8359
          %10325 = vmatpush1.bf16.msra.mxu0 %v8358
          %10326 = vmatprep.subr.bf16.mxu0 %v8367
          %10327 = vmatpush1.bf16.msra.mxu0 %v8366
          %10328 = vmatprep.subr.bf16.mxu0 %v8375
          %10329 = vmatpush1.bf16.msra.mxu0 %v8374
          %10330 = vmatprep.mubr.bf16.mxu0 %v8233
          %10331 = vmatmul.mubr.bf16.gmra.mrb[0].mxu0 %v8232
          %v10332 = vpop.f32.mrb[0].mxu0
          %v10333 = vadd.f32 %v9301, %v10332
          %v10334 = vpop.f32.mrb[0].mxu0
          %v10335 = vadd.f32 %v9305, %v10334
          %v10336 = vpop.f32.mrb[0].mxu0
          %v10337 = vpop.f32.mrb[0].mxu0
          %10338 = vdwg.mxu0
          %10339 = vmatprep.subr.bf16.mxu0 %v8383
          %10340 = vmatpush1.bf16.msra.mxu0 %v8382
          %10341 = vmatprep.subr.bf16.mxu0 %v8391
          %10342 = vmatpush1.bf16.msra.mxu0 %v8390
          %10343 = vmatprep.subr.bf16.mxu0 %v8399
          %10344 = vmatpush1.bf16.msra.mxu0 %v8398
          %10345 = vmatprep.subr.bf16.mxu0 %v8407
          %10346 = vmatpush1.bf16.msra.mxu0 %v8406
          %10347 = vmatprep.subr.bf16.mxu0 %v8415
          %10348 = vmatpush1.bf16.msra.mxu0 %v8414
          %10349 = vmatprep.subr.bf16.mxu0 %v8423
          %10350 = vmatpush1.bf16.msra.mxu0 %v8422
          %10351 = vmatprep.subr.bf16.mxu0 %v8431
          %10352 = vmatpush1.bf16.msra.mxu0 %v8430
          %10353 = vmatprep.subr.bf16.mxu0 %v8439
          %10354 = vmatpush1.bf16.msra.mxu0 %v8438
          %10355 = vmatprep.subr.bf16.mxu0 %v8447
          %10356 = vmatpush1.bf16.msra.mxu0 %v8446
          %10357 = vmatprep.subr.bf16.mxu0 %v8455
          %10358 = vmatpush1.bf16.msra.mxu0 %v8454
          %10359 = vmatprep.subr.bf16.mxu0 %v8463
          %10360 = vmatpush1.bf16.msra.mxu0 %v8462
          %10361 = vmatprep.subr.bf16.mxu0 %v8471
          %10362 = vmatpush1.bf16.msra.mxu0 %v8470
          %10363 = vmatprep.subr.bf16.mxu0 %v8479
          %10364 = vmatpush1.bf16.msra.mxu0 %v8478
          %10365 = vmatprep.subr.bf16.mxu0 %v8487
          %10366 = vmatpush1.bf16.msra.mxu0 %v8486
          %10367 = vmatprep.subr.bf16.mxu0 %v8495
          %10368 = vmatpush1.bf16.msra.mxu0 %v8494
          %10369 = vmatprep.subr.bf16.mxu0 %v8503
          %10370 = vmatpush1.bf16.msra.mxu0 %v8502
          %10371 = vmatprep.mubr.bf16.mxu0 %v8235
          %10372 = vmatmul.mubr.bf16.gmra.mrb[0].mxu0 %v8234
          %v10373 = vpop.f32.mrb[0].mxu0
          %v10374 = vadd.f32 %v10333, %v10373
          %v10375 = vpop.f32.mrb[0].mxu0
          %v10376 = vadd.f32 %v10335, %v10375
          %v10377 = vpop.f32.mrb[0].mxu0
          %v10378 = vpop.f32.mrb[0].mxu0
          %10379 = vdwg.mxu0
          %10380 = vmatprep.subr.bf16.mxu0 %v8511
          %10381 = vmatpush1.bf16.msra.mxu0 %v8510
          %10382 = vmatprep.subr.bf16.mxu0 %v8519
          %10383 = vmatpush1.bf16.msra.mxu0 %v8518
          %10384 = vmatprep.subr.bf16.mxu0 %v8527
          %10385 = vmatpush1.bf16.msra.mxu0 %v8526
          %10386 = vmatprep.subr.bf16.mxu0 %v8535
          %10387 = vmatpush1.bf16.msra.mxu0 %v8534
          %10388 = vmatprep.subr.bf16.mxu0 %v8543
          %10389 = vmatpush1.bf16.msra.mxu0 %v8542
          %10390 = vmatprep.subr.bf16.mxu0 %v8551
          %10391 = vmatpush1.bf16.msra.mxu0 %v8550
          %10392 = vmatprep.subr.bf16.mxu0 %v8559
          %10393 = vmatpush1.bf16.msra.mxu0 %v8558
          %10394 = vmatprep.subr.bf16.mxu0 %v8567
          %10395 = vmatpush1.bf16.msra.mxu0 %v8566
          %10396 = vmatprep.subr.bf16.mxu0 %v8575
          %10397 = vmatpush1.bf16.msra.mxu0 %v8574
          %10398 = vmatprep.subr.bf16.mxu0 %v8583
          %10399 = vmatpush1.bf16.msra.mxu0 %v8582
          %10400 = vmatprep.subr.bf16.mxu0 %v8591
          %10401 = vmatpush1.bf16.msra.mxu0 %v8590
          %10402 = vmatprep.subr.bf16.mxu0 %v8599
          %10403 = vmatpush1.bf16.msra.mxu0 %v8598
          %10404 = vmatprep.subr.bf16.mxu0 %v8607
          %10405 = vmatpush1.bf16.msra.mxu0 %v8606
          %10406 = vmatprep.subr.bf16.mxu0 %v8615
          %10407 = vmatpush1.bf16.msra.mxu0 %v8614
          %10408 = vmatprep.subr.bf16.mxu0 %v8623
          %10409 = vmatpush1.bf16.msra.mxu0 %v8622
          %10410 = vmatprep.subr.bf16.mxu0 %v8631
          %10411 = vmatpush1.bf16.msra.mxu0 %v8630
          %10412 = vmatprep.mubr.bf16.mxu0 %v8237
          %10413 = vmatmul.mubr.bf16.gmra.mrb[0].mxu0 %v8236
          %v10414 = vpop.f32.mrb[0].mxu0
          %v10415 = vadd.f32 %v10374, %v10414
          %v10416 = vpop.f32.mrb[0].mxu0
          %v10417 = vadd.f32 %v10376, %v10416
          %v10418 = vpop.f32.mrb[0].mxu0
          %v10419 = vpop.f32.mrb[0].mxu0
          %10420 = vdwg.mxu0
          %10421 = vmatprep.subr.bf16.mxu0 %v8639
          %10422 = vmatpush1.bf16.msra.mxu0 %v8638
          %10423 = vmatprep.subr.bf16.mxu0 %v8647
          %10424 = vmatpush1.bf16.msra.mxu0 %v8646
          %10425 = vmatprep.subr.bf16.mxu0 %v8655
          %10426 = vmatpush1.bf16.msra.mxu0 %v8654
          %10427 = vmatprep.subr.bf16.mxu0 %v8663
          %10428 = vmatpush1.bf16.msra.mxu0 %v8662
          %10429 = vmatprep.subr.bf16.mxu0 %v8671
          %10430 = vmatpush1.bf16.msra.mxu0 %v8670
          %10431 = vmatprep.subr.bf16.mxu0 %v8679
          %10432 = vmatpush1.bf16.msra.mxu0 %v8678
          %10433 = vmatprep.subr.bf16.mxu0 %v8687
          %10434 = vmatpush1.bf16.msra.mxu0 %v8686
          %10435 = vmatprep.subr.bf16.mxu0 %v8695
          %10436 = vmatpush1.bf16.msra.mxu0 %v8694
          %10437 = vmatprep.subr.bf16.mxu0 %v8703
          %10438 = vmatpush1.bf16.msra.mxu0 %v8702
          %10439 = vmatprep.subr.bf16.mxu0 %v8711
          %10440 = vmatpush1.bf16.msra.mxu0 %v8710
          %10441 = vmatprep.subr.bf16.mxu0 %v8719
          %10442 = vmatpush1.bf16.msra.mxu0 %v8718
          %10443 = vmatprep.subr.bf16.mxu0 %v8727
          %10444 = vmatpush1.bf16.msra.mxu0 %v8726
          %10445 = vmatprep.subr.bf16.mxu0 %v8735
          %10446 = vmatpush1.bf16.msra.mxu0 %v8734
          %10447 = vmatprep.subr.bf16.mxu0 %v8743
          %10448 = vmatpush1.bf16.msra.mxu0 %v8742
          %10449 = vmatprep.subr.bf16.mxu0 %v8751
          %10450 = vmatpush1.bf16.msra.mxu0 %v8750
          %10451 = vmatprep.subr.bf16.mxu0 %v8759
          %10452 = vmatpush1.bf16.msra.mxu0 %v8758
          %10453 = vmatprep.mubr.bf16.mxu0 %v8239
          %10454 = vmatmul.mubr.bf16.gmra.mrb[0].mxu0 %v8238
          %v10455 = vpop.f32.mrb[0].mxu0
          %v10456 = vadd.f32 %v10415, %v10455
          %v10457 = vpop.f32.mrb[0].mxu0
          %v10458 = vadd.f32 %v10417, %v10457
          %v10459 = vpop.f32.mrb[0].mxu0
          %v10460 = vpop.f32.mrb[0].mxu0
          %10461 = vdwg.mxu0
          %10462 = vmatprep.subr.bf16.mxu0 %v8767
          %10463 = vmatpush1.bf16.msra.mxu0 %v8766
          %10464 = vmatprep.subr.bf16.mxu0 %v8775
          %10465 = vmatpush1.bf16.msra.mxu0 %v8774
          %10466 = vmatprep.subr.bf16.mxu0 %v8783
          %10467 = vmatpush1.bf16.msra.mxu0 %v8782
          %10468 = vmatprep.subr.bf16.mxu0 %v8791
          %10469 = vmatpush1.bf16.msra.mxu0 %v8790
          %10470 = vmatprep.subr.bf16.mxu0 %v8799
          %10471 = vmatpush1.bf16.msra.mxu0 %v8798
          %10472 = vmatprep.subr.bf16.mxu0 %v8807
          %10473 = vmatpush1.bf16.msra.mxu0 %v8806
          %10474 = vmatprep.subr.bf16.mxu0 %v8815
          %10475 = vmatpush1.bf16.msra.mxu0 %v8814
          %10476 = vmatprep.subr.bf16.mxu0 %v8823
          %10477 = vmatpush1.bf16.msra.mxu0 %v8822
          %10478 = vmatprep.subr.bf16.mxu0 %v8831
          %10479 = vmatpush1.bf16.msra.mxu0 %v8830
          %10480 = vmatprep.subr.bf16.mxu0 %v8839
          %10481 = vmatpush1.bf16.msra.mxu0 %v8838
          %10482 = vmatprep.subr.bf16.mxu0 %v8847
          %10483 = vmatpush1.bf16.msra.mxu0 %v8846
          %10484 = vmatprep.subr.bf16.mxu0 %v8855
          %10485 = vmatpush1.bf16.msra.mxu0 %v8854
          %10486 = vmatprep.subr.bf16.mxu0 %v8863
          %10487 = vmatpush1.bf16.msra.mxu0 %v8862
          %10488 = vmatprep.subr.bf16.mxu0 %v8871
          %10489 = vmatpush1.bf16.msra.mxu0 %v8870
          %10490 = vmatprep.subr.bf16.mxu0 %v8879
          %10491 = vmatpush1.bf16.msra.mxu0 %v8878
          %10492 = vmatprep.subr.bf16.mxu0 %v8887
          %10493 = vmatpush1.bf16.msra.mxu0 %v8886
          %10494 = vmatprep.mubr.bf16.mxu0 %v8241
          %10495 = vmatmul.mubr.bf16.gmra.mrb[0].mxu0 %v8240
          %v10496 = vpop.f32.mrb[0].mxu0
          %v10497 = vadd.f32 %v10456, %v10496
          %v10498 = vpop.f32.mrb[0].mxu0
          %v10499 = vadd.f32 %v10458, %v10498
          %v10500 = vpop.f32.mrb[0].mxu0
          %v10501 = vpop.f32.mrb[0].mxu0
          %10502 = vdwg.mxu0
          %10503 = vmatprep.subr.bf16.mxu0 %v8895
          %10504 = vmatpush1.bf16.msra.mxu0 %v8894
          %10505 = vmatprep.subr.bf16.mxu0 %v8903
          %10506 = vmatpush1.bf16.msra.mxu0 %v8902
          %10507 = vmatprep.subr.bf16.mxu0 %v8911
          %10508 = vmatpush1.bf16.msra.mxu0 %v8910
          %10509 = vmatprep.subr.bf16.mxu0 %v8919
          %10510 = vmatpush1.bf16.msra.mxu0 %v8918
          %10511 = vmatprep.subr.bf16.mxu0 %v8927
          %10512 = vmatpush1.bf16.msra.mxu0 %v8926
          %10513 = vmatprep.subr.bf16.mxu0 %v8935
          %10514 = vmatpush1.bf16.msra.mxu0 %v8934
          %10515 = vmatprep.subr.bf16.mxu0 %v8943
          %10516 = vmatpush1.bf16.msra.mxu0 %v8942
          %10517 = vmatprep.subr.bf16.mxu0 %v8951
          %10518 = vmatpush1.bf16.msra.mxu0 %v8950
          %10519 = vmatprep.subr.bf16.mxu0 %v8959
          %10520 = vmatpush1.bf16.msra.mxu0 %v8958
          %10521 = vmatprep.subr.bf16.mxu0 %v8967
          %10522 = vmatpush1.bf16.msra.mxu0 %v8966
          %10523 = vmatprep.subr.bf16.mxu0 %v8975
          %10524 = vmatpush1.bf16.msra.mxu0 %v8974
          %10525 = vmatprep.subr.bf16.mxu0 %v8983
          %10526 = vmatpush1.bf16.msra.mxu0 %v8982
          %10527 = vmatprep.subr.bf16.mxu0 %v8991
          %10528 = vmatpush1.bf16.msra.mxu0 %v8990
          %10529 = vmatprep.subr.bf16.mxu0 %v8999
          %10530 = vmatpush1.bf16.msra.mxu0 %v8998
          %10531 = vmatprep.subr.bf16.mxu0 %v9007
          %10532 = vmatpush1.bf16.msra.mxu0 %v9006
          %10533 = vmatprep.subr.bf16.mxu0 %v9015
          %10534 = vmatpush1.bf16.msra.mxu0 %v9014
          %10535 = vmatprep.mubr.bf16.mxu0 %v8243
          %10536 = vmatmul.mubr.bf16.gmra.mrb[0].mxu0 %v8242
          %v10537 = vpop.f32.mrb[0].mxu0
          %v10538 = vadd.f32 %v10497, %v10537
          %v10539 = vpop.f32.mrb[0].mxu0
          %v10540 = vadd.f32 %v10499, %v10539
          %v10541 = vpop.f32.mrb[0].mxu0
          %v10542 = vpop.f32.mrb[0].mxu0
          %10543 = vdwg.mxu0
          %10544 = vmatprep.subr.bf16.mxu0 %v9023
          %10545 = vmatpush1.bf16.msra.mxu0 %v9022
          %10546 = vmatprep.subr.bf16.mxu0 %v9031
          %10547 = vmatpush1.bf16.msra.mxu0 %v9030
          %10548 = vmatprep.subr.bf16.mxu0 %v9039
          %10549 = vmatpush1.bf16.msra.mxu0 %v9038
          %10550 = vmatprep.subr.bf16.mxu0 %v9047
          %10551 = vmatpush1.bf16.msra.mxu0 %v9046
          %10552 = vmatprep.subr.bf16.mxu0 %v9055
          %10553 = vmatpush1.bf16.msra.mxu0 %v9054
          %10554 = vmatprep.subr.bf16.mxu0 %v9063
          %10555 = vmatpush1.bf16.msra.mxu0 %v9062
          %10556 = vmatprep.subr.bf16.mxu0 %v9071
          %10557 = vmatpush1.bf16.msra.mxu0 %v9070
          %10558 = vmatprep.subr.bf16.mxu0 %v9079
          %10559 = vmatpush1.bf16.msra.mxu0 %v9078
          %10560 = vmatprep.subr.bf16.mxu0 %v9087
          %10561 = vmatpush1.bf16.msra.mxu0 %v9086
          %10562 = vmatprep.subr.bf16.mxu0 %v9095
          %10563 = vmatpush1.bf16.msra.mxu0 %v9094
          %10564 = vmatprep.subr.bf16.mxu0 %v9103
          %10565 = vmatpush1.bf16.msra.mxu0 %v9102
          %10566 = vmatprep.subr.bf16.mxu0 %v9111
          %10567 = vmatpush1.bf16.msra.mxu0 %v9110
          %10568 = vmatprep.subr.bf16.mxu0 %v9119
          %10569 = vmatpush1.bf16.msra.mxu0 %v9118
          %10570 = vmatprep.subr.bf16.mxu0 %v9127
          %10571 = vmatpush1.bf16.msra.mxu0 %v9126
          %10572 = vmatprep.subr.bf16.mxu0 %v9135
          %10573 = vmatpush1.bf16.msra.mxu0 %v9134
          %10574 = vmatprep.subr.bf16.mxu0 %v9143
          %10575 = vmatpush1.bf16.msra.mxu0 %v9142
          %10576 = vmatprep.mubr.bf16.mxu0 %v8245
          %10577 = vmatmul.mubr.bf16.gmra.mrb[0].mxu0 %v8244
          %v10578 = vpop.f32.mrb[0].mxu0
          %v10579 = vadd.f32 %v10538, %v10578
          %v10580 = vpop.f32.mrb[0].mxu0
          %v10581 = vadd.f32 %v10540, %v10580
          %v10582 = vpop.f32.mrb[0].mxu0
          %v10583 = vpop.f32.mrb[0].mxu0
          %10584 = vdwg.mxu0
          %10585 = vmatprep.subr.bf16.mxu0 %v9151
          %10586 = vmatpush1.bf16.msra.mxu0 %v9150
          %10587 = vmatprep.subr.bf16.mxu0 %v9159
          %10588 = vmatpush1.bf16.msra.mxu0 %v9158
          %10589 = vmatprep.subr.bf16.mxu0 %v9167
          %10590 = vmatpush1.bf16.msra.mxu0 %v9166
          %10591 = vmatprep.subr.bf16.mxu0 %v9175
          %10592 = vmatpush1.bf16.msra.mxu0 %v9174
          %10593 = vmatprep.subr.bf16.mxu0 %v9183
          %10594 = vmatpush1.bf16.msra.mxu0 %v9182
          %10595 = vmatprep.subr.bf16.mxu0 %v9191
          %10596 = vmatpush1.bf16.msra.mxu0 %v9190
          %10597 = vmatprep.subr.bf16.mxu0 %v9199
          %10598 = vmatpush1.bf16.msra.mxu0 %v9198
          %10599 = vmatprep.subr.bf16.mxu0 %v9207
          %10600 = vmatpush1.bf16.msra.mxu0 %v9206
          %10601 = vmatprep.subr.bf16.mxu0 %v9215
          %10602 = vmatpush1.bf16.msra.mxu0 %v9214
          %10603 = vmatprep.subr.bf16.mxu0 %v9223
          %10604 = vmatpush1.bf16.msra.mxu0 %v9222
          %10605 = vmatprep.subr.bf16.mxu0 %v9231
          %10606 = vmatpush1.bf16.msra.mxu0 %v9230
          %10607 = vmatprep.subr.bf16.mxu0 %v9239
          %10608 = vmatpush1.bf16.msra.mxu0 %v9238
          %10609 = vmatprep.subr.bf16.mxu0 %v9247
          %10610 = vmatpush1.bf16.msra.mxu0 %v9246
          %10611 = vmatprep.subr.bf16.mxu0 %v9255
          %10612 = vmatpush1.bf16.msra.mxu0 %v9254
          %10613 = vmatprep.subr.bf16.mxu0 %v9263
          %10614 = vmatpush1.bf16.msra.mxu0 %v9262
          %10615 = vmatprep.subr.bf16.mxu0 %v9271
          %10616 = vmatpush1.bf16.msra.mxu0 %v9270
          %10617 = vmatprep.mubr.bf16.mxu0 %v8247
          %10618 = vmatmul.mubr.bf16.gmra.mrb[0].mxu0 %v8246
          %v10619 = vpop.f32.mrb[0].mxu0
          %v10620 = vadd.f32 %v10579, %v10619
          %v10621 = vpop.f32.mrb[0].mxu0
          %v10622 = vadd.f32 %v10581, %v10621
          %v10623 = vpop.f32.mrb[0].mxu0
          %v10624 = vpop.f32.mrb[0].mxu0
          %10625 = vdwg.mxu0
          %vm10626 = vcmp.gt.f32.partialorder %v9636, 0.0
          %vm10627 = vcmp.gt.f32.partialorder %v9638, 0.0
          %vm10628 = vcmp.gt.f32.partialorder %v9964, 0.0
          %vm10629 = vcmp.gt.f32.partialorder %v9966, 0.0
          %vm10630 = vcmp.gt.f32.partialorder %v10292, 0.0
          %vm10631 = vcmp.gt.f32.partialorder %v10294, 0.0
          %vm10632 = vcmp.gt.f32.partialorder %v10620, 0.0
          %vm10633 = vcmp.gt.f32.partialorder %v10622, 0.0
          %v10634 = vmul.f32 %v9636, 0.2
          %v10635 = vmul.f32 %v9638, 0.2
          %v10636 = vmul.f32 %v9964, 0.2
          %v10637 = vmul.f32 %v9966, 0.2
          %v10638 = vmul.f32 %v10292, 0.2
          %v10639 = vmul.f32 %v10294, 0.2
          %v10640 = vmul.f32 %v10620, 0.2
          %v10641 = vmul.f32 %v10622, 0.2
          %v10642 = vsel %vm10626, %v9636, %v10634
          %v10643 = vsel %vm10627, %v9638, %v10635
          %v10644 = vsel %vm10628, %v9964, %v10636
          %v10645 = vsel %vm10629, %v9966, %v10637
          %v10646 = vsel %vm10630, %v10292, %v10638
          %v10647 = vsel %vm10631, %v10294, %v10639
          %v10648 = vsel %vm10632, %v10620, %v10640
          %v10649 = vsel %vm10633, %v10622, %v10641
          %v10650 = vpack.c.bf16 %v10642, %v10642
          %v10651 = vpack.c.bf16 %v10643, %v10643
          %v10652 = vpack.c.bf16 %v10644, %v10644
          %v10653 = vpack.c.bf16 %v10645, %v10645
          %v10654 = vpack.c.bf16 %v10646, %v10646
          %v10655 = vpack.c.bf16 %v10647, %v10647
          %v10656 = vpack.c.bf16 %v10648, %v10648
          %v10657 = vpack.c.bf16 %v10649, %v10649
          %v10658 = vld [vmem:[#allocation4] sm:$0xff]
          %v10659 = vld [vmem:[#allocation4 + $0x8] sm:$0xff]
          %v10660 = vld [vmem:[#allocation4 + $0x10] sm:$0xff]
          %v10661 = vld [vmem:[#allocation4 + $0x18] sm:$0xff]
          %v10662 = vld [vmem:[#allocation4 + $0x20] sm:$0xff]
          %v10663 = vld [vmem:[#allocation4 + $0x28] sm:$0xff]
          %v10664 = vld [vmem:[#allocation4 + $0x30] sm:$0xff]
          %v10665 = vld [vmem:[#allocation4 + $0x38] sm:$0xff]
          %v10666 = vld [vmem:[#allocation4 + $0x40] sm:$0xff]
          %v10667 = vld [vmem:[#allocation4 + $0x48] sm:$0xff]
          %v10668 = vld [vmem:[#allocation4 + $0x50] sm:$0xff]
          %v10669 = vld [vmem:[#allocation4 + $0x58] sm:$0xff]
          %v10670 = vld [vmem:[#allocation4 + $0x60] sm:$0xff]
          %v10671 = vld [vmem:[#allocation4 + $0x68] sm:$0xff]
          %v10672 = vld [vmem:[#allocation4 + $0x70] sm:$0xff]
          %v10673 = vld [vmem:[#allocation4 + $0x78] sm:$0xff]
          %v10674 = vld [vmem:[#allocation4 + $0x80] sm:$0xff]
          %v10675 = vld [vmem:[#allocation4 + $0x88] sm:$0xff]
          %v10676 = vld [vmem:[#allocation4 + $0x90] sm:$0xff]
          %v10677 = vld [vmem:[#allocation4 + $0x98] sm:$0xff]
          %v10678 = vld [vmem:[#allocation4 + $0xa0] sm:$0xff]
          %v10679 = vld [vmem:[#allocation4 + $0xa8] sm:$0xff]
          %v10680 = vld [vmem:[#allocation4 + $0xb0] sm:$0xff]
          %v10681 = vld [vmem:[#allocation4 + $0xb8] sm:$0xff]
          %v10682 = vld [vmem:[#allocation4 + $0xc0] sm:$0xff]
          %v10683 = vld [vmem:[#allocation4 + $0xc8] sm:$0xff]
          %v10684 = vld [vmem:[#allocation4 + $0xd0] sm:$0xff]
          %v10685 = vld [vmem:[#allocation4 + $0xd8] sm:$0xff]
          %v10686 = vld [vmem:[#allocation4 + $0xe0] sm:$0xff]
          %v10687 = vld [vmem:[#allocation4 + $0xe8] sm:$0xff]
          %v10688 = vld [vmem:[#allocation4 + $0xf0] sm:$0xff]
          %v10689 = vld [vmem:[#allocation4 + $0xf8] sm:$0xff]
          %v10690 = vld [vmem:[#allocation4 + $0x100] sm:$0xff]
          %v10691 = vld [vmem:[#allocation4 + $0x108] sm:$0xff]
          %v10692 = vld [vmem:[#allocation4 + $0x110] sm:$0xff]
          %v10693 = vld [vmem:[#allocation4 + $0x118] sm:$0xff]
          %v10694 = vld [vmem:[#allocation4 + $0x120] sm:$0xff]
          %v10695 = vld [vmem:[#allocation4 + $0x128] sm:$0xff]
          %v10696 = vld [vmem:[#allocation4 + $0x130] sm:$0xff]
          %v10697 = vld [vmem:[#allocation4 + $0x138] sm:$0xff]
          %v10698 = vld [vmem:[#allocation4 + $0x140] sm:$0xff]
          %v10699 = vld [vmem:[#allocation4 + $0x148] sm:$0xff]
          %v10700 = vld [vmem:[#allocation4 + $0x150] sm:$0xff]
          %v10701 = vld [vmem:[#allocation4 + $0x158] sm:$0xff]
          %v10702 = vld [vmem:[#allocation4 + $0x160] sm:$0xff]
          %v10703 = vld [vmem:[#allocation4 + $0x168] sm:$0xff]
          %v10704 = vld [vmem:[#allocation4 + $0x170] sm:$0xff]
          %v10705 = vld [vmem:[#allocation4 + $0x178] sm:$0xff]
          %v10706 = vld [vmem:[#allocation4 + $0x180] sm:$0xff]
          %v10707 = vld [vmem:[#allocation4 + $0x188] sm:$0xff]
          %v10708 = vld [vmem:[#allocation4 + $0x190] sm:$0xff]
          %v10709 = vld [vmem:[#allocation4 + $0x198] sm:$0xff]
          %v10710 = vld [vmem:[#allocation4 + $0x1a0] sm:$0xff]
          %v10711 = vld [vmem:[#allocation4 + $0x1a8] sm:$0xff]
          %v10712 = vld [vmem:[#allocation4 + $0x1b0] sm:$0xff]
          %v10713 = vld [vmem:[#allocation4 + $0x1b8] sm:$0xff]
          %v10714 = vld [vmem:[#allocation4 + $0x1c0] sm:$0xff]
          %v10715 = vld [vmem:[#allocation4 + $0x1c8] sm:$0xff]
          %v10716 = vld [vmem:[#allocation4 + $0x1d0] sm:$0xff]
          %v10717 = vld [vmem:[#allocation4 + $0x1d8] sm:$0xff]
          %v10718 = vld [vmem:[#allocation4 + $0x1e0] sm:$0xff]
          %v10719 = vld [vmem:[#allocation4 + $0x1e8] sm:$0xff]
          %v10720 = vld [vmem:[#allocation4 + $0x1f0] sm:$0xff]
          %v10721 = vld [vmem:[#allocation4 + $0x1f8] sm:$0xff]
          %v10722 = vld [vmem:[#allocation4 + $0x200] sm:$0xff]
          %v10723 = vld [vmem:[#allocation4 + $0x208] sm:$0xff]
          %v10724 = vld [vmem:[#allocation4 + $0x210] sm:$0xff]
          %v10725 = vld [vmem:[#allocation4 + $0x218] sm:$0xff]
          %v10726 = vld [vmem:[#allocation4 + $0x220] sm:$0xff]
          %v10727 = vld [vmem:[#allocation4 + $0x228] sm:$0xff]
          %v10728 = vld [vmem:[#allocation4 + $0x230] sm:$0xff]
          %v10729 = vld [vmem:[#allocation4 + $0x238] sm:$0xff]
          %v10730 = vld [vmem:[#allocation4 + $0x240] sm:$0xff]
          %v10731 = vld [vmem:[#allocation4 + $0x248] sm:$0xff]
          %v10732 = vld [vmem:[#allocation4 + $0x250] sm:$0xff]
          %v10733 = vld [vmem:[#allocation4 + $0x258] sm:$0xff]
          %v10734 = vld [vmem:[#allocation4 + $0x260] sm:$0xff]
          %v10735 = vld [vmem:[#allocation4 + $0x268] sm:$0xff]
          %v10736 = vld [vmem:[#allocation4 + $0x270] sm:$0xff]
          %v10737 = vld [vmem:[#allocation4 + $0x278] sm:$0xff]
          %v10738 = vld [vmem:[#allocation4 + $0x280] sm:$0xff]
          %v10739 = vld [vmem:[#allocation4 + $0x288] sm:$0xff]
          %v10740 = vld [vmem:[#allocation4 + $0x290] sm:$0xff]
          %v10741 = vld [vmem:[#allocation4 + $0x298] sm:$0xff]
          %v10742 = vld [vmem:[#allocation4 + $0x2a0] sm:$0xff]
          %v10743 = vld [vmem:[#allocation4 + $0x2a8] sm:$0xff]
          %v10744 = vld [vmem:[#allocation4 + $0x2b0] sm:$0xff]
          %v10745 = vld [vmem:[#allocation4 + $0x2b8] sm:$0xff]
          %v10746 = vld [vmem:[#allocation4 + $0x2c0] sm:$0xff]
          %v10747 = vld [vmem:[#allocation4 + $0x2c8] sm:$0xff]
          %v10748 = vld [vmem:[#allocation4 + $0x2d0] sm:$0xff]
          %v10749 = vld [vmem:[#allocation4 + $0x2d8] sm:$0xff]
          %v10750 = vld [vmem:[#allocation4 + $0x2e0] sm:$0xff]
          %v10751 = vld [vmem:[#allocation4 + $0x2e8] sm:$0xff]
          %v10752 = vld [vmem:[#allocation4 + $0x2f0] sm:$0xff]
          %v10753 = vld [vmem:[#allocation4 + $0x2f8] sm:$0xff]
          %v10754 = vld [vmem:[#allocation4 + $0x300] sm:$0xff]
          %v10755 = vld [vmem:[#allocation4 + $0x308] sm:$0xff]
          %v10756 = vld [vmem:[#allocation4 + $0x310] sm:$0xff]
          %v10757 = vld [vmem:[#allocation4 + $0x318] sm:$0xff]
          %v10758 = vld [vmem:[#allocation4 + $0x320] sm:$0xff]
          %v10759 = vld [vmem:[#allocation4 + $0x328] sm:$0xff]
          %v10760 = vld [vmem:[#allocation4 + $0x330] sm:$0xff]
          %v10761 = vld [vmem:[#allocation4 + $0x338] sm:$0xff]
          %v10762 = vld [vmem:[#allocation4 + $0x340] sm:$0xff]
          %v10763 = vld [vmem:[#allocation4 + $0x348] sm:$0xff]
          %v10764 = vld [vmem:[#allocation4 + $0x350] sm:$0xff]
          %v10765 = vld [vmem:[#allocation4 + $0x358] sm:$0xff]
          %v10766 = vld [vmem:[#allocation4 + $0x360] sm:$0xff]
          %v10767 = vld [vmem:[#allocation4 + $0x368] sm:$0xff]
          %v10768 = vld [vmem:[#allocation4 + $0x370] sm:$0xff]
          %v10769 = vld [vmem:[#allocation4 + $0x378] sm:$0xff]
          %v10770 = vld [vmem:[#allocation4 + $0x380] sm:$0xff]
          %v10771 = vld [vmem:[#allocation4 + $0x388] sm:$0xff]
          %v10772 = vld [vmem:[#allocation4 + $0x390] sm:$0xff]
          %v10773 = vld [vmem:[#allocation4 + $0x398] sm:$0xff]
          %v10774 = vld [vmem:[#allocation4 + $0x3a0] sm:$0xff]
          %v10775 = vld [vmem:[#allocation4 + $0x3a8] sm:$0xff]
          %v10776 = vld [vmem:[#allocation4 + $0x3b0] sm:$0xff]
          %v10777 = vld [vmem:[#allocation4 + $0x3b8] sm:$0xff]
          %v10778 = vld [vmem:[#allocation4 + $0x3c0] sm:$0xff]
          %v10779 = vld [vmem:[#allocation4 + $0x3c8] sm:$0xff]
          %v10780 = vld [vmem:[#allocation4 + $0x3d0] sm:$0xff]
          %v10781 = vld [vmem:[#allocation4 + $0x3d8] sm:$0xff]
          %v10782 = vld [vmem:[#allocation4 + $0x3e0] sm:$0xff]
          %v10783 = vld [vmem:[#allocation4 + $0x3e8] sm:$0xff]
          %v10784 = vld [vmem:[#allocation4 + $0x3f0] sm:$0xff]
          %v10785 = vld [vmem:[#allocation4 + $0x3f8] sm:$0xff]
          %v10786 = vld [vmem:[#allocation4 + $0x400] sm:$0xff]
          %v10787 = vld [vmem:[#allocation4 + $0x408] sm:$0xff]
          %v10788 = vld [vmem:[#allocation4 + $0x410] sm:$0xff]
          %v10789 = vld [vmem:[#allocation4 + $0x418] sm:$0xff]
          %v10790 = vld [vmem:[#allocation4 + $0x420] sm:$0xff]
          %v10791 = vld [vmem:[#allocation4 + $0x428] sm:$0xff]
          %v10792 = vld [vmem:[#allocation4 + $0x430] sm:$0xff]
          %v10793 = vld [vmem:[#allocation4 + $0x438] sm:$0xff]
          %v10794 = vld [vmem:[#allocation4 + $0x440] sm:$0xff]
          %v10795 = vld [vmem:[#allocation4 + $0x448] sm:$0xff]
          %v10796 = vld [vmem:[#allocation4 + $0x450] sm:$0xff]
          %v10797 = vld [vmem:[#allocation4 + $0x458] sm:$0xff]
          %v10798 = vld [vmem:[#allocation4 + $0x460] sm:$0xff]
          %v10799 = vld [vmem:[#allocation4 + $0x468] sm:$0xff]
          %v10800 = vld [vmem:[#allocation4 + $0x470] sm:$0xff]
          %v10801 = vld [vmem:[#allocation4 + $0x478] sm:$0xff]
          %v10802 = vld [vmem:[#allocation4 + $0x480] sm:$0xff]
          %v10803 = vld [vmem:[#allocation4 + $0x488] sm:$0xff]
          %v10804 = vld [vmem:[#allocation4 + $0x490] sm:$0xff]
          %v10805 = vld [vmem:[#allocation4 + $0x498] sm:$0xff]
          %v10806 = vld [vmem:[#allocation4 + $0x4a0] sm:$0xff]
          %v10807 = vld [vmem:[#allocation4 + $0x4a8] sm:$0xff]
          %v10808 = vld [vmem:[#allocation4 + $0x4b0] sm:$0xff]
          %v10809 = vld [vmem:[#allocation4 + $0x4b8] sm:$0xff]
          %v10810 = vld [vmem:[#allocation4 + $0x4c0] sm:$0xff]
          %v10811 = vld [vmem:[#allocation4 + $0x4c8] sm:$0xff]
          %v10812 = vld [vmem:[#allocation4 + $0x4d0] sm:$0xff]
          %v10813 = vld [vmem:[#allocation4 + $0x4d8] sm:$0xff]
          %v10814 = vld [vmem:[#allocation4 + $0x4e0] sm:$0xff]
          %v10815 = vld [vmem:[#allocation4 + $0x4e8] sm:$0xff]
          %v10816 = vld [vmem:[#allocation4 + $0x4f0] sm:$0xff]
          %v10817 = vld [vmem:[#allocation4 + $0x4f8] sm:$0xff]
          %v10818 = vld [vmem:[#allocation4 + $0x500] sm:$0xff]
          %v10819 = vld [vmem:[#allocation4 + $0x508] sm:$0xff]
          %v10820 = vld [vmem:[#allocation4 + $0x510] sm:$0xff]
          %v10821 = vld [vmem:[#allocation4 + $0x518] sm:$0xff]
          %v10822 = vld [vmem:[#allocation4 + $0x520] sm:$0xff]
          %v10823 = vld [vmem:[#allocation4 + $0x528] sm:$0xff]
          %v10824 = vld [vmem:[#allocation4 + $0x530] sm:$0xff]
          %v10825 = vld [vmem:[#allocation4 + $0x538] sm:$0xff]
          %v10826 = vld [vmem:[#allocation4 + $0x540] sm:$0xff]
          %v10827 = vld [vmem:[#allocation4 + $0x548] sm:$0xff]
          %v10828 = vld [vmem:[#allocation4 + $0x550] sm:$0xff]
          %v10829 = vld [vmem:[#allocation4 + $0x558] sm:$0xff]
          %v10830 = vld [vmem:[#allocation4 + $0x560] sm:$0xff]
          %v10831 = vld [vmem:[#allocation4 + $0x568] sm:$0xff]
          %v10832 = vld [vmem:[#allocation4 + $0x570] sm:$0xff]
          %v10833 = vld [vmem:[#allocation4 + $0x578] sm:$0xff]
          %v10834 = vld [vmem:[#allocation4 + $0x580] sm:$0xff]
          %v10835 = vld [vmem:[#allocation4 + $0x588] sm:$0xff]
          %v10836 = vld [vmem:[#allocation4 + $0x590] sm:$0xff]
          %v10837 = vld [vmem:[#allocation4 + $0x598] sm:$0xff]
          %v10838 = vld [vmem:[#allocation4 + $0x5a0] sm:$0xff]
          %v10839 = vld [vmem:[#allocation4 + $0x5a8] sm:$0xff]
          %v10840 = vld [vmem:[#allocation4 + $0x5b0] sm:$0xff]
          %v10841 = vld [vmem:[#allocation4 + $0x5b8] sm:$0xff]
          %v10842 = vld [vmem:[#allocation4 + $0x5c0] sm:$0xff]
          %v10843 = vld [vmem:[#allocation4 + $0x5c8] sm:$0xff]
          %v10844 = vld [vmem:[#allocation4 + $0x5d0] sm:$0xff]
          %v10845 = vld [vmem:[#allocation4 + $0x5d8] sm:$0xff]
          %v10846 = vld [vmem:[#allocation4 + $0x5e0] sm:$0xff]
          %v10847 = vld [vmem:[#allocation4 + $0x5e8] sm:$0xff]
          %v10848 = vld [vmem:[#allocation4 + $0x5f0] sm:$0xff]
          %v10849 = vld [vmem:[#allocation4 + $0x5f8] sm:$0xff]
          %v10850 = vld [vmem:[#allocation4 + $0x600] sm:$0xff]
          %v10851 = vld [vmem:[#allocation4 + $0x608] sm:$0xff]
          %v10852 = vld [vmem:[#allocation4 + $0x610] sm:$0xff]
          %v10853 = vld [vmem:[#allocation4 + $0x618] sm:$0xff]
          %v10854 = vld [vmem:[#allocation4 + $0x620] sm:$0xff]
          %v10855 = vld [vmem:[#allocation4 + $0x628] sm:$0xff]
          %v10856 = vld [vmem:[#allocation4 + $0x630] sm:$0xff]
          %v10857 = vld [vmem:[#allocation4 + $0x638] sm:$0xff]
          %v10858 = vld [vmem:[#allocation4 + $0x640] sm:$0xff]
          %v10859 = vld [vmem:[#allocation4 + $0x648] sm:$0xff]
          %v10860 = vld [vmem:[#allocation4 + $0x650] sm:$0xff]
          %v10861 = vld [vmem:[#allocation4 + $0x658] sm:$0xff]
          %v10862 = vld [vmem:[#allocation4 + $0x660] sm:$0xff]
          %v10863 = vld [vmem:[#allocation4 + $0x668] sm:$0xff]
          %v10864 = vld [vmem:[#allocation4 + $0x670] sm:$0xff]
          %v10865 = vld [vmem:[#allocation4 + $0x678] sm:$0xff]
          %v10866 = vld [vmem:[#allocation4 + $0x680] sm:$0xff]
          %v10867 = vld [vmem:[#allocation4 + $0x688] sm:$0xff]
          %v10868 = vld [vmem:[#allocation4 + $0x690] sm:$0xff]
          %v10869 = vld [vmem:[#allocation4 + $0x698] sm:$0xff]
          %v10870 = vld [vmem:[#allocation4 + $0x6a0] sm:$0xff]
          %v10871 = vld [vmem:[#allocation4 + $0x6a8] sm:$0xff]
          %v10872 = vld [vmem:[#allocation4 + $0x6b0] sm:$0xff]
          %v10873 = vld [vmem:[#allocation4 + $0x6b8] sm:$0xff]
          %v10874 = vld [vmem:[#allocation4 + $0x6c0] sm:$0xff]
          %v10875 = vld [vmem:[#allocation4 + $0x6c8] sm:$0xff]
          %v10876 = vld [vmem:[#allocation4 + $0x6d0] sm:$0xff]
          %v10877 = vld [vmem:[#allocation4 + $0x6d8] sm:$0xff]
          %v10878 = vld [vmem:[#allocation4 + $0x6e0] sm:$0xff]
          %v10879 = vld [vmem:[#allocation4 + $0x6e8] sm:$0xff]
          %v10880 = vld [vmem:[#allocation4 + $0x6f0] sm:$0xff]
          %v10881 = vld [vmem:[#allocation4 + $0x6f8] sm:$0xff]
          %v10882 = vld [vmem:[#allocation4 + $0x700] sm:$0xff]
          %v10883 = vld [vmem:[#allocation4 + $0x708] sm:$0xff]
          %v10884 = vld [vmem:[#allocation4 + $0x710] sm:$0xff]
          %v10885 = vld [vmem:[#allocation4 + $0x718] sm:$0xff]
          %v10886 = vld [vmem:[#allocation4 + $0x720] sm:$0xff]
          %v10887 = vld [vmem:[#allocation4 + $0x728] sm:$0xff]
          %v10888 = vld [vmem:[#allocation4 + $0x730] sm:$0xff]
          %v10889 = vld [vmem:[#allocation4 + $0x738] sm:$0xff]
          %v10890 = vld [vmem:[#allocation4 + $0x740] sm:$0xff]
          %v10891 = vld [vmem:[#allocation4 + $0x748] sm:$0xff]
          %v10892 = vld [vmem:[#allocation4 + $0x750] sm:$0xff]
          %v10893 = vld [vmem:[#allocation4 + $0x758] sm:$0xff]
          %v10894 = vld [vmem:[#allocation4 + $0x760] sm:$0xff]
          %v10895 = vld [vmem:[#allocation4 + $0x768] sm:$0xff]
          %v10896 = vld [vmem:[#allocation4 + $0x770] sm:$0xff]
          %v10897 = vld [vmem:[#allocation4 + $0x778] sm:$0xff]
          %v10898 = vld [vmem:[#allocation4 + $0x780] sm:$0xff]
          %v10899 = vld [vmem:[#allocation4 + $0x788] sm:$0xff]
          %v10900 = vld [vmem:[#allocation4 + $0x790] sm:$0xff]
          %v10901 = vld [vmem:[#allocation4 + $0x798] sm:$0xff]
          %v10902 = vld [vmem:[#allocation4 + $0x7a0] sm:$0xff]
          %v10903 = vld [vmem:[#allocation4 + $0x7a8] sm:$0xff]
          %v10904 = vld [vmem:[#allocation4 + $0x7b0] sm:$0xff]
          %v10905 = vld [vmem:[#allocation4 + $0x7b8] sm:$0xff]
          %v10906 = vld [vmem:[#allocation4 + $0x7c0] sm:$0xff]
          %v10907 = vld [vmem:[#allocation4 + $0x7c8] sm:$0xff]
          %v10908 = vld [vmem:[#allocation4 + $0x7d0] sm:$0xff]
          %v10909 = vld [vmem:[#allocation4 + $0x7d8] sm:$0xff]
          %v10910 = vld [vmem:[#allocation4 + $0x7e0] sm:$0xff]
          %v10911 = vld [vmem:[#allocation4 + $0x7e8] sm:$0xff]
          %v10912 = vld [vmem:[#allocation4 + $0x7f0] sm:$0xff]
          %v10913 = vld [vmem:[#allocation4 + $0x7f8] sm:$0xff]
          %v10914 = vld [vmem:[#allocation13] sm:$0xf]
          %v10916 = vlaneseq
          %v10917 = vshrl.u32 %v10916, 7
          %v10918 = vsub.s32 0, %v10917
          %v10919 = vrot.slane %v10914, %v10918
          %v10920 = vlaneseq
          %v10921 = vshrl.u32 %v10920, 7
          %v10922 = vsub.s32 1, %v10921
          %v10923 = vrot.slane %v10914, %v10922
          %v10924 = vlaneseq
          %v10925 = vshrl.u32 %v10924, 7
          %v10926 = vsub.s32 2, %v10925
          %v10927 = vrot.slane %v10914, %v10926
          %v10928 = vlaneseq
          %v10929 = vshrl.u32 %v10928, 7
          %v10930 = vsub.s32 3, %v10929
          %v10931 = vrot.slane %v10914, %v10930
          %10936 = vmatprep.subr.bf16.mxu0 %v10659
          %10937 = vmatpush1.bf16.msra.mxu0 %v10658
          %10938 = vmatprep.subr.bf16.mxu0 %v10663
          %10939 = vmatpush1.bf16.msra.mxu0 %v10662
          %10940 = vmatprep.subr.bf16.mxu0 %v10667
          %10941 = vmatpush1.bf16.msra.mxu0 %v10666
          %10942 = vmatprep.subr.bf16.mxu0 %v10671
          %10943 = vmatpush1.bf16.msra.mxu0 %v10670
          %10944 = vmatprep.subr.bf16.mxu0 %v10675
          %10945 = vmatpush1.bf16.msra.mxu0 %v10674
          %10946 = vmatprep.subr.bf16.mxu0 %v10679
          %10947 = vmatpush1.bf16.msra.mxu0 %v10678
          %10948 = vmatprep.subr.bf16.mxu0 %v10683
          %10949 = vmatpush1.bf16.msra.mxu0 %v10682
          %10950 = vmatprep.subr.bf16.mxu0 %v10687
          %10951 = vmatpush1.bf16.msra.mxu0 %v10686
          %10952 = vmatprep.subr.bf16.mxu0 %v10691
          %10953 = vmatpush1.bf16.msra.mxu0 %v10690
          %10954 = vmatprep.subr.bf16.mxu0 %v10695
          %10955 = vmatpush1.bf16.msra.mxu0 %v10694
          %10956 = vmatprep.subr.bf16.mxu0 %v10699
          %10957 = vmatpush1.bf16.msra.mxu0 %v10698
          %10958 = vmatprep.subr.bf16.mxu0 %v10703
          %10959 = vmatpush1.bf16.msra.mxu0 %v10702
          %10960 = vmatprep.subr.bf16.mxu0 %v10707
          %10961 = vmatpush1.bf16.msra.mxu0 %v10706
          %10962 = vmatprep.subr.bf16.mxu0 %v10711
          %10963 = vmatpush1.bf16.msra.mxu0 %v10710
          %10964 = vmatprep.subr.bf16.mxu0 %v10715
          %10965 = vmatpush1.bf16.msra.mxu0 %v10714
          %10966 = vmatprep.subr.bf16.mxu0 %v10719
          %10967 = vmatpush1.bf16.msra.mxu0 %v10718
          %10968 = vmatprep.mubr.bf16.mxu0 %v10651
          %10969 = vmatmul.mubr.bf16.gmra.mrb[0].mxu0 %v10650
          %v10970 = vpop.f32.mrb[0].mxu0
          %v10971 = vadd.f32 %v10919, %v10970
          %v10972 = vpop.f32.mrb[0].mxu0
          %v10973 = vadd.f32 %v10923, %v10972
          %v10974 = vpop.f32.mrb[0].mxu0
          %v10975 = vpop.f32.mrb[0].mxu0
          %10976 = vdwg.mxu0
          %10977 = vmatprep.subr.bf16.mxu0 %v10723
          %10978 = vmatpush1.bf16.msra.mxu0 %v10722
          %10979 = vmatprep.subr.bf16.mxu0 %v10727
          %10980 = vmatpush1.bf16.msra.mxu0 %v10726
          %10981 = vmatprep.subr.bf16.mxu0 %v10731
          %10982 = vmatpush1.bf16.msra.mxu0 %v10730
          %10983 = vmatprep.subr.bf16.mxu0 %v10735
          %10984 = vmatpush1.bf16.msra.mxu0 %v10734
          %10985 = vmatprep.subr.bf16.mxu0 %v10739
          %10986 = vmatpush1.bf16.msra.mxu0 %v10738
          %10987 = vmatprep.subr.bf16.mxu0 %v10743
          %10988 = vmatpush1.bf16.msra.mxu0 %v10742
          %10989 = vmatprep.subr.bf16.mxu0 %v10747
          %10990 = vmatpush1.bf16.msra.mxu0 %v10746
          %10991 = vmatprep.subr.bf16.mxu0 %v10751
          %10992 = vmatpush1.bf16.msra.mxu0 %v10750
          %10993 = vmatprep.subr.bf16.mxu0 %v10755
          %10994 = vmatpush1.bf16.msra.mxu0 %v10754
          %10995 = vmatprep.subr.bf16.mxu0 %v10759
          %10996 = vmatpush1.bf16.msra.mxu0 %v10758
          %10997 = vmatprep.subr.bf16.mxu0 %v10763
          %10998 = vmatpush1.bf16.msra.mxu0 %v10762
          %10999 = vmatprep.subr.bf16.mxu0 %v10767
          %11000 = vmatpush1.bf16.msra.mxu0 %v10766
          %11001 = vmatprep.subr.bf16.mxu0 %v10771
          %11002 = vmatpush1.bf16.msra.mxu0 %v10770
          %11003 = vmatprep.subr.bf16.mxu0 %v10775
          %11004 = vmatpush1.bf16.msra.mxu0 %v10774
          %11005 = vmatprep.subr.bf16.mxu0 %v10779
          %11006 = vmatpush1.bf16.msra.mxu0 %v10778
          %11007 = vmatprep.subr.bf16.mxu0 %v10783
          %11008 = vmatpush1.bf16.msra.mxu0 %v10782
          %11009 = vmatprep.mubr.bf16.mxu0 %v10653
          %11010 = vmatmul.mubr.bf16.gmra.mrb[0].mxu0 %v10652
          %v11011 = vpop.f32.mrb[0].mxu0
          %v11012 = vadd.f32 %v10971, %v11011
          %v11013 = vpop.f32.mrb[0].mxu0
          %v11014 = vadd.f32 %v10973, %v11013
          %v11015 = vpop.f32.mrb[0].mxu0
          %v11016 = vpop.f32.mrb[0].mxu0
          %11017 = vdwg.mxu0
          %11018 = vmatprep.subr.bf16.mxu0 %v10787
          %11019 = vmatpush1.bf16.msra.mxu0 %v10786
          %11020 = vmatprep.subr.bf16.mxu0 %v10791
          %11021 = vmatpush1.bf16.msra.mxu0 %v10790
          %11022 = vmatprep.subr.bf16.mxu0 %v10795
          %11023 = vmatpush1.bf16.msra.mxu0 %v10794
          %11024 = vmatprep.subr.bf16.mxu0 %v10799
          %11025 = vmatpush1.bf16.msra.mxu0 %v10798
          %11026 = vmatprep.subr.bf16.mxu0 %v10803
          %11027 = vmatpush1.bf16.msra.mxu0 %v10802
          %11028 = vmatprep.subr.bf16.mxu0 %v10807
          %11029 = vmatpush1.bf16.msra.mxu0 %v10806
          %11030 = vmatprep.subr.bf16.mxu0 %v10811
          %11031 = vmatpush1.bf16.msra.mxu0 %v10810
          %11032 = vmatprep.subr.bf16.mxu0 %v10815
          %11033 = vmatpush1.bf16.msra.mxu0 %v10814
          %11034 = vmatprep.subr.bf16.mxu0 %v10819
          %11035 = vmatpush1.bf16.msra.mxu0 %v10818
          %11036 = vmatprep.subr.bf16.mxu0 %v10823
          %11037 = vmatpush1.bf16.msra.mxu0 %v10822
          %11038 = vmatprep.subr.bf16.mxu0 %v10827
          %11039 = vmatpush1.bf16.msra.mxu0 %v10826
          %11040 = vmatprep.subr.bf16.mxu0 %v10831
          %11041 = vmatpush1.bf16.msra.mxu0 %v10830
          %11042 = vmatprep.subr.bf16.mxu0 %v10835
          %11043 = vmatpush1.bf16.msra.mxu0 %v10834
          %11044 = vmatprep.subr.bf16.mxu0 %v10839
          %11045 = vmatpush1.bf16.msra.mxu0 %v10838
          %11046 = vmatprep.subr.bf16.mxu0 %v10843
          %11047 = vmatpush1.bf16.msra.mxu0 %v10842
          %11048 = vmatprep.subr.bf16.mxu0 %v10847
          %11049 = vmatpush1.bf16.msra.mxu0 %v10846
          %11050 = vmatprep.mubr.bf16.mxu0 %v10655
          %11051 = vmatmul.mubr.bf16.gmra.mrb[0].mxu0 %v10654
          %v11052 = vpop.f32.mrb[0].mxu0
          %v11053 = vadd.f32 %v11012, %v11052
          %v11054 = vpop.f32.mrb[0].mxu0
          %v11055 = vadd.f32 %v11014, %v11054
          %v11056 = vpop.f32.mrb[0].mxu0
          %v11057 = vpop.f32.mrb[0].mxu0
          %11058 = vdwg.mxu0
          %11059 = vmatprep.subr.bf16.mxu0 %v10851
          %11060 = vmatpush1.bf16.msra.mxu0 %v10850
          %11061 = vmatprep.subr.bf16.mxu0 %v10855
          %11062 = vmatpush1.bf16.msra.mxu0 %v10854
          %11063 = vmatprep.subr.bf16.mxu0 %v10859
          %11064 = vmatpush1.bf16.msra.mxu0 %v10858
          %11065 = vmatprep.subr.bf16.mxu0 %v10863
          %11066 = vmatpush1.bf16.msra.mxu0 %v10862
          %11067 = vmatprep.subr.bf16.mxu0 %v10867
          %11068 = vmatpush1.bf16.msra.mxu0 %v10866
          %11069 = vmatprep.subr.bf16.mxu0 %v10871
          %11070 = vmatpush1.bf16.msra.mxu0 %v10870
          %11071 = vmatprep.subr.bf16.mxu0 %v10875
          %11072 = vmatpush1.bf16.msra.mxu0 %v10874
          %11073 = vmatprep.subr.bf16.mxu0 %v10879
          %11074 = vmatpush1.bf16.msra.mxu0 %v10878
          %11075 = vmatprep.subr.bf16.mxu0 %v10883
          %11076 = vmatpush1.bf16.msra.mxu0 %v10882
          %11077 = vmatprep.subr.bf16.mxu0 %v10887
          %11078 = vmatpush1.bf16.msra.mxu0 %v10886
          %11079 = vmatprep.subr.bf16.mxu0 %v10891
          %11080 = vmatpush1.bf16.msra.mxu0 %v10890
          %11081 = vmatprep.subr.bf16.mxu0 %v10895
          %11082 = vmatpush1.bf16.msra.mxu0 %v10894
          %11083 = vmatprep.subr.bf16.mxu0 %v10899
          %11084 = vmatpush1.bf16.msra.mxu0 %v10898
          %11085 = vmatprep.subr.bf16.mxu0 %v10903
          %11086 = vmatpush1.bf16.msra.mxu0 %v10902
          %11087 = vmatprep.subr.bf16.mxu0 %v10907
          %11088 = vmatpush1.bf16.msra.mxu0 %v10906
          %11089 = vmatprep.subr.bf16.mxu0 %v10911
          %11090 = vmatpush1.bf16.msra.mxu0 %v10910
          %11091 = vmatprep.mubr.bf16.mxu0 %v10657
          %11092 = vmatmul.mubr.bf16.gmra.mrb[0].mxu0 %v10656
          %v11093 = vpop.f32.mrb[0].mxu0
          %v11094 = vadd.f32 %v11053, %v11093
          %v11095 = vpop.f32.mrb[0].mxu0
          %v11096 = vadd.f32 %v11055, %v11095
          %v11097 = vpop.f32.mrb[0].mxu0
          %v11098 = vpop.f32.mrb[0].mxu0
          %11099 = vdwg.mxu0
          %11100 = vmatprep.subr.bf16.mxu0 %v10661
          %11101 = vmatpush1.bf16.msra.mxu0 %v10660
          %11102 = vmatprep.subr.bf16.mxu0 %v10665
          %11103 = vmatpush1.bf16.msra.mxu0 %v10664
          %11104 = vmatprep.subr.bf16.mxu0 %v10669
          %11105 = vmatpush1.bf16.msra.mxu0 %v10668
          %11106 = vmatprep.subr.bf16.mxu0 %v10673
          %11107 = vmatpush1.bf16.msra.mxu0 %v10672
          %11108 = vmatprep.subr.bf16.mxu0 %v10677
          %11109 = vmatpush1.bf16.msra.mxu0 %v10676
          %11110 = vmatprep.subr.bf16.mxu0 %v10681
          %11111 = vmatpush1.bf16.msra.mxu0 %v10680
          %11112 = vmatprep.subr.bf16.mxu0 %v10685
          %11113 = vmatpush1.bf16.msra.mxu0 %v10684
          %11114 = vmatprep.subr.bf16.mxu0 %v10689
          %11115 = vmatpush1.bf16.msra.mxu0 %v10688
          %11116 = vmatprep.subr.bf16.mxu0 %v10693
          %11117 = vmatpush1.bf16.msra.mxu0 %v10692
          %11118 = vmatprep.subr.bf16.mxu0 %v10697
          %11119 = vmatpush1.bf16.msra.mxu0 %v10696
          %11120 = vmatprep.subr.bf16.mxu0 %v10701
          %11121 = vmatpush1.bf16.msra.mxu0 %v10700
          %11122 = vmatprep.subr.bf16.mxu0 %v10705
          %11123 = vmatpush1.bf16.msra.mxu0 %v10704
          %11124 = vmatprep.subr.bf16.mxu0 %v10709
          %11125 = vmatpush1.bf16.msra.mxu0 %v10708
          %11126 = vmatprep.subr.bf16.mxu0 %v10713
          %11127 = vmatpush1.bf16.msra.mxu0 %v10712
          %11128 = vmatprep.subr.bf16.mxu0 %v10717
          %11129 = vmatpush1.bf16.msra.mxu0 %v10716
          %11130 = vmatprep.subr.bf16.mxu0 %v10721
          %11131 = vmatpush1.bf16.msra.mxu0 %v10720
          %11132 = vmatprep.mubr.bf16.mxu0 %v10651
          %11133 = vmatmul.mubr.bf16.gmra.mrb[0].mxu0 %v10650
          %v11134 = vpop.f32.mrb[0].mxu0
          %v11135 = vadd.f32 %v10927, %v11134
          %v11136 = vpop.f32.mrb[0].mxu0
          %v11137 = vadd.f32 %v10931, %v11136
          %v11138 = vpop.f32.mrb[0].mxu0
          %v11139 = vpop.f32.mrb[0].mxu0
          %11140 = vdwg.mxu0
          %11141 = vmatprep.subr.bf16.mxu0 %v10725
          %11142 = vmatpush1.bf16.msra.mxu0 %v10724
          %11143 = vmatprep.subr.bf16.mxu0 %v10729
          %11144 = vmatpush1.bf16.msra.mxu0 %v10728
          %11145 = vmatprep.subr.bf16.mxu0 %v10733
          %11146 = vmatpush1.bf16.msra.mxu0 %v10732
          %11147 = vmatprep.subr.bf16.mxu0 %v10737
          %11148 = vmatpush1.bf16.msra.mxu0 %v10736
          %11149 = vmatprep.subr.bf16.mxu0 %v10741
          %11150 = vmatpush1.bf16.msra.mxu0 %v10740
          %11151 = vmatprep.subr.bf16.mxu0 %v10745
          %11152 = vmatpush1.bf16.msra.mxu0 %v10744
          %11153 = vmatprep.subr.bf16.mxu0 %v10749
          %11154 = vmatpush1.bf16.msra.mxu0 %v10748
          %11155 = vmatprep.subr.bf16.mxu0 %v10753
          %11156 = vmatpush1.bf16.msra.mxu0 %v10752
          %11157 = vmatprep.subr.bf16.mxu0 %v10757
          %11158 = vmatpush1.bf16.msra.mxu0 %v10756
          %11159 = vmatprep.subr.bf16.mxu0 %v10761
          %11160 = vmatpush1.bf16.msra.mxu0 %v10760
          %11161 = vmatprep.subr.bf16.mxu0 %v10765
          %11162 = vmatpush1.bf16.msra.mxu0 %v10764
          %11163 = vmatprep.subr.bf16.mxu0 %v10769
          %11164 = vmatpush1.bf16.msra.mxu0 %v10768
          %11165 = vmatprep.subr.bf16.mxu0 %v10773
          %11166 = vmatpush1.bf16.msra.mxu0 %v10772
          %11167 = vmatprep.subr.bf16.mxu0 %v10777
          %11168 = vmatpush1.bf16.msra.mxu0 %v10776
          %11169 = vmatprep.subr.bf16.mxu0 %v10781
          %11170 = vmatpush1.bf16.msra.mxu0 %v10780
          %11171 = vmatprep.subr.bf16.mxu0 %v10785
          %11172 = vmatpush1.bf16.msra.mxu0 %v10784
          %11173 = vmatprep.mubr.bf16.mxu0 %v10653
          %11174 = vmatmul.mubr.bf16.gmra.mrb[0].mxu0 %v10652
          %v11175 = vpop.f32.mrb[0].mxu0
          %v11176 = vadd.f32 %v11135, %v11175
          %v11177 = vpop.f32.mrb[0].mxu0
          %v11178 = vadd.f32 %v11137, %v11177
          %v11179 = vpop.f32.mrb[0].mxu0
          %v11180 = vpop.f32.mrb[0].mxu0
          %11181 = vdwg.mxu0
          %11182 = vmatprep.subr.bf16.mxu0 %v10789
          %11183 = vmatpush1.bf16.msra.mxu0 %v10788
          %11184 = vmatprep.subr.bf16.mxu0 %v10793
          %11185 = vmatpush1.bf16.msra.mxu0 %v10792
          %11186 = vmatprep.subr.bf16.mxu0 %v10797
          %11187 = vmatpush1.bf16.msra.mxu0 %v10796
          %11188 = vmatprep.subr.bf16.mxu0 %v10801
          %11189 = vmatpush1.bf16.msra.mxu0 %v10800
          %11190 = vmatprep.subr.bf16.mxu0 %v10805
          %11191 = vmatpush1.bf16.msra.mxu0 %v10804
          %11192 = vmatprep.subr.bf16.mxu0 %v10809
          %11193 = vmatpush1.bf16.msra.mxu0 %v10808
          %11194 = vmatprep.subr.bf16.mxu0 %v10813
          %11195 = vmatpush1.bf16.msra.mxu0 %v10812
          %11196 = vmatprep.subr.bf16.mxu0 %v10817
          %11197 = vmatpush1.bf16.msra.mxu0 %v10816
          %11198 = vmatprep.subr.bf16.mxu0 %v10821
          %11199 = vmatpush1.bf16.msra.mxu0 %v10820
          %11200 = vmatprep.subr.bf16.mxu0 %v10825
          %11201 = vmatpush1.bf16.msra.mxu0 %v10824
          %11202 = vmatprep.subr.bf16.mxu0 %v10829
          %11203 = vmatpush1.bf16.msra.mxu0 %v10828
          %11204 = vmatprep.subr.bf16.mxu0 %v10833
          %11205 = vmatpush1.bf16.msra.mxu0 %v10832
          %11206 = vmatprep.subr.bf16.mxu0 %v10837
          %11207 = vmatpush1.bf16.msra.mxu0 %v10836
          %11208 = vmatprep.subr.bf16.mxu0 %v10841
          %11209 = vmatpush1.bf16.msra.mxu0 %v10840
          %11210 = vmatprep.subr.bf16.mxu0 %v10845
          %11211 = vmatpush1.bf16.msra.mxu0 %v10844
          %11212 = vmatprep.subr.bf16.mxu0 %v10849
          %11213 = vmatpush1.bf16.msra.mxu0 %v10848
          %11214 = vmatprep.mubr.bf16.mxu0 %v10655
          %11215 = vmatmul.mubr.bf16.gmra.mrb[0].mxu0 %v10654
          %v11216 = vpop.f32.mrb[0].mxu0
          %v11217 = vadd.f32 %v11176, %v11216
          %v11218 = vpop.f32.mrb[0].mxu0
          %v11219 = vadd.f32 %v11178, %v11218
          %v11220 = vpop.f32.mrb[0].mxu0
          %v11221 = vpop.f32.mrb[0].mxu0
          %11222 = vdwg.mxu0
          %11223 = vmatprep.subr.bf16.mxu0 %v10853
          %11224 = vmatpush1.bf16.msra.mxu0 %v10852
          %11225 = vmatprep.subr.bf16.mxu0 %v10857
          %11226 = vmatpush1.bf16.msra.mxu0 %v10856
          %11227 = vmatprep.subr.bf16.mxu0 %v10861
          %11228 = vmatpush1.bf16.msra.mxu0 %v10860
          %11229 = vmatprep.subr.bf16.mxu0 %v10865
          %11230 = vmatpush1.bf16.msra.mxu0 %v10864
          %11231 = vmatprep.subr.bf16.mxu0 %v10869
          %11232 = vmatpush1.bf16.msra.mxu0 %v10868
          %11233 = vmatprep.subr.bf16.mxu0 %v10873
          %11234 = vmatpush1.bf16.msra.mxu0 %v10872
          %11235 = vmatprep.subr.bf16.mxu0 %v10877
          %11236 = vmatpush1.bf16.msra.mxu0 %v10876
          %11237 = vmatprep.subr.bf16.mxu0 %v10881
          %11238 = vmatpush1.bf16.msra.mxu0 %v10880
          %11239 = vmatprep.subr.bf16.mxu0 %v10885
          %11240 = vmatpush1.bf16.msra.mxu0 %v10884
          %11241 = vmatprep.subr.bf16.mxu0 %v10889
          %11242 = vmatpush1.bf16.msra.mxu0 %v10888
          %11243 = vmatprep.subr.bf16.mxu0 %v10893
          %11244 = vmatpush1.bf16.msra.mxu0 %v10892
          %11245 = vmatprep.subr.bf16.mxu0 %v10897
          %11246 = vmatpush1.bf16.msra.mxu0 %v10896
          %11247 = vmatprep.subr.bf16.mxu0 %v10901
          %11248 = vmatpush1.bf16.msra.mxu0 %v10900
          %11249 = vmatprep.subr.bf16.mxu0 %v10905
          %11250 = vmatpush1.bf16.msra.mxu0 %v10904
          %11251 = vmatprep.subr.bf16.mxu0 %v10909
          %11252 = vmatpush1.bf16.msra.mxu0 %v10908
          %11253 = vmatprep.subr.bf16.mxu0 %v10913
          %11254 = vmatpush1.bf16.msra.mxu0 %v10912
          %11255 = vmatprep.mubr.bf16.mxu0 %v10657
          %11256 = vmatmul.mubr.bf16.gmra.mrb[0].mxu0 %v10656
          %v11257 = vpop.f32.mrb[0].mxu0
          %v11258 = vadd.f32 %v11217, %v11257
          %v11259 = vpop.f32.mrb[0].mxu0
          %v11260 = vadd.f32 %v11219, %v11259
          %v11261 = vpop.f32.mrb[0].mxu0
          %v11262 = vpop.f32.mrb[0].mxu0
          %11263 = vdwg.mxu0
          %vm11264 = vcmp.gt.f32.partialorder %v11094, 0.0
          %vm11265 = vcmp.gt.f32.partialorder %v11096, 0.0
          %vm11266 = vcmp.gt.f32.partialorder %v11258, 0.0
          %vm11267 = vcmp.gt.f32.partialorder %v11260, 0.0
          %v11268 = vmul.f32 %v11094, 0.2
          %v11269 = vmul.f32 %v11096, 0.2
          %v11270 = vmul.f32 %v11258, 0.2
          %v11271 = vmul.f32 %v11260, 0.2
          %v11272 = vsel %vm11264, %v11094, %v11268
          %v11273 = vsel %vm11265, %v11096, %v11269
          %v11274 = vsel %vm11266, %v11258, %v11270
          %v11275 = vsel %vm11267, %v11260, %v11271
          %v11276 = vpack.c.bf16 %v11272, %v11272
          %v11277 = vpack.c.bf16 %v11273, %v11273
          %v11278 = vpack.c.bf16 %v11274, %v11274
          %v11279 = vpack.c.bf16 %v11275, %v11275
          %v11280 = vld [vmem:[#allocation5] sm:$0xff]
          %v11281 = vld [vmem:[#allocation5 + $0x8] sm:$0xff]
          %v11282 = vld [vmem:[#allocation5 + $0x10] sm:$0xff]
          %v11283 = vld [vmem:[#allocation5 + $0x18] sm:$0xff]
          %v11284 = vld [vmem:[#allocation5 + $0x20] sm:$0xff]
          %v11285 = vld [vmem:[#allocation5 + $0x28] sm:$0xff]
          %v11286 = vld [vmem:[#allocation5 + $0x30] sm:$0xff]
          %v11287 = vld [vmem:[#allocation5 + $0x38] sm:$0xff]
          %v11288 = vld [vmem:[#allocation5 + $0x40] sm:$0xff]
          %v11289 = vld [vmem:[#allocation5 + $0x48] sm:$0xff]
          %v11290 = vld [vmem:[#allocation5 + $0x50] sm:$0xff]
          %v11291 = vld [vmem:[#allocation5 + $0x58] sm:$0xff]
          %v11292 = vld [vmem:[#allocation5 + $0x60] sm:$0xff]
          %v11293 = vld [vmem:[#allocation5 + $0x68] sm:$0xff]
          %v11294 = vld [vmem:[#allocation5 + $0x70] sm:$0xff]
          %v11295 = vld [vmem:[#allocation5 + $0x78] sm:$0xff]
          %v11296 = vld [vmem:[#allocation5 + $0x80] sm:$0xff]
          %v11297 = vld [vmem:[#allocation5 + $0x88] sm:$0xff]
          %v11298 = vld [vmem:[#allocation5 + $0x90] sm:$0xff]
          %v11299 = vld [vmem:[#allocation5 + $0x98] sm:$0xff]
          %v11300 = vld [vmem:[#allocation5 + $0xa0] sm:$0xff]
          %v11301 = vld [vmem:[#allocation5 + $0xa8] sm:$0xff]
          %v11302 = vld [vmem:[#allocation5 + $0xb0] sm:$0xff]
          %v11303 = vld [vmem:[#allocation5 + $0xb8] sm:$0xff]
          %v11304 = vld [vmem:[#allocation5 + $0xc0] sm:$0xff]
          %v11305 = vld [vmem:[#allocation5 + $0xc8] sm:$0xff]
          %v11306 = vld [vmem:[#allocation5 + $0xd0] sm:$0xff]
          %v11307 = vld [vmem:[#allocation5 + $0xd8] sm:$0xff]
          %v11308 = vld [vmem:[#allocation5 + $0xe0] sm:$0xff]
          %v11309 = vld [vmem:[#allocation5 + $0xe8] sm:$0xff]
          %v11310 = vld [vmem:[#allocation5 + $0xf0] sm:$0xff]
          %v11311 = vld [vmem:[#allocation5 + $0xf8] sm:$0xff]
          %v11312 = vld [vmem:[#allocation5 + $0x100] sm:$0xff]
          %v11313 = vld [vmem:[#allocation5 + $0x108] sm:$0xff]
          %v11314 = vld [vmem:[#allocation5 + $0x110] sm:$0xff]
          %v11315 = vld [vmem:[#allocation5 + $0x118] sm:$0xff]
          %v11316 = vld [vmem:[#allocation5 + $0x120] sm:$0xff]
          %v11317 = vld [vmem:[#allocation5 + $0x128] sm:$0xff]
          %v11318 = vld [vmem:[#allocation5 + $0x130] sm:$0xff]
          %v11319 = vld [vmem:[#allocation5 + $0x138] sm:$0xff]
          %v11320 = vld [vmem:[#allocation5 + $0x140] sm:$0xff]
          %v11321 = vld [vmem:[#allocation5 + $0x148] sm:$0xff]
          %v11322 = vld [vmem:[#allocation5 + $0x150] sm:$0xff]
          %v11323 = vld [vmem:[#allocation5 + $0x158] sm:$0xff]
          %v11324 = vld [vmem:[#allocation5 + $0x160] sm:$0xff]
          %v11325 = vld [vmem:[#allocation5 + $0x168] sm:$0xff]
          %v11326 = vld [vmem:[#allocation5 + $0x170] sm:$0xff]
          %v11327 = vld [vmem:[#allocation5 + $0x178] sm:$0xff]
          %v11328 = vld [vmem:[#allocation5 + $0x180] sm:$0xff]
          %v11329 = vld [vmem:[#allocation5 + $0x188] sm:$0xff]
          %v11330 = vld [vmem:[#allocation5 + $0x190] sm:$0xff]
          %v11331 = vld [vmem:[#allocation5 + $0x198] sm:$0xff]
          %v11332 = vld [vmem:[#allocation5 + $0x1a0] sm:$0xff]
          %v11333 = vld [vmem:[#allocation5 + $0x1a8] sm:$0xff]
          %v11334 = vld [vmem:[#allocation5 + $0x1b0] sm:$0xff]
          %v11335 = vld [vmem:[#allocation5 + $0x1b8] sm:$0xff]
          %v11336 = vld [vmem:[#allocation5 + $0x1c0] sm:$0xff]
          %v11337 = vld [vmem:[#allocation5 + $0x1c8] sm:$0xff]
          %v11338 = vld [vmem:[#allocation5 + $0x1d0] sm:$0xff]
          %v11339 = vld [vmem:[#allocation5 + $0x1d8] sm:$0xff]
          %v11340 = vld [vmem:[#allocation5 + $0x1e0] sm:$0xff]
          %v11341 = vld [vmem:[#allocation5 + $0x1e8] sm:$0xff]
          %v11342 = vld [vmem:[#allocation5 + $0x1f0] sm:$0xff]
          %v11343 = vld [vmem:[#allocation5 + $0x1f8] sm:$0xff]
          %v11344 = vld [vmem:[#allocation15] sm:$0x3]
          %v11346 = vlaneseq
          %v11347 = vshrl.u32 %v11346, 7
          %v11348 = vsub.s32 0, %v11347
          %v11349 = vrot.slane %v11344, %v11348
          %v11350 = vlaneseq
          %v11351 = vshrl.u32 %v11350, 7
          %v11352 = vsub.s32 1, %v11351
          %v11353 = vrot.slane %v11344, %v11352
          %11356 = vmatprep.subr.bf16.mxu0 %v11281
          %11357 = vmatpush1.bf16.msra.mxu0 %v11280
          %11358 = vmatprep.subr.bf16.mxu0 %v11283
          %11359 = vmatpush1.bf16.msra.mxu0 %v11282
          %11360 = vmatprep.subr.bf16.mxu0 %v11285
          %11361 = vmatpush1.bf16.msra.mxu0 %v11284
          %11362 = vmatprep.subr.bf16.mxu0 %v11287
          %11363 = vmatpush1.bf16.msra.mxu0 %v11286
          %11364 = vmatprep.subr.bf16.mxu0 %v11289
          %11365 = vmatpush1.bf16.msra.mxu0 %v11288
          %11366 = vmatprep.subr.bf16.mxu0 %v11291
          %11367 = vmatpush1.bf16.msra.mxu0 %v11290
          %11368 = vmatprep.subr.bf16.mxu0 %v11293
          %11369 = vmatpush1.bf16.msra.mxu0 %v11292
          %11370 = vmatprep.subr.bf16.mxu0 %v11295
          %11371 = vmatpush1.bf16.msra.mxu0 %v11294
          %11372 = vmatprep.subr.bf16.mxu0 %v11297
          %11373 = vmatpush1.bf16.msra.mxu0 %v11296
          %11374 = vmatprep.subr.bf16.mxu0 %v11299
          %11375 = vmatpush1.bf16.msra.mxu0 %v11298
          %11376 = vmatprep.subr.bf16.mxu0 %v11301
          %11377 = vmatpush1.bf16.msra.mxu0 %v11300
          %11378 = vmatprep.subr.bf16.mxu0 %v11303
          %11379 = vmatpush1.bf16.msra.mxu0 %v11302
          %11380 = vmatprep.subr.bf16.mxu0 %v11305
          %11381 = vmatpush1.bf16.msra.mxu0 %v11304
          %11382 = vmatprep.subr.bf16.mxu0 %v11307
          %11383 = vmatpush1.bf16.msra.mxu0 %v11306
          %11384 = vmatprep.subr.bf16.mxu0 %v11309
          %11385 = vmatpush1.bf16.msra.mxu0 %v11308
          %11386 = vmatprep.subr.bf16.mxu0 %v11311
          %11387 = vmatpush1.bf16.msra.mxu0 %v11310
          %11388 = vmatprep.mubr.bf16.mxu0 %v11277
          %11389 = vmatmul.mubr.bf16.gmra.mrb[0].mxu0 %v11276
          %v11390 = vpop.f32.mrb[0].mxu0
          %v11391 = vadd.f32 %v11349, %v11390
          %v11392 = vpop.f32.mrb[0].mxu0
          %v11393 = vadd.f32 %v11353, %v11392
          %v11394 = vpop.f32.mrb[0].mxu0
          %v11395 = vpop.f32.mrb[0].mxu0
          %11396 = vdwg.mxu0
          %11397 = vmatprep.subr.bf16.mxu0 %v11313
          %11398 = vmatpush1.bf16.msra.mxu0 %v11312
          %11399 = vmatprep.subr.bf16.mxu0 %v11315
          %11400 = vmatpush1.bf16.msra.mxu0 %v11314
          %11401 = vmatprep.subr.bf16.mxu0 %v11317
          %11402 = vmatpush1.bf16.msra.mxu0 %v11316
          %11403 = vmatprep.subr.bf16.mxu0 %v11319
          %11404 = vmatpush1.bf16.msra.mxu0 %v11318
          %11405 = vmatprep.subr.bf16.mxu0 %v11321
          %11406 = vmatpush1.bf16.msra.mxu0 %v11320
          %11407 = vmatprep.subr.bf16.mxu0 %v11323
          %11408 = vmatpush1.bf16.msra.mxu0 %v11322
          %11409 = vmatprep.subr.bf16.mxu0 %v11325
          %11410 = vmatpush1.bf16.msra.mxu0 %v11324
          %11411 = vmatprep.subr.bf16.mxu0 %v11327
          %11412 = vmatpush1.bf16.msra.mxu0 %v11326
          %11413 = vmatprep.subr.bf16.mxu0 %v11329
          %11414 = vmatpush1.bf16.msra.mxu0 %v11328
          %11415 = vmatprep.subr.bf16.mxu0 %v11331
          %11416 = vmatpush1.bf16.msra.mxu0 %v11330
          %11417 = vmatprep.subr.bf16.mxu0 %v11333
          %11418 = vmatpush1.bf16.msra.mxu0 %v11332
          %11419 = vmatprep.subr.bf16.mxu0 %v11335
          %11420 = vmatpush1.bf16.msra.mxu0 %v11334
          %11421 = vmatprep.subr.bf16.mxu0 %v11337
          %11422 = vmatpush1.bf16.msra.mxu0 %v11336
          %11423 = vmatprep.subr.bf16.mxu0 %v11339
          %11424 = vmatpush1.bf16.msra.mxu0 %v11338
          %11425 = vmatprep.subr.bf16.mxu0 %v11341
          %11426 = vmatpush1.bf16.msra.mxu0 %v11340
          %11427 = vmatprep.subr.bf16.mxu0 %v11343
          %11428 = vmatpush1.bf16.msra.mxu0 %v11342
          %11429 = vmatprep.mubr.bf16.mxu0 %v11279
          %11430 = vmatmul.mubr.bf16.gmra.mrb[0].mxu0 %v11278
          %v11431 = vpop.f32.mrb[0].mxu0
          %v11432 = vadd.f32 %v11391, %v11431
          %v11433 = vpop.f32.mrb[0].mxu0
          %v11434 = vadd.f32 %v11393, %v11433
          %v11435 = vpop.f32.mrb[0].mxu0
          %v11436 = vpop.f32.mrb[0].mxu0
          %11437 = vdwg.mxu0
          %vm11438 = vcmp.gt.f32.partialorder %v11432, 0.0
          %vm11439 = vcmp.gt.f32.partialorder %v11434, 0.0
          %v11440 = vmul.f32 %v11432, 0.2
          %v11441 = vmul.f32 %v11434, 0.2
          %v11442 = vsel %vm11438, %v11432, %v11440
          %v11443 = vsel %vm11439, %v11434, %v11441
          %v11444 = vld [vmem:[#allocation16] sm:$0x3]
          %v11446 = vlaneseq
          %v11447 = vshrl.u32 %v11446, 7
          %v11448 = vsub.s32 0, %v11447
          %v11449 = vrot.slane %v11444, %v11448
          %v11450 = vlaneseq
          %v11451 = vshrl.u32 %v11450, 7
          %v11452 = vsub.s32 1, %v11451
          %v11453 = vrot.slane %v11444, %v11452
          %v11456 = vmul.f32 %v11442, %v11449
          %v11457 = vmul.f32 %v11443, %v11453
          %v11458 = vadd.f32 %v11456, %v11457
          %11459 = vadd.xlane.f32.xlu0 %v11458
          %v11460 = vpop.xlane.xlu0 %11459
          %v11461 = vld [vmem:[#allocation7] sm:$0x1]
          %v11463 = vlaneseq
          %v11464 = vshrl.u32 %v11463, 7
          %v11465 = vsub.s32 0, %v11464
          %v11466 = vrot.slane %v11461, %v11465
          %v11468 = vadd.f32 %v11460, %v11466
          %v11469 = vxor.u32 %v11468, 2147483648
          %v11470 = vmul.f32 %v11469, 1.442695
          %v11471 = vpow.pop %v11470
          %v11472 = vadd.f32 %v11471, 1.0
          %v11473 = vrcp.pop %v11472
          %v11474 = vmul.f32 1.0, %v11473
          %vm11475 = vcmask 7168
          %11476 = vst.msk [vmem:[%s11] sm:$0xff] %vm11475, %v11474
        $region84: #{discriminator_forward.1} parent=51 // pred_fallthru
          _
        // Predicated region
        $region85: #{discriminator_forward.1} parent=51 // pred_check
          %p11477 = pneg %p221
        $region86: #{discriminator_forward.1} parent=51 // pred_check_branch
          %11479 = sbr.rel (%p11477) target = $region88
        $region87: #{discriminator_forward.1} parent=51 // pred_region
          _
        $region88: #{discriminator_forward.1} parent=51 // pred_fallthru
          _
        // Predicated region
        $region89: #{discriminator_forward.1} parent=51 // pred_check
          %p11480 = pneg %p221
        $region90: #{discriminator_forward.1} parent=51 // pred_check_branch
          %11482 = sbr.rel (%p11480) target = $region92
        $region91: #{discriminator_forward.1} parent=51 // pred_region
          _
        $region92: #{discriminator_forward.1} parent=51 // pred_fallthru
          _
      $region52: #{discriminator_forward.1} parent=5 // pred_fallthru
        _
      %p11483 = scmp.le.s32.totalorder 2, %s25
      // Predicated region
      $region93: #{discriminator_forward.1} parent=5 // pred_check
        %p11484 = pneg %p11483
      $region94: #{discriminator_forward.1} parent=5 // pred_check_branch
        %11486 = sbr.rel (%p11484) target = $region96
      $region95: #{discriminator_forward.1} parent=5 // pred_region
        %s11487 = ssub.s32 %s25, 2
      $region96: #{discriminator_forward.1} parent=5 // pred_fallthru
        _
    $region6: #{discriminator_forward.1} parent=1 // loop_footer
      %s29 = sadd.s32 1, %s25
    $region7: #{discriminator_forward.1} parent=1 // loop_footer_branch
      %24 = sbr.rel target = $region3
    $region8: #{discriminator_forward.1} parent=1 // loop_exit
      _
    %11488 = vsyncpa [#allocation9], 1
    %s11489 = scalar_lea.sflag [#allocation9], 1
    %11490 = vsyncpa %s11489, 1
    %11491 = vsyncpa [#allocation11], 1
    %11492 = vsyncpa [#allocation14], 1
    %11493 = vsyncpa [#allocation17], 1
  %11494 = vsyncmov [#allocation6]
  %s11495 = vpop.sfrf %11494
  %p11496 = scmp.eq.s32.totalorder %s11495, 0
  %p11497 = pneg %p11496
  %11499 = shalt.err (%p11497)
  %s11500 = scalar_lea.sflag [#allocation6], 1
  %11501 = vsyncmov %s11500
  %s11502 = vpop.sfrf %11501
  %p11503 = scmp.eq.s32.totalorder %s11502, 0
  %p11504 = pneg %p11503
  %11506 = shalt.err (%p11504)
  %s11507 = scalar_lea.sflag [#allocation6], 2
  %11508 = vsyncmov %s11507
  %s11509 = vpop.sfrf %11508
  %p11510 = scmp.eq.s32.totalorder %s11509, 0
  %p11511 = pneg %p11510
  %11513 = shalt.err (%p11511)

</llo_original>
